<compile_context>
chip_gen: v7x
topology: tpu7x:2x2x1
jax: 0.10.0
libtpu: 0.0.40
codegen_flags: <defaults>
</compile_context>

<pallas_src>
import functools

import jax
import jax.numpy as jnp
import numpy as np
from jax import lax
from jax.experimental import pallas as pl
from jax.experimental.pallas import tpu as pltpu

BN_EPS = 1e-5


# --------------------------------------------------------------------------- #
# In-kernel helpers
# --------------------------------------------------------------------------- #
def _pool3_bias_elu(acc, width, bias):
    """MaxPool2d((3,1)) over H, then per-channel bias, then ELU.

    acc  : (Ho*width, C) f32, rows in row-major (h, w) order.
    bias : (1, C) f32 (folded BatchNorm bias).
    Returns (Hp*width, C) f32 with Hp = Ho // 3 (floor-trim like MaxPool2d).
    """
    m, c = acc.shape
    hp = m // (3 * width)
    t = acc[: hp * 3 * width].reshape(hp, 3 * width, c)
    y = jnp.maximum(jnp.maximum(t[:, :width], t[:, width:2 * width]),
                    t[:, 2 * width:3 * width])
    y = y.reshape(hp * width, c) + bias        # bias AFTER the max (exact, 1/3 of the adds)
    return jnp.where(y > 0.0, y, jnp.exp(y) - 1.0)   # ELU(alpha=1)


def _fused_frontend_kernel(p1_ref, w1_ref, w2_ref, w3_ref, b1_ref, b2_ref, b3_ref,
                           o_ref, pad_ref, *, width):
    f32 = jnp.float32
    bf16 = jnp.bfloat16
    w = width

    # -------- stage 1: Conv2d(1->20, (3,3), pad (0,1)) as one im2col matmul --------
    # patches are built on the host (Cin=1 -> K=9, un-padded, bf16: tiny HBM stream).
    acc1 = jnp.dot(p1_ref[0], w1_ref[...], preferred_element_type=f32)   # (Ho1*W, C) f32
    a1 = _pool3_bias_elu(acc1, w, b1_ref[...]).astype(bf16)              # (Hp1*W, C)

    # -------- stage 2: Conv2d(20->20, (20,1)) as 20 shifted matmuls ----------------
    # An H-shift of di is a contiguous row-range shift of di*W in the (H*W, C) layout.
    kh2 = w2_ref.shape[0]
    ho2 = a1.shape[0] // w - kh2 + 1
    acc2 = jnp.dot(a1[0:ho2 * w], w2_ref[0], preferred_element_type=f32)
    for di in range(1, kh2):
        acc2 = acc2 + jnp.dot(a1[di * w:di * w + ho2 * w], w2_ref[di],
                              preferred_element_type=f32)
    a2 = _pool3_bias_elu(acc2, w, b2_ref[...])                           # (Hp2*W, C) f32

    # -------- stage 3: Conv2d(20->out, (3,3), pad (0,1)) as 9 shifted matmuls ------
    # Width-pad the stage-2 activation inside VMEM (scratch), then slide the 3x3 taps.
    hp2, _, c = pad_ref.shape
    pad_ref[...] = jnp.zeros_like(pad_ref)
    pad_ref[:, 1:1 + w, :] = a2.reshape(hp2, w, c)
    ho3 = hp2 - 2
    acc3 = None
    for di in range(3):
        for dj in range(3):
            sl = pad_ref[di:di + ho3, dj:dj + w, :].astype(bf16).reshape(ho3 * w, c)
            term = jnp.dot(sl, w3_ref[di * 3 + dj], preferred_element_type=f32)
            acc3 = term if acc3 is None else acc3 + term
    y = _pool3_bias_elu(acc3, w, b3_ref[...])                            # (Hp3*W, Cout) f32
    o_ref[0] = y.astype(o_ref.dtype)


# --------------------------------------------------------------------------- #
# Host-side wrapper: BN folding, stage-1 im2col, single fused pallas_call
# --------------------------------------------------------------------------- #
def _fold_bn(weight, bn):
    gamma, beta, mean, var = bn
    scale = gamma / jnp.sqrt(var + BN_EPS)                       # (Cout,)
    bias = (beta - mean * scale).reshape(1, -1).astype(jnp.float32)
    return weight * scale[:, None, None, None], bias             # scale folded into conv weight


@jax.jit
def conv_frontend(x_nchw, params):
    n, cin, h, w = x_nchw.shape
    assert cin == 1, "ConvFrontEnd expects a single input channel"
    c = params["w1"].shape[0]           # 20 hidden channels
    cout = params["w3"].shape[0]

    ho1 = h - 2
    hp1 = ho1 // 3
    ho2 = hp1 - params["w2"].shape[2] + 1
    hp2 = ho2 // 3
    ho3 = hp2 - 2
    hp3 = ho3 // 3
    assert hp3 >= 1, "input height too small for the three conv/pool stages"

    # Fold BatchNorm(eval) scale into the conv weights; keep the per-channel bias.
    w1f, b1 = _fold_bn(params["w1"], params["bn1"])
    w2f, b2 = _fold_bn(params["w2"], params["bn2"])
    w3f, b3 = _fold_bn(params["w3"], params["bn3"])

    # (Cout, Cin, kh, kw) -> tap-major (kh*kw, Cin, Cout) matrices, bf16 for the MXU.
    w1m = jnp.transpose(w1f, (2, 3, 1, 0)).reshape(9, c).astype(jnp.bfloat16)        # Cin == 1
    w2m = jnp.transpose(w2f, (2, 3, 1, 0)).reshape(-1, c, c).astype(jnp.bfloat16)    # (20, C, C)
    w3m = jnp.transpose(w3f, (2, 3, 1, 0)).reshape(9, c, cout).astype(jnp.bfloat16)  # (9, C, Cout)

    # Stage-1 im2col on the host: Cin=1 so K=9, un-padded, bf16 (a few tens of KB of HBM).
    xw = jnp.pad(x_nchw[:, 0], ((0, 0), (0, 0), (1, 1)))          # 'same' width padding
    cols = [xw[:, di:di + ho1, dj:dj + w] for di in range(3) for dj in range(3)]
    p1 = jnp.stack(cols, axis=-1).reshape(n, ho1 * w, 9).astype(jnp.bfloat16)

    kernel = functools.partial(_fused_frontend_kernel, width=w)
    out = pl.pallas_call(
        kernel,
        out_shape=jax.ShapeDtypeStruct((n, hp3 * w, cout), jnp.float32),
        grid_spec=pltpu.PrefetchScalarGridSpec(
            num_scalar_prefetch=0,
            grid=(n,),
            in_specs=[
                pl.BlockSpec((1, ho1 * w, 9), lambda i: (i, 0, 0)),   # stage-1 patches (per batch)
                pl.BlockSpec((9, c), lambda i: (0, 0)),               # folded weights (resident)
                pl.BlockSpec(w2m.shape, lambda i: (0, 0, 0)),
                pl.BlockSpec((9, c, cout), lambda i: (0, 0, 0)),
                pl.BlockSpec((1, c), lambda i: (0, 0)),               # folded BN biases
                pl.BlockSpec((1, c), lambda i: (0, 0)),
                pl.BlockSpec((1, cout), lambda i: (0, 0)),
            ],
            out_specs=pl.BlockSpec((1, hp3 * w, cout), lambda i: (i, 0, 0)),
            scratch_shapes=[pltpu.VMEM((hp2, w + 2, c), jnp.float32)],  # width-padded stage-2 act
        ),
        compiler_params=pltpu.CompilerParams(dimension_semantics=("parallel",)),
    )(p1, w1m, w2m, w3m, b1, b2, b3)

    return jnp.transpose(out.reshape(n, hp3, w, cout), (0, 3, 1, 2))   # -> NCHW


# --------------------------------------------------------------------------- #
# Pure-JAX f32 reference (correctness check only)
# --------------------------------------------------------------------------- #
def _ref_stage(x_nchw, weight, gamma, beta, mean, var, pw):
    y = lax.conv_general_dilated(
        x_nchw, weight, window_strides=(1, 1), padding=((0, 0), (pw, pw)),
        dimension_numbers=("NCHW", "OIHW", "NCHW"), precision=lax.Precision.HIGHEST)
    scale = gamma / jnp.sqrt(var + BN_EPS)
    bias = beta - mean * scale
    y = y * scale[None, :, None, None] + bias[None, :, None, None]
    n, c, h, w = y.shape
    hp = h // 3
    y = y[:, :, : hp * 3].reshape(n, c, hp, 3, w).max(axis=3)
    return jnp.where(y > 0, y, jnp.exp(y) - 1.0)


def ref_forward(x, params):
    x = _ref_stage(x, params["w1"], *params["bn1"], pw=1)
    x = _ref_stage(x, params["w2"], *params["bn2"], pw=0)
    x = _ref_stage(x, params["w3"], *params["bn3"], pw=1)
    return x


# --------------------------------------------------------------------------- #
def make_params(key, out_features=20):
    ks = jax.random.split(key, 12)

    def bn(k, c):
        k1, k2, k3, k4 = jax.random.split(k, 4)
        gamma = 1.0 + 0.1 * jax.random.normal(k1, (c,), jnp.float32)
        beta = 0.1 * jax.random.normal(k2, (c,), jnp.float32)
        mean = 0.1 * jax.random.normal(k3, (c,), jnp.float32)
        var = jax.random.uniform(k4, (c,), jnp.float32, 0.5, 1.5)
        return (gamma, beta, mean, var)

    return {
        "w1": 0.2 * jax.random.normal(ks[0], (20, 1, 3, 3), jnp.float32),
        "bn1": bn(ks[1], 20),
        "w2": 0.1 * jax.random.normal(ks[2], (20, 20, 20, 1), jnp.float32),
        "bn2": bn(ks[3], 20),
        "w3": 0.15 * jax.random.normal(ks[4], (out_features, 20, 3, 3), jnp.float32),
        "bn3": bn(ks[5], out_features),
    }


if __name__ == "__main__":
    key = jax.random.PRNGKey(0)
    kx, kp = jax.random.split(key)

    # Smallest H that survives the three (conv, pool/3) stages with the (20,1) conv:
    # 104 -> conv3x3: 102 -> pool: 34 -> conv20x1: 15 -> pool: 5 -> conv3x3: 3 -> pool: 1
    N, C, H, W = 2, 1, 104, 16
    x = jax.random.normal(kx, (N, C, H, W), jnp.float32)
    params = make_params(kp)

    out = jax.block_until_ready(conv_frontend(x, params))
    ref = ref_forward(x, params)
    assert out.shape == ref.shape == (N, 20, 1, W), (out.shape, ref.shape)

    # Tolerance sized for bf16 patch/weight quantization feeding two wide (K=400 / K=180)
    # contractions (f32 accumulation); the all-f32 variant of this kernel matches to ~1e-5.
    np.testing.assert_allclose(np.asarray(out), np.asarray(ref), rtol=5e-2, atol=1e-1)

    print("KERNEL_OK")
</pallas_src>

<mosaic_0001>
module attributes {stable_mosaic.version = 11 : i64} {
  func.func @_fused_frontend_kernel(%arg0: i32, %arg1: memref<1x1632x9xbf16, #tpu.memory_space<vmem>>, %arg2: memref<9x20xbf16, #tpu.memory_space<vmem>>, %arg3: memref<20x20x20xbf16, #tpu.memory_space<vmem>>, %arg4: memref<9x20x20xbf16, #tpu.memory_space<vmem>>, %arg5: memref<1x20xf32, #tpu.memory_space<vmem>>, %arg6: memref<1x20xf32, #tpu.memory_space<vmem>>, %arg7: memref<1x20xf32, #tpu.memory_space<vmem>>, %arg8: memref<1x16x20xf32, #tpu.memory_space<vmem>>, %arg9: memref<5x18x20xf32, #tpu.memory_space<vmem>>) attributes {dimension_semantics = [#tpu.dimension_semantics<parallel>], iteration_bounds = array<i64: 2>, scalar_prefetch = 0 : i64, scratch_operands = 1 : i64, tpu.core_type = #tpu.core_type<tc>, window_params = [{transform_indices = @transform_0, window_bounds = array<i64: 1, 1632, 9>}, {pipeline_mode = #tpu.pipeline_mode<synchronous>, transform_indices = @transform_1, window_bounds = array<i64: 9, 20>}, {pipeline_mode = #tpu.pipeline_mode<synchronous>, transform_indices = @transform_2, window_bounds = array<i64: 20, 20, 20>}, {pipeline_mode = #tpu.pipeline_mode<synchronous>, transform_indices = @transform_3, window_bounds = array<i64: 9, 20, 20>}, {pipeline_mode = #tpu.pipeline_mode<synchronous>, transform_indices = @transform_4, window_bounds = array<i64: 1, 20>}, {pipeline_mode = #tpu.pipeline_mode<synchronous>, transform_indices = @transform_5, window_bounds = array<i64: 1, 20>}, {pipeline_mode = #tpu.pipeline_mode<synchronous>, transform_indices = @transform_6, window_bounds = array<i64: 1, 20>}, {transform_indices = @transform_7, window_bounds = array<i64: 1, 16, 20>}]} {
    %c0 = arith.constant 0 : index
    %c0_0 = arith.constant 0 : index
    %c0_1 = arith.constant 0 : index
    %0 = vector.load %arg1[%c0, %c0_0, %c0_1] : memref<1x1632x9xbf16, #tpu.memory_space<vmem>>, vector<1x1632x9xbf16>
    %1 = vector.shape_cast %0 : vector<1x1632x9xbf16> to vector<1632x9xbf16>
    %c0_2 = arith.constant 0 : index
    %c0_3 = arith.constant 0 : index
    %2 = vector.load %arg2[%c0_2, %c0_3] : memref<9x20xbf16, #tpu.memory_space<vmem>>, vector<9x20xbf16>
    %cst = arith.constant dense<0.000000e+00> : vector<1632x20xf32>
    %3 = tpu.matmul %1, %2, %cst {dimension_numbers = #tpu.dot_dimension_numbers<[1], [0], [0], [1], [0, 0, 1, 1], [], []>} : vector<1632x9xbf16>, vector<9x20xbf16>, vector<1632x20xf32> -> vector<1632x20xf32>
    %c0_4 = arith.constant 0 : index
    %c0_5 = arith.constant 0 : index
    %4 = vector.load %arg5[%c0_4, %c0_5] : memref<1x20xf32, #tpu.memory_space<vmem>>, vector<1x20xf32>
    %5 = vector.shape_cast %3 : vector<1632x20xf32> to vector<34x48x20xf32>
    %6 = vector.extract_strided_slice %5 {offsets = [0, 0, 0], sizes = [34, 16, 20], strides = [1, 1, 1]} : vector<34x48x20xf32> to vector<34x16x20xf32>
    %7 = vector.extract_strided_slice %5 {offsets = [0, 16, 0], sizes = [34, 16, 20], strides = [1, 1, 1]} : vector<34x48x20xf32> to vector<34x16x20xf32>
    %8 = arith.maximumf %6, %7 : vector<34x16x20xf32>
    %9 = vector.extract_strided_slice %5 {offsets = [0, 32, 0], sizes = [34, 16, 20], strides = [1, 1, 1]} : vector<34x48x20xf32> to vector<34x16x20xf32>
    %10 = arith.maximumf %8, %9 : vector<34x16x20xf32>
    %11 = vector.shape_cast %10 : vector<34x16x20xf32> to vector<544x20xf32>
    %12 = vector.broadcast %4 : vector<1x20xf32> to vector<544x20xf32>
    %13 = arith.addf %11, %12 : vector<544x20xf32>
    %cst_6 = arith.constant 0.000000e+00 : f32
    %14 = vector.broadcast %cst_6 : f32 to vector<544x20xf32>
    %15 = arith.cmpf ogt, %13, %14 : vector<544x20xf32>
    %16 = math.exp %13 : vector<544x20xf32>
    %cst_7 = arith.constant 1.000000e+00 : f32
    %17 = vector.broadcast %cst_7 : f32 to vector<544x20xf32>
    %18 = arith.subf %16, %17 : vector<544x20xf32>
    %19 = arith.select %15, %13, %18 : vector<544x20xi1>, vector<544x20xf32>
    %20 = arith.truncf %19 : vector<544x20xf32> to vector<544x20xbf16>
    %21 = vector.extract_strided_slice %20 {offsets = [0, 0], sizes = [240, 20], strides = [1, 1]} : vector<544x20xbf16> to vector<240x20xbf16>
    %c0_8 = arith.constant 0 : index
    %c0_9 = arith.constant 0 : index
    %c0_10 = arith.constant 0 : index
    %22 = vector.load %arg3[%c0_8, %c0_9, %c0_10] : memref<20x20x20xbf16, #tpu.memory_space<vmem>>, vector<1x20x20xbf16>
    %23 = vector.shape_cast %22 : vector<1x20x20xbf16> to vector<20x20xbf16>
    %cst_11 = arith.constant dense<0.000000e+00> : vector<240x20xf32>
    %24 = tpu.matmul %21, %23, %cst_11 {dimension_numbers = #tpu.dot_dimension_numbers<[1], [0], [0], [1], [0, 0, 1, 1], [], []>} : vector<240x20xbf16>, vector<20x20xbf16>, vector<240x20xf32> -> vector<240x20xf32>
    %25 = vector.extract_strided_slice %20 {offsets = [16, 0], sizes = [240, 20], strides = [1, 1]} : vector<544x20xbf16> to vector<240x20xbf16>
    %c1 = arith.constant 1 : index
    %c0_12 = arith.constant 0 : index
    %c0_13 = arith.constant 0 : index
    %26 = vector.load %arg3[%c1, %c0_12, %c0_13] : memref<20x20x20xbf16, #tpu.memory_space<vmem>>, vector<1x20x20xbf16>
    %27 = vector.shape_cast %26 : vector<1x20x20xbf16> to vector<20x20xbf16>
    %cst_14 = arith.constant dense<0.000000e+00> : vector<240x20xf32>
    %28 = tpu.matmul %25, %27, %cst_14 {dimension_numbers = #tpu.dot_dimension_numbers<[1], [0], [0], [1], [0, 0, 1, 1], [], []>} : vector<240x20xbf16>, vector<20x20xbf16>, vector<240x20xf32> -> vector<240x20xf32>
    %29 = arith.addf %24, %28 : vector<240x20xf32>
    %30 = vector.extract_strided_slice %20 {offsets = [32, 0], sizes = [240, 20], strides = [1, 1]} : vector<544x20xbf16> to vector<240x20xbf16>
    %c2 = arith.constant 2 : index
    %c0_15 = arith.constant 0 : index
    %c0_16 = arith.constant 0 : index
    %31 = vector.load %arg3[%c2, %c0_15, %c0_16] : memref<20x20x20xbf16, #tpu.memory_space<vmem>>, vector<1x20x20xbf16>
    %32 = vector.shape_cast %31 : vector<1x20x20xbf16> to vector<20x20xbf16>
    %cst_17 = arith.constant dense<0.000000e+00> : vector<240x20xf32>
    %33 = tpu.matmul %30, %32, %cst_17 {dimension_numbers = #tpu.dot_dimension_numbers<[1], [0], [0], [1], [0, 0, 1, 1], [], []>} : vector<240x20xbf16>, vector<20x20xbf16>, vector<240x20xf32> -> vector<240x20xf32>
    %34 = arith.addf %29, %33 : vector<240x20xf32>
    %35 = vector.extract_strided_slice %20 {offsets = [48, 0], sizes = [240, 20], strides = [1, 1]} : vector<544x20xbf16> to vector<240x20xbf16>
    %c3 = arith.constant 3 : index
    %c0_18 = arith.constant 0 : index
    %c0_19 = arith.constant 0 : index
    %36 = vector.load %arg3[%c3, %c0_18, %c0_19] : memref<20x20x20xbf16, #tpu.memory_space<vmem>>, vector<1x20x20xbf16>
    %37 = vector.shape_cast %36 : vector<1x20x20xbf16> to vector<20x20xbf16>
    %cst_20 = arith.constant dense<0.000000e+00> : vector<240x20xf32>
    %38 = tpu.matmul %35, %37, %cst_20 {dimension_numbers = #tpu.dot_dimension_numbers<[1], [0], [0], [1], [0, 0, 1, 1], [], []>} : vector<240x20xbf16>, vector<20x20xbf16>, vector<240x20xf32> -> vector<240x20xf32>
    %39 = arith.addf %34, %38 : vector<240x20xf32>
    %40 = vector.extract_strided_slice %20 {offsets = [64, 0], sizes = [240, 20], strides = [1, 1]} : vector<544x20xbf16> to vector<240x20xbf16>
    %c4 = arith.constant 4 : index
    %c0_21 = arith.constant 0 : index
    %c0_22 = arith.constant 0 : index
    %41 = vector.load %arg3[%c4, %c0_21, %c0_22] : memref<20x20x20xbf16, #tpu.memory_space<vmem>>, vector<1x20x20xbf16>
    %42 = vector.shape_cast %41 : vector<1x20x20xbf16> to vector<20x20xbf16>
    %cst_23 = arith.constant dense<0.000000e+00> : vector<240x20xf32>
    %43 = tpu.matmul %40, %42, %cst_23 {dimension_numbers = #tpu.dot_dimension_numbers<[1], [0], [0], [1], [0, 0, 1, 1], [], []>} : vector<240x20xbf16>, vector<20x20xbf16>, vector<240x20xf32> -> vector<240x20xf32>
    %44 = arith.addf %39, %43 : vector<240x20xf32>
    %45 = vector.extract_strided_slice %20 {offsets = [80, 0], sizes = [240, 20], strides = [1, 1]} : vector<544x20xbf16> to vector<240x20xbf16>
    %c5 = arith.constant 5 : index
    %c0_24 = arith.constant 0 : index
    %c0_25 = arith.constant 0 : index
    %46 = vector.load %arg3[%c5, %c0_24, %c0_25] : memref<20x20x20xbf16, #tpu.memory_space<vmem>>, vector<1x20x20xbf16>
    %47 = vector.shape_cast %46 : vector<1x20x20xbf16> to vector<20x20xbf16>
    %cst_26 = arith.constant dense<0.000000e+00> : vector<240x20xf32>
    %48 = tpu.matmul %45, %47, %cst_26 {dimension_numbers = #tpu.dot_dimension_numbers<[1], [0], [0], [1], [0, 0, 1, 1], [], []>} : vector<240x20xbf16>, vector<20x20xbf16>, vector<240x20xf32> -> vector<240x20xf32>
    %49 = arith.addf %44, %48 : vector<240x20xf32>
    %50 = vector.extract_strided_slice %20 {offsets = [96, 0], sizes = [240, 20], strides = [1, 1]} : vector<544x20xbf16> to vector<240x20xbf16>
    %c6 = arith.constant 6 : index
    %c0_27 = arith.constant 0 : index
    %c0_28 = arith.constant 0 : index
    %51 = vector.load %arg3[%c6, %c0_27, %c0_28] : memref<20x20x20xbf16, #tpu.memory_space<vmem>>, vector<1x20x20xbf16>
    %52 = vector.shape_cast %51 : vector<1x20x20xbf16> to vector<20x20xbf16>
    %cst_29 = arith.constant dense<0.000000e+00> : vector<240x20xf32>
    %53 = tpu.matmul %50, %52, %cst_29 {dimension_numbers = #tpu.dot_dimension_numbers<[1], [0], [0], [1], [0, 0, 1, 1], [], []>} : vector<240x20xbf16>, vector<20x20xbf16>, vector<240x20xf32> -> vector<240x20xf32>
    %54 = arith.addf %49, %53 : vector<240x20xf32>
    %55 = vector.extract_strided_slice %20 {offsets = [112, 0], sizes = [240, 20], strides = [1, 1]} : vector<544x20xbf16> to vector<240x20xbf16>
    %c7 = arith.constant 7 : index
    %c0_30 = arith.constant 0 : index
    %c0_31 = arith.constant 0 : index
    %56 = vector.load %arg3[%c7, %c0_30, %c0_31] : memref<20x20x20xbf16, #tpu.memory_space<vmem>>, vector<1x20x20xbf16>
    %57 = vector.shape_cast %56 : vector<1x20x20xbf16> to vector<20x20xbf16>
    %cst_32 = arith.constant dense<0.000000e+00> : vector<240x20xf32>
    %58 = tpu.matmul %55, %57, %cst_32 {dimension_numbers = #tpu.dot_dimension_numbers<[1], [0], [0], [1], [0, 0, 1, 1], [], []>} : vector<240x20xbf16>, vector<20x20xbf16>, vector<240x20xf32> -> vector<240x20xf32>
    %59 = arith.addf %54, %58 : vector<240x20xf32>
    %60 = vector.extract_strided_slice %20 {offsets = [128, 0], sizes = [240, 20], strides = [1, 1]} : vector<544x20xbf16> to vector<240x20xbf16>
    %c8 = arith.constant 8 : index
    %c0_33 = arith.constant 0 : index
    %c0_34 = arith.constant 0 : index
    %61 = vector.load %arg3[%c8, %c0_33, %c0_34] : memref<20x20x20xbf16, #tpu.memory_space<vmem>>, vector<1x20x20xbf16>
    %62 = vector.shape_cast %61 : vector<1x20x20xbf16> to vector<20x20xbf16>
    %cst_35 = arith.constant dense<0.000000e+00> : vector<240x20xf32>
    %63 = tpu.matmul %60, %62, %cst_35 {dimension_numbers = #tpu.dot_dimension_numbers<[1], [0], [0], [1], [0, 0, 1, 1], [], []>} : vector<240x20xbf16>, vector<20x20xbf16>, vector<240x20xf32> -> vector<240x20xf32>
    %64 = arith.addf %59, %63 : vector<240x20xf32>
    %65 = vector.extract_strided_slice %20 {offsets = [144, 0], sizes = [240, 20], strides = [1, 1]} : vector<544x20xbf16> to vector<240x20xbf16>
    %c9 = arith.constant 9 : index
    %c0_36 = arith.constant 0 : index
    %c0_37 = arith.constant 0 : index
    %66 = vector.load %arg3[%c9, %c0_36, %c0_37] : memref<20x20x20xbf16, #tpu.memory_space<vmem>>, vector<1x20x20xbf16>
    %67 = vector.shape_cast %66 : vector<1x20x20xbf16> to vector<20x20xbf16>
    %cst_38 = arith.constant dense<0.000000e+00> : vector<240x20xf32>
    %68 = tpu.matmul %65, %67, %cst_38 {dimension_numbers = #tpu.dot_dimension_numbers<[1], [0], [0], [1], [0, 0, 1, 1], [], []>} : vector<240x20xbf16>, vector<20x20xbf16>, vector<240x20xf32> -> vector<240x20xf32>
    %69 = arith.addf %64, %68 : vector<240x20xf32>
    %70 = vector.extract_strided_slice %20 {offsets = [160, 0], sizes = [240, 20], strides = [1, 1]} : vector<544x20xbf16> to vector<240x20xbf16>
    %c10 = arith.constant 10 : index
    %c0_39 = arith.constant 0 : index
    %c0_40 = arith.constant 0 : index
    %71 = vector.load %arg3[%c10, %c0_39, %c0_40] : memref<20x20x20xbf16, #tpu.memory_space<vmem>>, vector<1x20x20xbf16>
    %72 = vector.shape_cast %71 : vector<1x20x20xbf16> to vector<20x20xbf16>
    %cst_41 = arith.constant dense<0.000000e+00> : vector<240x20xf32>
    %73 = tpu.matmul %70, %72, %cst_41 {dimension_numbers = #tpu.dot_dimension_numbers<[1], [0], [0], [1], [0, 0, 1, 1], [], []>} : vector<240x20xbf16>, vector<20x20xbf16>, vector<240x20xf32> -> vector<240x20xf32>
    %74 = arith.addf %69, %73 : vector<240x20xf32>
    %75 = vector.extract_strided_slice %20 {offsets = [176, 0], sizes = [240, 20], strides = [1, 1]} : vector<544x20xbf16> to vector<240x20xbf16>
    %c11 = arith.constant 11 : index
    %c0_42 = arith.constant 0 : index
    %c0_43 = arith.constant 0 : index
    %76 = vector.load %arg3[%c11, %c0_42, %c0_43] : memref<20x20x20xbf16, #tpu.memory_space<vmem>>, vector<1x20x20xbf16>
    %77 = vector.shape_cast %76 : vector<1x20x20xbf16> to vector<20x20xbf16>
    %cst_44 = arith.constant dense<0.000000e+00> : vector<240x20xf32>
    %78 = tpu.matmul %75, %77, %cst_44 {dimension_numbers = #tpu.dot_dimension_numbers<[1], [0], [0], [1], [0, 0, 1, 1], [], []>} : vector<240x20xbf16>, vector<20x20xbf16>, vector<240x20xf32> -> vector<240x20xf32>
    %79 = arith.addf %74, %78 : vector<240x20xf32>
    %80 = vector.extract_strided_slice %20 {offsets = [192, 0], sizes = [240, 20], strides = [1, 1]} : vector<544x20xbf16> to vector<240x20xbf16>
    %c12 = arith.constant 12 : index
    %c0_45 = arith.constant 0 : index
    %c0_46 = arith.constant 0 : index
    %81 = vector.load %arg3[%c12, %c0_45, %c0_46] : memref<20x20x20xbf16, #tpu.memory_space<vmem>>, vector<1x20x20xbf16>
    %82 = vector.shape_cast %81 : vector<1x20x20xbf16> to vector<20x20xbf16>
    %cst_47 = arith.constant dense<0.000000e+00> : vector<240x20xf32>
    %83 = tpu.matmul %80, %82, %cst_47 {dimension_numbers = #tpu.dot_dimension_numbers<[1], [0], [0], [1], [0, 0, 1, 1], [], []>} : vector<240x20xbf16>, vector<20x20xbf16>, vector<240x20xf32> -> vector<240x20xf32>
    %84 = arith.addf %79, %83 : vector<240x20xf32>
    %85 = vector.extract_strided_slice %20 {offsets = [208, 0], sizes = [240, 20], strides = [1, 1]} : vector<544x20xbf16> to vector<240x20xbf16>
    %c13 = arith.constant 13 : index
    %c0_48 = arith.constant 0 : index
    %c0_49 = arith.constant 0 : index
    %86 = vector.load %arg3[%c13, %c0_48, %c0_49] : memref<20x20x20xbf16, #tpu.memory_space<vmem>>, vector<1x20x20xbf16>
    %87 = vector.shape_cast %86 : vector<1x20x20xbf16> to vector<20x20xbf16>
    %cst_50 = arith.constant dense<0.000000e+00> : vector<240x20xf32>
    %88 = tpu.matmul %85, %87, %cst_50 {dimension_numbers = #tpu.dot_dimension_numbers<[1], [0], [0], [1], [0, 0, 1, 1], [], []>} : vector<240x20xbf16>, vector<20x20xbf16>, vector<240x20xf32> -> vector<240x20xf32>
    %89 = arith.addf %84, %88 : vector<240x20xf32>
    %90 = vector.extract_strided_slice %20 {offsets = [224, 0], sizes = [240, 20], strides = [1, 1]} : vector<544x20xbf16> to vector<240x20xbf16>
    %c14 = arith.constant 14 : index
    %c0_51 = arith.constant 0 : index
    %c0_52 = arith.constant 0 : index
    %91 = vector.load %arg3[%c14, %c0_51, %c0_52] : memref<20x20x20xbf16, #tpu.memory_space<vmem>>, vector<1x20x20xbf16>
    %92 = vector.shape_cast %91 : vector<1x20x20xbf16> to vector<20x20xbf16>
    %cst_53 = arith.constant dense<0.000000e+00> : vector<240x20xf32>
    %93 = tpu.matmul %90, %92, %cst_53 {dimension_numbers = #tpu.dot_dimension_numbers<[1], [0], [0], [1], [0, 0, 1, 1], [], []>} : vector<240x20xbf16>, vector<20x20xbf16>, vector<240x20xf32> -> vector<240x20xf32>
    %94 = arith.addf %89, %93 : vector<240x20xf32>
    %95 = vector.extract_strided_slice %20 {offsets = [240, 0], sizes = [240, 20], strides = [1, 1]} : vector<544x20xbf16> to vector<240x20xbf16>
    %c15 = arith.constant 15 : index
    %c0_54 = arith.constant 0 : index
    %c0_55 = arith.constant 0 : index
    %96 = vector.load %arg3[%c15, %c0_54, %c0_55] : memref<20x20x20xbf16, #tpu.memory_space<vmem>>, vector<1x20x20xbf16>
    %97 = vector.shape_cast %96 : vector<1x20x20xbf16> to vector<20x20xbf16>
    %cst_56 = arith.constant dense<0.000000e+00> : vector<240x20xf32>
    %98 = tpu.matmul %95, %97, %cst_56 {dimension_numbers = #tpu.dot_dimension_numbers<[1], [0], [0], [1], [0, 0, 1, 1], [], []>} : vector<240x20xbf16>, vector<20x20xbf16>, vector<240x20xf32> -> vector<240x20xf32>
    %99 = arith.addf %94, %98 : vector<240x20xf32>
    %100 = vector.extract_strided_slice %20 {offsets = [256, 0], sizes = [240, 20], strides = [1, 1]} : vector<544x20xbf16> to vector<240x20xbf16>
    %c16 = arith.constant 16 : index
    %c0_57 = arith.constant 0 : index
    %c0_58 = arith.constant 0 : index
    %101 = vector.load %arg3[%c16, %c0_57, %c0_58] : memref<20x20x20xbf16, #tpu.memory_space<vmem>>, vector<1x20x20xbf16>
    %102 = vector.shape_cast %101 : vector<1x20x20xbf16> to vector<20x20xbf16>
    %cst_59 = arith.constant dense<0.000000e+00> : vector<240x20xf32>
    %103 = tpu.matmul %100, %102, %cst_59 {dimension_numbers = #tpu.dot_dimension_numbers<[1], [0], [0], [1], [0, 0, 1, 1], [], []>} : vector<240x20xbf16>, vector<20x20xbf16>, vector<240x20xf32> -> vector<240x20xf32>
    %104 = arith.addf %99, %103 : vector<240x20xf32>
    %105 = vector.extract_strided_slice %20 {offsets = [272, 0], sizes = [240, 20], strides = [1, 1]} : vector<544x20xbf16> to vector<240x20xbf16>
    %c17 = arith.constant 17 : index
    %c0_60 = arith.constant 0 : index
    %c0_61 = arith.constant 0 : index
    %106 = vector.load %arg3[%c17, %c0_60, %c0_61] : memref<20x20x20xbf16, #tpu.memory_space<vmem>>, vector<1x20x20xbf16>
    %107 = vector.shape_cast %106 : vector<1x20x20xbf16> to vector<20x20xbf16>
    %cst_62 = arith.constant dense<0.000000e+00> : vector<240x20xf32>
    %108 = tpu.matmul %105, %107, %cst_62 {dimension_numbers = #tpu.dot_dimension_numbers<[1], [0], [0], [1], [0, 0, 1, 1], [], []>} : vector<240x20xbf16>, vector<20x20xbf16>, vector<240x20xf32> -> vector<240x20xf32>
    %109 = arith.addf %104, %108 : vector<240x20xf32>
    %110 = vector.extract_strided_slice %20 {offsets = [288, 0], sizes = [240, 20], strides = [1, 1]} : vector<544x20xbf16> to vector<240x20xbf16>
    %c18 = arith.constant 18 : index
    %c0_63 = arith.constant 0 : index
    %c0_64 = arith.constant 0 : index
    %111 = vector.load %arg3[%c18, %c0_63, %c0_64] : memref<20x20x20xbf16, #tpu.memory_space<vmem>>, vector<1x20x20xbf16>
    %112 = vector.shape_cast %111 : vector<1x20x20xbf16> to vector<20x20xbf16>
    %cst_65 = arith.constant dense<0.000000e+00> : vector<240x20xf32>
    %113 = tpu.matmul %110, %112, %cst_65 {dimension_numbers = #tpu.dot_dimension_numbers<[1], [0], [0], [1], [0, 0, 1, 1], [], []>} : vector<240x20xbf16>, vector<20x20xbf16>, vector<240x20xf32> -> vector<240x20xf32>
    %114 = arith.addf %109, %113 : vector<240x20xf32>
    %115 = vector.extract_strided_slice %20 {offsets = [304, 0], sizes = [240, 20], strides = [1, 1]} : vector<544x20xbf16> to vector<240x20xbf16>
    %c19 = arith.constant 19 : index
    %c0_66 = arith.constant 0 : index
    %c0_67 = arith.constant 0 : index
    %116 = vector.load %arg3[%c19, %c0_66, %c0_67] : memref<20x20x20xbf16, #tpu.memory_space<vmem>>, vector<1x20x20xbf16>
    %117 = vector.shape_cast %116 : vector<1x20x20xbf16> to vector<20x20xbf16>
    %cst_68 = arith.constant dense<0.000000e+00> : vector<240x20xf32>
    %118 = tpu.matmul %115, %117, %cst_68 {dimension_numbers = #tpu.dot_dimension_numbers<[1], [0], [0], [1], [0, 0, 1, 1], [], []>} : vector<240x20xbf16>, vector<20x20xbf16>, vector<240x20xf32> -> vector<240x20xf32>
    %119 = arith.addf %114, %118 : vector<240x20xf32>
    %c0_69 = arith.constant 0 : index
    %c0_70 = arith.constant 0 : index
    %120 = vector.load %arg6[%c0_69, %c0_70] : memref<1x20xf32, #tpu.memory_space<vmem>>, vector<1x20xf32>
    %121 = vector.shape_cast %119 : vector<240x20xf32> to vector<5x48x20xf32>
    %122 = vector.extract_strided_slice %121 {offsets = [0, 0, 0], sizes = [5, 16, 20], strides = [1, 1, 1]} : vector<5x48x20xf32> to vector<5x16x20xf32>
    %123 = vector.extract_strided_slice %121 {offsets = [0, 16, 0], sizes = [5, 16, 20], strides = [1, 1, 1]} : vector<5x48x20xf32> to vector<5x16x20xf32>
    %124 = arith.maximumf %122, %123 : vector<5x16x20xf32>
    %125 = vector.extract_strided_slice %121 {offsets = [0, 32, 0], sizes = [5, 16, 20], strides = [1, 1, 1]} : vector<5x48x20xf32> to vector<5x16x20xf32>
    %126 = arith.maximumf %124, %125 : vector<5x16x20xf32>
    %127 = vector.shape_cast %126 : vector<5x16x20xf32> to vector<80x20xf32>
    %128 = vector.broadcast %120 : vector<1x20xf32> to vector<80x20xf32>
    %129 = arith.addf %127, %128 : vector<80x20xf32>
    %cst_71 = arith.constant 0.000000e+00 : f32
    %130 = vector.broadcast %cst_71 : f32 to vector<80x20xf32>
    %131 = arith.cmpf ogt, %129, %130 : vector<80x20xf32>
    %132 = math.exp %129 : vector<80x20xf32>
    %cst_72 = arith.constant 1.000000e+00 : f32
    %133 = vector.broadcast %cst_72 : f32 to vector<80x20xf32>
    %134 = arith.subf %132, %133 : vector<80x20xf32>
    %135 = arith.select %131, %129, %134 : vector<80x20xi1>, vector<80x20xf32>
    %cst_73 = arith.constant 0.000000e+00 : f32
    %136 = vector.broadcast %cst_73 : f32 to vector<5x18x20xf32>
    %c0_74 = arith.constant 0 : index
    %c0_75 = arith.constant 0 : index
    %c0_76 = arith.constant 0 : index
    %137 = vector.load %arg9[%c0_74, %c0_75, %c0_76] : memref<5x18x20xf32, #tpu.memory_space<vmem>>, vector<5x18x20xf32>
    tpu.vector_store %arg9[%c0_74, %c0_75, %c0_76], %136 {strides = array<i32>} : memref<5x18x20xf32, #tpu.memory_space<vmem>>, vector<5x18x20xf32>,
    %138 = vector.shape_cast %135 : vector<80x20xf32> to vector<5x16x20xf32>
    %c0_77 = arith.constant 0 : index
    %c1_78 = arith.constant 1 : index
    %c0_79 = arith.constant 0 : index
    %139 = vector.load %arg9[%c0_77, %c1_78, %c0_79] : memref<5x18x20xf32, #tpu.memory_space<vmem>>, vector<5x16x20xf32>
    tpu.vector_store %arg9[%c0_77, %c1_78, %c0_79], %138 {strides = array<i32>} : memref<5x18x20xf32, #tpu.memory_space<vmem>>, vector<5x16x20xf32>,
    %c0_80 = arith.constant 0 : index
    %c0_81 = arith.constant 0 : index
    %c0_82 = arith.constant 0 : index
    %140 = vector.load %arg9[%c0_80, %c0_81, %c0_82] : memref<5x18x20xf32, #tpu.memory_space<vmem>>, vector<3x16x20xf32>
    %141 = arith.truncf %140 : vector<3x16x20xf32> to vector<3x16x20xbf16>
    %142 = vector.shape_cast %141 : vector<3x16x20xbf16> to vector<48x20xbf16>
    %c0_83 = arith.constant 0 : index
    %c0_84 = arith.constant 0 : index
    %c0_85 = arith.constant 0 : index
    %143 = vector.load %arg4[%c0_83, %c0_84, %c0_85] : memref<9x20x20xbf16, #tpu.memory_space<vmem>>, vector<1x20x20xbf16>
    %144 = vector.shape_cast %143 : vector<1x20x20xbf16> to vector<20x20xbf16>
    %cst_86 = arith.constant dense<0.000000e+00> : vector<48x20xf32>
    %145 = tpu.matmul %142, %144, %cst_86 {dimension_numbers = #tpu.dot_dimension_numbers<[1], [0], [0], [1], [0, 0, 1, 1], [], []>} : vector<48x20xbf16>, vector<20x20xbf16>, vector<48x20xf32> -> vector<48x20xf32>
    %c0_87 = arith.constant 0 : index
    %c1_88 = arith.constant 1 : index
    %c0_89 = arith.constant 0 : index
    %146 = vector.load %arg9[%c0_87, %c1_88, %c0_89] : memref<5x18x20xf32, #tpu.memory_space<vmem>>, vector<3x16x20xf32>
    %147 = arith.truncf %146 : vector<3x16x20xf32> to vector<3x16x20xbf16>
    %148 = vector.shape_cast %147 : vector<3x16x20xbf16> to vector<48x20xbf16>
    %c1_90 = arith.constant 1 : index
    %c0_91 = arith.constant 0 : index
    %c0_92 = arith.constant 0 : index
    %149 = vector.load %arg4[%c1_90, %c0_91, %c0_92] : memref<9x20x20xbf16, #tpu.memory_space<vmem>>, vector<1x20x20xbf16>
    %150 = vector.shape_cast %149 : vector<1x20x20xbf16> to vector<20x20xbf16>
    %cst_93 = arith.constant dense<0.000000e+00> : vector<48x20xf32>
    %151 = tpu.matmul %148, %150, %cst_93 {dimension_numbers = #tpu.dot_dimension_numbers<[1], [0], [0], [1], [0, 0, 1, 1], [], []>} : vector<48x20xbf16>, vector<20x20xbf16>, vector<48x20xf32> -> vector<48x20xf32>
    %152 = arith.addf %145, %151 : vector<48x20xf32>
    %c0_94 = arith.constant 0 : index
    %c2_95 = arith.constant 2 : index
    %c0_96 = arith.constant 0 : index
    %153 = vector.load %arg9[%c0_94, %c2_95, %c0_96] : memref<5x18x20xf32, #tpu.memory_space<vmem>>, vector<3x16x20xf32>
    %154 = arith.truncf %153 : vector<3x16x20xf32> to vector<3x16x20xbf16>
    %155 = vector.shape_cast %154 : vector<3x16x20xbf16> to vector<48x20xbf16>
    %c2_97 = arith.constant 2 : index
    %c0_98 = arith.constant 0 : index
    %c0_99 = arith.constant 0 : index
    %156 = vector.load %arg4[%c2_97, %c0_98, %c0_99] : memref<9x20x20xbf16, #tpu.memory_space<vmem>>, vector<1x20x20xbf16>
    %157 = vector.shape_cast %156 : vector<1x20x20xbf16> to vector<20x20xbf16>
    %cst_100 = arith.constant dense<0.000000e+00> : vector<48x20xf32>
    %158 = tpu.matmul %155, %157, %cst_100 {dimension_numbers = #tpu.dot_dimension_numbers<[1], [0], [0], [1], [0, 0, 1, 1], [], []>} : vector<48x20xbf16>, vector<20x20xbf16>, vector<48x20xf32> -> vector<48x20xf32>
    %159 = arith.addf %152, %158 : vector<48x20xf32>
    %c1_101 = arith.constant 1 : index
    %c0_102 = arith.constant 0 : index
    %c0_103 = arith.constant 0 : index
    %160 = vector.load %arg9[%c1_101, %c0_102, %c0_103] : memref<5x18x20xf32, #tpu.memory_space<vmem>>, vector<3x16x20xf32>
    %161 = arith.truncf %160 : vector<3x16x20xf32> to vector<3x16x20xbf16>
    %162 = vector.shape_cast %161 : vector<3x16x20xbf16> to vector<48x20xbf16>
    %c3_104 = arith.constant 3 : index
    %c0_105 = arith.constant 0 : index
    %c0_106 = arith.constant 0 : index
    %163 = vector.load %arg4[%c3_104, %c0_105, %c0_106] : memref<9x20x20xbf16, #tpu.memory_space<vmem>>, vector<1x20x20xbf16>
    %164 = vector.shape_cast %163 : vector<1x20x20xbf16> to vector<20x20xbf16>
    %cst_107 = arith.constant dense<0.000000e+00> : vector<48x20xf32>
    %165 = tpu.matmul %162, %164, %cst_107 {dimension_numbers = #tpu.dot_dimension_numbers<[1], [0], [0], [1], [0, 0, 1, 1], [], []>} : vector<48x20xbf16>, vector<20x20xbf16>, vector<48x20xf32> -> vector<48x20xf32>
    %166 = arith.addf %159, %165 : vector<48x20xf32>
    %c1_108 = arith.constant 1 : index
    %c1_109 = arith.constant 1 : index
    %c0_110 = arith.constant 0 : index
    %167 = vector.load %arg9[%c1_108, %c1_109, %c0_110] : memref<5x18x20xf32, #tpu.memory_space<vmem>>, vector<3x16x20xf32>
    %168 = arith.truncf %167 : vector<3x16x20xf32> to vector<3x16x20xbf16>
    %169 = vector.shape_cast %168 : vector<3x16x20xbf16> to vector<48x20xbf16>
    %c4_111 = arith.constant 4 : index
    %c0_112 = arith.constant 0 : index
    %c0_113 = arith.constant 0 : index
    %170 = vector.load %arg4[%c4_111, %c0_112, %c0_113] : memref<9x20x20xbf16, #tpu.memory_space<vmem>>, vector<1x20x20xbf16>
    %171 = vector.shape_cast %170 : vector<1x20x20xbf16> to vector<20x20xbf16>
    %cst_114 = arith.constant dense<0.000000e+00> : vector<48x20xf32>
    %172 = tpu.matmul %169, %171, %cst_114 {dimension_numbers = #tpu.dot_dimension_numbers<[1], [0], [0], [1], [0, 0, 1, 1], [], []>} : vector<48x20xbf16>, vector<20x20xbf16>, vector<48x20xf32> -> vector<48x20xf32>
    %173 = arith.addf %166, %172 : vector<48x20xf32>
    %c1_115 = arith.constant 1 : index
    %c2_116 = arith.constant 2 : index
    %c0_117 = arith.constant 0 : index
    %174 = vector.load %arg9[%c1_115, %c2_116, %c0_117] : memref<5x18x20xf32, #tpu.memory_space<vmem>>, vector<3x16x20xf32>
    %175 = arith.truncf %174 : vector<3x16x20xf32> to vector<3x16x20xbf16>
    %176 = vector.shape_cast %175 : vector<3x16x20xbf16> to vector<48x20xbf16>
    %c5_118 = arith.constant 5 : index
    %c0_119 = arith.constant 0 : index
    %c0_120 = arith.constant 0 : index
    %177 = vector.load %arg4[%c5_118, %c0_119, %c0_120] : memref<9x20x20xbf16, #tpu.memory_space<vmem>>, vector<1x20x20xbf16>
    %178 = vector.shape_cast %177 : vector<1x20x20xbf16> to vector<20x20xbf16>
    %cst_121 = arith.constant dense<0.000000e+00> : vector<48x20xf32>
    %179 = tpu.matmul %176, %178, %cst_121 {dimension_numbers = #tpu.dot_dimension_numbers<[1], [0], [0], [1], [0, 0, 1, 1], [], []>} : vector<48x20xbf16>, vector<20x20xbf16>, vector<48x20xf32> -> vector<48x20xf32>
    %180 = arith.addf %173, %179 : vector<48x20xf32>
    %c2_122 = arith.constant 2 : index
    %c0_123 = arith.constant 0 : index
    %c0_124 = arith.constant 0 : index
    %181 = vector.load %arg9[%c2_122, %c0_123, %c0_124] : memref<5x18x20xf32, #tpu.memory_space<vmem>>, vector<3x16x20xf32>
    %182 = arith.truncf %181 : vector<3x16x20xf32> to vector<3x16x20xbf16>
    %183 = vector.shape_cast %182 : vector<3x16x20xbf16> to vector<48x20xbf16>
    %c6_125 = arith.constant 6 : index
    %c0_126 = arith.constant 0 : index
    %c0_127 = arith.constant 0 : index
    %184 = vector.load %arg4[%c6_125, %c0_126, %c0_127] : memref<9x20x20xbf16, #tpu.memory_space<vmem>>, vector<1x20x20xbf16>
    %185 = vector.shape_cast %184 : vector<1x20x20xbf16> to vector<20x20xbf16>
    %cst_128 = arith.constant dense<0.000000e+00> : vector<48x20xf32>
    %186 = tpu.matmul %183, %185, %cst_128 {dimension_numbers = #tpu.dot_dimension_numbers<[1], [0], [0], [1], [0, 0, 1, 1], [], []>} : vector<48x20xbf16>, vector<20x20xbf16>, vector<48x20xf32> -> vector<48x20xf32>
    %187 = arith.addf %180, %186 : vector<48x20xf32>
    %c2_129 = arith.constant 2 : index
    %c1_130 = arith.constant 1 : index
    %c0_131 = arith.constant 0 : index
    %188 = vector.load %arg9[%c2_129, %c1_130, %c0_131] : memref<5x18x20xf32, #tpu.memory_space<vmem>>, vector<3x16x20xf32>
    %189 = arith.truncf %188 : vector<3x16x20xf32> to vector<3x16x20xbf16>
    %190 = vector.shape_cast %189 : vector<3x16x20xbf16> to vector<48x20xbf16>
    %c7_132 = arith.constant 7 : index
    %c0_133 = arith.constant 0 : index
    %c0_134 = arith.constant 0 : index
    %191 = vector.load %arg4[%c7_132, %c0_133, %c0_134] : memref<9x20x20xbf16, #tpu.memory_space<vmem>>, vector<1x20x20xbf16>
    %192 = vector.shape_cast %191 : vector<1x20x20xbf16> to vector<20x20xbf16>
    %cst_135 = arith.constant dense<0.000000e+00> : vector<48x20xf32>
    %193 = tpu.matmul %190, %192, %cst_135 {dimension_numbers = #tpu.dot_dimension_numbers<[1], [0], [0], [1], [0, 0, 1, 1], [], []>} : vector<48x20xbf16>, vector<20x20xbf16>, vector<48x20xf32> -> vector<48x20xf32>
    %194 = arith.addf %187, %193 : vector<48x20xf32>
    %c2_136 = arith.constant 2 : index
    %c2_137 = arith.constant 2 : index
    %c0_138 = arith.constant 0 : index
    %195 = vector.load %arg9[%c2_136, %c2_137, %c0_138] : memref<5x18x20xf32, #tpu.memory_space<vmem>>, vector<3x16x20xf32>
    %196 = arith.truncf %195 : vector<3x16x20xf32> to vector<3x16x20xbf16>
    %197 = vector.shape_cast %196 : vector<3x16x20xbf16> to vector<48x20xbf16>
    %c8_139 = arith.constant 8 : index
    %c0_140 = arith.constant 0 : index
    %c0_141 = arith.constant 0 : index
    %198 = vector.load %arg4[%c8_139, %c0_140, %c0_141] : memref<9x20x20xbf16, #tpu.memory_space<vmem>>, vector<1x20x20xbf16>
    %199 = vector.shape_cast %198 : vector<1x20x20xbf16> to vector<20x20xbf16>
    %cst_142 = arith.constant dense<0.000000e+00> : vector<48x20xf32>
    %200 = tpu.matmul %197, %199, %cst_142 {dimension_numbers = #tpu.dot_dimension_numbers<[1], [0], [0], [1], [0, 0, 1, 1], [], []>} : vector<48x20xbf16>, vector<20x20xbf16>, vector<48x20xf32> -> vector<48x20xf32>
    %201 = arith.addf %194, %200 : vector<48x20xf32>
    %c0_143 = arith.constant 0 : index
    %c0_144 = arith.constant 0 : index
    %202 = vector.load %arg7[%c0_143, %c0_144] : memref<1x20xf32, #tpu.memory_space<vmem>>, vector<1x20xf32>
    %203 = vector.shape_cast %201 : vector<48x20xf32> to vector<1x48x20xf32>
    %204 = vector.extract_strided_slice %203 {offsets = [0, 0, 0], sizes = [1, 16, 20], strides = [1, 1, 1]} : vector<1x48x20xf32> to vector<1x16x20xf32>
    %205 = vector.extract_strided_slice %203 {offsets = [0, 16, 0], sizes = [1, 16, 20], strides = [1, 1, 1]} : vector<1x48x20xf32> to vector<1x16x20xf32>
    %206 = arith.maximumf %204, %205 : vector<1x16x20xf32>
    %207 = vector.extract_strided_slice %203 {offsets = [0, 32, 0], sizes = [1, 16, 20], strides = [1, 1, 1]} : vector<1x48x20xf32> to vector<1x16x20xf32>
    %208 = arith.maximumf %206, %207 : vector<1x16x20xf32>
    %209 = vector.shape_cast %208 : vector<1x16x20xf32> to vector<16x20xf32>
    %210 = vector.broadcast %202 : vector<1x20xf32> to vector<16x20xf32>
    %211 = arith.addf %209, %210 : vector<16x20xf32>
    %cst_145 = arith.constant 0.000000e+00 : f32
    %212 = vector.broadcast %cst_145 : f32 to vector<16x20xf32>
    %213 = arith.cmpf ogt, %211, %212 : vector<16x20xf32>
    %214 = math.exp %211 : vector<16x20xf32>
    %cst_146 = arith.constant 1.000000e+00 : f32
    %215 = vector.broadcast %cst_146 : f32 to vector<16x20xf32>
    %216 = arith.subf %214, %215 : vector<16x20xf32>
    %217 = arith.select %213, %211, %216 : vector<16x20xi1>, vector<16x20xf32>
    %c0_147 = arith.constant 0 : index
    %c0_148 = arith.constant 0 : index
    %c0_149 = arith.constant 0 : index
    %218 = vector.load %arg8[%c0_147, %c0_148, %c0_149] : memref<1x16x20xf32, #tpu.memory_space<vmem>>, vector<1x16x20xf32>
    %219 = vector.shape_cast %218 : vector<1x16x20xf32> to vector<16x20xf32>
    %220 = vector.shape_cast %217 : vector<16x20xf32> to vector<1x16x20xf32>
    tpu.vector_store %arg8[%c0_147, %c0_148, %c0_149], %220 {strides = array<i32>} : memref<1x16x20xf32, #tpu.memory_space<vmem>>, vector<1x16x20xf32>,
    return
  }
  func.func @transform_0(%arg0: i32) -> (i32, i32, i32) {
    %c0_i32 = arith.constant 0 : i32
    %c0_i32_0 = arith.constant 0 : i32
    %c0_i32_1 = arith.constant 0 : i32
    return %arg0, %c0_i32, %c0_i32_0 : i32, i32, i32
  }
  func.func @transform_1(%arg0: i32) -> (i32, i32) {
    %c0_i32 = arith.constant 0 : i32
    %c0_i32_0 = arith.constant 0 : i32
    %c0_i32_1 = arith.constant 0 : i32
    return %c0_i32, %c0_i32_0 : i32, i32
  }
  func.func @transform_2(%arg0: i32) -> (i32, i32, i32) {
    %c0_i32 = arith.constant 0 : i32
    %c0_i32_0 = arith.constant 0 : i32
    %c0_i32_1 = arith.constant 0 : i32
    %c0_i32_2 = arith.constant 0 : i32
    return %c0_i32, %c0_i32_0, %c0_i32_1 : i32, i32, i32
  }
  func.func @transform_3(%arg0: i32) -> (i32, i32, i32) {
    %c0_i32 = arith.constant 0 : i32
    %c0_i32_0 = arith.constant 0 : i32
    %c0_i32_1 = arith.constant 0 : i32
    %c0_i32_2 = arith.constant 0 : i32
    return %c0_i32, %c0_i32_0, %c0_i32_1 : i32, i32, i32
  }
  func.func @transform_4(%arg0: i32) -> (i32, i32) {
    %c0_i32 = arith.constant 0 : i32
    %c0_i32_0 = arith.constant 0 : i32
    %c0_i32_1 = arith.constant 0 : i32
    return %c0_i32, %c0_i32_0 : i32, i32
  }
  func.func @transform_5(%arg0: i32) -> (i32, i32) {
    %c0_i32 = arith.constant 0 : i32
    %c0_i32_0 = arith.constant 0 : i32
    %c0_i32_1 = arith.constant 0 : i32
    return %c0_i32, %c0_i32_0 : i32, i32
  }
  func.func @transform_6(%arg0: i32) -> (i32, i32) {
    %c0_i32 = arith.constant 0 : i32
    %c0_i32_0 = arith.constant 0 : i32
    %c0_i32_1 = arith.constant 0 : i32
    return %c0_i32, %c0_i32_0 : i32, i32
  }
  func.func @transform_7(%arg0: i32) -> (i32, i32, i32) {
    %c0_i32 = arith.constant 0 : i32
    %c0_i32_0 = arith.constant 0 : i32
    %c0_i32_1 = arith.constant 0 : i32
    return %arg0, %c0_i32, %c0_i32_0 : i32, i32, i32
  }
}

</mosaic_0001>

<llo_original>
// kernel: conv_frontend.1
$region0: #{conv_frontend.1}
  #allocation0 [shape = 'u32[]', space=smem, size = 0x4, offset = 0x4, fixed_abs, tag = 'smem constant byte address 0x4 - core index']
  #allocation1 [shape = 'u32[144,128]{1,0:T(1,128)}', space=vmem, size = 0x12000, scoped, tag = 'internal scratch']
  #allocation2 [shape = 'f32[5,18,20]{2,1,0:T(8,128)}', space=vmem, size = 0xf000, scoped, tag = 'scratch operand']
  %s0 = inlined_call_operand.vmem [shape: bf16[2,1632,9], index: 0, kind: input, shape index: {}]
  %s1 = inlined_call_operand.vmem [shape: bf16[9,20], index: 1, kind: input, shape index: {}]
  %s2 = inlined_call_operand.vmem [shape: bf16[20,20,20], index: 2, kind: input, shape index: {}]
  %s3 = inlined_call_operand.vmem [shape: bf16[9,20,20], index: 3, kind: input, shape index: {}]
  %s4 = inlined_call_operand.vmem [shape: f32[1,20], index: 4, kind: input, shape index: {}]
  %s5 = inlined_call_operand.vmem [shape: f32[1,20], index: 5, kind: input, shape index: {}]
  %s6 = inlined_call_operand.vmem [shape: f32[1,20], index: 6, kind: input, shape index: {}]
  %s7 = inlined_call_operand.hbm [shape: f32[2,16,20], index: 7, kind: output, shape index: {}]
  %s8 = sld [smem:[#allocation0]]
  $region61: #{conv_frontend.1} parent=0
    _
  %s10 = ssub.s32 1, %s8
  %s11 = scalar_select 0, %s10, %s8
  $region1: #{conv_frontend.1} parent=0
    #allocation3 [shape = 'u8[16384]{0}', space=vmem, size = 0x4000, scoped, tag = 'output window, operand 0']
    #allocation4 [shape = 's32[2]{0}', space=sflag, size = 0x8, scoped, tag = 'scoped memory for conv_frontend.1']
    %12 = vsyncpa [#allocation4], 0
    %s13 = scalar_lea.sflag [#allocation4], 1
    %14 = vsyncpa %s13, 0
    loop: start=0, step=1, limit=4
    $region2: #{conv_frontend.1} parent=1 // loop_pre_header
      _
    $region3: #{conv_frontend.1} parent=1 // loop_header
      %s16 = sphi 0, %s20
      %p17 = scmp.ge.s32.totalorder %s16, 4
      %s26 = sphi 0, %s28
      %s29 = sphi 0, %s26
      %s30 = sphi 0, %s29
      %s46 = sphi 0, %s30
      %s50 = sphi 0, %s50
      %s52 = sphi 0, %s50
      %s53 = sphi 0, %s52
      %s67 = sphi 0, %s53
      %s71 = sphi 0, %s71
      %s73 = sphi 0, %s71
      %s74 = sphi 0, %s73
      %s88 = sphi 0, %s74
      %s92 = sphi 0, %s92
      %s94 = sphi 0, %s92
      %s95 = sphi 0, %s94
      %s109 = sphi 0, %s95
      %s113 = sphi 0, %s113
      %s115 = sphi 0, %s113
      %s116 = sphi 0, %s115
      %s130 = sphi 0, %s116
      %s134 = sphi 0, %s134
      %s136 = sphi 0, %s134
      %s137 = sphi 0, %s136
      %s151 = sphi 0, %s137
      %s155 = sphi 0, %s155
      %s157 = sphi 0, %s155
      %s158 = sphi 0, %s157
      %s172 = sphi 0, %s158
      %s178 = sphi 0, %s180
      %s181 = sphi 0, %s178
      %s182 = sphi 0, %s181
      %s198 = sphi 0, %s182
    $region4: #{conv_frontend.1} parent=1 // loop_header_branch
      %19 = sbr.rel (%p17) target = $region8
    $region5: #{conv_frontend.1} parent=1 // loop_body
      %s21 = ssub.s32 %s16, 1
      %s22 = ssub.s32 %s16, 2
      %s23 = sadd.s32 %s16, 1
      %s24 = ssub.s32 %s16, %s23
      %p25 = scmp.eq.s32.totalorder %s24, 0
      %s27 = sadd.s32 %s26, 1
      %s28 = scalar_select %p25, %s26, %s27
      %p31 = pneg %p25
      %p32 = scmp.eq.s32.totalorder %s16, 1
      %p33 = por %p31, %p32
      %p34 = scmp.ne.s32.totalorder %s26, %s29
      %p35 = scmp.eq.s32.totalorder %s16, 0
      %p36 = por %p34, %p35
      %p37 = scmp.ne.s32.totalorder %s26, %s29
      %p38 = scmp.eq.s32.totalorder %s21, 1
      %p39 = por %p37, %p38
      %p40 = scmp.ne.s32.totalorder %s29, %s30
      %p41 = scmp.eq.s32.totalorder %s21, 0
      %p42 = por %p40, %p41
      %p43 = scmp.ne.s32.totalorder %s29, %s30
      %p44 = scmp.eq.s32.totalorder %s22, 1
      %p45 = por %p43, %p44
      %p47 = scmp.ne.s32.totalorder %s30, %s46
      %p48 = scmp.eq.s32.totalorder %s22, 0
      %p49 = por %p47, %p48
      %s51 = sadd.s32 %s50, 1
      %p54 = scmp.eq.s32.totalorder %s16, 1
      %p55 = scmp.ne.s32.totalorder %s50, %s52
      %p56 = scmp.eq.s32.totalorder %s16, 0
      %p57 = por %p55, %p56
      %p58 = scmp.ne.s32.totalorder %s50, %s52
      %p59 = scmp.eq.s32.totalorder %s21, 1
      %p60 = por %p58, %p59
      %p61 = scmp.ne.s32.totalorder %s52, %s53
      %p62 = scmp.eq.s32.totalorder %s21, 0
      %p63 = por %p61, %p62
      %p64 = scmp.ne.s32.totalorder %s52, %s53
      %p65 = scmp.eq.s32.totalorder %s22, 1
      %p66 = por %p64, %p65
      %p68 = scmp.ne.s32.totalorder %s53, %s67
      %p69 = scmp.eq.s32.totalorder %s22, 0
      %p70 = por %p68, %p69
      %s72 = sadd.s32 %s71, 1
      %p75 = scmp.eq.s32.totalorder %s16, 1
      %p76 = scmp.ne.s32.totalorder %s71, %s73
      %p77 = scmp.eq.s32.totalorder %s16, 0
      %p78 = por %p76, %p77
      %p79 = scmp.ne.s32.totalorder %s71, %s73
      %p80 = scmp.eq.s32.totalorder %s21, 1
      %p81 = por %p79, %p80
      %p82 = scmp.ne.s32.totalorder %s73, %s74
      %p83 = scmp.eq.s32.totalorder %s21, 0
      %p84 = por %p82, %p83
      %p85 = scmp.ne.s32.totalorder %s73, %s74
      %p86 = scmp.eq.s32.totalorder %s22, 1
      %p87 = por %p85, %p86
      %p89 = scmp.ne.s32.totalorder %s74, %s88
      %p90 = scmp.eq.s32.totalorder %s22, 0
      %p91 = por %p89, %p90
      %s93 = sadd.s32 %s92, 1
      %p96 = scmp.eq.s32.totalorder %s16, 1
      %p97 = scmp.ne.s32.totalorder %s92, %s94
      %p98 = scmp.eq.s32.totalorder %s16, 0
      %p99 = por %p97, %p98
      %p100 = scmp.ne.s32.totalorder %s92, %s94
      %p101 = scmp.eq.s32.totalorder %s21, 1
      %p102 = por %p100, %p101
      %p103 = scmp.ne.s32.totalorder %s94, %s95
      %p104 = scmp.eq.s32.totalorder %s21, 0
      %p105 = por %p103, %p104
      %p106 = scmp.ne.s32.totalorder %s94, %s95
      %p107 = scmp.eq.s32.totalorder %s22, 1
      %p108 = por %p106, %p107
      %p110 = scmp.ne.s32.totalorder %s95, %s109
      %p111 = scmp.eq.s32.totalorder %s22, 0
      %p112 = por %p110, %p111
      %s114 = sadd.s32 %s113, 1
      %p117 = scmp.eq.s32.totalorder %s16, 1
      %p118 = scmp.ne.s32.totalorder %s113, %s115
      %p119 = scmp.eq.s32.totalorder %s16, 0
      %p120 = por %p118, %p119
      %p121 = scmp.ne.s32.totalorder %s113, %s115
      %p122 = scmp.eq.s32.totalorder %s21, 1
      %p123 = por %p121, %p122
      %p124 = scmp.ne.s32.totalorder %s115, %s116
      %p125 = scmp.eq.s32.totalorder %s21, 0
      %p126 = por %p124, %p125
      %p127 = scmp.ne.s32.totalorder %s115, %s116
      %p128 = scmp.eq.s32.totalorder %s22, 1
      %p129 = por %p127, %p128
      %p131 = scmp.ne.s32.totalorder %s116, %s130
      %p132 = scmp.eq.s32.totalorder %s22, 0
      %p133 = por %p131, %p132
      %s135 = sadd.s32 %s134, 1
      %p138 = scmp.eq.s32.totalorder %s16, 1
      %p139 = scmp.ne.s32.totalorder %s134, %s136
      %p140 = scmp.eq.s32.totalorder %s16, 0
      %p141 = por %p139, %p140
      %p142 = scmp.ne.s32.totalorder %s134, %s136
      %p143 = scmp.eq.s32.totalorder %s21, 1
      %p144 = por %p142, %p143
      %p145 = scmp.ne.s32.totalorder %s136, %s137
      %p146 = scmp.eq.s32.totalorder %s21, 0
      %p147 = por %p145, %p146
      %p148 = scmp.ne.s32.totalorder %s136, %s137
      %p149 = scmp.eq.s32.totalorder %s22, 1
      %p150 = por %p148, %p149
      %p152 = scmp.ne.s32.totalorder %s137, %s151
      %p153 = scmp.eq.s32.totalorder %s22, 0
      %p154 = por %p152, %p153
      %s156 = sadd.s32 %s155, 1
      %p159 = scmp.eq.s32.totalorder %s16, 1
      %p160 = scmp.ne.s32.totalorder %s155, %s157
      %p161 = scmp.eq.s32.totalorder %s16, 0
      %p162 = por %p160, %p161
      %p163 = scmp.ne.s32.totalorder %s155, %s157
      %p164 = scmp.eq.s32.totalorder %s21, 1
      %p165 = por %p163, %p164
      %p166 = scmp.ne.s32.totalorder %s157, %s158
      %p167 = scmp.eq.s32.totalorder %s21, 0
      %p168 = por %p166, %p167
      %p169 = scmp.ne.s32.totalorder %s157, %s158
      %p170 = scmp.eq.s32.totalorder %s22, 1
      %p171 = por %p169, %p170
      %p173 = scmp.ne.s32.totalorder %s158, %s172
      %p174 = scmp.eq.s32.totalorder %s22, 0
      %p175 = por %p173, %p174
      %s176 = ssub.s32 %s16, %s23
      %p177 = scmp.eq.s32.totalorder %s176, 0
      %s179 = sadd.s32 %s178, 1
      %s180 = scalar_select %p177, %s178, %s179
      %p183 = pneg %p177
      %p184 = scmp.eq.s32.totalorder %s16, 1
      %p185 = por %p183, %p184
      %p186 = scmp.ne.s32.totalorder %s178, %s181
      %p187 = scmp.eq.s32.totalorder %s16, 0
      %p188 = por %p186, %p187
      %p189 = scmp.ne.s32.totalorder %s178, %s181
      %p190 = scmp.eq.s32.totalorder %s21, 1
      %p191 = por %p189, %p190
      %p192 = scmp.ne.s32.totalorder %s181, %s182
      %p193 = scmp.eq.s32.totalorder %s21, 0
      %p194 = por %p192, %p193
      %p195 = scmp.ne.s32.totalorder %s181, %s182
      %p196 = scmp.eq.s32.totalorder %s22, 1
      %p197 = por %p195, %p196
      %p199 = scmp.ne.s32.totalorder %s182, %s198
      %p200 = scmp.eq.s32.totalorder %s22, 0
      %p201 = por %p199, %p200
      %p202 = scmp.le.s32.totalorder 1, %s16
      %p203 = scmp.lt.s32.totalorder %s16, 3
      %p204 = pnand %p202, %p203
      %p205 = pneg %p204
      // Predicated region
      $region9: #{conv_frontend.1} parent=5 // pred_check
        _
      $region10: #{conv_frontend.1} parent=5 // pred_check_branch
        %207 = sbr.rel (%p204) target = $region12
      $region11: #{conv_frontend.1} parent=5 // pred_region
        %s208 = ssub.s32 %s16, 1
        // Predicated region
        $region13: #{conv_frontend.1} parent=11 // pred_check
          %p209 = pneg %p63
        $region14: #{conv_frontend.1} parent=11 // pred_check_branch
          %211 = sbr.rel (%p209) target = $region16
        $region15: #{conv_frontend.1} parent=11 // pred_region
          _
        $region16: #{conv_frontend.1} parent=11 // pred_fallthru
          _
        // Predicated region
        $region17: #{conv_frontend.1} parent=11 // pred_check
          %p212 = pneg %p84
        $region18: #{conv_frontend.1} parent=11 // pred_check_branch
          %214 = sbr.rel (%p212) target = $region20
        $region19: #{conv_frontend.1} parent=11 // pred_region
          _
        $region20: #{conv_frontend.1} parent=11 // pred_fallthru
          _
        // Predicated region
        $region21: #{conv_frontend.1} parent=11 // pred_check
          %p215 = pneg %p105
        $region22: #{conv_frontend.1} parent=11 // pred_check_branch
          %217 = sbr.rel (%p215) target = $region24
        $region23: #{conv_frontend.1} parent=11 // pred_region
          _
        $region24: #{conv_frontend.1} parent=11 // pred_fallthru
          _
        // Predicated region
        $region25: #{conv_frontend.1} parent=11 // pred_check
          %p218 = pneg %p126
        $region26: #{conv_frontend.1} parent=11 // pred_check_branch
          %220 = sbr.rel (%p218) target = $region28
        $region27: #{conv_frontend.1} parent=11 // pred_region
          _
        $region28: #{conv_frontend.1} parent=11 // pred_fallthru
          _
        // Predicated region
        $region29: #{conv_frontend.1} parent=11 // pred_check
          %p221 = pneg %p147
        $region30: #{conv_frontend.1} parent=11 // pred_check_branch
          %223 = sbr.rel (%p221) target = $region32
        $region31: #{conv_frontend.1} parent=11 // pred_region
          _
        $region32: #{conv_frontend.1} parent=11 // pred_fallthru
          _
        // Predicated region
        $region33: #{conv_frontend.1} parent=11 // pred_check
          %p224 = pneg %p168
        $region34: #{conv_frontend.1} parent=11 // pred_check_branch
          %226 = sbr.rel (%p224) target = $region36
        $region35: #{conv_frontend.1} parent=11 // pred_region
          _
        $region36: #{conv_frontend.1} parent=11 // pred_fallthru
          _
      $region12: #{conv_frontend.1} parent=5 // pred_fallthru
        _
      %p227 = scmp.lt.s32.totalorder %s16, 2
      // Predicated region
      $region37: #{conv_frontend.1} parent=5 // pred_check
        %p228 = pneg %p227
      $region38: #{conv_frontend.1} parent=5 // pred_check_branch
        %230 = sbr.rel (%p228) target = $region40
      $region39: #{conv_frontend.1} parent=5 // pred_region
        // Predicated region
        $region41: #{conv_frontend.1} parent=39 // pred_check
          %p231 = pneg %p36
        $region42: #{conv_frontend.1} parent=39 // pred_check_branch
          %233 = sbr.rel (%p231) target = $region44
        $region43: #{conv_frontend.1} parent=39 // pred_region
          %p234 = scmp.lt.s32.totalorder %s16, 1
          %s235 = scalar_select %p234, %s16, 1
          %s236 = smul.addr %s235, 204
          %s237 = smul.addr %s236, 4
          %s238 = scalar_lea.vmem %s0, %s237
        $region44: #{conv_frontend.1} parent=39 // pred_fallthru
          _
      $region40: #{conv_frontend.1} parent=5 // pred_fallthru
        _
      %p239 = scmp.le.s32.totalorder 1, %s16
      %p240 = scmp.lt.s32.totalorder %s16, 3
      %p241 = pnand %p239, %p240
      %p242 = pneg %p241
      // Predicated region
      $region45: #{conv_frontend.1} parent=5 // pred_check
        _
      $region46: #{conv_frontend.1} parent=5 // pred_check_branch
        %244 = sbr.rel (%p241) target = $region48
      $region47: #{conv_frontend.1} parent=5 // pred_region
        %s245 = ssub.s32 %s16, 1
        %p246 = scmp.lt.s32.totalorder %s21, 1
        %s247 = scalar_select %p246, %s21, 1
        %s248 = smul.addr %s247, 204
        %s249 = smul.addr %s248, 4
        %s250 = scalar_lea.vmem %s0, %s249
        %p251 = pneg %p42
        %p252 = pneg %p39
        %p253 = pneg %p63
        %p254 = pneg %p60
        %p255 = pneg %p84
        %p256 = pneg %p81
        %p257 = pneg %p105
        %p258 = pneg %p102
        %p259 = pneg %p126
        %p260 = pneg %p123
        %p261 = pneg %p147
        %p262 = pneg %p144
        %p263 = pneg %p168
        %p264 = pneg %p165
        %p265 = pneg %p194
        %p266 = pneg %p191
        %s267 = sand.u32 %s181, 1
        %s268 = scalar_lea.sflag [#allocation4], %s267
        %s269 = sand.u32 %s181, 1
        %s270 = smul.addr %s269, 16
        %s271 = scalar_lea.vmem [#allocation3], %s270
        %p272 = scmp.lt.s32.totalorder %s21, 1
        %s273 = scalar_select %p272, %s21, 1
        %s274 = smul.addr %s273, 204
        %s275 = smul.addr %s274, 4
        %s276 = scalar_lea.vmem %s0, %s275
        %v278 = vld [vmem:[%s276] sm:$0xf]
        %v279 = vld [vmem:[%s276 + $0x4] sm:$0xf]
        %v280 = vld [vmem:[%s276 + $0x8] sm:$0xf]
        %v281 = vld [vmem:[%s276 + $0xc] sm:$0xf]
        %v282 = vld [vmem:[%s276 + $0x10] sm:$0xf]
        %v283 = vld [vmem:[%s276 + $0x14] sm:$0xf]
        %v284 = vld [vmem:[%s276 + $0x18] sm:$0xf]
        %v285 = vld [vmem:[%s276 + $0x1c] sm:$0xf]
        %v286 = vld [vmem:[%s276 + $0x20] sm:$0xf]
        %v287 = vld [vmem:[%s276 + $0x24] sm:$0xf]
        %v288 = vld [vmem:[%s276 + $0x28] sm:$0xf]
        %v289 = vld [vmem:[%s276 + $0x2c] sm:$0xf]
        %v290 = vld [vmem:[%s276 + $0x30] sm:$0xf]
        %v291 = vld [vmem:[%s276 + $0x34] sm:$0xf]
        %v292 = vld [vmem:[%s276 + $0x38] sm:$0xf]
        %v293 = vld [vmem:[%s276 + $0x3c] sm:$0xf]
        %v294 = vld [vmem:[%s276 + $0x40] sm:$0xf]
        %v295 = vld [vmem:[%s276 + $0x44] sm:$0xf]
        %v296 = vld [vmem:[%s276 + $0x48] sm:$0xf]
        %v297 = vld [vmem:[%s276 + $0x4c] sm:$0xf]
        %v298 = vld [vmem:[%s276 + $0x50] sm:$0xf]
        %v299 = vld [vmem:[%s276 + $0x54] sm:$0xf]
        %v300 = vld [vmem:[%s276 + $0x58] sm:$0xf]
        %v301 = vld [vmem:[%s276 + $0x5c] sm:$0xf]
        %v302 = vld [vmem:[%s276 + $0x60] sm:$0xf]
        %v303 = vld [vmem:[%s276 + $0x64] sm:$0xf]
        %v304 = vld [vmem:[%s276 + $0x68] sm:$0xf]
        %v305 = vld [vmem:[%s276 + $0x6c] sm:$0xf]
        %v306 = vld [vmem:[%s276 + $0x70] sm:$0xf]
        %v307 = vld [vmem:[%s276 + $0x74] sm:$0xf]
        %v308 = vld [vmem:[%s276 + $0x78] sm:$0xf]
        %v309 = vld [vmem:[%s276 + $0x7c] sm:$0xf]
        %v310 = vld [vmem:[%s276 + $0x80] sm:$0xf]
        %v311 = vld [vmem:[%s276 + $0x84] sm:$0xf]
        %v312 = vld [vmem:[%s276 + $0x88] sm:$0xf]
        %v313 = vld [vmem:[%s276 + $0x8c] sm:$0xf]
        %v314 = vld [vmem:[%s276 + $0x90] sm:$0xf]
        %v315 = vld [vmem:[%s276 + $0x94] sm:$0xf]
        %v316 = vld [vmem:[%s276 + $0x98] sm:$0xf]
        %v317 = vld [vmem:[%s276 + $0x9c] sm:$0xf]
        %v318 = vld [vmem:[%s276 + $0xa0] sm:$0xf]
        %v319 = vld [vmem:[%s276 + $0xa4] sm:$0xf]
        %v320 = vld [vmem:[%s276 + $0xa8] sm:$0xf]
        %v321 = vld [vmem:[%s276 + $0xac] sm:$0xf]
        %v322 = vld [vmem:[%s276 + $0xb0] sm:$0xf]
        %v323 = vld [vmem:[%s276 + $0xb4] sm:$0xf]
        %v324 = vld [vmem:[%s276 + $0xb8] sm:$0xf]
        %v325 = vld [vmem:[%s276 + $0xbc] sm:$0xf]
        %v326 = vld [vmem:[%s276 + $0xc0] sm:$0xf]
        %v327 = vld [vmem:[%s276 + $0xc4] sm:$0xf]
        %v328 = vld [vmem:[%s276 + $0xc8] sm:$0xf]
        %v329 = vld [vmem:[%s276 + $0xcc] sm:$0xf]
        %v330 = vld [vmem:[%s276 + $0xd0] sm:$0xf]
        %v331 = vld [vmem:[%s276 + $0xd4] sm:$0xf]
        %v332 = vld [vmem:[%s276 + $0xd8] sm:$0xf]
        %v333 = vld [vmem:[%s276 + $0xdc] sm:$0xf]
        %v334 = vld [vmem:[%s276 + $0xe0] sm:$0xf]
        %v335 = vld [vmem:[%s276 + $0xe4] sm:$0xf]
        %v336 = vld [vmem:[%s276 + $0xe8] sm:$0xf]
        %v337 = vld [vmem:[%s276 + $0xec] sm:$0xf]
        %v338 = vld [vmem:[%s276 + $0xf0] sm:$0xf]
        %v339 = vld [vmem:[%s276 + $0xf4] sm:$0xf]
        %v340 = vld [vmem:[%s276 + $0xf8] sm:$0xf]
        %v341 = vld [vmem:[%s276 + $0xfc] sm:$0xf]
        %v342 = vld [vmem:[%s276 + $0x100] sm:$0xf]
        %v343 = vld [vmem:[%s276 + $0x104] sm:$0xf]
        %v344 = vld [vmem:[%s276 + $0x108] sm:$0xf]
        %v345 = vld [vmem:[%s276 + $0x10c] sm:$0xf]
        %v346 = vld [vmem:[%s276 + $0x110] sm:$0xf]
        %v347 = vld [vmem:[%s276 + $0x114] sm:$0xf]
        %v348 = vld [vmem:[%s276 + $0x118] sm:$0xf]
        %v349 = vld [vmem:[%s276 + $0x11c] sm:$0xf]
        %v350 = vld [vmem:[%s276 + $0x120] sm:$0xf]
        %v351 = vld [vmem:[%s276 + $0x124] sm:$0xf]
        %v352 = vld [vmem:[%s276 + $0x128] sm:$0xf]
        %v353 = vld [vmem:[%s276 + $0x12c] sm:$0xf]
        %v354 = vld [vmem:[%s276 + $0x130] sm:$0xf]
        %v355 = vld [vmem:[%s276 + $0x134] sm:$0xf]
        %v356 = vld [vmem:[%s276 + $0x138] sm:$0xf]
        %v357 = vld [vmem:[%s276 + $0x13c] sm:$0xf]
        %v358 = vld [vmem:[%s276 + $0x140] sm:$0xf]
        %v359 = vld [vmem:[%s276 + $0x144] sm:$0xf]
        %v360 = vld [vmem:[%s276 + $0x148] sm:$0xf]
        %v361 = vld [vmem:[%s276 + $0x14c] sm:$0xf]
        %v362 = vld [vmem:[%s276 + $0x150] sm:$0xf]
        %v363 = vld [vmem:[%s276 + $0x154] sm:$0xf]
        %v364 = vld [vmem:[%s276 + $0x158] sm:$0xf]
        %v365 = vld [vmem:[%s276 + $0x15c] sm:$0xf]
        %v366 = vld [vmem:[%s276 + $0x160] sm:$0xf]
        %v367 = vld [vmem:[%s276 + $0x164] sm:$0xf]
        %v368 = vld [vmem:[%s276 + $0x168] sm:$0xf]
        %v369 = vld [vmem:[%s276 + $0x16c] sm:$0xf]
        %v370 = vld [vmem:[%s276 + $0x170] sm:$0xf]
        %v371 = vld [vmem:[%s276 + $0x174] sm:$0xf]
        %v372 = vld [vmem:[%s276 + $0x178] sm:$0xf]
        %v373 = vld [vmem:[%s276 + $0x17c] sm:$0xf]
        %v374 = vld [vmem:[%s276 + $0x180] sm:$0xf]
        %v375 = vld [vmem:[%s276 + $0x184] sm:$0xf]
        %v376 = vld [vmem:[%s276 + $0x188] sm:$0xf]
        %v377 = vld [vmem:[%s276 + $0x18c] sm:$0xf]
        %v378 = vld [vmem:[%s276 + $0x190] sm:$0xf]
        %v379 = vld [vmem:[%s276 + $0x194] sm:$0xf]
        %v380 = vld [vmem:[%s276 + $0x198] sm:$0xf]
        %v381 = vld [vmem:[%s276 + $0x19c] sm:$0xf]
        %v382 = vld [vmem:[%s276 + $0x1a0] sm:$0xf]
        %v383 = vld [vmem:[%s276 + $0x1a4] sm:$0xf]
        %v384 = vld [vmem:[%s276 + $0x1a8] sm:$0xf]
        %v385 = vld [vmem:[%s276 + $0x1ac] sm:$0xf]
        %v386 = vld [vmem:[%s276 + $0x1b0] sm:$0xf]
        %v387 = vld [vmem:[%s276 + $0x1b4] sm:$0xf]
        %v388 = vld [vmem:[%s276 + $0x1b8] sm:$0xf]
        %v389 = vld [vmem:[%s276 + $0x1bc] sm:$0xf]
        %v390 = vld [vmem:[%s276 + $0x1c0] sm:$0xf]
        %v391 = vld [vmem:[%s276 + $0x1c4] sm:$0xf]
        %v392 = vld [vmem:[%s276 + $0x1c8] sm:$0xf]
        %v393 = vld [vmem:[%s276 + $0x1cc] sm:$0xf]
        %v394 = vld [vmem:[%s276 + $0x1d0] sm:$0xf]
        %v395 = vld [vmem:[%s276 + $0x1d4] sm:$0xf]
        %v396 = vld [vmem:[%s276 + $0x1d8] sm:$0xf]
        %v397 = vld [vmem:[%s276 + $0x1dc] sm:$0xf]
        %v398 = vld [vmem:[%s276 + $0x1e0] sm:$0xf]
        %v399 = vld [vmem:[%s276 + $0x1e4] sm:$0xf]
        %v400 = vld [vmem:[%s276 + $0x1e8] sm:$0xf]
        %v401 = vld [vmem:[%s276 + $0x1ec] sm:$0xf]
        %v402 = vld [vmem:[%s276 + $0x1f0] sm:$0xf]
        %v403 = vld [vmem:[%s276 + $0x1f4] sm:$0xf]
        %v404 = vld [vmem:[%s276 + $0x1f8] sm:$0xf]
        %v405 = vld [vmem:[%s276 + $0x1fc] sm:$0xf]
        %v406 = vld [vmem:[%s276 + $0x200] sm:$0xf]
        %v407 = vld [vmem:[%s276 + $0x204] sm:$0xf]
        %v408 = vld [vmem:[%s276 + $0x208] sm:$0xf]
        %v409 = vld [vmem:[%s276 + $0x20c] sm:$0xf]
        %v410 = vld [vmem:[%s276 + $0x210] sm:$0xf]
        %v411 = vld [vmem:[%s276 + $0x214] sm:$0xf]
        %v412 = vld [vmem:[%s276 + $0x218] sm:$0xf]
        %v413 = vld [vmem:[%s276 + $0x21c] sm:$0xf]
        %v414 = vld [vmem:[%s276 + $0x220] sm:$0xf]
        %v415 = vld [vmem:[%s276 + $0x224] sm:$0xf]
        %v416 = vld [vmem:[%s276 + $0x228] sm:$0xf]
        %v417 = vld [vmem:[%s276 + $0x22c] sm:$0xf]
        %v418 = vld [vmem:[%s276 + $0x230] sm:$0xf]
        %v419 = vld [vmem:[%s276 + $0x234] sm:$0xf]
        %v420 = vld [vmem:[%s276 + $0x238] sm:$0xf]
        %v421 = vld [vmem:[%s276 + $0x23c] sm:$0xf]
        %v422 = vld [vmem:[%s276 + $0x240] sm:$0xf]
        %v423 = vld [vmem:[%s276 + $0x244] sm:$0xf]
        %v424 = vld [vmem:[%s276 + $0x248] sm:$0xf]
        %v425 = vld [vmem:[%s276 + $0x24c] sm:$0xf]
        %v426 = vld [vmem:[%s276 + $0x250] sm:$0xf]
        %v427 = vld [vmem:[%s276 + $0x254] sm:$0xf]
        %v428 = vld [vmem:[%s276 + $0x258] sm:$0xf]
        %v429 = vld [vmem:[%s276 + $0x25c] sm:$0xf]
        %v430 = vld [vmem:[%s276 + $0x260] sm:$0xf]
        %v431 = vld [vmem:[%s276 + $0x264] sm:$0xf]
        %v432 = vld [vmem:[%s276 + $0x268] sm:$0xf]
        %v433 = vld [vmem:[%s276 + $0x26c] sm:$0xf]
        %v434 = vld [vmem:[%s276 + $0x270] sm:$0xf]
        %v435 = vld [vmem:[%s276 + $0x274] sm:$0xf]
        %v436 = vld [vmem:[%s276 + $0x278] sm:$0xf]
        %v437 = vld [vmem:[%s276 + $0x27c] sm:$0xf]
        %v438 = vld [vmem:[%s276 + $0x280] sm:$0xf]
        %v439 = vld [vmem:[%s276 + $0x284] sm:$0xf]
        %v440 = vld [vmem:[%s276 + $0x288] sm:$0xf]
        %v441 = vld [vmem:[%s276 + $0x28c] sm:$0xf]
        %v442 = vld [vmem:[%s276 + $0x290] sm:$0xf]
        %v443 = vld [vmem:[%s276 + $0x294] sm:$0xf]
        %v444 = vld [vmem:[%s276 + $0x298] sm:$0xf]
        %v445 = vld [vmem:[%s276 + $0x29c] sm:$0xf]
        %v446 = vld [vmem:[%s276 + $0x2a0] sm:$0xf]
        %v447 = vld [vmem:[%s276 + $0x2a4] sm:$0xf]
        %v448 = vld [vmem:[%s276 + $0x2a8] sm:$0xf]
        %v449 = vld [vmem:[%s276 + $0x2ac] sm:$0xf]
        %v450 = vld [vmem:[%s276 + $0x2b0] sm:$0xf]
        %v451 = vld [vmem:[%s276 + $0x2b4] sm:$0xf]
        %v452 = vld [vmem:[%s276 + $0x2b8] sm:$0xf]
        %v453 = vld [vmem:[%s276 + $0x2bc] sm:$0xf]
        %v454 = vld [vmem:[%s276 + $0x2c0] sm:$0xf]
        %v455 = vld [vmem:[%s276 + $0x2c4] sm:$0xf]
        %v456 = vld [vmem:[%s276 + $0x2c8] sm:$0xf]
        %v457 = vld [vmem:[%s276 + $0x2cc] sm:$0xf]
        %v458 = vld [vmem:[%s276 + $0x2d0] sm:$0xf]
        %v459 = vld [vmem:[%s276 + $0x2d4] sm:$0xf]
        %v460 = vld [vmem:[%s276 + $0x2d8] sm:$0xf]
        %v461 = vld [vmem:[%s276 + $0x2dc] sm:$0xf]
        %v462 = vld [vmem:[%s276 + $0x2e0] sm:$0xf]
        %v463 = vld [vmem:[%s276 + $0x2e4] sm:$0xf]
        %v464 = vld [vmem:[%s276 + $0x2e8] sm:$0xf]
        %v465 = vld [vmem:[%s276 + $0x2ec] sm:$0xf]
        %v466 = vld [vmem:[%s276 + $0x2f0] sm:$0xf]
        %v467 = vld [vmem:[%s276 + $0x2f4] sm:$0xf]
        %v468 = vld [vmem:[%s276 + $0x2f8] sm:$0xf]
        %v469 = vld [vmem:[%s276 + $0x2fc] sm:$0xf]
        %v470 = vld [vmem:[%s276 + $0x300] sm:$0xf]
        %v471 = vld [vmem:[%s276 + $0x304] sm:$0xf]
        %v472 = vld [vmem:[%s276 + $0x308] sm:$0xf]
        %v473 = vld [vmem:[%s276 + $0x30c] sm:$0xf]
        %v474 = vld [vmem:[%s276 + $0x310] sm:$0xf]
        %v475 = vld [vmem:[%s276 + $0x314] sm:$0xf]
        %v476 = vld [vmem:[%s276 + $0x318] sm:$0xf]
        %v477 = vld [vmem:[%s276 + $0x31c] sm:$0xf]
        %v478 = vld [vmem:[%s276 + $0x320] sm:$0xf]
        %v479 = vld [vmem:[%s276 + $0x324] sm:$0xf]
        %v480 = vld [vmem:[%s276 + $0x328] sm:$0xf]
        %v481 = vld [vmem:[%s276 + $0x32c] sm:$0xf]
        %v482 = vld [vmem:[%s1] sm:$0xf]
        %v483 = vld [vmem:[%s1 + $0x4] sm:$0x1]
        %v688 = vunpack.c.l.b16 %v278
        %v689 = vunpack.c.l.b16 %v279
        %v690 = vunpack.c.l.b16 %v280
        %v691 = vunpack.c.l.b16 %v281
        %v692 = vunpack.c.l.b16 %v282
        %v693 = vunpack.c.l.b16 %v283
        %v694 = vunpack.c.l.b16 %v284
        %v695 = vunpack.c.l.b16 %v285
        %v696 = vunpack.c.l.b16 %v286
        %v697 = vunpack.c.l.b16 %v287
        %v698 = vunpack.c.l.b16 %v288
        %v699 = vunpack.c.l.b16 %v289
        %v700 = vunpack.c.l.b16 %v290
        %v701 = vunpack.c.l.b16 %v291
        %v702 = vunpack.c.l.b16 %v292
        %v703 = vunpack.c.l.b16 %v293
        %v704 = vunpack.c.l.b16 %v294
        %v705 = vunpack.c.l.b16 %v295
        %v706 = vunpack.c.l.b16 %v296
        %v707 = vunpack.c.l.b16 %v297
        %v708 = vunpack.c.l.b16 %v298
        %v709 = vunpack.c.l.b16 %v299
        %v710 = vunpack.c.l.b16 %v300
        %v711 = vunpack.c.l.b16 %v301
        %v712 = vunpack.c.l.b16 %v302
        %v713 = vunpack.c.l.b16 %v303
        %v714 = vunpack.c.l.b16 %v304
        %v715 = vunpack.c.l.b16 %v305
        %v716 = vunpack.c.l.b16 %v306
        %v717 = vunpack.c.l.b16 %v307
        %v718 = vunpack.c.l.b16 %v308
        %v719 = vunpack.c.l.b16 %v309
        %v720 = vunpack.c.l.b16 %v310
        %v721 = vunpack.c.l.b16 %v311
        %v722 = vunpack.c.l.b16 %v312
        %v723 = vunpack.c.l.b16 %v313
        %v724 = vunpack.c.l.b16 %v314
        %v725 = vunpack.c.l.b16 %v315
        %v726 = vunpack.c.l.b16 %v316
        %v727 = vunpack.c.l.b16 %v317
        %v728 = vunpack.c.l.b16 %v318
        %v729 = vunpack.c.l.b16 %v319
        %v730 = vunpack.c.l.b16 %v320
        %v731 = vunpack.c.l.b16 %v321
        %v732 = vunpack.c.l.b16 %v322
        %v733 = vunpack.c.l.b16 %v323
        %v734 = vunpack.c.l.b16 %v324
        %v735 = vunpack.c.l.b16 %v325
        %v736 = vunpack.c.l.b16 %v326
        %v737 = vunpack.c.l.b16 %v327
        %v738 = vunpack.c.l.b16 %v328
        %v739 = vunpack.c.l.b16 %v329
        %v740 = vunpack.c.l.b16 %v330
        %v741 = vunpack.c.l.b16 %v331
        %v742 = vunpack.c.l.b16 %v332
        %v743 = vunpack.c.l.b16 %v333
        %v744 = vunpack.c.l.b16 %v334
        %v745 = vunpack.c.l.b16 %v335
        %v746 = vunpack.c.l.b16 %v336
        %v747 = vunpack.c.l.b16 %v337
        %v748 = vunpack.c.l.b16 %v338
        %v749 = vunpack.c.l.b16 %v339
        %v750 = vunpack.c.l.b16 %v340
        %v751 = vunpack.c.l.b16 %v341
        %v752 = vunpack.c.l.b16 %v342
        %v753 = vunpack.c.l.b16 %v343
        %v754 = vunpack.c.l.b16 %v344
        %v755 = vunpack.c.l.b16 %v345
        %v756 = vunpack.c.l.b16 %v346
        %v757 = vunpack.c.l.b16 %v347
        %v758 = vunpack.c.l.b16 %v348
        %v759 = vunpack.c.l.b16 %v349
        %v760 = vunpack.c.l.b16 %v350
        %v761 = vunpack.c.l.b16 %v351
        %v762 = vunpack.c.l.b16 %v352
        %v763 = vunpack.c.l.b16 %v353
        %v764 = vunpack.c.l.b16 %v354
        %v765 = vunpack.c.l.b16 %v355
        %v766 = vunpack.c.l.b16 %v356
        %v767 = vunpack.c.l.b16 %v357
        %v768 = vunpack.c.l.b16 %v358
        %v769 = vunpack.c.l.b16 %v359
        %v770 = vunpack.c.l.b16 %v360
        %v771 = vunpack.c.l.b16 %v361
        %v772 = vunpack.c.l.b16 %v362
        %v773 = vunpack.c.l.b16 %v363
        %v774 = vunpack.c.l.b16 %v364
        %v775 = vunpack.c.l.b16 %v365
        %v776 = vunpack.c.l.b16 %v366
        %v777 = vunpack.c.l.b16 %v367
        %v778 = vunpack.c.l.b16 %v368
        %v779 = vunpack.c.l.b16 %v369
        %v780 = vunpack.c.l.b16 %v370
        %v781 = vunpack.c.l.b16 %v371
        %v782 = vunpack.c.l.b16 %v372
        %v783 = vunpack.c.l.b16 %v373
        %v784 = vunpack.c.l.b16 %v374
        %v785 = vunpack.c.l.b16 %v375
        %v786 = vunpack.c.l.b16 %v376
        %v787 = vunpack.c.l.b16 %v377
        %v788 = vunpack.c.l.b16 %v378
        %v789 = vunpack.c.l.b16 %v379
        %v790 = vunpack.c.l.b16 %v380
        %v791 = vunpack.c.l.b16 %v381
        %v792 = vunpack.c.l.b16 %v382
        %v793 = vunpack.c.l.b16 %v383
        %v794 = vunpack.c.l.b16 %v384
        %v795 = vunpack.c.l.b16 %v385
        %v796 = vunpack.c.l.b16 %v386
        %v797 = vunpack.c.l.b16 %v387
        %v798 = vunpack.c.l.b16 %v388
        %v799 = vunpack.c.l.b16 %v389
        %v800 = vunpack.c.l.b16 %v390
        %v801 = vunpack.c.l.b16 %v391
        %v802 = vunpack.c.l.b16 %v392
        %v803 = vunpack.c.l.b16 %v393
        %v804 = vunpack.c.l.b16 %v394
        %v805 = vunpack.c.l.b16 %v395
        %v806 = vunpack.c.l.b16 %v396
        %v807 = vunpack.c.l.b16 %v397
        %v808 = vunpack.c.l.b16 %v398
        %v809 = vunpack.c.l.b16 %v399
        %v810 = vunpack.c.l.b16 %v400
        %v811 = vunpack.c.l.b16 %v401
        %v812 = vunpack.c.l.b16 %v402
        %v813 = vunpack.c.l.b16 %v403
        %v814 = vunpack.c.l.b16 %v404
        %v815 = vunpack.c.l.b16 %v405
        %v816 = vunpack.c.l.b16 %v406
        %v817 = vunpack.c.l.b16 %v407
        %v818 = vunpack.c.l.b16 %v408
        %v819 = vunpack.c.l.b16 %v409
        %v820 = vunpack.c.l.b16 %v410
        %v821 = vunpack.c.l.b16 %v411
        %v822 = vunpack.c.l.b16 %v412
        %v823 = vunpack.c.l.b16 %v413
        %v824 = vunpack.c.l.b16 %v414
        %v825 = vunpack.c.l.b16 %v415
        %v826 = vunpack.c.l.b16 %v416
        %v827 = vunpack.c.l.b16 %v417
        %v828 = vunpack.c.l.b16 %v418
        %v829 = vunpack.c.l.b16 %v419
        %v830 = vunpack.c.l.b16 %v420
        %v831 = vunpack.c.l.b16 %v421
        %v832 = vunpack.c.l.b16 %v422
        %v833 = vunpack.c.l.b16 %v423
        %v834 = vunpack.c.l.b16 %v424
        %v835 = vunpack.c.l.b16 %v425
        %v836 = vunpack.c.l.b16 %v426
        %v837 = vunpack.c.l.b16 %v427
        %v838 = vunpack.c.l.b16 %v428
        %v839 = vunpack.c.l.b16 %v429
        %v840 = vunpack.c.l.b16 %v430
        %v841 = vunpack.c.l.b16 %v431
        %v842 = vunpack.c.l.b16 %v432
        %v843 = vunpack.c.l.b16 %v433
        %v844 = vunpack.c.l.b16 %v434
        %v845 = vunpack.c.l.b16 %v435
        %v846 = vunpack.c.l.b16 %v436
        %v847 = vunpack.c.l.b16 %v437
        %v848 = vunpack.c.l.b16 %v438
        %v849 = vunpack.c.l.b16 %v439
        %v850 = vunpack.c.l.b16 %v440
        %v851 = vunpack.c.l.b16 %v441
        %v852 = vunpack.c.l.b16 %v442
        %v853 = vunpack.c.l.b16 %v443
        %v854 = vunpack.c.l.b16 %v444
        %v855 = vunpack.c.l.b16 %v445
        %v856 = vunpack.c.l.b16 %v446
        %v857 = vunpack.c.l.b16 %v447
        %v858 = vunpack.c.l.b16 %v448
        %v859 = vunpack.c.l.b16 %v449
        %v860 = vunpack.c.l.b16 %v450
        %v861 = vunpack.c.l.b16 %v451
        %v862 = vunpack.c.l.b16 %v452
        %v863 = vunpack.c.l.b16 %v453
        %v864 = vunpack.c.l.b16 %v454
        %v865 = vunpack.c.l.b16 %v455
        %v866 = vunpack.c.l.b16 %v456
        %v867 = vunpack.c.l.b16 %v457
        %v868 = vunpack.c.l.b16 %v458
        %v869 = vunpack.c.l.b16 %v459
        %v870 = vunpack.c.l.b16 %v460
        %v871 = vunpack.c.l.b16 %v461
        %v872 = vunpack.c.l.b16 %v462
        %v873 = vunpack.c.l.b16 %v463
        %v874 = vunpack.c.l.b16 %v464
        %v875 = vunpack.c.l.b16 %v465
        %v876 = vunpack.c.l.b16 %v466
        %v877 = vunpack.c.l.b16 %v467
        %v878 = vunpack.c.l.b16 %v468
        %v879 = vunpack.c.l.b16 %v469
        %v880 = vunpack.c.l.b16 %v470
        %v881 = vunpack.c.l.b16 %v471
        %v882 = vunpack.c.l.b16 %v472
        %v883 = vunpack.c.l.b16 %v473
        %v884 = vunpack.c.l.b16 %v474
        %v885 = vunpack.c.l.b16 %v475
        %v886 = vunpack.c.l.b16 %v476
        %v887 = vunpack.c.l.b16 %v477
        %v888 = vunpack.c.l.b16 %v478
        %v889 = vunpack.c.l.b16 %v479
        %v890 = vunpack.c.l.b16 %v480
        %v891 = vunpack.c.l.b16 %v481
        %v892 = vpack.c.b16 %v689, %v688
        %v893 = vpack.c.b16 %v691, %v690
        %v894 = vpack.c.b16 %v693, %v692
        %v895 = vpack.c.b16 %v695, %v694
        %v896 = vpack.c.b16 %v697, %v696
        %v897 = vpack.c.b16 %v699, %v698
        %v898 = vpack.c.b16 %v701, %v700
        %v899 = vpack.c.b16 %v703, %v702
        %v900 = vpack.c.b16 %v705, %v704
        %v901 = vpack.c.b16 %v707, %v706
        %v902 = vpack.c.b16 %v709, %v708
        %v903 = vpack.c.b16 %v711, %v710
        %v904 = vpack.c.b16 %v713, %v712
        %v905 = vpack.c.b16 %v715, %v714
        %v906 = vpack.c.b16 %v717, %v716
        %v907 = vpack.c.b16 %v719, %v718
        %v908 = vpack.c.b16 %v721, %v720
        %v909 = vpack.c.b16 %v723, %v722
        %v910 = vpack.c.b16 %v725, %v724
        %v911 = vpack.c.b16 %v727, %v726
        %v912 = vpack.c.b16 %v729, %v728
        %v913 = vpack.c.b16 %v731, %v730
        %v914 = vpack.c.b16 %v733, %v732
        %v915 = vpack.c.b16 %v735, %v734
        %v916 = vpack.c.b16 %v737, %v736
        %v917 = vpack.c.b16 %v739, %v738
        %v918 = vpack.c.b16 %v741, %v740
        %v919 = vpack.c.b16 %v743, %v742
        %v920 = vpack.c.b16 %v745, %v744
        %v921 = vpack.c.b16 %v747, %v746
        %v922 = vpack.c.b16 %v749, %v748
        %v923 = vpack.c.b16 %v751, %v750
        %v924 = vpack.c.b16 %v753, %v752
        %v925 = vpack.c.b16 %v755, %v754
        %v926 = vpack.c.b16 %v757, %v756
        %v927 = vpack.c.b16 %v759, %v758
        %v928 = vpack.c.b16 %v761, %v760
        %v929 = vpack.c.b16 %v763, %v762
        %v930 = vpack.c.b16 %v765, %v764
        %v931 = vpack.c.b16 %v767, %v766
        %v932 = vpack.c.b16 %v769, %v768
        %v933 = vpack.c.b16 %v771, %v770
        %v934 = vpack.c.b16 %v773, %v772
        %v935 = vpack.c.b16 %v775, %v774
        %v936 = vpack.c.b16 %v777, %v776
        %v937 = vpack.c.b16 %v779, %v778
        %v938 = vpack.c.b16 %v781, %v780
        %v939 = vpack.c.b16 %v783, %v782
        %v940 = vpack.c.b16 %v785, %v784
        %v941 = vpack.c.b16 %v787, %v786
        %v942 = vpack.c.b16 %v789, %v788
        %v943 = vpack.c.b16 %v791, %v790
        %v944 = vpack.c.b16 %v793, %v792
        %v945 = vpack.c.b16 %v795, %v794
        %v946 = vpack.c.b16 %v797, %v796
        %v947 = vpack.c.b16 %v799, %v798
        %v948 = vpack.c.b16 %v801, %v800
        %v949 = vpack.c.b16 %v803, %v802
        %v950 = vpack.c.b16 %v805, %v804
        %v951 = vpack.c.b16 %v807, %v806
        %v952 = vpack.c.b16 %v809, %v808
        %v953 = vpack.c.b16 %v811, %v810
        %v954 = vpack.c.b16 %v813, %v812
        %v955 = vpack.c.b16 %v815, %v814
        %v956 = vpack.c.b16 %v817, %v816
        %v957 = vpack.c.b16 %v819, %v818
        %v958 = vpack.c.b16 %v821, %v820
        %v959 = vpack.c.b16 %v823, %v822
        %v960 = vpack.c.b16 %v825, %v824
        %v961 = vpack.c.b16 %v827, %v826
        %v962 = vpack.c.b16 %v829, %v828
        %v963 = vpack.c.b16 %v831, %v830
        %v964 = vpack.c.b16 %v833, %v832
        %v965 = vpack.c.b16 %v835, %v834
        %v966 = vpack.c.b16 %v837, %v836
        %v967 = vpack.c.b16 %v839, %v838
        %v968 = vpack.c.b16 %v841, %v840
        %v969 = vpack.c.b16 %v843, %v842
        %v970 = vpack.c.b16 %v845, %v844
        %v971 = vpack.c.b16 %v847, %v846
        %v972 = vpack.c.b16 %v849, %v848
        %v973 = vpack.c.b16 %v851, %v850
        %v974 = vpack.c.b16 %v853, %v852
        %v975 = vpack.c.b16 %v855, %v854
        %v976 = vpack.c.b16 %v857, %v856
        %v977 = vpack.c.b16 %v859, %v858
        %v978 = vpack.c.b16 %v861, %v860
        %v979 = vpack.c.b16 %v863, %v862
        %v980 = vpack.c.b16 %v865, %v864
        %v981 = vpack.c.b16 %v867, %v866
        %v982 = vpack.c.b16 %v869, %v868
        %v983 = vpack.c.b16 %v871, %v870
        %v984 = vpack.c.b16 %v873, %v872
        %v985 = vpack.c.b16 %v875, %v874
        %v986 = vpack.c.b16 %v877, %v876
        %v987 = vpack.c.b16 %v879, %v878
        %v988 = vpack.c.b16 %v881, %v880
        %v989 = vpack.c.b16 %v883, %v882
        %v990 = vpack.c.b16 %v885, %v884
        %v991 = vpack.c.b16 %v887, %v886
        %v992 = vpack.c.b16 %v889, %v888
        %v993 = vpack.c.b16 %v891, %v890
        %v996 = vunpack.c.l.b16 %v482
        %v997 = vunpack.c.l.b16 %v483
        %v998 = vpack.c.b16 %v997, %v996
        %vm999 = vcmask 72704
        %v1001 = vsel %vm999, %v892, 0
        %v1004 = vsel %vm999, %v893, 0
        %v1007 = vsel %vm999, %v894, 0
        %v1010 = vsel %vm999, %v895, 0
        %v1013 = vsel %vm999, %v896, 0
        %v1016 = vsel %vm999, %v897, 0
        %v1019 = vsel %vm999, %v898, 0
        %v1022 = vsel %vm999, %v899, 0
        %v1025 = vsel %vm999, %v900, 0
        %v1028 = vsel %vm999, %v901, 0
        %v1031 = vsel %vm999, %v902, 0
        %v1034 = vsel %vm999, %v903, 0
        %v1037 = vsel %vm999, %v904, 0
        %v1040 = vsel %vm999, %v905, 0
        %v1043 = vsel %vm999, %v906, 0
        %v1046 = vsel %vm999, %v907, 0
        %v1049 = vsel %vm999, %v908, 0
        %v1052 = vsel %vm999, %v909, 0
        %v1055 = vsel %vm999, %v910, 0
        %v1058 = vsel %vm999, %v911, 0
        %v1061 = vsel %vm999, %v912, 0
        %v1064 = vsel %vm999, %v913, 0
        %v1067 = vsel %vm999, %v914, 0
        %v1070 = vsel %vm999, %v915, 0
        %v1073 = vsel %vm999, %v916, 0
        %v1076 = vsel %vm999, %v917, 0
        %v1079 = vsel %vm999, %v918, 0
        %v1082 = vsel %vm999, %v919, 0
        %v1085 = vsel %vm999, %v920, 0
        %v1088 = vsel %vm999, %v921, 0
        %v1091 = vsel %vm999, %v922, 0
        %v1094 = vsel %vm999, %v923, 0
        %v1097 = vsel %vm999, %v924, 0
        %v1100 = vsel %vm999, %v925, 0
        %v1103 = vsel %vm999, %v926, 0
        %v1106 = vsel %vm999, %v927, 0
        %v1109 = vsel %vm999, %v928, 0
        %v1112 = vsel %vm999, %v929, 0
        %v1115 = vsel %vm999, %v930, 0
        %v1118 = vsel %vm999, %v931, 0
        %v1121 = vsel %vm999, %v932, 0
        %v1124 = vsel %vm999, %v933, 0
        %v1127 = vsel %vm999, %v934, 0
        %v1130 = vsel %vm999, %v935, 0
        %v1133 = vsel %vm999, %v936, 0
        %v1136 = vsel %vm999, %v937, 0
        %v1139 = vsel %vm999, %v938, 0
        %v1142 = vsel %vm999, %v939, 0
        %v1145 = vsel %vm999, %v940, 0
        %v1148 = vsel %vm999, %v941, 0
        %v1151 = vsel %vm999, %v942, 0
        %v1154 = vsel %vm999, %v943, 0
        %v1157 = vsel %vm999, %v944, 0
        %v1160 = vsel %vm999, %v945, 0
        %v1163 = vsel %vm999, %v946, 0
        %v1166 = vsel %vm999, %v947, 0
        %v1169 = vsel %vm999, %v948, 0
        %v1172 = vsel %vm999, %v949, 0
        %v1175 = vsel %vm999, %v950, 0
        %v1178 = vsel %vm999, %v951, 0
        %v1181 = vsel %vm999, %v952, 0
        %v1184 = vsel %vm999, %v953, 0
        %v1187 = vsel %vm999, %v954, 0
        %v1190 = vsel %vm999, %v955, 0
        %v1193 = vsel %vm999, %v956, 0
        %v1196 = vsel %vm999, %v957, 0
        %v1199 = vsel %vm999, %v958, 0
        %v1202 = vsel %vm999, %v959, 0
        %v1205 = vsel %vm999, %v960, 0
        %v1208 = vsel %vm999, %v961, 0
        %v1211 = vsel %vm999, %v962, 0
        %v1214 = vsel %vm999, %v963, 0
        %v1217 = vsel %vm999, %v964, 0
        %v1220 = vsel %vm999, %v965, 0
        %v1223 = vsel %vm999, %v966, 0
        %v1226 = vsel %vm999, %v967, 0
        %v1229 = vsel %vm999, %v968, 0
        %v1232 = vsel %vm999, %v969, 0
        %v1235 = vsel %vm999, %v970, 0
        %v1238 = vsel %vm999, %v971, 0
        %v1241 = vsel %vm999, %v972, 0
        %v1244 = vsel %vm999, %v973, 0
        %v1247 = vsel %vm999, %v974, 0
        %v1250 = vsel %vm999, %v975, 0
        %v1253 = vsel %vm999, %v976, 0
        %v1256 = vsel %vm999, %v977, 0
        %v1259 = vsel %vm999, %v978, 0
        %v1262 = vsel %vm999, %v979, 0
        %v1265 = vsel %vm999, %v980, 0
        %v1268 = vsel %vm999, %v981, 0
        %v1271 = vsel %vm999, %v982, 0
        %v1274 = vsel %vm999, %v983, 0
        %v1277 = vsel %vm999, %v984, 0
        %v1280 = vsel %vm999, %v985, 0
        %v1283 = vsel %vm999, %v986, 0
        %v1286 = vsel %vm999, %v987, 0
        %v1289 = vsel %vm999, %v988, 0
        %v1292 = vsel %vm999, %v989, 0
        %v1295 = vsel %vm999, %v990, 0
        %v1298 = vsel %vm999, %v991, 0
        %v1301 = vsel %vm999, %v992, 0
        %v1304 = vsel %vm999, %v993, 0
        %vm1306 = vcmask 1043456
        %vm1307 = vcmask 1044480
        %v1308 = vsel %vm1306, 4294967295, 65535
        %v1309 = vsel %vm1307, %v1308, 0
        %v1311 = vand.u32 %v998, %v1309
        %1313 = vmatprep.subr.bf16.mxu0 0
        %1314 = vmatpush1.bf16.msra.mxu0 %v1311
        %1315 = vmatprep.subr.bf16.mxu0 0
        %1316 = vmatpush1.bf16.msra.mxu0 0
        %1317 = vmatprep.subr.bf16.mxu0 0
        %1318 = vmatpush1.bf16.msra.mxu0 0
        %1319 = vmatprep.subr.bf16.mxu0 0
        %1320 = vmatpush1.bf16.msra.mxu0 0
        %1321 = vmatprep.subr.bf16.mxu0 0
        %1322 = vmatpush1.bf16.msra.mxu0 0
        %1323 = vmatprep.subr.bf16.mxu0 0
        %1324 = vmatpush1.bf16.msra.mxu0 0
        %1325 = vmatprep.subr.bf16.mxu0 0
        %1326 = vmatpush1.bf16.msra.mxu0 0
        %1327 = vmatprep.subr.bf16.mxu0 0
        %1328 = vmatpush1.bf16.msra.mxu0 0
        %1329 = vmatprep.subr.bf16.mxu0 0
        %1330 = vmatpush1.bf16.msra.mxu0 0
        %1331 = vmatprep.subr.bf16.mxu0 0
        %1332 = vmatpush1.bf16.msra.mxu0 0
        %1333 = vmatprep.subr.bf16.mxu0 0
        %1334 = vmatpush1.bf16.msra.mxu0 0
        %1335 = vmatprep.subr.bf16.mxu0 0
        %1336 = vmatpush1.bf16.msra.mxu0 0
        %1337 = vmatprep.subr.bf16.mxu0 0
        %1338 = vmatpush1.bf16.msra.mxu0 0
        %1339 = vmatprep.subr.bf16.mxu0 0
        %1340 = vmatpush1.bf16.msra.mxu0 0
        %1341 = vmatprep.subr.bf16.mxu0 0
        %1342 = vmatpush1.bf16.msra.mxu0 0
        %1343 = vmatprep.subr.bf16.mxu0 0
        %1344 = vmatpush1.bf16.msra.mxu0 0
        %1345 = vmatprep.mubr.bf16.mxu0 0
        %1346 = vmatmul.mubr.bf16.gmra.mrb[0].mxu0 %v1001
        %v1347 = vpop.f32.mrb[0].mxu0
        %v1348 = vadd.f32 0.0, %v1347
        %v1349 = vpop.f32.mrb[0].mxu0
        %v1350 = vpop.f32.mrb[0].mxu0
        %v1351 = vadd.f32 0.0, %v1350
        %v1352 = vpop.f32.mrb[0].mxu0
        %1353 = vmatprep.mubr.bf16.mxu0 0
        %1354 = vmatmul.mubr.bf16.gmra.mrb[0].mxu0 %v1004
        %v1355 = vpop.f32.mrb[0].mxu0
        %v1356 = vadd.f32 0.0, %v1355
        %v1357 = vpop.f32.mrb[0].mxu0
        %v1358 = vpop.f32.mrb[0].mxu0
        %v1359 = vadd.f32 0.0, %v1358
        %v1360 = vpop.f32.mrb[0].mxu0
        %1361 = vmatprep.mubr.bf16.mxu0 0
        %1362 = vmatmul.mubr.bf16.gmra.mrb[0].mxu0 %v1007
        %v1363 = vpop.f32.mrb[0].mxu0
        %v1364 = vadd.f32 0.0, %v1363
        %v1365 = vpop.f32.mrb[0].mxu0
        %v1366 = vpop.f32.mrb[0].mxu0
        %v1367 = vadd.f32 0.0, %v1366
        %v1368 = vpop.f32.mrb[0].mxu0
        %1369 = vmatprep.mubr.bf16.mxu0 0
        %1370 = vmatmul.mubr.bf16.gmra.mrb[0].mxu0 %v1010
        %v1371 = vpop.f32.mrb[0].mxu0
        %v1372 = vadd.f32 0.0, %v1371
        %v1373 = vpop.f32.mrb[0].mxu0
        %v1374 = vpop.f32.mrb[0].mxu0
        %v1375 = vadd.f32 0.0, %v1374
        %v1376 = vpop.f32.mrb[0].mxu0
        %1377 = vmatprep.mubr.bf16.mxu0 0
        %1378 = vmatmul.mubr.bf16.gmra.mrb[0].mxu0 %v1013
        %v1379 = vpop.f32.mrb[0].mxu0
        %v1380 = vadd.f32 0.0, %v1379
        %v1381 = vpop.f32.mrb[0].mxu0
        %v1382 = vpop.f32.mrb[0].mxu0
        %v1383 = vadd.f32 0.0, %v1382
        %v1384 = vpop.f32.mrb[0].mxu0
        %1385 = vmatprep.mubr.bf16.mxu0 0
        %1386 = vmatmul.mubr.bf16.gmra.mrb[0].mxu0 %v1016
        %v1387 = vpop.f32.mrb[0].mxu0
        %v1388 = vadd.f32 0.0, %v1387
        %v1389 = vpop.f32.mrb[0].mxu0
        %v1390 = vpop.f32.mrb[0].mxu0
        %v1391 = vadd.f32 0.0, %v1390
        %v1392 = vpop.f32.mrb[0].mxu0
        %1393 = vmatprep.mubr.bf16.mxu0 0
        %1394 = vmatmul.mubr.bf16.gmra.mrb[0].mxu0 %v1019
        %v1395 = vpop.f32.mrb[0].mxu0
        %v1396 = vadd.f32 0.0, %v1395
        %v1397 = vpop.f32.mrb[0].mxu0
        %v1398 = vpop.f32.mrb[0].mxu0
        %v1399 = vadd.f32 0.0, %v1398
        %v1400 = vpop.f32.mrb[0].mxu0
        %1401 = vmatprep.mubr.bf16.mxu0 0
        %1402 = vmatmul.mubr.bf16.gmra.mrb[0].mxu0 %v1022
        %v1403 = vpop.f32.mrb[0].mxu0
        %v1404 = vadd.f32 0.0, %v1403
        %v1405 = vpop.f32.mrb[0].mxu0
        %v1406 = vpop.f32.mrb[0].mxu0
        %v1407 = vadd.f32 0.0, %v1406
        %v1408 = vpop.f32.mrb[0].mxu0
        %1409 = vmatprep.mubr.bf16.mxu0 0
        %1410 = vmatmul.mubr.bf16.gmra.mrb[0].mxu0 %v1025
        %v1411 = vpop.f32.mrb[0].mxu0
        %v1412 = vadd.f32 0.0, %v1411
        %v1413 = vpop.f32.mrb[0].mxu0
        %v1414 = vpop.f32.mrb[0].mxu0
        %v1415 = vadd.f32 0.0, %v1414
        %v1416 = vpop.f32.mrb[0].mxu0
        %1417 = vmatprep.mubr.bf16.mxu0 0
        %1418 = vmatmul.mubr.bf16.gmra.mrb[0].mxu0 %v1028
        %v1419 = vpop.f32.mrb[0].mxu0
        %v1420 = vadd.f32 0.0, %v1419
        %v1421 = vpop.f32.mrb[0].mxu0
        %v1422 = vpop.f32.mrb[0].mxu0
        %v1423 = vadd.f32 0.0, %v1422
        %v1424 = vpop.f32.mrb[0].mxu0
        %1425 = vmatprep.mubr.bf16.mxu0 0
        %1426 = vmatmul.mubr.bf16.gmra.mrb[0].mxu0 %v1031
        %v1427 = vpop.f32.mrb[0].mxu0
        %v1428 = vadd.f32 0.0, %v1427
        %v1429 = vpop.f32.mrb[0].mxu0
        %v1430 = vpop.f32.mrb[0].mxu0
        %v1431 = vadd.f32 0.0, %v1430
        %v1432 = vpop.f32.mrb[0].mxu0
        %1433 = vmatprep.mubr.bf16.mxu0 0
        %1434 = vmatmul.mubr.bf16.gmra.mrb[0].mxu0 %v1034
        %v1435 = vpop.f32.mrb[0].mxu0
        %v1436 = vadd.f32 0.0, %v1435
        %v1437 = vpop.f32.mrb[0].mxu0
        %v1438 = vpop.f32.mrb[0].mxu0
        %v1439 = vadd.f32 0.0, %v1438
        %v1440 = vpop.f32.mrb[0].mxu0
        %1441 = vmatprep.mubr.bf16.mxu0 0
        %1442 = vmatmul.mubr.bf16.gmra.mrb[0].mxu0 %v1037
        %v1443 = vpop.f32.mrb[0].mxu0
        %v1444 = vadd.f32 0.0, %v1443
        %v1445 = vpop.f32.mrb[0].mxu0
        %v1446 = vpop.f32.mrb[0].mxu0
        %v1447 = vadd.f32 0.0, %v1446
        %v1448 = vpop.f32.mrb[0].mxu0
        %1449 = vmatprep.mubr.bf16.mxu0 0
        %1450 = vmatmul.mubr.bf16.gmra.mrb[0].mxu0 %v1040
        %v1451 = vpop.f32.mrb[0].mxu0
        %v1452 = vadd.f32 0.0, %v1451
        %v1453 = vpop.f32.mrb[0].mxu0
        %v1454 = vpop.f32.mrb[0].mxu0
        %v1455 = vadd.f32 0.0, %v1454
        %v1456 = vpop.f32.mrb[0].mxu0
        %1457 = vmatprep.mubr.bf16.mxu0 0
        %1458 = vmatmul.mubr.bf16.gmra.mrb[0].mxu0 %v1043
        %v1459 = vpop.f32.mrb[0].mxu0
        %v1460 = vadd.f32 0.0, %v1459
        %v1461 = vpop.f32.mrb[0].mxu0
        %v1462 = vpop.f32.mrb[0].mxu0
        %v1463 = vadd.f32 0.0, %v1462
        %v1464 = vpop.f32.mrb[0].mxu0
        %1465 = vmatprep.mubr.bf16.mxu0 0
        %1466 = vmatmul.mubr.bf16.gmra.mrb[0].mxu0 %v1046
        %v1467 = vpop.f32.mrb[0].mxu0
        %v1468 = vadd.f32 0.0, %v1467
        %v1469 = vpop.f32.mrb[0].mxu0
        %v1470 = vpop.f32.mrb[0].mxu0
        %v1471 = vadd.f32 0.0, %v1470
        %v1472 = vpop.f32.mrb[0].mxu0
        %1473 = vmatprep.mubr.bf16.mxu0 0
        %1474 = vmatmul.mubr.bf16.gmra.mrb[0].mxu0 %v1049
        %v1475 = vpop.f32.mrb[0].mxu0
        %v1476 = vadd.f32 0.0, %v1475
        %v1477 = vpop.f32.mrb[0].mxu0
        %v1478 = vpop.f32.mrb[0].mxu0
        %v1479 = vadd.f32 0.0, %v1478
        %v1480 = vpop.f32.mrb[0].mxu0
        %1481 = vmatprep.mubr.bf16.mxu0 0
        %1482 = vmatmul.mubr.bf16.gmra.mrb[0].mxu0 %v1052
        %v1483 = vpop.f32.mrb[0].mxu0
        %v1484 = vadd.f32 0.0, %v1483
        %v1485 = vpop.f32.mrb[0].mxu0
        %v1486 = vpop.f32.mrb[0].mxu0
        %v1487 = vadd.f32 0.0, %v1486
        %v1488 = vpop.f32.mrb[0].mxu0
        %1489 = vmatprep.mubr.bf16.mxu0 0
        %1490 = vmatmul.mubr.bf16.gmra.mrb[0].mxu0 %v1055
        %v1491 = vpop.f32.mrb[0].mxu0
        %v1492 = vadd.f32 0.0, %v1491
        %v1493 = vpop.f32.mrb[0].mxu0
        %v1494 = vpop.f32.mrb[0].mxu0
        %v1495 = vadd.f32 0.0, %v1494
        %v1496 = vpop.f32.mrb[0].mxu0
        %1497 = vmatprep.mubr.bf16.mxu0 0
        %1498 = vmatmul.mubr.bf16.gmra.mrb[0].mxu0 %v1058
        %v1499 = vpop.f32.mrb[0].mxu0
        %v1500 = vadd.f32 0.0, %v1499
        %v1501 = vpop.f32.mrb[0].mxu0
        %v1502 = vpop.f32.mrb[0].mxu0
        %v1503 = vadd.f32 0.0, %v1502
        %v1504 = vpop.f32.mrb[0].mxu0
        %1505 = vmatprep.mubr.bf16.mxu0 0
        %1506 = vmatmul.mubr.bf16.gmra.mrb[0].mxu0 %v1061
        %v1507 = vpop.f32.mrb[0].mxu0
        %v1508 = vadd.f32 0.0, %v1507
        %v1509 = vpop.f32.mrb[0].mxu0
        %v1510 = vpop.f32.mrb[0].mxu0
        %v1511 = vadd.f32 0.0, %v1510
        %v1512 = vpop.f32.mrb[0].mxu0
        %1513 = vmatprep.mubr.bf16.mxu0 0
        %1514 = vmatmul.mubr.bf16.gmra.mrb[0].mxu0 %v1064
        %v1515 = vpop.f32.mrb[0].mxu0
        %v1516 = vadd.f32 0.0, %v1515
        %v1517 = vpop.f32.mrb[0].mxu0
        %v1518 = vpop.f32.mrb[0].mxu0
        %v1519 = vadd.f32 0.0, %v1518
        %v1520 = vpop.f32.mrb[0].mxu0
        %1521 = vmatprep.mubr.bf16.mxu0 0
        %1522 = vmatmul.mubr.bf16.gmra.mrb[0].mxu0 %v1067
        %v1523 = vpop.f32.mrb[0].mxu0
        %v1524 = vadd.f32 0.0, %v1523
        %v1525 = vpop.f32.mrb[0].mxu0
        %v1526 = vpop.f32.mrb[0].mxu0
        %v1527 = vadd.f32 0.0, %v1526
        %v1528 = vpop.f32.mrb[0].mxu0
        %1529 = vmatprep.mubr.bf16.mxu0 0
        %1530 = vmatmul.mubr.bf16.gmra.mrb[0].mxu0 %v1070
        %v1531 = vpop.f32.mrb[0].mxu0
        %v1532 = vadd.f32 0.0, %v1531
        %v1533 = vpop.f32.mrb[0].mxu0
        %v1534 = vpop.f32.mrb[0].mxu0
        %v1535 = vadd.f32 0.0, %v1534
        %v1536 = vpop.f32.mrb[0].mxu0
        %1537 = vmatprep.mubr.bf16.mxu0 0
        %1538 = vmatmul.mubr.bf16.gmra.mrb[0].mxu0 %v1073
        %v1539 = vpop.f32.mrb[0].mxu0
        %v1540 = vadd.f32 0.0, %v1539
        %v1541 = vpop.f32.mrb[0].mxu0
        %v1542 = vpop.f32.mrb[0].mxu0
        %v1543 = vadd.f32 0.0, %v1542
        %v1544 = vpop.f32.mrb[0].mxu0
        %1545 = vmatprep.mubr.bf16.mxu0 0
        %1546 = vmatmul.mubr.bf16.gmra.mrb[0].mxu0 %v1076
        %v1547 = vpop.f32.mrb[0].mxu0
        %v1548 = vadd.f32 0.0, %v1547
        %v1549 = vpop.f32.mrb[0].mxu0
        %v1550 = vpop.f32.mrb[0].mxu0
        %v1551 = vadd.f32 0.0, %v1550
        %v1552 = vpop.f32.mrb[0].mxu0
        %1553 = vmatprep.mubr.bf16.mxu0 0
        %1554 = vmatmul.mubr.bf16.gmra.mrb[0].mxu0 %v1079
        %v1555 = vpop.f32.mrb[0].mxu0
        %v1556 = vadd.f32 0.0, %v1555
        %v1557 = vpop.f32.mrb[0].mxu0
        %v1558 = vpop.f32.mrb[0].mxu0
        %v1559 = vadd.f32 0.0, %v1558
        %v1560 = vpop.f32.mrb[0].mxu0
        %1561 = vmatprep.mubr.bf16.mxu0 0
        %1562 = vmatmul.mubr.bf16.gmra.mrb[0].mxu0 %v1082
        %v1563 = vpop.f32.mrb[0].mxu0
        %v1564 = vadd.f32 0.0, %v1563
        %v1565 = vpop.f32.mrb[0].mxu0
        %v1566 = vpop.f32.mrb[0].mxu0
        %v1567 = vadd.f32 0.0, %v1566
        %v1568 = vpop.f32.mrb[0].mxu0
        %1569 = vmatprep.mubr.bf16.mxu0 0
        %1570 = vmatmul.mubr.bf16.gmra.mrb[0].mxu0 %v1085
        %v1571 = vpop.f32.mrb[0].mxu0
        %v1572 = vadd.f32 0.0, %v1571
        %v1573 = vpop.f32.mrb[0].mxu0
        %v1574 = vpop.f32.mrb[0].mxu0
        %v1575 = vadd.f32 0.0, %v1574
        %v1576 = vpop.f32.mrb[0].mxu0
        %1577 = vmatprep.mubr.bf16.mxu0 0
        %1578 = vmatmul.mubr.bf16.gmra.mrb[0].mxu0 %v1088
        %v1579 = vpop.f32.mrb[0].mxu0
        %v1580 = vadd.f32 0.0, %v1579
        %v1581 = vpop.f32.mrb[0].mxu0
        %v1582 = vpop.f32.mrb[0].mxu0
        %v1583 = vadd.f32 0.0, %v1582
        %v1584 = vpop.f32.mrb[0].mxu0
        %1585 = vmatprep.mubr.bf16.mxu0 0
        %1586 = vmatmul.mubr.bf16.gmra.mrb[0].mxu0 %v1091
        %v1587 = vpop.f32.mrb[0].mxu0
        %v1588 = vadd.f32 0.0, %v1587
        %v1589 = vpop.f32.mrb[0].mxu0
        %v1590 = vpop.f32.mrb[0].mxu0
        %v1591 = vadd.f32 0.0, %v1590
        %v1592 = vpop.f32.mrb[0].mxu0
        %1593 = vmatprep.mubr.bf16.mxu0 0
        %1594 = vmatmul.mubr.bf16.gmra.mrb[0].mxu0 %v1094
        %v1595 = vpop.f32.mrb[0].mxu0
        %v1596 = vadd.f32 0.0, %v1595
        %v1597 = vpop.f32.mrb[0].mxu0
        %v1598 = vpop.f32.mrb[0].mxu0
        %v1599 = vadd.f32 0.0, %v1598
        %v1600 = vpop.f32.mrb[0].mxu0
        %1601 = vmatprep.mubr.bf16.mxu0 0
        %1602 = vmatmul.mubr.bf16.gmra.mrb[0].mxu0 %v1097
        %v1603 = vpop.f32.mrb[0].mxu0
        %v1604 = vadd.f32 0.0, %v1603
        %v1605 = vpop.f32.mrb[0].mxu0
        %v1606 = vpop.f32.mrb[0].mxu0
        %v1607 = vadd.f32 0.0, %v1606
        %v1608 = vpop.f32.mrb[0].mxu0
        %1609 = vmatprep.mubr.bf16.mxu0 0
        %1610 = vmatmul.mubr.bf16.gmra.mrb[0].mxu0 %v1100
        %v1611 = vpop.f32.mrb[0].mxu0
        %v1612 = vadd.f32 0.0, %v1611
        %v1613 = vpop.f32.mrb[0].mxu0
        %v1614 = vpop.f32.mrb[0].mxu0
        %v1615 = vadd.f32 0.0, %v1614
        %v1616 = vpop.f32.mrb[0].mxu0
        %1617 = vmatprep.mubr.bf16.mxu0 0
        %1618 = vmatmul.mubr.bf16.gmra.mrb[0].mxu0 %v1103
        %v1619 = vpop.f32.mrb[0].mxu0
        %v1620 = vadd.f32 0.0, %v1619
        %v1621 = vpop.f32.mrb[0].mxu0
        %v1622 = vpop.f32.mrb[0].mxu0
        %v1623 = vadd.f32 0.0, %v1622
        %v1624 = vpop.f32.mrb[0].mxu0
        %1625 = vmatprep.mubr.bf16.mxu0 0
        %1626 = vmatmul.mubr.bf16.gmra.mrb[0].mxu0 %v1106
        %v1627 = vpop.f32.mrb[0].mxu0
        %v1628 = vadd.f32 0.0, %v1627
        %v1629 = vpop.f32.mrb[0].mxu0
        %v1630 = vpop.f32.mrb[0].mxu0
        %v1631 = vadd.f32 0.0, %v1630
        %v1632 = vpop.f32.mrb[0].mxu0
        %1633 = vmatprep.mubr.bf16.mxu0 0
        %1634 = vmatmul.mubr.bf16.gmra.mrb[0].mxu0 %v1109
        %v1635 = vpop.f32.mrb[0].mxu0
        %v1636 = vadd.f32 0.0, %v1635
        %v1637 = vpop.f32.mrb[0].mxu0
        %v1638 = vpop.f32.mrb[0].mxu0
        %v1639 = vadd.f32 0.0, %v1638
        %v1640 = vpop.f32.mrb[0].mxu0
        %1641 = vmatprep.mubr.bf16.mxu0 0
        %1642 = vmatmul.mubr.bf16.gmra.mrb[0].mxu0 %v1112
        %v1643 = vpop.f32.mrb[0].mxu0
        %v1644 = vadd.f32 0.0, %v1643
        %v1645 = vpop.f32.mrb[0].mxu0
        %v1646 = vpop.f32.mrb[0].mxu0
        %v1647 = vadd.f32 0.0, %v1646
        %v1648 = vpop.f32.mrb[0].mxu0
        %1649 = vmatprep.mubr.bf16.mxu0 0
        %1650 = vmatmul.mubr.bf16.gmra.mrb[0].mxu0 %v1115
        %v1651 = vpop.f32.mrb[0].mxu0
        %v1652 = vadd.f32 0.0, %v1651
        %v1653 = vpop.f32.mrb[0].mxu0
        %v1654 = vpop.f32.mrb[0].mxu0
        %v1655 = vadd.f32 0.0, %v1654
        %v1656 = vpop.f32.mrb[0].mxu0
        %1657 = vmatprep.mubr.bf16.mxu0 0
        %1658 = vmatmul.mubr.bf16.gmra.mrb[0].mxu0 %v1118
        %v1659 = vpop.f32.mrb[0].mxu0
        %v1660 = vadd.f32 0.0, %v1659
        %v1661 = vpop.f32.mrb[0].mxu0
        %v1662 = vpop.f32.mrb[0].mxu0
        %v1663 = vadd.f32 0.0, %v1662
        %v1664 = vpop.f32.mrb[0].mxu0
        %1665 = vmatprep.mubr.bf16.mxu0 0
        %1666 = vmatmul.mubr.bf16.gmra.mrb[0].mxu0 %v1121
        %v1667 = vpop.f32.mrb[0].mxu0
        %v1668 = vadd.f32 0.0, %v1667
        %v1669 = vpop.f32.mrb[0].mxu0
        %v1670 = vpop.f32.mrb[0].mxu0
        %v1671 = vadd.f32 0.0, %v1670
        %v1672 = vpop.f32.mrb[0].mxu0
        %1673 = vmatprep.mubr.bf16.mxu0 0
        %1674 = vmatmul.mubr.bf16.gmra.mrb[0].mxu0 %v1124
        %v1675 = vpop.f32.mrb[0].mxu0
        %v1676 = vadd.f32 0.0, %v1675
        %v1677 = vpop.f32.mrb[0].mxu0
        %v1678 = vpop.f32.mrb[0].mxu0
        %v1679 = vadd.f32 0.0, %v1678
        %v1680 = vpop.f32.mrb[0].mxu0
        %1681 = vmatprep.mubr.bf16.mxu0 0
        %1682 = vmatmul.mubr.bf16.gmra.mrb[0].mxu0 %v1127
        %v1683 = vpop.f32.mrb[0].mxu0
        %v1684 = vadd.f32 0.0, %v1683
        %v1685 = vpop.f32.mrb[0].mxu0
        %v1686 = vpop.f32.mrb[0].mxu0
        %v1687 = vadd.f32 0.0, %v1686
        %v1688 = vpop.f32.mrb[0].mxu0
        %1689 = vmatprep.mubr.bf16.mxu0 0
        %1690 = vmatmul.mubr.bf16.gmra.mrb[0].mxu0 %v1130
        %v1691 = vpop.f32.mrb[0].mxu0
        %v1692 = vadd.f32 0.0, %v1691
        %v1693 = vpop.f32.mrb[0].mxu0
        %v1694 = vpop.f32.mrb[0].mxu0
        %v1695 = vadd.f32 0.0, %v1694
        %v1696 = vpop.f32.mrb[0].mxu0
        %1697 = vmatprep.mubr.bf16.mxu0 0
        %1698 = vmatmul.mubr.bf16.gmra.mrb[0].mxu0 %v1133
        %v1699 = vpop.f32.mrb[0].mxu0
        %v1700 = vadd.f32 0.0, %v1699
        %v1701 = vpop.f32.mrb[0].mxu0
        %v1702 = vpop.f32.mrb[0].mxu0
        %v1703 = vadd.f32 0.0, %v1702
        %v1704 = vpop.f32.mrb[0].mxu0
        %1705 = vmatprep.mubr.bf16.mxu0 0
        %1706 = vmatmul.mubr.bf16.gmra.mrb[0].mxu0 %v1136
        %v1707 = vpop.f32.mrb[0].mxu0
        %v1708 = vadd.f32 0.0, %v1707
        %v1709 = vpop.f32.mrb[0].mxu0
        %v1710 = vpop.f32.mrb[0].mxu0
        %v1711 = vadd.f32 0.0, %v1710
        %v1712 = vpop.f32.mrb[0].mxu0
        %1713 = vmatprep.mubr.bf16.mxu0 0
        %1714 = vmatmul.mubr.bf16.gmra.mrb[0].mxu0 %v1139
        %v1715 = vpop.f32.mrb[0].mxu0
        %v1716 = vadd.f32 0.0, %v1715
        %v1717 = vpop.f32.mrb[0].mxu0
        %v1718 = vpop.f32.mrb[0].mxu0
        %v1719 = vadd.f32 0.0, %v1718
        %v1720 = vpop.f32.mrb[0].mxu0
        %1721 = vmatprep.mubr.bf16.mxu0 0
        %1722 = vmatmul.mubr.bf16.gmra.mrb[0].mxu0 %v1142
        %v1723 = vpop.f32.mrb[0].mxu0
        %v1724 = vadd.f32 0.0, %v1723
        %v1725 = vpop.f32.mrb[0].mxu0
        %v1726 = vpop.f32.mrb[0].mxu0
        %v1727 = vadd.f32 0.0, %v1726
        %v1728 = vpop.f32.mrb[0].mxu0
        %1729 = vmatprep.mubr.bf16.mxu0 0
        %1730 = vmatmul.mubr.bf16.gmra.mrb[0].mxu0 %v1145
        %v1731 = vpop.f32.mrb[0].mxu0
        %v1732 = vadd.f32 0.0, %v1731
        %v1733 = vpop.f32.mrb[0].mxu0
        %v1734 = vpop.f32.mrb[0].mxu0
        %v1735 = vadd.f32 0.0, %v1734
        %v1736 = vpop.f32.mrb[0].mxu0
        %1737 = vmatprep.mubr.bf16.mxu0 0
        %1738 = vmatmul.mubr.bf16.gmra.mrb[0].mxu0 %v1148
        %v1739 = vpop.f32.mrb[0].mxu0
        %v1740 = vadd.f32 0.0, %v1739
        %v1741 = vpop.f32.mrb[0].mxu0
        %v1742 = vpop.f32.mrb[0].mxu0
        %v1743 = vadd.f32 0.0, %v1742
        %v1744 = vpop.f32.mrb[0].mxu0
        %1745 = vmatprep.mubr.bf16.mxu0 0
        %1746 = vmatmul.mubr.bf16.gmra.mrb[0].mxu0 %v1151
        %v1747 = vpop.f32.mrb[0].mxu0
        %v1748 = vadd.f32 0.0, %v1747
        %v1749 = vpop.f32.mrb[0].mxu0
        %v1750 = vpop.f32.mrb[0].mxu0
        %v1751 = vadd.f32 0.0, %v1750
        %v1752 = vpop.f32.mrb[0].mxu0
        %1753 = vmatprep.mubr.bf16.mxu0 0
        %1754 = vmatmul.mubr.bf16.gmra.mrb[0].mxu0 %v1154
        %v1755 = vpop.f32.mrb[0].mxu0
        %v1756 = vadd.f32 0.0, %v1755
        %v1757 = vpop.f32.mrb[0].mxu0
        %v1758 = vpop.f32.mrb[0].mxu0
        %v1759 = vadd.f32 0.0, %v1758
        %v1760 = vpop.f32.mrb[0].mxu0
        %1761 = vmatprep.mubr.bf16.mxu0 0
        %1762 = vmatmul.mubr.bf16.gmra.mrb[0].mxu0 %v1157
        %v1763 = vpop.f32.mrb[0].mxu0
        %v1764 = vadd.f32 0.0, %v1763
        %v1765 = vpop.f32.mrb[0].mxu0
        %v1766 = vpop.f32.mrb[0].mxu0
        %v1767 = vadd.f32 0.0, %v1766
        %v1768 = vpop.f32.mrb[0].mxu0
        %1769 = vmatprep.mubr.bf16.mxu0 0
        %1770 = vmatmul.mubr.bf16.gmra.mrb[0].mxu0 %v1160
        %v1771 = vpop.f32.mrb[0].mxu0
        %v1772 = vadd.f32 0.0, %v1771
        %v1773 = vpop.f32.mrb[0].mxu0
        %v1774 = vpop.f32.mrb[0].mxu0
        %v1775 = vadd.f32 0.0, %v1774
        %v1776 = vpop.f32.mrb[0].mxu0
        %1777 = vmatprep.mubr.bf16.mxu0 0
        %1778 = vmatmul.mubr.bf16.gmra.mrb[0].mxu0 %v1163
        %v1779 = vpop.f32.mrb[0].mxu0
        %v1780 = vadd.f32 0.0, %v1779
        %v1781 = vpop.f32.mrb[0].mxu0
        %v1782 = vpop.f32.mrb[0].mxu0
        %v1783 = vadd.f32 0.0, %v1782
        %v1784 = vpop.f32.mrb[0].mxu0
        %1785 = vmatprep.mubr.bf16.mxu0 0
        %1786 = vmatmul.mubr.bf16.gmra.mrb[0].mxu0 %v1166
        %v1787 = vpop.f32.mrb[0].mxu0
        %v1788 = vadd.f32 0.0, %v1787
        %v1789 = vpop.f32.mrb[0].mxu0
        %v1790 = vpop.f32.mrb[0].mxu0
        %v1791 = vadd.f32 0.0, %v1790
        %v1792 = vpop.f32.mrb[0].mxu0
        %1793 = vmatprep.mubr.bf16.mxu0 0
        %1794 = vmatmul.mubr.bf16.gmra.mrb[0].mxu0 %v1169
        %v1795 = vpop.f32.mrb[0].mxu0
        %v1796 = vadd.f32 0.0, %v1795
        %v1797 = vpop.f32.mrb[0].mxu0
        %v1798 = vpop.f32.mrb[0].mxu0
        %v1799 = vadd.f32 0.0, %v1798
        %v1800 = vpop.f32.mrb[0].mxu0
        %1801 = vmatprep.mubr.bf16.mxu0 0
        %1802 = vmatmul.mubr.bf16.gmra.mrb[0].mxu0 %v1172
        %v1803 = vpop.f32.mrb[0].mxu0
        %v1804 = vadd.f32 0.0, %v1803
        %v1805 = vpop.f32.mrb[0].mxu0
        %v1806 = vpop.f32.mrb[0].mxu0
        %v1807 = vadd.f32 0.0, %v1806
        %v1808 = vpop.f32.mrb[0].mxu0
        %1809 = vmatprep.mubr.bf16.mxu0 0
        %1810 = vmatmul.mubr.bf16.gmra.mrb[0].mxu0 %v1175
        %v1811 = vpop.f32.mrb[0].mxu0
        %v1812 = vadd.f32 0.0, %v1811
        %v1813 = vpop.f32.mrb[0].mxu0
        %v1814 = vpop.f32.mrb[0].mxu0
        %v1815 = vadd.f32 0.0, %v1814
        %v1816 = vpop.f32.mrb[0].mxu0
        %1817 = vmatprep.mubr.bf16.mxu0 0
        %1818 = vmatmul.mubr.bf16.gmra.mrb[0].mxu0 %v1178
        %v1819 = vpop.f32.mrb[0].mxu0
        %v1820 = vadd.f32 0.0, %v1819
        %v1821 = vpop.f32.mrb[0].mxu0
        %v1822 = vpop.f32.mrb[0].mxu0
        %v1823 = vadd.f32 0.0, %v1822
        %v1824 = vpop.f32.mrb[0].mxu0
        %1825 = vmatprep.mubr.bf16.mxu0 0
        %1826 = vmatmul.mubr.bf16.gmra.mrb[0].mxu0 %v1181
        %v1827 = vpop.f32.mrb[0].mxu0
        %v1828 = vadd.f32 0.0, %v1827
        %v1829 = vpop.f32.mrb[0].mxu0
        %v1830 = vpop.f32.mrb[0].mxu0
        %v1831 = vadd.f32 0.0, %v1830
        %v1832 = vpop.f32.mrb[0].mxu0
        %1833 = vmatprep.mubr.bf16.mxu0 0
        %1834 = vmatmul.mubr.bf16.gmra.mrb[0].mxu0 %v1184
        %v1835 = vpop.f32.mrb[0].mxu0
        %v1836 = vadd.f32 0.0, %v1835
        %v1837 = vpop.f32.mrb[0].mxu0
        %v1838 = vpop.f32.mrb[0].mxu0
        %v1839 = vadd.f32 0.0, %v1838
        %v1840 = vpop.f32.mrb[0].mxu0
        %1841 = vmatprep.mubr.bf16.mxu0 0
        %1842 = vmatmul.mubr.bf16.gmra.mrb[0].mxu0 %v1187
        %v1843 = vpop.f32.mrb[0].mxu0
        %v1844 = vadd.f32 0.0, %v1843
        %v1845 = vpop.f32.mrb[0].mxu0
        %v1846 = vpop.f32.mrb[0].mxu0
        %v1847 = vadd.f32 0.0, %v1846
        %v1848 = vpop.f32.mrb[0].mxu0
        %1849 = vmatprep.mubr.bf16.mxu0 0
        %1850 = vmatmul.mubr.bf16.gmra.mrb[0].mxu0 %v1190
        %v1851 = vpop.f32.mrb[0].mxu0
        %v1852 = vadd.f32 0.0, %v1851
        %v1853 = vpop.f32.mrb[0].mxu0
        %v1854 = vpop.f32.mrb[0].mxu0
        %v1855 = vadd.f32 0.0, %v1854
        %v1856 = vpop.f32.mrb[0].mxu0
        %1857 = vmatprep.mubr.bf16.mxu0 0
        %1858 = vmatmul.mubr.bf16.gmra.mrb[0].mxu0 %v1193
        %v1859 = vpop.f32.mrb[0].mxu0
        %v1860 = vadd.f32 0.0, %v1859
        %v1861 = vpop.f32.mrb[0].mxu0
        %v1862 = vpop.f32.mrb[0].mxu0
        %v1863 = vadd.f32 0.0, %v1862
        %v1864 = vpop.f32.mrb[0].mxu0
        %1865 = vmatprep.mubr.bf16.mxu0 0
        %1866 = vmatmul.mubr.bf16.gmra.mrb[0].mxu0 %v1196
        %v1867 = vpop.f32.mrb[0].mxu0
        %v1868 = vadd.f32 0.0, %v1867
        %v1869 = vpop.f32.mrb[0].mxu0
        %v1870 = vpop.f32.mrb[0].mxu0
        %v1871 = vadd.f32 0.0, %v1870
        %v1872 = vpop.f32.mrb[0].mxu0
        %1873 = vmatprep.mubr.bf16.mxu0 0
        %1874 = vmatmul.mubr.bf16.gmra.mrb[0].mxu0 %v1199
        %v1875 = vpop.f32.mrb[0].mxu0
        %v1876 = vadd.f32 0.0, %v1875
        %v1877 = vpop.f32.mrb[0].mxu0
        %v1878 = vpop.f32.mrb[0].mxu0
        %v1879 = vadd.f32 0.0, %v1878
        %v1880 = vpop.f32.mrb[0].mxu0
        %1881 = vmatprep.mubr.bf16.mxu0 0
        %1882 = vmatmul.mubr.bf16.gmra.mrb[0].mxu0 %v1202
        %v1883 = vpop.f32.mrb[0].mxu0
        %v1884 = vadd.f32 0.0, %v1883
        %v1885 = vpop.f32.mrb[0].mxu0
        %v1886 = vpop.f32.mrb[0].mxu0
        %v1887 = vadd.f32 0.0, %v1886
        %v1888 = vpop.f32.mrb[0].mxu0
        %1889 = vmatprep.mubr.bf16.mxu0 0
        %1890 = vmatmul.mubr.bf16.gmra.mrb[0].mxu0 %v1205
        %v1891 = vpop.f32.mrb[0].mxu0
        %v1892 = vadd.f32 0.0, %v1891
        %v1893 = vpop.f32.mrb[0].mxu0
        %v1894 = vpop.f32.mrb[0].mxu0
        %v1895 = vadd.f32 0.0, %v1894
        %v1896 = vpop.f32.mrb[0].mxu0
        %1897 = vmatprep.mubr.bf16.mxu0 0
        %1898 = vmatmul.mubr.bf16.gmra.mrb[0].mxu0 %v1208
        %v1899 = vpop.f32.mrb[0].mxu0
        %v1900 = vadd.f32 0.0, %v1899
        %v1901 = vpop.f32.mrb[0].mxu0
        %v1902 = vpop.f32.mrb[0].mxu0
        %v1903 = vadd.f32 0.0, %v1902
        %v1904 = vpop.f32.mrb[0].mxu0
        %1905 = vmatprep.mubr.bf16.mxu0 0
        %1906 = vmatmul.mubr.bf16.gmra.mrb[0].mxu0 %v1211
        %v1907 = vpop.f32.mrb[0].mxu0
        %v1908 = vadd.f32 0.0, %v1907
        %v1909 = vpop.f32.mrb[0].mxu0
        %v1910 = vpop.f32.mrb[0].mxu0
        %v1911 = vadd.f32 0.0, %v1910
        %v1912 = vpop.f32.mrb[0].mxu0
        %1913 = vmatprep.mubr.bf16.mxu0 0
        %1914 = vmatmul.mubr.bf16.gmra.mrb[0].mxu0 %v1214
        %v1915 = vpop.f32.mrb[0].mxu0
        %v1916 = vadd.f32 0.0, %v1915
        %v1917 = vpop.f32.mrb[0].mxu0
        %v1918 = vpop.f32.mrb[0].mxu0
        %v1919 = vadd.f32 0.0, %v1918
        %v1920 = vpop.f32.mrb[0].mxu0
        %1921 = vmatprep.mubr.bf16.mxu0 0
        %1922 = vmatmul.mubr.bf16.gmra.mrb[0].mxu0 %v1217
        %v1923 = vpop.f32.mrb[0].mxu0
        %v1924 = vadd.f32 0.0, %v1923
        %v1925 = vpop.f32.mrb[0].mxu0
        %v1926 = vpop.f32.mrb[0].mxu0
        %v1927 = vadd.f32 0.0, %v1926
        %v1928 = vpop.f32.mrb[0].mxu0
        %1929 = vmatprep.mubr.bf16.mxu0 0
        %1930 = vmatmul.mubr.bf16.gmra.mrb[0].mxu0 %v1220
        %v1931 = vpop.f32.mrb[0].mxu0
        %v1932 = vadd.f32 0.0, %v1931
        %v1933 = vpop.f32.mrb[0].mxu0
        %v1934 = vpop.f32.mrb[0].mxu0
        %v1935 = vadd.f32 0.0, %v1934
        %v1936 = vpop.f32.mrb[0].mxu0
        %1937 = vmatprep.mubr.bf16.mxu0 0
        %1938 = vmatmul.mubr.bf16.gmra.mrb[0].mxu0 %v1223
        %v1939 = vpop.f32.mrb[0].mxu0
        %v1940 = vadd.f32 0.0, %v1939
        %v1941 = vpop.f32.mrb[0].mxu0
        %v1942 = vpop.f32.mrb[0].mxu0
        %v1943 = vadd.f32 0.0, %v1942
        %v1944 = vpop.f32.mrb[0].mxu0
        %1945 = vmatprep.mubr.bf16.mxu0 0
        %1946 = vmatmul.mubr.bf16.gmra.mrb[0].mxu0 %v1226
        %v1947 = vpop.f32.mrb[0].mxu0
        %v1948 = vadd.f32 0.0, %v1947
        %v1949 = vpop.f32.mrb[0].mxu0
        %v1950 = vpop.f32.mrb[0].mxu0
        %v1951 = vadd.f32 0.0, %v1950
        %v1952 = vpop.f32.mrb[0].mxu0
        %1953 = vmatprep.mubr.bf16.mxu0 0
        %1954 = vmatmul.mubr.bf16.gmra.mrb[0].mxu0 %v1229
        %v1955 = vpop.f32.mrb[0].mxu0
        %v1956 = vadd.f32 0.0, %v1955
        %v1957 = vpop.f32.mrb[0].mxu0
        %v1958 = vpop.f32.mrb[0].mxu0
        %v1959 = vadd.f32 0.0, %v1958
        %v1960 = vpop.f32.mrb[0].mxu0
        %1961 = vmatprep.mubr.bf16.mxu0 0
        %1962 = vmatmul.mubr.bf16.gmra.mrb[0].mxu0 %v1232
        %v1963 = vpop.f32.mrb[0].mxu0
        %v1964 = vadd.f32 0.0, %v1963
        %v1965 = vpop.f32.mrb[0].mxu0
        %v1966 = vpop.f32.mrb[0].mxu0
        %v1967 = vadd.f32 0.0, %v1966
        %v1968 = vpop.f32.mrb[0].mxu0
        %1969 = vmatprep.mubr.bf16.mxu0 0
        %1970 = vmatmul.mubr.bf16.gmra.mrb[0].mxu0 %v1235
        %v1971 = vpop.f32.mrb[0].mxu0
        %v1972 = vadd.f32 0.0, %v1971
        %v1973 = vpop.f32.mrb[0].mxu0
        %v1974 = vpop.f32.mrb[0].mxu0
        %v1975 = vadd.f32 0.0, %v1974
        %v1976 = vpop.f32.mrb[0].mxu0
        %1977 = vmatprep.mubr.bf16.mxu0 0
        %1978 = vmatmul.mubr.bf16.gmra.mrb[0].mxu0 %v1238
        %v1979 = vpop.f32.mrb[0].mxu0
        %v1980 = vadd.f32 0.0, %v1979
        %v1981 = vpop.f32.mrb[0].mxu0
        %v1982 = vpop.f32.mrb[0].mxu0
        %v1983 = vadd.f32 0.0, %v1982
        %v1984 = vpop.f32.mrb[0].mxu0
        %1985 = vmatprep.mubr.bf16.mxu0 0
        %1986 = vmatmul.mubr.bf16.gmra.mrb[0].mxu0 %v1241
        %v1987 = vpop.f32.mrb[0].mxu0
        %v1988 = vadd.f32 0.0, %v1987
        %v1989 = vpop.f32.mrb[0].mxu0
        %v1990 = vpop.f32.mrb[0].mxu0
        %v1991 = vadd.f32 0.0, %v1990
        %v1992 = vpop.f32.mrb[0].mxu0
        %1993 = vmatprep.mubr.bf16.mxu0 0
        %1994 = vmatmul.mubr.bf16.gmra.mrb[0].mxu0 %v1244
        %v1995 = vpop.f32.mrb[0].mxu0
        %v1996 = vadd.f32 0.0, %v1995
        %v1997 = vpop.f32.mrb[0].mxu0
        %v1998 = vpop.f32.mrb[0].mxu0
        %v1999 = vadd.f32 0.0, %v1998
        %v2000 = vpop.f32.mrb[0].mxu0
        %2001 = vmatprep.mubr.bf16.mxu0 0
        %2002 = vmatmul.mubr.bf16.gmra.mrb[0].mxu0 %v1247
        %v2003 = vpop.f32.mrb[0].mxu0
        %v2004 = vadd.f32 0.0, %v2003
        %v2005 = vpop.f32.mrb[0].mxu0
        %v2006 = vpop.f32.mrb[0].mxu0
        %v2007 = vadd.f32 0.0, %v2006
        %v2008 = vpop.f32.mrb[0].mxu0
        %2009 = vmatprep.mubr.bf16.mxu0 0
        %2010 = vmatmul.mubr.bf16.gmra.mrb[0].mxu0 %v1250
        %v2011 = vpop.f32.mrb[0].mxu0
        %v2012 = vadd.f32 0.0, %v2011
        %v2013 = vpop.f32.mrb[0].mxu0
        %v2014 = vpop.f32.mrb[0].mxu0
        %v2015 = vadd.f32 0.0, %v2014
        %v2016 = vpop.f32.mrb[0].mxu0
        %2017 = vmatprep.mubr.bf16.mxu0 0
        %2018 = vmatmul.mubr.bf16.gmra.mrb[0].mxu0 %v1253
        %v2019 = vpop.f32.mrb[0].mxu0
        %v2020 = vadd.f32 0.0, %v2019
        %v2021 = vpop.f32.mrb[0].mxu0
        %v2022 = vpop.f32.mrb[0].mxu0
        %v2023 = vadd.f32 0.0, %v2022
        %v2024 = vpop.f32.mrb[0].mxu0
        %2025 = vmatprep.mubr.bf16.mxu0 0
        %2026 = vmatmul.mubr.bf16.gmra.mrb[0].mxu0 %v1256
        %v2027 = vpop.f32.mrb[0].mxu0
        %v2028 = vadd.f32 0.0, %v2027
        %v2029 = vpop.f32.mrb[0].mxu0
        %v2030 = vpop.f32.mrb[0].mxu0
        %v2031 = vadd.f32 0.0, %v2030
        %v2032 = vpop.f32.mrb[0].mxu0
        %2033 = vmatprep.mubr.bf16.mxu0 0
        %2034 = vmatmul.mubr.bf16.gmra.mrb[0].mxu0 %v1259
        %v2035 = vpop.f32.mrb[0].mxu0
        %v2036 = vadd.f32 0.0, %v2035
        %v2037 = vpop.f32.mrb[0].mxu0
        %v2038 = vpop.f32.mrb[0].mxu0
        %v2039 = vadd.f32 0.0, %v2038
        %v2040 = vpop.f32.mrb[0].mxu0
        %2041 = vmatprep.mubr.bf16.mxu0 0
        %2042 = vmatmul.mubr.bf16.gmra.mrb[0].mxu0 %v1262
        %v2043 = vpop.f32.mrb[0].mxu0
        %v2044 = vadd.f32 0.0, %v2043
        %v2045 = vpop.f32.mrb[0].mxu0
        %v2046 = vpop.f32.mrb[0].mxu0
        %v2047 = vadd.f32 0.0, %v2046
        %v2048 = vpop.f32.mrb[0].mxu0
        %2049 = vmatprep.mubr.bf16.mxu0 0
        %2050 = vmatmul.mubr.bf16.gmra.mrb[0].mxu0 %v1265
        %v2051 = vpop.f32.mrb[0].mxu0
        %v2052 = vadd.f32 0.0, %v2051
        %v2053 = vpop.f32.mrb[0].mxu0
        %v2054 = vpop.f32.mrb[0].mxu0
        %v2055 = vadd.f32 0.0, %v2054
        %v2056 = vpop.f32.mrb[0].mxu0
        %2057 = vmatprep.mubr.bf16.mxu0 0
        %2058 = vmatmul.mubr.bf16.gmra.mrb[0].mxu0 %v1268
        %v2059 = vpop.f32.mrb[0].mxu0
        %v2060 = vadd.f32 0.0, %v2059
        %v2061 = vpop.f32.mrb[0].mxu0
        %v2062 = vpop.f32.mrb[0].mxu0
        %v2063 = vadd.f32 0.0, %v2062
        %v2064 = vpop.f32.mrb[0].mxu0
        %2065 = vmatprep.mubr.bf16.mxu0 0
        %2066 = vmatmul.mubr.bf16.gmra.mrb[0].mxu0 %v1271
        %v2067 = vpop.f32.mrb[0].mxu0
        %v2068 = vadd.f32 0.0, %v2067
        %v2069 = vpop.f32.mrb[0].mxu0
        %v2070 = vpop.f32.mrb[0].mxu0
        %v2071 = vadd.f32 0.0, %v2070
        %v2072 = vpop.f32.mrb[0].mxu0
        %2073 = vmatprep.mubr.bf16.mxu0 0
        %2074 = vmatmul.mubr.bf16.gmra.mrb[0].mxu0 %v1274
        %v2075 = vpop.f32.mrb[0].mxu0
        %v2076 = vadd.f32 0.0, %v2075
        %v2077 = vpop.f32.mrb[0].mxu0
        %v2078 = vpop.f32.mrb[0].mxu0
        %v2079 = vadd.f32 0.0, %v2078
        %v2080 = vpop.f32.mrb[0].mxu0
        %2081 = vmatprep.mubr.bf16.mxu0 0
        %2082 = vmatmul.mubr.bf16.gmra.mrb[0].mxu0 %v1277
        %v2083 = vpop.f32.mrb[0].mxu0
        %v2084 = vadd.f32 0.0, %v2083
        %v2085 = vpop.f32.mrb[0].mxu0
        %v2086 = vpop.f32.mrb[0].mxu0
        %v2087 = vadd.f32 0.0, %v2086
        %v2088 = vpop.f32.mrb[0].mxu0
        %2089 = vmatprep.mubr.bf16.mxu0 0
        %2090 = vmatmul.mubr.bf16.gmra.mrb[0].mxu0 %v1280
        %v2091 = vpop.f32.mrb[0].mxu0
        %v2092 = vadd.f32 0.0, %v2091
        %v2093 = vpop.f32.mrb[0].mxu0
        %v2094 = vpop.f32.mrb[0].mxu0
        %v2095 = vadd.f32 0.0, %v2094
        %v2096 = vpop.f32.mrb[0].mxu0
        %2097 = vmatprep.mubr.bf16.mxu0 0
        %2098 = vmatmul.mubr.bf16.gmra.mrb[0].mxu0 %v1283
        %v2099 = vpop.f32.mrb[0].mxu0
        %v2100 = vadd.f32 0.0, %v2099
        %v2101 = vpop.f32.mrb[0].mxu0
        %v2102 = vpop.f32.mrb[0].mxu0
        %v2103 = vadd.f32 0.0, %v2102
        %v2104 = vpop.f32.mrb[0].mxu0
        %2105 = vmatprep.mubr.bf16.mxu0 0
        %2106 = vmatmul.mubr.bf16.gmra.mrb[0].mxu0 %v1286
        %v2107 = vpop.f32.mrb[0].mxu0
        %v2108 = vadd.f32 0.0, %v2107
        %v2109 = vpop.f32.mrb[0].mxu0
        %v2110 = vpop.f32.mrb[0].mxu0
        %v2111 = vadd.f32 0.0, %v2110
        %v2112 = vpop.f32.mrb[0].mxu0
        %2113 = vmatprep.mubr.bf16.mxu0 0
        %2114 = vmatmul.mubr.bf16.gmra.mrb[0].mxu0 %v1289
        %v2115 = vpop.f32.mrb[0].mxu0
        %v2116 = vadd.f32 0.0, %v2115
        %v2117 = vpop.f32.mrb[0].mxu0
        %v2118 = vpop.f32.mrb[0].mxu0
        %v2119 = vadd.f32 0.0, %v2118
        %v2120 = vpop.f32.mrb[0].mxu0
        %2121 = vmatprep.mubr.bf16.mxu0 0
        %2122 = vmatmul.mubr.bf16.gmra.mrb[0].mxu0 %v1292
        %v2123 = vpop.f32.mrb[0].mxu0
        %v2124 = vadd.f32 0.0, %v2123
        %v2125 = vpop.f32.mrb[0].mxu0
        %v2126 = vpop.f32.mrb[0].mxu0
        %v2127 = vadd.f32 0.0, %v2126
        %v2128 = vpop.f32.mrb[0].mxu0
        %2129 = vmatprep.mubr.bf16.mxu0 0
        %2130 = vmatmul.mubr.bf16.gmra.mrb[0].mxu0 %v1295
        %v2131 = vpop.f32.mrb[0].mxu0
        %v2132 = vadd.f32 0.0, %v2131
        %v2133 = vpop.f32.mrb[0].mxu0
        %v2134 = vpop.f32.mrb[0].mxu0
        %v2135 = vadd.f32 0.0, %v2134
        %v2136 = vpop.f32.mrb[0].mxu0
        %2137 = vmatprep.mubr.bf16.mxu0 0
        %2138 = vmatmul.mubr.bf16.gmra.mrb[0].mxu0 %v1298
        %v2139 = vpop.f32.mrb[0].mxu0
        %v2140 = vadd.f32 0.0, %v2139
        %v2141 = vpop.f32.mrb[0].mxu0
        %v2142 = vpop.f32.mrb[0].mxu0
        %v2143 = vadd.f32 0.0, %v2142
        %v2144 = vpop.f32.mrb[0].mxu0
        %2145 = vmatprep.mubr.bf16.mxu0 0
        %2146 = vmatmul.mubr.bf16.gmra.mrb[0].mxu0 %v1301
        %v2147 = vpop.f32.mrb[0].mxu0
        %v2148 = vadd.f32 0.0, %v2147
        %v2149 = vpop.f32.mrb[0].mxu0
        %v2150 = vpop.f32.mrb[0].mxu0
        %v2151 = vadd.f32 0.0, %v2150
        %v2152 = vpop.f32.mrb[0].mxu0
        %2153 = vmatprep.mubr.bf16.mxu0 0
        %2154 = vmatmul.mubr.bf16.gmra.mrb[0].mxu0 %v1304
        %v2155 = vpop.f32.mrb[0].mxu0
        %v2156 = vadd.f32 0.0, %v2155
        %v2157 = vpop.f32.mrb[0].mxu0
        %v2158 = vpop.f32.mrb[0].mxu0
        %v2159 = vadd.f32 0.0, %v2158
        %v2160 = vpop.f32.mrb[0].mxu0
        %2161 = vdwg.mxu0
        %v2162 = vld [vmem:[%s4] sm:$0x1]
        %v2163 = vmax.f32 %v1348, %v1356
        %v2164 = vmax.f32 %v1351, %v1359
        %v2165 = vmax.f32 %v1372, %v1380
        %v2166 = vmax.f32 %v1375, %v1383
        %v2167 = vmax.f32 %v1396, %v1404
        %v2168 = vmax.f32 %v1399, %v1407
        %v2169 = vmax.f32 %v1420, %v1428
        %v2170 = vmax.f32 %v1423, %v1431
        %v2171 = vmax.f32 %v1444, %v1452
        %v2172 = vmax.f32 %v1447, %v1455
        %v2173 = vmax.f32 %v1468, %v1476
        %v2174 = vmax.f32 %v1471, %v1479
        %v2175 = vmax.f32 %v1492, %v1500
        %v2176 = vmax.f32 %v1495, %v1503
        %v2177 = vmax.f32 %v1516, %v1524
        %v2178 = vmax.f32 %v1519, %v1527
        %v2179 = vmax.f32 %v1540, %v1548
        %v2180 = vmax.f32 %v1543, %v1551
        %v2181 = vmax.f32 %v1564, %v1572
        %v2182 = vmax.f32 %v1567, %v1575
        %v2183 = vmax.f32 %v1588, %v1596
        %v2184 = vmax.f32 %v1591, %v1599
        %v2185 = vmax.f32 %v1612, %v1620
        %v2186 = vmax.f32 %v1615, %v1623
        %v2187 = vmax.f32 %v1636, %v1644
        %v2188 = vmax.f32 %v1639, %v1647
        %v2189 = vmax.f32 %v1660, %v1668
        %v2190 = vmax.f32 %v1663, %v1671
        %v2191 = vmax.f32 %v1684, %v1692
        %v2192 = vmax.f32 %v1687, %v1695
        %v2193 = vmax.f32 %v1708, %v1716
        %v2194 = vmax.f32 %v1711, %v1719
        %v2195 = vmax.f32 %v1732, %v1740
        %v2196 = vmax.f32 %v1735, %v1743
        %v2197 = vmax.f32 %v1756, %v1764
        %v2198 = vmax.f32 %v1759, %v1767
        %v2199 = vmax.f32 %v1780, %v1788
        %v2200 = vmax.f32 %v1783, %v1791
        %v2201 = vmax.f32 %v1804, %v1812
        %v2202 = vmax.f32 %v1807, %v1815
        %v2203 = vmax.f32 %v1828, %v1836
        %v2204 = vmax.f32 %v1831, %v1839
        %v2205 = vmax.f32 %v1852, %v1860
        %v2206 = vmax.f32 %v1855, %v1863
        %v2207 = vmax.f32 %v1876, %v1884
        %v2208 = vmax.f32 %v1879, %v1887
        %v2209 = vmax.f32 %v1900, %v1908
        %v2210 = vmax.f32 %v1903, %v1911
        %v2211 = vmax.f32 %v1924, %v1932
        %v2212 = vmax.f32 %v1927, %v1935
        %v2213 = vmax.f32 %v1948, %v1956
        %v2214 = vmax.f32 %v1951, %v1959
        %v2215 = vmax.f32 %v1972, %v1980
        %v2216 = vmax.f32 %v1975, %v1983
        %v2217 = vmax.f32 %v1996, %v2004
        %v2218 = vmax.f32 %v1999, %v2007
        %v2219 = vmax.f32 %v2020, %v2028
        %v2220 = vmax.f32 %v2023, %v2031
        %v2221 = vmax.f32 %v2044, %v2052
        %v2222 = vmax.f32 %v2047, %v2055
        %v2223 = vmax.f32 %v2068, %v2076
        %v2224 = vmax.f32 %v2071, %v2079
        %v2225 = vmax.f32 %v2092, %v2100
        %v2226 = vmax.f32 %v2095, %v2103
        %v2227 = vmax.f32 %v2116, %v2124
        %v2228 = vmax.f32 %v2119, %v2127
        %v2229 = vmax.f32 %v2140, %v2148
        %v2230 = vmax.f32 %v2143, %v2151
        %v2231 = vmax.f32 %v2163, %v1364
        %v2232 = vmax.f32 %v2164, %v1367
        %v2233 = vmax.f32 %v2165, %v1388
        %v2234 = vmax.f32 %v2166, %v1391
        %v2235 = vmax.f32 %v2167, %v1412
        %v2236 = vmax.f32 %v2168, %v1415
        %v2237 = vmax.f32 %v2169, %v1436
        %v2238 = vmax.f32 %v2170, %v1439
        %v2239 = vmax.f32 %v2171, %v1460
        %v2240 = vmax.f32 %v2172, %v1463
        %v2241 = vmax.f32 %v2173, %v1484
        %v2242 = vmax.f32 %v2174, %v1487
        %v2243 = vmax.f32 %v2175, %v1508
        %v2244 = vmax.f32 %v2176, %v1511
        %v2245 = vmax.f32 %v2177, %v1532
        %v2246 = vmax.f32 %v2178, %v1535
        %v2247 = vmax.f32 %v2179, %v1556
        %v2248 = vmax.f32 %v2180, %v1559
        %v2249 = vmax.f32 %v2181, %v1580
        %v2250 = vmax.f32 %v2182, %v1583
        %v2251 = vmax.f32 %v2183, %v1604
        %v2252 = vmax.f32 %v2184, %v1607
        %v2253 = vmax.f32 %v2185, %v1628
        %v2254 = vmax.f32 %v2186, %v1631
        %v2255 = vmax.f32 %v2187, %v1652
        %v2256 = vmax.f32 %v2188, %v1655
        %v2257 = vmax.f32 %v2189, %v1676
        %v2258 = vmax.f32 %v2190, %v1679
        %v2259 = vmax.f32 %v2191, %v1700
        %v2260 = vmax.f32 %v2192, %v1703
        %v2261 = vmax.f32 %v2193, %v1724
        %v2262 = vmax.f32 %v2194, %v1727
        %v2263 = vmax.f32 %v2195, %v1748
        %v2264 = vmax.f32 %v2196, %v1751
        %v2265 = vmax.f32 %v2197, %v1772
        %v2266 = vmax.f32 %v2198, %v1775
        %v2267 = vmax.f32 %v2199, %v1796
        %v2268 = vmax.f32 %v2200, %v1799
        %v2269 = vmax.f32 %v2201, %v1820
        %v2270 = vmax.f32 %v2202, %v1823
        %v2271 = vmax.f32 %v2203, %v1844
        %v2272 = vmax.f32 %v2204, %v1847
        %v2273 = vmax.f32 %v2205, %v1868
        %v2274 = vmax.f32 %v2206, %v1871
        %v2275 = vmax.f32 %v2207, %v1892
        %v2276 = vmax.f32 %v2208, %v1895
        %v2277 = vmax.f32 %v2209, %v1916
        %v2278 = vmax.f32 %v2210, %v1919
        %v2279 = vmax.f32 %v2211, %v1940
        %v2280 = vmax.f32 %v2212, %v1943
        %v2281 = vmax.f32 %v2213, %v1964
        %v2282 = vmax.f32 %v2214, %v1967
        %v2283 = vmax.f32 %v2215, %v1988
        %v2284 = vmax.f32 %v2216, %v1991
        %v2285 = vmax.f32 %v2217, %v2012
        %v2286 = vmax.f32 %v2218, %v2015
        %v2287 = vmax.f32 %v2219, %v2036
        %v2288 = vmax.f32 %v2220, %v2039
        %v2289 = vmax.f32 %v2221, %v2060
        %v2290 = vmax.f32 %v2222, %v2063
        %v2291 = vmax.f32 %v2223, %v2084
        %v2292 = vmax.f32 %v2224, %v2087
        %v2293 = vmax.f32 %v2225, %v2108
        %v2294 = vmax.f32 %v2226, %v2111
        %v2295 = vmax.f32 %v2227, %v2132
        %v2296 = vmax.f32 %v2228, %v2135
        %v2297 = vmax.f32 %v2229, %v2156
        %v2298 = vmax.f32 %v2230, %v2159
        %v2300 = vlaneseq
        %v2301 = vshrl.u32 %v2300, 7
        %v2302 = vsub.s32 0, %v2301
        %v2303 = vrot.slane %v2162, %v2302
        %v2305 = vadd.f32 %v2231, %v2303
        %v2306 = vadd.f32 %v2232, %v2303
        %v2307 = vadd.f32 %v2233, %v2303
        %v2308 = vadd.f32 %v2234, %v2303
        %v2309 = vadd.f32 %v2235, %v2303
        %v2310 = vadd.f32 %v2236, %v2303
        %v2311 = vadd.f32 %v2237, %v2303
        %v2312 = vadd.f32 %v2238, %v2303
        %v2313 = vadd.f32 %v2239, %v2303
        %v2314 = vadd.f32 %v2240, %v2303
        %v2315 = vadd.f32 %v2241, %v2303
        %v2316 = vadd.f32 %v2242, %v2303
        %v2317 = vadd.f32 %v2243, %v2303
        %v2318 = vadd.f32 %v2244, %v2303
        %v2319 = vadd.f32 %v2245, %v2303
        %v2320 = vadd.f32 %v2246, %v2303
        %v2321 = vadd.f32 %v2247, %v2303
        %v2322 = vadd.f32 %v2248, %v2303
        %v2323 = vadd.f32 %v2249, %v2303
        %v2324 = vadd.f32 %v2250, %v2303
        %v2325 = vadd.f32 %v2251, %v2303
        %v2326 = vadd.f32 %v2252, %v2303
        %v2327 = vadd.f32 %v2253, %v2303
        %v2328 = vadd.f32 %v2254, %v2303
        %v2329 = vadd.f32 %v2255, %v2303
        %v2330 = vadd.f32 %v2256, %v2303
        %v2331 = vadd.f32 %v2257, %v2303
        %v2332 = vadd.f32 %v2258, %v2303
        %v2333 = vadd.f32 %v2259, %v2303
        %v2334 = vadd.f32 %v2260, %v2303
        %v2335 = vadd.f32 %v2261, %v2303
        %v2336 = vadd.f32 %v2262, %v2303
        %v2337 = vadd.f32 %v2263, %v2303
        %v2338 = vadd.f32 %v2264, %v2303
        %v2339 = vadd.f32 %v2265, %v2303
        %v2340 = vadd.f32 %v2266, %v2303
        %v2341 = vadd.f32 %v2267, %v2303
        %v2342 = vadd.f32 %v2268, %v2303
        %v2343 = vadd.f32 %v2269, %v2303
        %v2344 = vadd.f32 %v2270, %v2303
        %v2345 = vadd.f32 %v2271, %v2303
        %v2346 = vadd.f32 %v2272, %v2303
        %v2347 = vadd.f32 %v2273, %v2303
        %v2348 = vadd.f32 %v2274, %v2303
        %v2349 = vadd.f32 %v2275, %v2303
        %v2350 = vadd.f32 %v2276, %v2303
        %v2351 = vadd.f32 %v2277, %v2303
        %v2352 = vadd.f32 %v2278, %v2303
        %v2353 = vadd.f32 %v2279, %v2303
        %v2354 = vadd.f32 %v2280, %v2303
        %v2355 = vadd.f32 %v2281, %v2303
        %v2356 = vadd.f32 %v2282, %v2303
        %v2357 = vadd.f32 %v2283, %v2303
        %v2358 = vadd.f32 %v2284, %v2303
        %v2359 = vadd.f32 %v2285, %v2303
        %v2360 = vadd.f32 %v2286, %v2303
        %v2361 = vadd.f32 %v2287, %v2303
        %v2362 = vadd.f32 %v2288, %v2303
        %v2363 = vadd.f32 %v2289, %v2303
        %v2364 = vadd.f32 %v2290, %v2303
        %v2365 = vadd.f32 %v2291, %v2303
        %v2366 = vadd.f32 %v2292, %v2303
        %v2367 = vadd.f32 %v2293, %v2303
        %v2368 = vadd.f32 %v2294, %v2303
        %v2369 = vadd.f32 %v2295, %v2303
        %v2370 = vadd.f32 %v2296, %v2303
        %v2371 = vadd.f32 %v2297, %v2303
        %v2372 = vadd.f32 %v2298, %v2303
        %vm2373 = vcmp.gt.f32.partialorder %v2305, 0.0
        %vm2374 = vcmp.gt.f32.partialorder %v2306, 0.0
        %vm2375 = vcmp.gt.f32.partialorder %v2307, 0.0
        %vm2376 = vcmp.gt.f32.partialorder %v2308, 0.0
        %vm2377 = vcmp.gt.f32.partialorder %v2309, 0.0
        %vm2378 = vcmp.gt.f32.partialorder %v2310, 0.0
        %vm2379 = vcmp.gt.f32.partialorder %v2311, 0.0
        %vm2380 = vcmp.gt.f32.partialorder %v2312, 0.0
        %vm2381 = vcmp.gt.f32.partialorder %v2313, 0.0
        %vm2382 = vcmp.gt.f32.partialorder %v2314, 0.0
        %vm2383 = vcmp.gt.f32.partialorder %v2315, 0.0
        %vm2384 = vcmp.gt.f32.partialorder %v2316, 0.0
        %vm2385 = vcmp.gt.f32.partialorder %v2317, 0.0
        %vm2386 = vcmp.gt.f32.partialorder %v2318, 0.0
        %vm2387 = vcmp.gt.f32.partialorder %v2319, 0.0
        %vm2388 = vcmp.gt.f32.partialorder %v2320, 0.0
        %vm2389 = vcmp.gt.f32.partialorder %v2321, 0.0
        %vm2390 = vcmp.gt.f32.partialorder %v2322, 0.0
        %vm2391 = vcmp.gt.f32.partialorder %v2323, 0.0
        %vm2392 = vcmp.gt.f32.partialorder %v2324, 0.0
        %vm2393 = vcmp.gt.f32.partialorder %v2325, 0.0
        %vm2394 = vcmp.gt.f32.partialorder %v2326, 0.0
        %vm2395 = vcmp.gt.f32.partialorder %v2327, 0.0
        %vm2396 = vcmp.gt.f32.partialorder %v2328, 0.0
        %vm2397 = vcmp.gt.f32.partialorder %v2329, 0.0
        %vm2398 = vcmp.gt.f32.partialorder %v2330, 0.0
        %vm2399 = vcmp.gt.f32.partialorder %v2331, 0.0
        %vm2400 = vcmp.gt.f32.partialorder %v2332, 0.0
        %vm2401 = vcmp.gt.f32.partialorder %v2333, 0.0
        %vm2402 = vcmp.gt.f32.partialorder %v2334, 0.0
        %vm2403 = vcmp.gt.f32.partialorder %v2335, 0.0
        %vm2404 = vcmp.gt.f32.partialorder %v2336, 0.0
        %vm2405 = vcmp.gt.f32.partialorder %v2337, 0.0
        %vm2406 = vcmp.gt.f32.partialorder %v2338, 0.0
        %vm2407 = vcmp.gt.f32.partialorder %v2339, 0.0
        %vm2408 = vcmp.gt.f32.partialorder %v2340, 0.0
        %vm2409 = vcmp.gt.f32.partialorder %v2341, 0.0
        %vm2410 = vcmp.gt.f32.partialorder %v2342, 0.0
        %vm2411 = vcmp.gt.f32.partialorder %v2343, 0.0
        %vm2412 = vcmp.gt.f32.partialorder %v2344, 0.0
        %vm2413 = vcmp.gt.f32.partialorder %v2345, 0.0
        %vm2414 = vcmp.gt.f32.partialorder %v2346, 0.0
        %vm2415 = vcmp.gt.f32.partialorder %v2347, 0.0
        %vm2416 = vcmp.gt.f32.partialorder %v2348, 0.0
        %vm2417 = vcmp.gt.f32.partialorder %v2349, 0.0
        %vm2418 = vcmp.gt.f32.partialorder %v2350, 0.0
        %vm2419 = vcmp.gt.f32.partialorder %v2351, 0.0
        %vm2420 = vcmp.gt.f32.partialorder %v2352, 0.0
        %vm2421 = vcmp.gt.f32.partialorder %v2353, 0.0
        %vm2422 = vcmp.gt.f32.partialorder %v2354, 0.0
        %vm2423 = vcmp.gt.f32.partialorder %v2355, 0.0
        %vm2424 = vcmp.gt.f32.partialorder %v2356, 0.0
        %vm2425 = vcmp.gt.f32.partialorder %v2357, 0.0
        %vm2426 = vcmp.gt.f32.partialorder %v2358, 0.0
        %vm2427 = vcmp.gt.f32.partialorder %v2359, 0.0
        %vm2428 = vcmp.gt.f32.partialorder %v2360, 0.0
        %vm2429 = vcmp.gt.f32.partialorder %v2361, 0.0
        %vm2430 = vcmp.gt.f32.partialorder %v2362, 0.0
        %vm2431 = vcmp.gt.f32.partialorder %v2363, 0.0
        %vm2432 = vcmp.gt.f32.partialorder %v2364, 0.0
        %vm2433 = vcmp.gt.f32.partialorder %v2365, 0.0
        %vm2434 = vcmp.gt.f32.partialorder %v2366, 0.0
        %vm2435 = vcmp.gt.f32.partialorder %v2367, 0.0
        %vm2436 = vcmp.gt.f32.partialorder %v2368, 0.0
        %vm2437 = vcmp.gt.f32.partialorder %v2369, 0.0
        %vm2438 = vcmp.gt.f32.partialorder %v2370, 0.0
        %vm2439 = vcmp.gt.f32.partialorder %v2371, 0.0
        %vm2440 = vcmp.gt.f32.partialorder %v2372, 0.0
        %v2441 = vmul.f32 %v2305, 1.442695
        %v2442 = vpow.pop %v2441
        %v2443 = vmul.f32 %v2306, 1.442695
        %v2444 = vpow.pop %v2443
        %v2445 = vmul.f32 %v2307, 1.442695
        %v2446 = vpow.pop %v2445
        %v2447 = vmul.f32 %v2308, 1.442695
        %v2448 = vpow.pop %v2447
        %v2449 = vmul.f32 %v2309, 1.442695
        %v2450 = vpow.pop %v2449
        %v2451 = vmul.f32 %v2310, 1.442695
        %v2452 = vpow.pop %v2451
        %v2453 = vmul.f32 %v2311, 1.442695
        %v2454 = vpow.pop %v2453
        %v2455 = vmul.f32 %v2312, 1.442695
        %v2456 = vpow.pop %v2455
        %v2457 = vmul.f32 %v2313, 1.442695
        %v2458 = vpow.pop %v2457
        %v2459 = vmul.f32 %v2314, 1.442695
        %v2460 = vpow.pop %v2459
        %v2461 = vmul.f32 %v2315, 1.442695
        %v2462 = vpow.pop %v2461
        %v2463 = vmul.f32 %v2316, 1.442695
        %v2464 = vpow.pop %v2463
        %v2465 = vmul.f32 %v2317, 1.442695
        %v2466 = vpow.pop %v2465
        %v2467 = vmul.f32 %v2318, 1.442695
        %v2468 = vpow.pop %v2467
        %v2469 = vmul.f32 %v2319, 1.442695
        %v2470 = vpow.pop %v2469
        %v2471 = vmul.f32 %v2320, 1.442695
        %v2472 = vpow.pop %v2471
        %v2473 = vmul.f32 %v2321, 1.442695
        %v2474 = vpow.pop %v2473
        %v2475 = vmul.f32 %v2322, 1.442695
        %v2476 = vpow.pop %v2475
        %v2477 = vmul.f32 %v2323, 1.442695
        %v2478 = vpow.pop %v2477
        %v2479 = vmul.f32 %v2324, 1.442695
        %v2480 = vpow.pop %v2479
        %v2481 = vmul.f32 %v2325, 1.442695
        %v2482 = vpow.pop %v2481
        %v2483 = vmul.f32 %v2326, 1.442695
        %v2484 = vpow.pop %v2483
        %v2485 = vmul.f32 %v2327, 1.442695
        %v2486 = vpow.pop %v2485
        %v2487 = vmul.f32 %v2328, 1.442695
        %v2488 = vpow.pop %v2487
        %v2489 = vmul.f32 %v2329, 1.442695
        %v2490 = vpow.pop %v2489
        %v2491 = vmul.f32 %v2330, 1.442695
        %v2492 = vpow.pop %v2491
        %v2493 = vmul.f32 %v2331, 1.442695
        %v2494 = vpow.pop %v2493
        %v2495 = vmul.f32 %v2332, 1.442695
        %v2496 = vpow.pop %v2495
        %v2497 = vmul.f32 %v2333, 1.442695
        %v2498 = vpow.pop %v2497
        %v2499 = vmul.f32 %v2334, 1.442695
        %v2500 = vpow.pop %v2499
        %v2501 = vmul.f32 %v2335, 1.442695
        %v2502 = vpow.pop %v2501
        %v2503 = vmul.f32 %v2336, 1.442695
        %v2504 = vpow.pop %v2503
        %v2505 = vmul.f32 %v2337, 1.442695
        %v2506 = vpow.pop %v2505
        %v2507 = vmul.f32 %v2338, 1.442695
        %v2508 = vpow.pop %v2507
        %v2509 = vmul.f32 %v2339, 1.442695
        %v2510 = vpow.pop %v2509
        %v2511 = vmul.f32 %v2340, 1.442695
        %v2512 = vpow.pop %v2511
        %v2513 = vmul.f32 %v2341, 1.442695
        %v2514 = vpow.pop %v2513
        %v2515 = vmul.f32 %v2342, 1.442695
        %v2516 = vpow.pop %v2515
        %v2517 = vmul.f32 %v2343, 1.442695
        %v2518 = vpow.pop %v2517
        %v2519 = vmul.f32 %v2344, 1.442695
        %v2520 = vpow.pop %v2519
        %v2521 = vmul.f32 %v2345, 1.442695
        %v2522 = vpow.pop %v2521
        %v2523 = vmul.f32 %v2346, 1.442695
        %v2524 = vpow.pop %v2523
        %v2525 = vmul.f32 %v2347, 1.442695
        %v2526 = vpow.pop %v2525
        %v2527 = vmul.f32 %v2348, 1.442695
        %v2528 = vpow.pop %v2527
        %v2529 = vmul.f32 %v2349, 1.442695
        %v2530 = vpow.pop %v2529
        %v2531 = vmul.f32 %v2350, 1.442695
        %v2532 = vpow.pop %v2531
        %v2533 = vmul.f32 %v2351, 1.442695
        %v2534 = vpow.pop %v2533
        %v2535 = vmul.f32 %v2352, 1.442695
        %v2536 = vpow.pop %v2535
        %v2537 = vmul.f32 %v2353, 1.442695
        %v2538 = vpow.pop %v2537
        %v2539 = vmul.f32 %v2354, 1.442695
        %v2540 = vpow.pop %v2539
        %v2541 = vmul.f32 %v2355, 1.442695
        %v2542 = vpow.pop %v2541
        %v2543 = vmul.f32 %v2356, 1.442695
        %v2544 = vpow.pop %v2543
        %v2545 = vmul.f32 %v2357, 1.442695
        %v2546 = vpow.pop %v2545
        %v2547 = vmul.f32 %v2358, 1.442695
        %v2548 = vpow.pop %v2547
        %v2549 = vmul.f32 %v2359, 1.442695
        %v2550 = vpow.pop %v2549
        %v2551 = vmul.f32 %v2360, 1.442695
        %v2552 = vpow.pop %v2551
        %v2553 = vmul.f32 %v2361, 1.442695
        %v2554 = vpow.pop %v2553
        %v2555 = vmul.f32 %v2362, 1.442695
        %v2556 = vpow.pop %v2555
        %v2557 = vmul.f32 %v2363, 1.442695
        %v2558 = vpow.pop %v2557
        %v2559 = vmul.f32 %v2364, 1.442695
        %v2560 = vpow.pop %v2559
        %v2561 = vmul.f32 %v2365, 1.442695
        %v2562 = vpow.pop %v2561
        %v2563 = vmul.f32 %v2366, 1.442695
        %v2564 = vpow.pop %v2563
        %v2565 = vmul.f32 %v2367, 1.442695
        %v2566 = vpow.pop %v2565
        %v2567 = vmul.f32 %v2368, 1.442695
        %v2568 = vpow.pop %v2567
        %v2569 = vmul.f32 %v2369, 1.442695
        %v2570 = vpow.pop %v2569
        %v2571 = vmul.f32 %v2370, 1.442695
        %v2572 = vpow.pop %v2571
        %v2573 = vmul.f32 %v2371, 1.442695
        %v2574 = vpow.pop %v2573
        %v2575 = vmul.f32 %v2372, 1.442695
        %v2576 = vpow.pop %v2575
        %v2577 = vsub.f32 %v2442, 1.0
        %v2578 = vsub.f32 %v2444, 1.0
        %v2579 = vsub.f32 %v2446, 1.0
        %v2580 = vsub.f32 %v2448, 1.0
        %v2581 = vsub.f32 %v2450, 1.0
        %v2582 = vsub.f32 %v2452, 1.0
        %v2583 = vsub.f32 %v2454, 1.0
        %v2584 = vsub.f32 %v2456, 1.0
        %v2585 = vsub.f32 %v2458, 1.0
        %v2586 = vsub.f32 %v2460, 1.0
        %v2587 = vsub.f32 %v2462, 1.0
        %v2588 = vsub.f32 %v2464, 1.0
        %v2589 = vsub.f32 %v2466, 1.0
        %v2590 = vsub.f32 %v2468, 1.0
        %v2591 = vsub.f32 %v2470, 1.0
        %v2592 = vsub.f32 %v2472, 1.0
        %v2593 = vsub.f32 %v2474, 1.0
        %v2594 = vsub.f32 %v2476, 1.0
        %v2595 = vsub.f32 %v2478, 1.0
        %v2596 = vsub.f32 %v2480, 1.0
        %v2597 = vsub.f32 %v2482, 1.0
        %v2598 = vsub.f32 %v2484, 1.0
        %v2599 = vsub.f32 %v2486, 1.0
        %v2600 = vsub.f32 %v2488, 1.0
        %v2601 = vsub.f32 %v2490, 1.0
        %v2602 = vsub.f32 %v2492, 1.0
        %v2603 = vsub.f32 %v2494, 1.0
        %v2604 = vsub.f32 %v2496, 1.0
        %v2605 = vsub.f32 %v2498, 1.0
        %v2606 = vsub.f32 %v2500, 1.0
        %v2607 = vsub.f32 %v2502, 1.0
        %v2608 = vsub.f32 %v2504, 1.0
        %v2609 = vsub.f32 %v2506, 1.0
        %v2610 = vsub.f32 %v2508, 1.0
        %v2611 = vsub.f32 %v2510, 1.0
        %v2612 = vsub.f32 %v2512, 1.0
        %v2613 = vsub.f32 %v2514, 1.0
        %v2614 = vsub.f32 %v2516, 1.0
        %v2615 = vsub.f32 %v2518, 1.0
        %v2616 = vsub.f32 %v2520, 1.0
        %v2617 = vsub.f32 %v2522, 1.0
        %v2618 = vsub.f32 %v2524, 1.0
        %v2619 = vsub.f32 %v2526, 1.0
        %v2620 = vsub.f32 %v2528, 1.0
        %v2621 = vsub.f32 %v2530, 1.0
        %v2622 = vsub.f32 %v2532, 1.0
        %v2623 = vsub.f32 %v2534, 1.0
        %v2624 = vsub.f32 %v2536, 1.0
        %v2625 = vsub.f32 %v2538, 1.0
        %v2626 = vsub.f32 %v2540, 1.0
        %v2627 = vsub.f32 %v2542, 1.0
        %v2628 = vsub.f32 %v2544, 1.0
        %v2629 = vsub.f32 %v2546, 1.0
        %v2630 = vsub.f32 %v2548, 1.0
        %v2631 = vsub.f32 %v2550, 1.0
        %v2632 = vsub.f32 %v2552, 1.0
        %v2633 = vsub.f32 %v2554, 1.0
        %v2634 = vsub.f32 %v2556, 1.0
        %v2635 = vsub.f32 %v2558, 1.0
        %v2636 = vsub.f32 %v2560, 1.0
        %v2637 = vsub.f32 %v2562, 1.0
        %v2638 = vsub.f32 %v2564, 1.0
        %v2639 = vsub.f32 %v2566, 1.0
        %v2640 = vsub.f32 %v2568, 1.0
        %v2641 = vsub.f32 %v2570, 1.0
        %v2642 = vsub.f32 %v2572, 1.0
        %v2643 = vsub.f32 %v2574, 1.0
        %v2644 = vsub.f32 %v2576, 1.0
        %v2645 = vsel %vm2373, %v2305, %v2577
        %v2646 = vsel %vm2374, %v2306, %v2578
        %v2647 = vsel %vm2375, %v2307, %v2579
        %v2648 = vsel %vm2376, %v2308, %v2580
        %v2649 = vsel %vm2377, %v2309, %v2581
        %v2650 = vsel %vm2378, %v2310, %v2582
        %v2651 = vsel %vm2379, %v2311, %v2583
        %v2652 = vsel %vm2380, %v2312, %v2584
        %v2653 = vsel %vm2381, %v2313, %v2585
        %v2654 = vsel %vm2382, %v2314, %v2586
        %v2655 = vsel %vm2383, %v2315, %v2587
        %v2656 = vsel %vm2384, %v2316, %v2588
        %v2657 = vsel %vm2385, %v2317, %v2589
        %v2658 = vsel %vm2386, %v2318, %v2590
        %v2659 = vsel %vm2387, %v2319, %v2591
        %v2660 = vsel %vm2388, %v2320, %v2592
        %v2661 = vsel %vm2389, %v2321, %v2593
        %v2662 = vsel %vm2390, %v2322, %v2594
        %v2663 = vsel %vm2391, %v2323, %v2595
        %v2664 = vsel %vm2392, %v2324, %v2596
        %v2665 = vsel %vm2393, %v2325, %v2597
        %v2666 = vsel %vm2394, %v2326, %v2598
        %v2667 = vsel %vm2395, %v2327, %v2599
        %v2668 = vsel %vm2396, %v2328, %v2600
        %v2669 = vsel %vm2397, %v2329, %v2601
        %v2670 = vsel %vm2398, %v2330, %v2602
        %v2671 = vsel %vm2399, %v2331, %v2603
        %v2672 = vsel %vm2400, %v2332, %v2604
        %v2673 = vsel %vm2401, %v2333, %v2605
        %v2674 = vsel %vm2402, %v2334, %v2606
        %v2675 = vsel %vm2403, %v2335, %v2607
        %v2676 = vsel %vm2404, %v2336, %v2608
        %v2677 = vsel %vm2405, %v2337, %v2609
        %v2678 = vsel %vm2406, %v2338, %v2610
        %v2679 = vsel %vm2407, %v2339, %v2611
        %v2680 = vsel %vm2408, %v2340, %v2612
        %v2681 = vsel %vm2409, %v2341, %v2613
        %v2682 = vsel %vm2410, %v2342, %v2614
        %v2683 = vsel %vm2411, %v2343, %v2615
        %v2684 = vsel %vm2412, %v2344, %v2616
        %v2685 = vsel %vm2413, %v2345, %v2617
        %v2686 = vsel %vm2414, %v2346, %v2618
        %v2687 = vsel %vm2415, %v2347, %v2619
        %v2688 = vsel %vm2416, %v2348, %v2620
        %v2689 = vsel %vm2417, %v2349, %v2621
        %v2690 = vsel %vm2418, %v2350, %v2622
        %v2691 = vsel %vm2419, %v2351, %v2623
        %v2692 = vsel %vm2420, %v2352, %v2624
        %v2693 = vsel %vm2421, %v2353, %v2625
        %v2694 = vsel %vm2422, %v2354, %v2626
        %v2695 = vsel %vm2423, %v2355, %v2627
        %v2696 = vsel %vm2424, %v2356, %v2628
        %v2697 = vsel %vm2425, %v2357, %v2629
        %v2698 = vsel %vm2426, %v2358, %v2630
        %v2699 = vsel %vm2427, %v2359, %v2631
        %v2700 = vsel %vm2428, %v2360, %v2632
        %v2701 = vsel %vm2429, %v2361, %v2633
        %v2702 = vsel %vm2430, %v2362, %v2634
        %v2703 = vsel %vm2431, %v2363, %v2635
        %v2704 = vsel %vm2432, %v2364, %v2636
        %v2705 = vsel %vm2433, %v2365, %v2637
        %v2706 = vsel %vm2434, %v2366, %v2638
        %v2707 = vsel %vm2435, %v2367, %v2639
        %v2708 = vsel %vm2436, %v2368, %v2640
        %v2709 = vsel %vm2437, %v2369, %v2641
        %v2710 = vsel %vm2438, %v2370, %v2642
        %v2711 = vsel %vm2439, %v2371, %v2643
        %v2712 = vsel %vm2440, %v2372, %v2644
        %v2713 = vpack.c.bf16 %v2646, %v2645
        %v2714 = vpack.c.bf16 %v2648, %v2647
        %v2715 = vpack.c.bf16 %v2650, %v2649
        %v2716 = vpack.c.bf16 %v2652, %v2651
        %v2717 = vpack.c.bf16 %v2654, %v2653
        %v2718 = vpack.c.bf16 %v2656, %v2655
        %v2719 = vpack.c.bf16 %v2658, %v2657
        %v2720 = vpack.c.bf16 %v2660, %v2659
        %v2721 = vpack.c.bf16 %v2662, %v2661
        %v2722 = vpack.c.bf16 %v2664, %v2663
        %v2723 = vpack.c.bf16 %v2666, %v2665
        %v2724 = vpack.c.bf16 %v2668, %v2667
        %v2725 = vpack.c.bf16 %v2670, %v2669
        %v2726 = vpack.c.bf16 %v2672, %v2671
        %v2727 = vpack.c.bf16 %v2674, %v2673
        %v2728 = vpack.c.bf16 %v2676, %v2675
        %v2729 = vpack.c.bf16 %v2678, %v2677
        %v2730 = vpack.c.bf16 %v2680, %v2679
        %v2731 = vpack.c.bf16 %v2682, %v2681
        %v2732 = vpack.c.bf16 %v2684, %v2683
        %v2733 = vpack.c.bf16 %v2686, %v2685
        %v2734 = vpack.c.bf16 %v2688, %v2687
        %v2735 = vpack.c.bf16 %v2690, %v2689
        %v2736 = vpack.c.bf16 %v2692, %v2691
        %v2737 = vpack.c.bf16 %v2694, %v2693
        %v2738 = vpack.c.bf16 %v2696, %v2695
        %v2739 = vpack.c.bf16 %v2698, %v2697
        %v2740 = vpack.c.bf16 %v2700, %v2699
        %v2741 = vpack.c.bf16 %v2702, %v2701
        %v2742 = vpack.c.bf16 %v2704, %v2703
        %v2743 = vpack.c.bf16 %v2706, %v2705
        %v2744 = vpack.c.bf16 %v2708, %v2707
        %v2745 = vpack.c.bf16 %v2710, %v2709
        %v2746 = vpack.c.bf16 %v2712, %v2711
        %v2747 = vld [vmem:[%s2] sm:$0xf]
        %v2748 = vld [vmem:[%s2 + $0x4] sm:$0xf]
        %v2749 = vld [vmem:[%s2 + $0x8] sm:$0x3]
        %s2750 = scalar_lea.vmem %s2, 12
        %v2751 = vld [vmem:[%s2750] sm:$0xf]
        %v2752 = vld [vmem:[%s2750 + $0x4] sm:$0xf]
        %v2753 = vld [vmem:[%s2750 + $0x8] sm:$0x3]
        %v2757 = vunpack.c.l.b16 %v2751
        %v2758 = vunpack.c.l.b16 %v2752
        %v2759 = vunpack.c.l.b16 %v2753
        %v2760 = vpack.c.b16 %v2758, %v2757
        %v2761 = vpack.c.b16 %v2759, %v2759
        %vm2763 = vcmask 162816
        %v2765 = vsel %vm2763, %v2714, 0
        %v2768 = vsel %vm2763, %v2715, 0
        %v2771 = vsel %vm2763, %v2716, 0
        %v2774 = vsel %vm2763, %v2717, 0
        %v2777 = vsel %vm2763, %v2718, 0
        %v2780 = vsel %vm2763, %v2719, 0
        %v2783 = vsel %vm2763, %v2720, 0
        %v2786 = vsel %vm2763, %v2721, 0
        %v2789 = vsel %vm2763, %v2722, 0
        %v2792 = vsel %vm2763, %v2723, 0
        %v2795 = vsel %vm2763, %v2724, 0
        %v2798 = vsel %vm2763, %v2725, 0
        %v2801 = vsel %vm2763, %v2726, 0
        %v2804 = vsel %vm2763, %v2727, 0
        %v2807 = vsel %vm2763, %v2728, 0
        %vm2809 = vcmask 1041408
        %v2811 = vsel %vm2809, %v2761, 0
        %2813 = vmatprep.subr.bf16.mxu0 0
        %2814 = vmatpush1.bf16.msra.mxu0 %v2760
        %2815 = vmatprep.subr.bf16.mxu0 0
        %2816 = vmatpush1.bf16.msra.mxu0 %v2811
        %2817 = vmatprep.subr.bf16.mxu0 0
        %2818 = vmatpush1.bf16.msra.mxu0 0
        %2819 = vmatprep.subr.bf16.mxu0 0
        %2820 = vmatpush1.bf16.msra.mxu0 0
        %2821 = vmatprep.subr.bf16.mxu0 0
        %2822 = vmatpush1.bf16.msra.mxu0 0
        %2823 = vmatprep.subr.bf16.mxu0 0
        %2824 = vmatpush1.bf16.msra.mxu0 0
        %2825 = vmatprep.subr.bf16.mxu0 0
        %2826 = vmatpush1.bf16.msra.mxu0 0
        %2827 = vmatprep.subr.bf16.mxu0 0
        %2828 = vmatpush1.bf16.msra.mxu0 0
        %2829 = vmatprep.subr.bf16.mxu0 0
        %2830 = vmatpush1.bf16.msra.mxu0 0
        %2831 = vmatprep.subr.bf16.mxu0 0
        %2832 = vmatpush1.bf16.msra.mxu0 0
        %2833 = vmatprep.subr.bf16.mxu0 0
        %2834 = vmatpush1.bf16.msra.mxu0 0
        %2835 = vmatprep.subr.bf16.mxu0 0
        %2836 = vmatpush1.bf16.msra.mxu0 0
        %2837 = vmatprep.subr.bf16.mxu0 0
        %2838 = vmatpush1.bf16.msra.mxu0 0
        %2839 = vmatprep.subr.bf16.mxu0 0
        %2840 = vmatpush1.bf16.msra.mxu0 0
        %2841 = vmatprep.subr.bf16.mxu0 0
        %2842 = vmatpush1.bf16.msra.mxu0 0
        %2843 = vmatprep.subr.bf16.mxu0 0
        %2844 = vmatpush1.bf16.msra.mxu0 0
        %2845 = vmatprep.mubr.bf16.mxu0 0
        %2846 = vmatmul.mubr.bf16.gmra.mrb[0].mxu0 %v2765
        %v2847 = vpop.f32.mrb[0].mxu0
        %v2848 = vadd.f32 0.0, %v2847
        %v2849 = vpop.f32.mrb[0].mxu0
        %v2850 = vpop.f32.mrb[0].mxu0
        %v2851 = vadd.f32 0.0, %v2850
        %v2852 = vpop.f32.mrb[0].mxu0
        %2853 = vmatprep.mubr.bf16.mxu0 0
        %2854 = vmatmul.mubr.bf16.gmra.mrb[0].mxu0 %v2768
        %v2855 = vpop.f32.mrb[0].mxu0
        %v2856 = vadd.f32 0.0, %v2855
        %v2857 = vpop.f32.mrb[0].mxu0
        %v2858 = vpop.f32.mrb[0].mxu0
        %v2859 = vadd.f32 0.0, %v2858
        %v2860 = vpop.f32.mrb[0].mxu0
        %2861 = vmatprep.mubr.bf16.mxu0 0
        %2862 = vmatmul.mubr.bf16.gmra.mrb[0].mxu0 %v2771
        %v2863 = vpop.f32.mrb[0].mxu0
        %v2864 = vadd.f32 0.0, %v2863
        %v2865 = vpop.f32.mrb[0].mxu0
        %v2866 = vpop.f32.mrb[0].mxu0
        %v2867 = vadd.f32 0.0, %v2866
        %v2868 = vpop.f32.mrb[0].mxu0
        %2869 = vmatprep.mubr.bf16.mxu0 0
        %2870 = vmatmul.mubr.bf16.gmra.mrb[0].mxu0 %v2774
        %v2871 = vpop.f32.mrb[0].mxu0
        %v2872 = vadd.f32 0.0, %v2871
        %v2873 = vpop.f32.mrb[0].mxu0
        %v2874 = vpop.f32.mrb[0].mxu0
        %v2875 = vadd.f32 0.0, %v2874
        %v2876 = vpop.f32.mrb[0].mxu0
        %2877 = vmatprep.mubr.bf16.mxu0 0
        %2878 = vmatmul.mubr.bf16.gmra.mrb[0].mxu0 %v2777
        %v2879 = vpop.f32.mrb[0].mxu0
        %v2880 = vadd.f32 0.0, %v2879
        %v2881 = vpop.f32.mrb[0].mxu0
        %v2882 = vpop.f32.mrb[0].mxu0
        %v2883 = vadd.f32 0.0, %v2882
        %v2884 = vpop.f32.mrb[0].mxu0
        %2885 = vmatprep.mubr.bf16.mxu0 0
        %2886 = vmatmul.mubr.bf16.gmra.mrb[0].mxu0 %v2780
        %v2887 = vpop.f32.mrb[0].mxu0
        %v2888 = vadd.f32 0.0, %v2887
        %v2889 = vpop.f32.mrb[0].mxu0
        %v2890 = vpop.f32.mrb[0].mxu0
        %v2891 = vadd.f32 0.0, %v2890
        %v2892 = vpop.f32.mrb[0].mxu0
        %2893 = vmatprep.mubr.bf16.mxu0 0
        %2894 = vmatmul.mubr.bf16.gmra.mrb[0].mxu0 %v2783
        %v2895 = vpop.f32.mrb[0].mxu0
        %v2896 = vadd.f32 0.0, %v2895
        %v2897 = vpop.f32.mrb[0].mxu0
        %v2898 = vpop.f32.mrb[0].mxu0
        %v2899 = vadd.f32 0.0, %v2898
        %v2900 = vpop.f32.mrb[0].mxu0
        %2901 = vmatprep.mubr.bf16.mxu0 0
        %2902 = vmatmul.mubr.bf16.gmra.mrb[0].mxu0 %v2786
        %v2903 = vpop.f32.mrb[0].mxu0
        %v2904 = vadd.f32 0.0, %v2903
        %v2905 = vpop.f32.mrb[0].mxu0
        %v2906 = vpop.f32.mrb[0].mxu0
        %v2907 = vadd.f32 0.0, %v2906
        %v2908 = vpop.f32.mrb[0].mxu0
        %2909 = vmatprep.mubr.bf16.mxu0 0
        %2910 = vmatmul.mubr.bf16.gmra.mrb[0].mxu0 %v2789
        %v2911 = vpop.f32.mrb[0].mxu0
        %v2912 = vadd.f32 0.0, %v2911
        %v2913 = vpop.f32.mrb[0].mxu0
        %v2914 = vpop.f32.mrb[0].mxu0
        %v2915 = vadd.f32 0.0, %v2914
        %v2916 = vpop.f32.mrb[0].mxu0
        %2917 = vmatprep.mubr.bf16.mxu0 0
        %2918 = vmatmul.mubr.bf16.gmra.mrb[0].mxu0 %v2792
        %v2919 = vpop.f32.mrb[0].mxu0
        %v2920 = vadd.f32 0.0, %v2919
        %v2921 = vpop.f32.mrb[0].mxu0
        %v2922 = vpop.f32.mrb[0].mxu0
        %v2923 = vadd.f32 0.0, %v2922
        %v2924 = vpop.f32.mrb[0].mxu0
        %2925 = vmatprep.mubr.bf16.mxu0 0
        %2926 = vmatmul.mubr.bf16.gmra.mrb[0].mxu0 %v2795
        %v2927 = vpop.f32.mrb[0].mxu0
        %v2928 = vadd.f32 0.0, %v2927
        %v2929 = vpop.f32.mrb[0].mxu0
        %v2930 = vpop.f32.mrb[0].mxu0
        %v2931 = vadd.f32 0.0, %v2930
        %v2932 = vpop.f32.mrb[0].mxu0
        %2933 = vmatprep.mubr.bf16.mxu0 0
        %2934 = vmatmul.mubr.bf16.gmra.mrb[0].mxu0 %v2798
        %v2935 = vpop.f32.mrb[0].mxu0
        %v2936 = vadd.f32 0.0, %v2935
        %v2937 = vpop.f32.mrb[0].mxu0
        %v2938 = vpop.f32.mrb[0].mxu0
        %v2939 = vadd.f32 0.0, %v2938
        %v2940 = vpop.f32.mrb[0].mxu0
        %2941 = vmatprep.mubr.bf16.mxu0 0
        %2942 = vmatmul.mubr.bf16.gmra.mrb[0].mxu0 %v2801
        %v2943 = vpop.f32.mrb[0].mxu0
        %v2944 = vadd.f32 0.0, %v2943
        %v2945 = vpop.f32.mrb[0].mxu0
        %v2946 = vpop.f32.mrb[0].mxu0
        %v2947 = vadd.f32 0.0, %v2946
        %v2948 = vpop.f32.mrb[0].mxu0
        %2949 = vmatprep.mubr.bf16.mxu0 0
        %2950 = vmatmul.mubr.bf16.gmra.mrb[0].mxu0 %v2804
        %v2951 = vpop.f32.mrb[0].mxu0
        %v2952 = vadd.f32 0.0, %v2951
        %v2953 = vpop.f32.mrb[0].mxu0
        %v2954 = vpop.f32.mrb[0].mxu0
        %v2955 = vadd.f32 0.0, %v2954
        %v2956 = vpop.f32.mrb[0].mxu0
        %2957 = vmatprep.mubr.bf16.mxu0 0
        %2958 = vmatmul.mubr.bf16.gmra.mrb[0].mxu0 %v2807
        %v2959 = vpop.f32.mrb[0].mxu0
        %v2960 = vadd.f32 0.0, %v2959
        %v2961 = vpop.f32.mrb[0].mxu0
        %v2962 = vpop.f32.mrb[0].mxu0
        %v2963 = vadd.f32 0.0, %v2962
        %v2964 = vpop.f32.mrb[0].mxu0
        %2965 = vdwg.mxu0
        %v2969 = vunpack.c.l.b16 %v2747
        %v2970 = vunpack.c.l.b16 %v2748
        %v2971 = vunpack.c.l.b16 %v2749
        %v2972 = vpack.c.b16 %v2970, %v2969
        %v2973 = vpack.c.b16 %v2971, %v2971
        %v2976 = vsel %vm2763, %v2713, 0
        %v2979 = vsel %vm2809, %v2973, 0
        %2981 = vmatprep.subr.bf16.mxu0 0
        %2982 = vmatpush1.bf16.msra.mxu0 %v2972
        %2983 = vmatprep.subr.bf16.mxu0 0
        %2984 = vmatpush1.bf16.msra.mxu0 %v2979
        %2985 = vmatprep.subr.bf16.mxu0 0
        %2986 = vmatpush1.bf16.msra.mxu0 0
        %2987 = vmatprep.subr.bf16.mxu0 0
        %2988 = vmatpush1.bf16.msra.mxu0 0
        %2989 = vmatprep.subr.bf16.mxu0 0
        %2990 = vmatpush1.bf16.msra.mxu0 0
        %2991 = vmatprep.subr.bf16.mxu0 0
        %2992 = vmatpush1.bf16.msra.mxu0 0
        %2993 = vmatprep.subr.bf16.mxu0 0
        %2994 = vmatpush1.bf16.msra.mxu0 0
        %2995 = vmatprep.subr.bf16.mxu0 0
        %2996 = vmatpush1.bf16.msra.mxu0 0
        %2997 = vmatprep.subr.bf16.mxu0 0
        %2998 = vmatpush1.bf16.msra.mxu0 0
        %2999 = vmatprep.subr.bf16.mxu0 0
        %3000 = vmatpush1.bf16.msra.mxu0 0
        %3001 = vmatprep.subr.bf16.mxu0 0
        %3002 = vmatpush1.bf16.msra.mxu0 0
        %3003 = vmatprep.subr.bf16.mxu0 0
        %3004 = vmatpush1.bf16.msra.mxu0 0
        %3005 = vmatprep.subr.bf16.mxu0 0
        %3006 = vmatpush1.bf16.msra.mxu0 0
        %3007 = vmatprep.subr.bf16.mxu0 0
        %3008 = vmatpush1.bf16.msra.mxu0 0
        %3009 = vmatprep.subr.bf16.mxu0 0
        %3010 = vmatpush1.bf16.msra.mxu0 0
        %3011 = vmatprep.subr.bf16.mxu0 0
        %3012 = vmatpush1.bf16.msra.mxu0 0
        %3013 = vmatprep.mubr.bf16.mxu0 0
        %3014 = vmatmul.mubr.bf16.gmra.mrb[0].mxu0 %v2976
        %v3015 = vpop.f32.mrb[0].mxu0
        %v3016 = vadd.f32 %v2848, %v3015
        %v3017 = vpop.f32.mrb[0].mxu0
        %v3018 = vpop.f32.mrb[0].mxu0
        %v3019 = vadd.f32 %v2851, %v3018
        %v3020 = vpop.f32.mrb[0].mxu0
        %3021 = vmatprep.mubr.bf16.mxu0 0
        %3022 = vmatmul.mubr.bf16.gmra.mrb[0].mxu0 %v2765
        %v3023 = vpop.f32.mrb[0].mxu0
        %v3024 = vadd.f32 %v2856, %v3023
        %v3025 = vpop.f32.mrb[0].mxu0
        %v3026 = vpop.f32.mrb[0].mxu0
        %v3027 = vadd.f32 %v2859, %v3026
        %v3028 = vpop.f32.mrb[0].mxu0
        %3029 = vmatprep.mubr.bf16.mxu0 0
        %3030 = vmatmul.mubr.bf16.gmra.mrb[0].mxu0 %v2768
        %v3031 = vpop.f32.mrb[0].mxu0
        %v3032 = vadd.f32 %v2864, %v3031
        %v3033 = vpop.f32.mrb[0].mxu0
        %v3034 = vpop.f32.mrb[0].mxu0
        %v3035 = vadd.f32 %v2867, %v3034
        %v3036 = vpop.f32.mrb[0].mxu0
        %3037 = vmatprep.mubr.bf16.mxu0 0
        %3038 = vmatmul.mubr.bf16.gmra.mrb[0].mxu0 %v2771
        %v3039 = vpop.f32.mrb[0].mxu0
        %v3040 = vadd.f32 %v2872, %v3039
        %v3041 = vpop.f32.mrb[0].mxu0
        %v3042 = vpop.f32.mrb[0].mxu0
        %v3043 = vadd.f32 %v2875, %v3042
        %v3044 = vpop.f32.mrb[0].mxu0
        %3045 = vmatprep.mubr.bf16.mxu0 0
        %3046 = vmatmul.mubr.bf16.gmra.mrb[0].mxu0 %v2774
        %v3047 = vpop.f32.mrb[0].mxu0
        %v3048 = vadd.f32 %v2880, %v3047
        %v3049 = vpop.f32.mrb[0].mxu0
        %v3050 = vpop.f32.mrb[0].mxu0
        %v3051 = vadd.f32 %v2883, %v3050
        %v3052 = vpop.f32.mrb[0].mxu0
        %3053 = vmatprep.mubr.bf16.mxu0 0
        %3054 = vmatmul.mubr.bf16.gmra.mrb[0].mxu0 %v2777
        %v3055 = vpop.f32.mrb[0].mxu0
        %v3056 = vadd.f32 %v2888, %v3055
        %v3057 = vpop.f32.mrb[0].mxu0
        %v3058 = vpop.f32.mrb[0].mxu0
        %v3059 = vadd.f32 %v2891, %v3058
        %v3060 = vpop.f32.mrb[0].mxu0
        %3061 = vmatprep.mubr.bf16.mxu0 0
        %3062 = vmatmul.mubr.bf16.gmra.mrb[0].mxu0 %v2780
        %v3063 = vpop.f32.mrb[0].mxu0
        %v3064 = vadd.f32 %v2896, %v3063
        %v3065 = vpop.f32.mrb[0].mxu0
        %v3066 = vpop.f32.mrb[0].mxu0
        %v3067 = vadd.f32 %v2899, %v3066
        %v3068 = vpop.f32.mrb[0].mxu0
        %3069 = vmatprep.mubr.bf16.mxu0 0
        %3070 = vmatmul.mubr.bf16.gmra.mrb[0].mxu0 %v2783
        %v3071 = vpop.f32.mrb[0].mxu0
        %v3072 = vadd.f32 %v2904, %v3071
        %v3073 = vpop.f32.mrb[0].mxu0
        %v3074 = vpop.f32.mrb[0].mxu0
        %v3075 = vadd.f32 %v2907, %v3074
        %v3076 = vpop.f32.mrb[0].mxu0
        %3077 = vmatprep.mubr.bf16.mxu0 0
        %3078 = vmatmul.mubr.bf16.gmra.mrb[0].mxu0 %v2786
        %v3079 = vpop.f32.mrb[0].mxu0
        %v3080 = vadd.f32 %v2912, %v3079
        %v3081 = vpop.f32.mrb[0].mxu0
        %v3082 = vpop.f32.mrb[0].mxu0
        %v3083 = vadd.f32 %v2915, %v3082
        %v3084 = vpop.f32.mrb[0].mxu0
        %3085 = vmatprep.mubr.bf16.mxu0 0
        %3086 = vmatmul.mubr.bf16.gmra.mrb[0].mxu0 %v2789
        %v3087 = vpop.f32.mrb[0].mxu0
        %v3088 = vadd.f32 %v2920, %v3087
        %v3089 = vpop.f32.mrb[0].mxu0
        %v3090 = vpop.f32.mrb[0].mxu0
        %v3091 = vadd.f32 %v2923, %v3090
        %v3092 = vpop.f32.mrb[0].mxu0
        %3093 = vmatprep.mubr.bf16.mxu0 0
        %3094 = vmatmul.mubr.bf16.gmra.mrb[0].mxu0 %v2792
        %v3095 = vpop.f32.mrb[0].mxu0
        %v3096 = vadd.f32 %v2928, %v3095
        %v3097 = vpop.f32.mrb[0].mxu0
        %v3098 = vpop.f32.mrb[0].mxu0
        %v3099 = vadd.f32 %v2931, %v3098
        %v3100 = vpop.f32.mrb[0].mxu0
        %3101 = vmatprep.mubr.bf16.mxu0 0
        %3102 = vmatmul.mubr.bf16.gmra.mrb[0].mxu0 %v2795
        %v3103 = vpop.f32.mrb[0].mxu0
        %v3104 = vadd.f32 %v2936, %v3103
        %v3105 = vpop.f32.mrb[0].mxu0
        %v3106 = vpop.f32.mrb[0].mxu0
        %v3107 = vadd.f32 %v2939, %v3106
        %v3108 = vpop.f32.mrb[0].mxu0
        %3109 = vmatprep.mubr.bf16.mxu0 0
        %3110 = vmatmul.mubr.bf16.gmra.mrb[0].mxu0 %v2798
        %v3111 = vpop.f32.mrb[0].mxu0
        %v3112 = vadd.f32 %v2944, %v3111
        %v3113 = vpop.f32.mrb[0].mxu0
        %v3114 = vpop.f32.mrb[0].mxu0
        %v3115 = vadd.f32 %v2947, %v3114
        %v3116 = vpop.f32.mrb[0].mxu0
        %3117 = vmatprep.mubr.bf16.mxu0 0
        %3118 = vmatmul.mubr.bf16.gmra.mrb[0].mxu0 %v2801
        %v3119 = vpop.f32.mrb[0].mxu0
        %v3120 = vadd.f32 %v2952, %v3119
        %v3121 = vpop.f32.mrb[0].mxu0
        %v3122 = vpop.f32.mrb[0].mxu0
        %v3123 = vadd.f32 %v2955, %v3122
        %v3124 = vpop.f32.mrb[0].mxu0
        %3125 = vmatprep.mubr.bf16.mxu0 0
        %3126 = vmatmul.mubr.bf16.gmra.mrb[0].mxu0 %v2804
        %v3127 = vpop.f32.mrb[0].mxu0
        %v3128 = vadd.f32 %v2960, %v3127
        %v3129 = vpop.f32.mrb[0].mxu0
        %v3130 = vpop.f32.mrb[0].mxu0
        %v3131 = vadd.f32 %v2963, %v3130
        %v3132 = vpop.f32.mrb[0].mxu0
        %3133 = vdwg.mxu0
        %s3134 = scalar_lea.vmem %s2, 24
        %v3135 = vld [vmem:[%s3134] sm:$0xf]
        %v3136 = vld [vmem:[%s3134 + $0x4] sm:$0xf]
        %v3137 = vld [vmem:[%s3134 + $0x8] sm:$0x3]
        %v3141 = vunpack.c.l.b16 %v3135
        %v3142 = vunpack.c.l.b16 %v3136
        %v3143 = vunpack.c.l.b16 %v3137
        %v3144 = vpack.c.b16 %v3142, %v3141
        %v3145 = vpack.c.b16 %v3143, %v3143
        %v3148 = vsel %vm2763, %v2729, 0
        %v3151 = vsel %vm2809, %v3145, 0
        %3153 = vmatprep.subr.bf16.mxu0 0
        %3154 = vmatpush1.bf16.msra.mxu0 %v3144
        %3155 = vmatprep.subr.bf16.mxu0 0
        %3156 = vmatpush1.bf16.msra.mxu0 %v3151
        %3157 = vmatprep.subr.bf16.mxu0 0
        %3158 = vmatpush1.bf16.msra.mxu0 0
        %3159 = vmatprep.subr.bf16.mxu0 0
        %3160 = vmatpush1.bf16.msra.mxu0 0
        %3161 = vmatprep.subr.bf16.mxu0 0
        %3162 = vmatpush1.bf16.msra.mxu0 0
        %3163 = vmatprep.subr.bf16.mxu0 0
        %3164 = vmatpush1.bf16.msra.mxu0 0
        %3165 = vmatprep.subr.bf16.mxu0 0
        %3166 = vmatpush1.bf16.msra.mxu0 0
        %3167 = vmatprep.subr.bf16.mxu0 0
        %3168 = vmatpush1.bf16.msra.mxu0 0
        %3169 = vmatprep.subr.bf16.mxu0 0
        %3170 = vmatpush1.bf16.msra.mxu0 0
        %3171 = vmatprep.subr.bf16.mxu0 0
        %3172 = vmatpush1.bf16.msra.mxu0 0
        %3173 = vmatprep.subr.bf16.mxu0 0
        %3174 = vmatpush1.bf16.msra.mxu0 0
        %3175 = vmatprep.subr.bf16.mxu0 0
        %3176 = vmatpush1.bf16.msra.mxu0 0
        %3177 = vmatprep.subr.bf16.mxu0 0
        %3178 = vmatpush1.bf16.msra.mxu0 0
        %3179 = vmatprep.subr.bf16.mxu0 0
        %3180 = vmatpush1.bf16.msra.mxu0 0
        %3181 = vmatprep.subr.bf16.mxu0 0
        %3182 = vmatpush1.bf16.msra.mxu0 0
        %3183 = vmatprep.subr.bf16.mxu0 0
        %3184 = vmatpush1.bf16.msra.mxu0 0
        %3185 = vmatprep.mubr.bf16.mxu0 0
        %3186 = vmatmul.mubr.bf16.gmra.mrb[0].mxu0 %v2768
        %v3187 = vpop.f32.mrb[0].mxu0
        %v3188 = vadd.f32 0.0, %v3187
        %v3189 = vpop.f32.mrb[0].mxu0
        %v3190 = vpop.f32.mrb[0].mxu0
        %v3191 = vadd.f32 0.0, %v3190
        %v3192 = vpop.f32.mrb[0].mxu0
        %3193 = vmatprep.mubr.bf16.mxu0 0
        %3194 = vmatmul.mubr.bf16.gmra.mrb[0].mxu0 %v2771
        %v3195 = vpop.f32.mrb[0].mxu0
        %v3196 = vadd.f32 0.0, %v3195
        %v3197 = vpop.f32.mrb[0].mxu0
        %v3198 = vpop.f32.mrb[0].mxu0
        %v3199 = vadd.f32 0.0, %v3198
        %v3200 = vpop.f32.mrb[0].mxu0
        %3201 = vmatprep.mubr.bf16.mxu0 0
        %3202 = vmatmul.mubr.bf16.gmra.mrb[0].mxu0 %v2774
        %v3203 = vpop.f32.mrb[0].mxu0
        %v3204 = vadd.f32 0.0, %v3203
        %v3205 = vpop.f32.mrb[0].mxu0
        %v3206 = vpop.f32.mrb[0].mxu0
        %v3207 = vadd.f32 0.0, %v3206
        %v3208 = vpop.f32.mrb[0].mxu0
        %3209 = vmatprep.mubr.bf16.mxu0 0
        %3210 = vmatmul.mubr.bf16.gmra.mrb[0].mxu0 %v2777
        %v3211 = vpop.f32.mrb[0].mxu0
        %v3212 = vadd.f32 0.0, %v3211
        %v3213 = vpop.f32.mrb[0].mxu0
        %v3214 = vpop.f32.mrb[0].mxu0
        %v3215 = vadd.f32 0.0, %v3214
        %v3216 = vpop.f32.mrb[0].mxu0
        %3217 = vmatprep.mubr.bf16.mxu0 0
        %3218 = vmatmul.mubr.bf16.gmra.mrb[0].mxu0 %v2780
        %v3219 = vpop.f32.mrb[0].mxu0
        %v3220 = vadd.f32 0.0, %v3219
        %v3221 = vpop.f32.mrb[0].mxu0
        %v3222 = vpop.f32.mrb[0].mxu0
        %v3223 = vadd.f32 0.0, %v3222
        %v3224 = vpop.f32.mrb[0].mxu0
        %3225 = vmatprep.mubr.bf16.mxu0 0
        %3226 = vmatmul.mubr.bf16.gmra.mrb[0].mxu0 %v2783
        %v3227 = vpop.f32.mrb[0].mxu0
        %v3228 = vadd.f32 0.0, %v3227
        %v3229 = vpop.f32.mrb[0].mxu0
        %v3230 = vpop.f32.mrb[0].mxu0
        %v3231 = vadd.f32 0.0, %v3230
        %v3232 = vpop.f32.mrb[0].mxu0
        %3233 = vmatprep.mubr.bf16.mxu0 0
        %3234 = vmatmul.mubr.bf16.gmra.mrb[0].mxu0 %v2786
        %v3235 = vpop.f32.mrb[0].mxu0
        %v3236 = vadd.f32 0.0, %v3235
        %v3237 = vpop.f32.mrb[0].mxu0
        %v3238 = vpop.f32.mrb[0].mxu0
        %v3239 = vadd.f32 0.0, %v3238
        %v3240 = vpop.f32.mrb[0].mxu0
        %3241 = vmatprep.mubr.bf16.mxu0 0
        %3242 = vmatmul.mubr.bf16.gmra.mrb[0].mxu0 %v2789
        %v3243 = vpop.f32.mrb[0].mxu0
        %v3244 = vadd.f32 0.0, %v3243
        %v3245 = vpop.f32.mrb[0].mxu0
        %v3246 = vpop.f32.mrb[0].mxu0
        %v3247 = vadd.f32 0.0, %v3246
        %v3248 = vpop.f32.mrb[0].mxu0
        %3249 = vmatprep.mubr.bf16.mxu0 0
        %3250 = vmatmul.mubr.bf16.gmra.mrb[0].mxu0 %v2792
        %v3251 = vpop.f32.mrb[0].mxu0
        %v3252 = vadd.f32 0.0, %v3251
        %v3253 = vpop.f32.mrb[0].mxu0
        %v3254 = vpop.f32.mrb[0].mxu0
        %v3255 = vadd.f32 0.0, %v3254
        %v3256 = vpop.f32.mrb[0].mxu0
        %3257 = vmatprep.mubr.bf16.mxu0 0
        %3258 = vmatmul.mubr.bf16.gmra.mrb[0].mxu0 %v2795
        %v3259 = vpop.f32.mrb[0].mxu0
        %v3260 = vadd.f32 0.0, %v3259
        %v3261 = vpop.f32.mrb[0].mxu0
        %v3262 = vpop.f32.mrb[0].mxu0
        %v3263 = vadd.f32 0.0, %v3262
        %v3264 = vpop.f32.mrb[0].mxu0
        %3265 = vmatprep.mubr.bf16.mxu0 0
        %3266 = vmatmul.mubr.bf16.gmra.mrb[0].mxu0 %v2798
        %v3267 = vpop.f32.mrb[0].mxu0
        %v3268 = vadd.f32 0.0, %v3267
        %v3269 = vpop.f32.mrb[0].mxu0
        %v3270 = vpop.f32.mrb[0].mxu0
        %v3271 = vadd.f32 0.0, %v3270
        %v3272 = vpop.f32.mrb[0].mxu0
        %3273 = vmatprep.mubr.bf16.mxu0 0
        %3274 = vmatmul.mubr.bf16.gmra.mrb[0].mxu0 %v2801
        %v3275 = vpop.f32.mrb[0].mxu0
        %v3276 = vadd.f32 0.0, %v3275
        %v3277 = vpop.f32.mrb[0].mxu0
        %v3278 = vpop.f32.mrb[0].mxu0
        %v3279 = vadd.f32 0.0, %v3278
        %v3280 = vpop.f32.mrb[0].mxu0
        %3281 = vmatprep.mubr.bf16.mxu0 0
        %3282 = vmatmul.mubr.bf16.gmra.mrb[0].mxu0 %v2804
        %v3283 = vpop.f32.mrb[0].mxu0
        %v3284 = vadd.f32 0.0, %v3283
        %v3285 = vpop.f32.mrb[0].mxu0
        %v3286 = vpop.f32.mrb[0].mxu0
        %v3287 = vadd.f32 0.0, %v3286
        %v3288 = vpop.f32.mrb[0].mxu0
        %3289 = vmatprep.mubr.bf16.mxu0 0
        %3290 = vmatmul.mubr.bf16.gmra.mrb[0].mxu0 %v2807
        %v3291 = vpop.f32.mrb[0].mxu0
        %v3292 = vadd.f32 0.0, %v3291
        %v3293 = vpop.f32.mrb[0].mxu0
        %v3294 = vpop.f32.mrb[0].mxu0
        %v3295 = vadd.f32 0.0, %v3294
        %v3296 = vpop.f32.mrb[0].mxu0
        %3297 = vmatprep.mubr.bf16.mxu0 0
        %3298 = vmatmul.mubr.bf16.gmra.mrb[0].mxu0 %v3148
        %v3299 = vpop.f32.mrb[0].mxu0
        %v3300 = vadd.f32 0.0, %v3299
        %v3301 = vpop.f32.mrb[0].mxu0
        %v3302 = vpop.f32.mrb[0].mxu0
        %v3303 = vadd.f32 0.0, %v3302
        %v3304 = vpop.f32.mrb[0].mxu0
        %3305 = vdwg.mxu0
        %v3306 = vadd.f32 %v3016, %v3188
        %v3307 = vadd.f32 %v3019, %v3191
        %v3308 = vadd.f32 %v3024, %v3196
        %v3309 = vadd.f32 %v3027, %v3199
        %v3310 = vadd.f32 %v3032, %v3204
        %v3311 = vadd.f32 %v3035, %v3207
        %v3312 = vadd.f32 %v3040, %v3212
        %v3313 = vadd.f32 %v3043, %v3215
        %v3314 = vadd.f32 %v3048, %v3220
        %v3315 = vadd.f32 %v3051, %v3223
        %v3316 = vadd.f32 %v3056, %v3228
        %v3317 = vadd.f32 %v3059, %v3231
        %v3318 = vadd.f32 %v3064, %v3236
        %v3319 = vadd.f32 %v3067, %v3239
        %v3320 = vadd.f32 %v3072, %v3244
        %v3321 = vadd.f32 %v3075, %v3247
        %v3322 = vadd.f32 %v3080, %v3252
        %v3323 = vadd.f32 %v3083, %v3255
        %v3324 = vadd.f32 %v3088, %v3260
        %v3325 = vadd.f32 %v3091, %v3263
        %v3326 = vadd.f32 %v3096, %v3268
        %v3327 = vadd.f32 %v3099, %v3271
        %v3328 = vadd.f32 %v3104, %v3276
        %v3329 = vadd.f32 %v3107, %v3279
        %v3330 = vadd.f32 %v3112, %v3284
        %v3331 = vadd.f32 %v3115, %v3287
        %v3332 = vadd.f32 %v3120, %v3292
        %v3333 = vadd.f32 %v3123, %v3295
        %v3334 = vadd.f32 %v3128, %v3300
        %v3335 = vadd.f32 %v3131, %v3303
        %s3336 = scalar_lea.vmem %s2, 36
        %v3337 = vld [vmem:[%s3336] sm:$0xf]
        %v3338 = vld [vmem:[%s3336 + $0x4] sm:$0xf]
        %v3339 = vld [vmem:[%s3336 + $0x8] sm:$0x3]
        %v3343 = vunpack.c.l.b16 %v3337
        %v3344 = vunpack.c.l.b16 %v3338
        %v3345 = vunpack.c.l.b16 %v3339
        %v3346 = vpack.c.b16 %v3344, %v3343
        %v3347 = vpack.c.b16 %v3345, %v3345
        %v3350 = vsel %vm2763, %v2730, 0
        %v3353 = vsel %vm2809, %v3347, 0
        %3355 = vmatprep.subr.bf16.mxu0 0
        %3356 = vmatpush1.bf16.msra.mxu0 %v3346
        %3357 = vmatprep.subr.bf16.mxu0 0
        %3358 = vmatpush1.bf16.msra.mxu0 %v3353
        %3359 = vmatprep.subr.bf16.mxu0 0
        %3360 = vmatpush1.bf16.msra.mxu0 0
        %3361 = vmatprep.subr.bf16.mxu0 0
        %3362 = vmatpush1.bf16.msra.mxu0 0
        %3363 = vmatprep.subr.bf16.mxu0 0
        %3364 = vmatpush1.bf16.msra.mxu0 0
        %3365 = vmatprep.subr.bf16.mxu0 0
        %3366 = vmatpush1.bf16.msra.mxu0 0
        %3367 = vmatprep.subr.bf16.mxu0 0
        %3368 = vmatpush1.bf16.msra.mxu0 0
        %3369 = vmatprep.subr.bf16.mxu0 0
        %3370 = vmatpush1.bf16.msra.mxu0 0
        %3371 = vmatprep.subr.bf16.mxu0 0
        %3372 = vmatpush1.bf16.msra.mxu0 0
        %3373 = vmatprep.subr.bf16.mxu0 0
        %3374 = vmatpush1.bf16.msra.mxu0 0
        %3375 = vmatprep.subr.bf16.mxu0 0
        %3376 = vmatpush1.bf16.msra.mxu0 0
        %3377 = vmatprep.subr.bf16.mxu0 0
        %3378 = vmatpush1.bf16.msra.mxu0 0
        %3379 = vmatprep.subr.bf16.mxu0 0
        %3380 = vmatpush1.bf16.msra.mxu0 0
        %3381 = vmatprep.subr.bf16.mxu0 0
        %3382 = vmatpush1.bf16.msra.mxu0 0
        %3383 = vmatprep.subr.bf16.mxu0 0
        %3384 = vmatpush1.bf16.msra.mxu0 0
        %3385 = vmatprep.subr.bf16.mxu0 0
        %3386 = vmatpush1.bf16.msra.mxu0 0
        %3387 = vmatprep.mubr.bf16.mxu0 0
        %3388 = vmatmul.mubr.bf16.gmra.mrb[0].mxu0 %v2771
        %v3389 = vpop.f32.mrb[0].mxu0
        %v3390 = vadd.f32 0.0, %v3389
        %v3391 = vpop.f32.mrb[0].mxu0
        %v3392 = vpop.f32.mrb[0].mxu0
        %v3393 = vadd.f32 0.0, %v3392
        %v3394 = vpop.f32.mrb[0].mxu0
        %3395 = vmatprep.mubr.bf16.mxu0 0
        %3396 = vmatmul.mubr.bf16.gmra.mrb[0].mxu0 %v2774
        %v3397 = vpop.f32.mrb[0].mxu0
        %v3398 = vadd.f32 0.0, %v3397
        %v3399 = vpop.f32.mrb[0].mxu0
        %v3400 = vpop.f32.mrb[0].mxu0
        %v3401 = vadd.f32 0.0, %v3400
        %v3402 = vpop.f32.mrb[0].mxu0
        %3403 = vmatprep.mubr.bf16.mxu0 0
        %3404 = vmatmul.mubr.bf16.gmra.mrb[0].mxu0 %v2777
        %v3405 = vpop.f32.mrb[0].mxu0
        %v3406 = vadd.f32 0.0, %v3405
        %v3407 = vpop.f32.mrb[0].mxu0
        %v3408 = vpop.f32.mrb[0].mxu0
        %v3409 = vadd.f32 0.0, %v3408
        %v3410 = vpop.f32.mrb[0].mxu0
        %3411 = vmatprep.mubr.bf16.mxu0 0
        %3412 = vmatmul.mubr.bf16.gmra.mrb[0].mxu0 %v2780
        %v3413 = vpop.f32.mrb[0].mxu0
        %v3414 = vadd.f32 0.0, %v3413
        %v3415 = vpop.f32.mrb[0].mxu0
        %v3416 = vpop.f32.mrb[0].mxu0
        %v3417 = vadd.f32 0.0, %v3416
        %v3418 = vpop.f32.mrb[0].mxu0
        %3419 = vmatprep.mubr.bf16.mxu0 0
        %3420 = vmatmul.mubr.bf16.gmra.mrb[0].mxu0 %v2783
        %v3421 = vpop.f32.mrb[0].mxu0
        %v3422 = vadd.f32 0.0, %v3421
        %v3423 = vpop.f32.mrb[0].mxu0
        %v3424 = vpop.f32.mrb[0].mxu0
        %v3425 = vadd.f32 0.0, %v3424
        %v3426 = vpop.f32.mrb[0].mxu0
        %3427 = vmatprep.mubr.bf16.mxu0 0
        %3428 = vmatmul.mubr.bf16.gmra.mrb[0].mxu0 %v2786
        %v3429 = vpop.f32.mrb[0].mxu0
        %v3430 = vadd.f32 0.0, %v3429
        %v3431 = vpop.f32.mrb[0].mxu0
        %v3432 = vpop.f32.mrb[0].mxu0
        %v3433 = vadd.f32 0.0, %v3432
        %v3434 = vpop.f32.mrb[0].mxu0
        %3435 = vmatprep.mubr.bf16.mxu0 0
        %3436 = vmatmul.mubr.bf16.gmra.mrb[0].mxu0 %v2789
        %v3437 = vpop.f32.mrb[0].mxu0
        %v3438 = vadd.f32 0.0, %v3437
        %v3439 = vpop.f32.mrb[0].mxu0
        %v3440 = vpop.f32.mrb[0].mxu0
        %v3441 = vadd.f32 0.0, %v3440
        %v3442 = vpop.f32.mrb[0].mxu0
        %3443 = vmatprep.mubr.bf16.mxu0 0
        %3444 = vmatmul.mubr.bf16.gmra.mrb[0].mxu0 %v2792
        %v3445 = vpop.f32.mrb[0].mxu0
        %v3446 = vadd.f32 0.0, %v3445
        %v3447 = vpop.f32.mrb[0].mxu0
        %v3448 = vpop.f32.mrb[0].mxu0
        %v3449 = vadd.f32 0.0, %v3448
        %v3450 = vpop.f32.mrb[0].mxu0
        %3451 = vmatprep.mubr.bf16.mxu0 0
        %3452 = vmatmul.mubr.bf16.gmra.mrb[0].mxu0 %v2795
        %v3453 = vpop.f32.mrb[0].mxu0
        %v3454 = vadd.f32 0.0, %v3453
        %v3455 = vpop.f32.mrb[0].mxu0
        %v3456 = vpop.f32.mrb[0].mxu0
        %v3457 = vadd.f32 0.0, %v3456
        %v3458 = vpop.f32.mrb[0].mxu0
        %3459 = vmatprep.mubr.bf16.mxu0 0
        %3460 = vmatmul.mubr.bf16.gmra.mrb[0].mxu0 %v2798
        %v3461 = vpop.f32.mrb[0].mxu0
        %v3462 = vadd.f32 0.0, %v3461
        %v3463 = vpop.f32.mrb[0].mxu0
        %v3464 = vpop.f32.mrb[0].mxu0
        %v3465 = vadd.f32 0.0, %v3464
        %v3466 = vpop.f32.mrb[0].mxu0
        %3467 = vmatprep.mubr.bf16.mxu0 0
        %3468 = vmatmul.mubr.bf16.gmra.mrb[0].mxu0 %v2801
        %v3469 = vpop.f32.mrb[0].mxu0
        %v3470 = vadd.f32 0.0, %v3469
        %v3471 = vpop.f32.mrb[0].mxu0
        %v3472 = vpop.f32.mrb[0].mxu0
        %v3473 = vadd.f32 0.0, %v3472
        %v3474 = vpop.f32.mrb[0].mxu0
        %3475 = vmatprep.mubr.bf16.mxu0 0
        %3476 = vmatmul.mubr.bf16.gmra.mrb[0].mxu0 %v2804
        %v3477 = vpop.f32.mrb[0].mxu0
        %v3478 = vadd.f32 0.0, %v3477
        %v3479 = vpop.f32.mrb[0].mxu0
        %v3480 = vpop.f32.mrb[0].mxu0
        %v3481 = vadd.f32 0.0, %v3480
        %v3482 = vpop.f32.mrb[0].mxu0
        %3483 = vmatprep.mubr.bf16.mxu0 0
        %3484 = vmatmul.mubr.bf16.gmra.mrb[0].mxu0 %v2807
        %v3485 = vpop.f32.mrb[0].mxu0
        %v3486 = vadd.f32 0.0, %v3485
        %v3487 = vpop.f32.mrb[0].mxu0
        %v3488 = vpop.f32.mrb[0].mxu0
        %v3489 = vadd.f32 0.0, %v3488
        %v3490 = vpop.f32.mrb[0].mxu0
        %3491 = vmatprep.mubr.bf16.mxu0 0
        %3492 = vmatmul.mubr.bf16.gmra.mrb[0].mxu0 %v3148
        %v3493 = vpop.f32.mrb[0].mxu0
        %v3494 = vadd.f32 0.0, %v3493
        %v3495 = vpop.f32.mrb[0].mxu0
        %v3496 = vpop.f32.mrb[0].mxu0
        %v3497 = vadd.f32 0.0, %v3496
        %v3498 = vpop.f32.mrb[0].mxu0
        %3499 = vmatprep.mubr.bf16.mxu0 0
        %3500 = vmatmul.mubr.bf16.gmra.mrb[0].mxu0 %v3350
        %v3501 = vpop.f32.mrb[0].mxu0
        %v3502 = vadd.f32 0.0, %v3501
        %v3503 = vpop.f32.mrb[0].mxu0
        %v3504 = vpop.f32.mrb[0].mxu0
        %v3505 = vadd.f32 0.0, %v3504
        %v3506 = vpop.f32.mrb[0].mxu0
        %3507 = vdwg.mxu0
        %v3508 = vadd.f32 %v3306, %v3390
        %v3509 = vadd.f32 %v3307, %v3393
        %v3510 = vadd.f32 %v3308, %v3398
        %v3511 = vadd.f32 %v3309, %v3401
        %v3512 = vadd.f32 %v3310, %v3406
        %v3513 = vadd.f32 %v3311, %v3409
        %v3514 = vadd.f32 %v3312, %v3414
        %v3515 = vadd.f32 %v3313, %v3417
        %v3516 = vadd.f32 %v3314, %v3422
        %v3517 = vadd.f32 %v3315, %v3425
        %v3518 = vadd.f32 %v3316, %v3430
        %v3519 = vadd.f32 %v3317, %v3433
        %v3520 = vadd.f32 %v3318, %v3438
        %v3521 = vadd.f32 %v3319, %v3441
        %v3522 = vadd.f32 %v3320, %v3446
        %v3523 = vadd.f32 %v3321, %v3449
        %v3524 = vadd.f32 %v3322, %v3454
        %v3525 = vadd.f32 %v3323, %v3457
        %v3526 = vadd.f32 %v3324, %v3462
        %v3527 = vadd.f32 %v3325, %v3465
        %v3528 = vadd.f32 %v3326, %v3470
        %v3529 = vadd.f32 %v3327, %v3473
        %v3530 = vadd.f32 %v3328, %v3478
        %v3531 = vadd.f32 %v3329, %v3481
        %v3532 = vadd.f32 %v3330, %v3486
        %v3533 = vadd.f32 %v3331, %v3489
        %v3534 = vadd.f32 %v3332, %v3494
        %v3535 = vadd.f32 %v3333, %v3497
        %v3536 = vadd.f32 %v3334, %v3502
        %v3537 = vadd.f32 %v3335, %v3505
        %s3538 = scalar_lea.vmem %s2, 48
        %v3539 = vld [vmem:[%s3538] sm:$0xf]
        %v3540 = vld [vmem:[%s3538 + $0x4] sm:$0xf]
        %v3541 = vld [vmem:[%s3538 + $0x8] sm:$0x3]
        %v3545 = vunpack.c.l.b16 %v3539
        %v3546 = vunpack.c.l.b16 %v3540
        %v3547 = vunpack.c.l.b16 %v3541
        %v3548 = vpack.c.b16 %v3546, %v3545
        %v3549 = vpack.c.b16 %v3547, %v3547
        %v3552 = vsel %vm2763, %v2731, 0
        %v3555 = vsel %vm2809, %v3549, 0
        %3557 = vmatprep.subr.bf16.mxu0 0
        %3558 = vmatpush1.bf16.msra.mxu0 %v3548
        %3559 = vmatprep.subr.bf16.mxu0 0
        %3560 = vmatpush1.bf16.msra.mxu0 %v3555
        %3561 = vmatprep.subr.bf16.mxu0 0
        %3562 = vmatpush1.bf16.msra.mxu0 0
        %3563 = vmatprep.subr.bf16.mxu0 0
        %3564 = vmatpush1.bf16.msra.mxu0 0
        %3565 = vmatprep.subr.bf16.mxu0 0
        %3566 = vmatpush1.bf16.msra.mxu0 0
        %3567 = vmatprep.subr.bf16.mxu0 0
        %3568 = vmatpush1.bf16.msra.mxu0 0
        %3569 = vmatprep.subr.bf16.mxu0 0
        %3570 = vmatpush1.bf16.msra.mxu0 0
        %3571 = vmatprep.subr.bf16.mxu0 0
        %3572 = vmatpush1.bf16.msra.mxu0 0
        %3573 = vmatprep.subr.bf16.mxu0 0
        %3574 = vmatpush1.bf16.msra.mxu0 0
        %3575 = vmatprep.subr.bf16.mxu0 0
        %3576 = vmatpush1.bf16.msra.mxu0 0
        %3577 = vmatprep.subr.bf16.mxu0 0
        %3578 = vmatpush1.bf16.msra.mxu0 0
        %3579 = vmatprep.subr.bf16.mxu0 0
        %3580 = vmatpush1.bf16.msra.mxu0 0
        %3581 = vmatprep.subr.bf16.mxu0 0
        %3582 = vmatpush1.bf16.msra.mxu0 0
        %3583 = vmatprep.subr.bf16.mxu0 0
        %3584 = vmatpush1.bf16.msra.mxu0 0
        %3585 = vmatprep.subr.bf16.mxu0 0
        %3586 = vmatpush1.bf16.msra.mxu0 0
        %3587 = vmatprep.subr.bf16.mxu0 0
        %3588 = vmatpush1.bf16.msra.mxu0 0
        %3589 = vmatprep.mubr.bf16.mxu0 0
        %3590 = vmatmul.mubr.bf16.gmra.mrb[0].mxu0 %v2774
        %v3591 = vpop.f32.mrb[0].mxu0
        %v3592 = vadd.f32 0.0, %v3591
        %v3593 = vpop.f32.mrb[0].mxu0
        %v3594 = vpop.f32.mrb[0].mxu0
        %v3595 = vadd.f32 0.0, %v3594
        %v3596 = vpop.f32.mrb[0].mxu0
        %3597 = vmatprep.mubr.bf16.mxu0 0
        %3598 = vmatmul.mubr.bf16.gmra.mrb[0].mxu0 %v2777
        %v3599 = vpop.f32.mrb[0].mxu0
        %v3600 = vadd.f32 0.0, %v3599
        %v3601 = vpop.f32.mrb[0].mxu0
        %v3602 = vpop.f32.mrb[0].mxu0
        %v3603 = vadd.f32 0.0, %v3602
        %v3604 = vpop.f32.mrb[0].mxu0
        %3605 = vmatprep.mubr.bf16.mxu0 0
        %3606 = vmatmul.mubr.bf16.gmra.mrb[0].mxu0 %v2780
        %v3607 = vpop.f32.mrb[0].mxu0
        %v3608 = vadd.f32 0.0, %v3607
        %v3609 = vpop.f32.mrb[0].mxu0
        %v3610 = vpop.f32.mrb[0].mxu0
        %v3611 = vadd.f32 0.0, %v3610
        %v3612 = vpop.f32.mrb[0].mxu0
        %3613 = vmatprep.mubr.bf16.mxu0 0
        %3614 = vmatmul.mubr.bf16.gmra.mrb[0].mxu0 %v2783
        %v3615 = vpop.f32.mrb[0].mxu0
        %v3616 = vadd.f32 0.0, %v3615
        %v3617 = vpop.f32.mrb[0].mxu0
        %v3618 = vpop.f32.mrb[0].mxu0
        %v3619 = vadd.f32 0.0, %v3618
        %v3620 = vpop.f32.mrb[0].mxu0
        %3621 = vmatprep.mubr.bf16.mxu0 0
        %3622 = vmatmul.mubr.bf16.gmra.mrb[0].mxu0 %v2786
        %v3623 = vpop.f32.mrb[0].mxu0
        %v3624 = vadd.f32 0.0, %v3623
        %v3625 = vpop.f32.mrb[0].mxu0
        %v3626 = vpop.f32.mrb[0].mxu0
        %v3627 = vadd.f32 0.0, %v3626
        %v3628 = vpop.f32.mrb[0].mxu0
        %3629 = vmatprep.mubr.bf16.mxu0 0
        %3630 = vmatmul.mubr.bf16.gmra.mrb[0].mxu0 %v2789
        %v3631 = vpop.f32.mrb[0].mxu0
        %v3632 = vadd.f32 0.0, %v3631
        %v3633 = vpop.f32.mrb[0].mxu0
        %v3634 = vpop.f32.mrb[0].mxu0
        %v3635 = vadd.f32 0.0, %v3634
        %v3636 = vpop.f32.mrb[0].mxu0
        %3637 = vmatprep.mubr.bf16.mxu0 0
        %3638 = vmatmul.mubr.bf16.gmra.mrb[0].mxu0 %v2792
        %v3639 = vpop.f32.mrb[0].mxu0
        %v3640 = vadd.f32 0.0, %v3639
        %v3641 = vpop.f32.mrb[0].mxu0
        %v3642 = vpop.f32.mrb[0].mxu0
        %v3643 = vadd.f32 0.0, %v3642
        %v3644 = vpop.f32.mrb[0].mxu0
        %3645 = vmatprep.mubr.bf16.mxu0 0
        %3646 = vmatmul.mubr.bf16.gmra.mrb[0].mxu0 %v2795
        %v3647 = vpop.f32.mrb[0].mxu0
        %v3648 = vadd.f32 0.0, %v3647
        %v3649 = vpop.f32.mrb[0].mxu0
        %v3650 = vpop.f32.mrb[0].mxu0
        %v3651 = vadd.f32 0.0, %v3650
        %v3652 = vpop.f32.mrb[0].mxu0
        %3653 = vmatprep.mubr.bf16.mxu0 0
        %3654 = vmatmul.mubr.bf16.gmra.mrb[0].mxu0 %v2798
        %v3655 = vpop.f32.mrb[0].mxu0
        %v3656 = vadd.f32 0.0, %v3655
        %v3657 = vpop.f32.mrb[0].mxu0
        %v3658 = vpop.f32.mrb[0].mxu0
        %v3659 = vadd.f32 0.0, %v3658
        %v3660 = vpop.f32.mrb[0].mxu0
        %3661 = vmatprep.mubr.bf16.mxu0 0
        %3662 = vmatmul.mubr.bf16.gmra.mrb[0].mxu0 %v2801
        %v3663 = vpop.f32.mrb[0].mxu0
        %v3664 = vadd.f32 0.0, %v3663
        %v3665 = vpop.f32.mrb[0].mxu0
        %v3666 = vpop.f32.mrb[0].mxu0
        %v3667 = vadd.f32 0.0, %v3666
        %v3668 = vpop.f32.mrb[0].mxu0
        %3669 = vmatprep.mubr.bf16.mxu0 0
        %3670 = vmatmul.mubr.bf16.gmra.mrb[0].mxu0 %v2804
        %v3671 = vpop.f32.mrb[0].mxu0
        %v3672 = vadd.f32 0.0, %v3671
        %v3673 = vpop.f32.mrb[0].mxu0
        %v3674 = vpop.f32.mrb[0].mxu0
        %v3675 = vadd.f32 0.0, %v3674
        %v3676 = vpop.f32.mrb[0].mxu0
        %3677 = vmatprep.mubr.bf16.mxu0 0
        %3678 = vmatmul.mubr.bf16.gmra.mrb[0].mxu0 %v2807
        %v3679 = vpop.f32.mrb[0].mxu0
        %v3680 = vadd.f32 0.0, %v3679
        %v3681 = vpop.f32.mrb[0].mxu0
        %v3682 = vpop.f32.mrb[0].mxu0
        %v3683 = vadd.f32 0.0, %v3682
        %v3684 = vpop.f32.mrb[0].mxu0
        %3685 = vmatprep.mubr.bf16.mxu0 0
        %3686 = vmatmul.mubr.bf16.gmra.mrb[0].mxu0 %v3148
        %v3687 = vpop.f32.mrb[0].mxu0
        %v3688 = vadd.f32 0.0, %v3687
        %v3689 = vpop.f32.mrb[0].mxu0
        %v3690 = vpop.f32.mrb[0].mxu0
        %v3691 = vadd.f32 0.0, %v3690
        %v3692 = vpop.f32.mrb[0].mxu0
        %3693 = vmatprep.mubr.bf16.mxu0 0
        %3694 = vmatmul.mubr.bf16.gmra.mrb[0].mxu0 %v3350
        %v3695 = vpop.f32.mrb[0].mxu0
        %v3696 = vadd.f32 0.0, %v3695
        %v3697 = vpop.f32.mrb[0].mxu0
        %v3698 = vpop.f32.mrb[0].mxu0
        %v3699 = vadd.f32 0.0, %v3698
        %v3700 = vpop.f32.mrb[0].mxu0
        %3701 = vmatprep.mubr.bf16.mxu0 0
        %3702 = vmatmul.mubr.bf16.gmra.mrb[0].mxu0 %v3552
        %v3703 = vpop.f32.mrb[0].mxu0
        %v3704 = vadd.f32 0.0, %v3703
        %v3705 = vpop.f32.mrb[0].mxu0
        %v3706 = vpop.f32.mrb[0].mxu0
        %v3707 = vadd.f32 0.0, %v3706
        %v3708 = vpop.f32.mrb[0].mxu0
        %3709 = vdwg.mxu0
        %v3710 = vadd.f32 %v3508, %v3592
        %v3711 = vadd.f32 %v3509, %v3595
        %v3712 = vadd.f32 %v3510, %v3600
        %v3713 = vadd.f32 %v3511, %v3603
        %v3714 = vadd.f32 %v3512, %v3608
        %v3715 = vadd.f32 %v3513, %v3611
        %v3716 = vadd.f32 %v3514, %v3616
        %v3717 = vadd.f32 %v3515, %v3619
        %v3718 = vadd.f32 %v3516, %v3624
        %v3719 = vadd.f32 %v3517, %v3627
        %v3720 = vadd.f32 %v3518, %v3632
        %v3721 = vadd.f32 %v3519, %v3635
        %v3722 = vadd.f32 %v3520, %v3640
        %v3723 = vadd.f32 %v3521, %v3643
        %v3724 = vadd.f32 %v3522, %v3648
        %v3725 = vadd.f32 %v3523, %v3651
        %v3726 = vadd.f32 %v3524, %v3656
        %v3727 = vadd.f32 %v3525, %v3659
        %v3728 = vadd.f32 %v3526, %v3664
        %v3729 = vadd.f32 %v3527, %v3667
        %v3730 = vadd.f32 %v3528, %v3672
        %v3731 = vadd.f32 %v3529, %v3675
        %v3732 = vadd.f32 %v3530, %v3680
        %v3733 = vadd.f32 %v3531, %v3683
        %v3734 = vadd.f32 %v3532, %v3688
        %v3735 = vadd.f32 %v3533, %v3691
        %v3736 = vadd.f32 %v3534, %v3696
        %v3737 = vadd.f32 %v3535, %v3699
        %v3738 = vadd.f32 %v3536, %v3704
        %v3739 = vadd.f32 %v3537, %v3707
        %s3740 = scalar_lea.vmem %s2, 60
        %v3741 = vld [vmem:[%s3740] sm:$0xf]
        %v3742 = vld [vmem:[%s3740 + $0x4] sm:$0xf]
        %v3743 = vld [vmem:[%s3740 + $0x8] sm:$0x3]
        %v3747 = vunpack.c.l.b16 %v3741
        %v3748 = vunpack.c.l.b16 %v3742
        %v3749 = vunpack.c.l.b16 %v3743
        %v3750 = vpack.c.b16 %v3748, %v3747
        %v3751 = vpack.c.b16 %v3749, %v3749
        %v3754 = vsel %vm2763, %v2732, 0
        %v3757 = vsel %vm2809, %v3751, 0
        %3759 = vmatprep.subr.bf16.mxu0 0
        %3760 = vmatpush1.bf16.msra.mxu0 %v3750
        %3761 = vmatprep.subr.bf16.mxu0 0
        %3762 = vmatpush1.bf16.msra.mxu0 %v3757
        %3763 = vmatprep.subr.bf16.mxu0 0
        %3764 = vmatpush1.bf16.msra.mxu0 0
        %3765 = vmatprep.subr.bf16.mxu0 0
        %3766 = vmatpush1.bf16.msra.mxu0 0
        %3767 = vmatprep.subr.bf16.mxu0 0
        %3768 = vmatpush1.bf16.msra.mxu0 0
        %3769 = vmatprep.subr.bf16.mxu0 0
        %3770 = vmatpush1.bf16.msra.mxu0 0
        %3771 = vmatprep.subr.bf16.mxu0 0
        %3772 = vmatpush1.bf16.msra.mxu0 0
        %3773 = vmatprep.subr.bf16.mxu0 0
        %3774 = vmatpush1.bf16.msra.mxu0 0
        %3775 = vmatprep.subr.bf16.mxu0 0
        %3776 = vmatpush1.bf16.msra.mxu0 0
        %3777 = vmatprep.subr.bf16.mxu0 0
        %3778 = vmatpush1.bf16.msra.mxu0 0
        %3779 = vmatprep.subr.bf16.mxu0 0
        %3780 = vmatpush1.bf16.msra.mxu0 0
        %3781 = vmatprep.subr.bf16.mxu0 0
        %3782 = vmatpush1.bf16.msra.mxu0 0
        %3783 = vmatprep.subr.bf16.mxu0 0
        %3784 = vmatpush1.bf16.msra.mxu0 0
        %3785 = vmatprep.subr.bf16.mxu0 0
        %3786 = vmatpush1.bf16.msra.mxu0 0
        %3787 = vmatprep.subr.bf16.mxu0 0
        %3788 = vmatpush1.bf16.msra.mxu0 0
        %3789 = vmatprep.subr.bf16.mxu0 0
        %3790 = vmatpush1.bf16.msra.mxu0 0
        %3791 = vmatprep.mubr.bf16.mxu0 0
        %3792 = vmatmul.mubr.bf16.gmra.mrb[0].mxu0 %v2777
        %v3793 = vpop.f32.mrb[0].mxu0
        %v3794 = vadd.f32 0.0, %v3793
        %v3795 = vpop.f32.mrb[0].mxu0
        %v3796 = vpop.f32.mrb[0].mxu0
        %v3797 = vadd.f32 0.0, %v3796
        %v3798 = vpop.f32.mrb[0].mxu0
        %3799 = vmatprep.mubr.bf16.mxu0 0
        %3800 = vmatmul.mubr.bf16.gmra.mrb[0].mxu0 %v2780
        %v3801 = vpop.f32.mrb[0].mxu0
        %v3802 = vadd.f32 0.0, %v3801
        %v3803 = vpop.f32.mrb[0].mxu0
        %v3804 = vpop.f32.mrb[0].mxu0
        %v3805 = vadd.f32 0.0, %v3804
        %v3806 = vpop.f32.mrb[0].mxu0
        %3807 = vmatprep.mubr.bf16.mxu0 0
        %3808 = vmatmul.mubr.bf16.gmra.mrb[0].mxu0 %v2783
        %v3809 = vpop.f32.mrb[0].mxu0
        %v3810 = vadd.f32 0.0, %v3809
        %v3811 = vpop.f32.mrb[0].mxu0
        %v3812 = vpop.f32.mrb[0].mxu0
        %v3813 = vadd.f32 0.0, %v3812
        %v3814 = vpop.f32.mrb[0].mxu0
        %3815 = vmatprep.mubr.bf16.mxu0 0
        %3816 = vmatmul.mubr.bf16.gmra.mrb[0].mxu0 %v2786
        %v3817 = vpop.f32.mrb[0].mxu0
        %v3818 = vadd.f32 0.0, %v3817
        %v3819 = vpop.f32.mrb[0].mxu0
        %v3820 = vpop.f32.mrb[0].mxu0
        %v3821 = vadd.f32 0.0, %v3820
        %v3822 = vpop.f32.mrb[0].mxu0
        %3823 = vmatprep.mubr.bf16.mxu0 0
        %3824 = vmatmul.mubr.bf16.gmra.mrb[0].mxu0 %v2789
        %v3825 = vpop.f32.mrb[0].mxu0
        %v3826 = vadd.f32 0.0, %v3825
        %v3827 = vpop.f32.mrb[0].mxu0
        %v3828 = vpop.f32.mrb[0].mxu0
        %v3829 = vadd.f32 0.0, %v3828
        %v3830 = vpop.f32.mrb[0].mxu0
        %3831 = vmatprep.mubr.bf16.mxu0 0
        %3832 = vmatmul.mubr.bf16.gmra.mrb[0].mxu0 %v2792
        %v3833 = vpop.f32.mrb[0].mxu0
        %v3834 = vadd.f32 0.0, %v3833
        %v3835 = vpop.f32.mrb[0].mxu0
        %v3836 = vpop.f32.mrb[0].mxu0
        %v3837 = vadd.f32 0.0, %v3836
        %v3838 = vpop.f32.mrb[0].mxu0
        %3839 = vmatprep.mubr.bf16.mxu0 0
        %3840 = vmatmul.mubr.bf16.gmra.mrb[0].mxu0 %v2795
        %v3841 = vpop.f32.mrb[0].mxu0
        %v3842 = vadd.f32 0.0, %v3841
        %v3843 = vpop.f32.mrb[0].mxu0
        %v3844 = vpop.f32.mrb[0].mxu0
        %v3845 = vadd.f32 0.0, %v3844
        %v3846 = vpop.f32.mrb[0].mxu0
        %3847 = vmatprep.mubr.bf16.mxu0 0
        %3848 = vmatmul.mubr.bf16.gmra.mrb[0].mxu0 %v2798
        %v3849 = vpop.f32.mrb[0].mxu0
        %v3850 = vadd.f32 0.0, %v3849
        %v3851 = vpop.f32.mrb[0].mxu0
        %v3852 = vpop.f32.mrb[0].mxu0
        %v3853 = vadd.f32 0.0, %v3852
        %v3854 = vpop.f32.mrb[0].mxu0
        %3855 = vmatprep.mubr.bf16.mxu0 0
        %3856 = vmatmul.mubr.bf16.gmra.mrb[0].mxu0 %v2801
        %v3857 = vpop.f32.mrb[0].mxu0
        %v3858 = vadd.f32 0.0, %v3857
        %v3859 = vpop.f32.mrb[0].mxu0
        %v3860 = vpop.f32.mrb[0].mxu0
        %v3861 = vadd.f32 0.0, %v3860
        %v3862 = vpop.f32.mrb[0].mxu0
        %3863 = vmatprep.mubr.bf16.mxu0 0
        %3864 = vmatmul.mubr.bf16.gmra.mrb[0].mxu0 %v2804
        %v3865 = vpop.f32.mrb[0].mxu0
        %v3866 = vadd.f32 0.0, %v3865
        %v3867 = vpop.f32.mrb[0].mxu0
        %v3868 = vpop.f32.mrb[0].mxu0
        %v3869 = vadd.f32 0.0, %v3868
        %v3870 = vpop.f32.mrb[0].mxu0
        %3871 = vmatprep.mubr.bf16.mxu0 0
        %3872 = vmatmul.mubr.bf16.gmra.mrb[0].mxu0 %v2807
        %v3873 = vpop.f32.mrb[0].mxu0
        %v3874 = vadd.f32 0.0, %v3873
        %v3875 = vpop.f32.mrb[0].mxu0
        %v3876 = vpop.f32.mrb[0].mxu0
        %v3877 = vadd.f32 0.0, %v3876
        %v3878 = vpop.f32.mrb[0].mxu0
        %3879 = vmatprep.mubr.bf16.mxu0 0
        %3880 = vmatmul.mubr.bf16.gmra.mrb[0].mxu0 %v3148
        %v3881 = vpop.f32.mrb[0].mxu0
        %v3882 = vadd.f32 0.0, %v3881
        %v3883 = vpop.f32.mrb[0].mxu0
        %v3884 = vpop.f32.mrb[0].mxu0
        %v3885 = vadd.f32 0.0, %v3884
        %v3886 = vpop.f32.mrb[0].mxu0
        %3887 = vmatprep.mubr.bf16.mxu0 0
        %3888 = vmatmul.mubr.bf16.gmra.mrb[0].mxu0 %v3350
        %v3889 = vpop.f32.mrb[0].mxu0
        %v3890 = vadd.f32 0.0, %v3889
        %v3891 = vpop.f32.mrb[0].mxu0
        %v3892 = vpop.f32.mrb[0].mxu0
        %v3893 = vadd.f32 0.0, %v3892
        %v3894 = vpop.f32.mrb[0].mxu0
        %3895 = vmatprep.mubr.bf16.mxu0 0
        %3896 = vmatmul.mubr.bf16.gmra.mrb[0].mxu0 %v3552
        %v3897 = vpop.f32.mrb[0].mxu0
        %v3898 = vadd.f32 0.0, %v3897
        %v3899 = vpop.f32.mrb[0].mxu0
        %v3900 = vpop.f32.mrb[0].mxu0
        %v3901 = vadd.f32 0.0, %v3900
        %v3902 = vpop.f32.mrb[0].mxu0
        %3903 = vmatprep.mubr.bf16.mxu0 0
        %3904 = vmatmul.mubr.bf16.gmra.mrb[0].mxu0 %v3754
        %v3905 = vpop.f32.mrb[0].mxu0
        %v3906 = vadd.f32 0.0, %v3905
        %v3907 = vpop.f32.mrb[0].mxu0
        %v3908 = vpop.f32.mrb[0].mxu0
        %v3909 = vadd.f32 0.0, %v3908
        %v3910 = vpop.f32.mrb[0].mxu0
        %3911 = vdwg.mxu0
        %v3912 = vadd.f32 %v3710, %v3794
        %v3913 = vadd.f32 %v3711, %v3797
        %v3914 = vadd.f32 %v3712, %v3802
        %v3915 = vadd.f32 %v3713, %v3805
        %v3916 = vadd.f32 %v3714, %v3810
        %v3917 = vadd.f32 %v3715, %v3813
        %v3918 = vadd.f32 %v3716, %v3818
        %v3919 = vadd.f32 %v3717, %v3821
        %v3920 = vadd.f32 %v3718, %v3826
        %v3921 = vadd.f32 %v3719, %v3829
        %v3922 = vadd.f32 %v3720, %v3834
        %v3923 = vadd.f32 %v3721, %v3837
        %v3924 = vadd.f32 %v3722, %v3842
        %v3925 = vadd.f32 %v3723, %v3845
        %v3926 = vadd.f32 %v3724, %v3850
        %v3927 = vadd.f32 %v3725, %v3853
        %v3928 = vadd.f32 %v3726, %v3858
        %v3929 = vadd.f32 %v3727, %v3861
        %v3930 = vadd.f32 %v3728, %v3866
        %v3931 = vadd.f32 %v3729, %v3869
        %v3932 = vadd.f32 %v3730, %v3874
        %v3933 = vadd.f32 %v3731, %v3877
        %v3934 = vadd.f32 %v3732, %v3882
        %v3935 = vadd.f32 %v3733, %v3885
        %v3936 = vadd.f32 %v3734, %v3890
        %v3937 = vadd.f32 %v3735, %v3893
        %v3938 = vadd.f32 %v3736, %v3898
        %v3939 = vadd.f32 %v3737, %v3901
        %v3940 = vadd.f32 %v3738, %v3906
        %v3941 = vadd.f32 %v3739, %v3909
        %s3942 = scalar_lea.vmem %s2, 72
        %v3943 = vld [vmem:[%s3942] sm:$0xf]
        %v3944 = vld [vmem:[%s3942 + $0x4] sm:$0xf]
        %v3945 = vld [vmem:[%s3942 + $0x8] sm:$0x3]
        %v3949 = vunpack.c.l.b16 %v3943
        %v3950 = vunpack.c.l.b16 %v3944
        %v3951 = vunpack.c.l.b16 %v3945
        %v3952 = vpack.c.b16 %v3950, %v3949
        %v3953 = vpack.c.b16 %v3951, %v3951
        %v3956 = vsel %vm2763, %v2733, 0
        %v3959 = vsel %vm2809, %v3953, 0
        %3961 = vmatprep.subr.bf16.mxu0 0
        %3962 = vmatpush1.bf16.msra.mxu0 %v3952
        %3963 = vmatprep.subr.bf16.mxu0 0
        %3964 = vmatpush1.bf16.msra.mxu0 %v3959
        %3965 = vmatprep.subr.bf16.mxu0 0
        %3966 = vmatpush1.bf16.msra.mxu0 0
        %3967 = vmatprep.subr.bf16.mxu0 0
        %3968 = vmatpush1.bf16.msra.mxu0 0
        %3969 = vmatprep.subr.bf16.mxu0 0
        %3970 = vmatpush1.bf16.msra.mxu0 0
        %3971 = vmatprep.subr.bf16.mxu0 0
        %3972 = vmatpush1.bf16.msra.mxu0 0
        %3973 = vmatprep.subr.bf16.mxu0 0
        %3974 = vmatpush1.bf16.msra.mxu0 0
        %3975 = vmatprep.subr.bf16.mxu0 0
        %3976 = vmatpush1.bf16.msra.mxu0 0
        %3977 = vmatprep.subr.bf16.mxu0 0
        %3978 = vmatpush1.bf16.msra.mxu0 0
        %3979 = vmatprep.subr.bf16.mxu0 0
        %3980 = vmatpush1.bf16.msra.mxu0 0
        %3981 = vmatprep.subr.bf16.mxu0 0
        %3982 = vmatpush1.bf16.msra.mxu0 0
        %3983 = vmatprep.subr.bf16.mxu0 0
        %3984 = vmatpush1.bf16.msra.mxu0 0
        %3985 = vmatprep.subr.bf16.mxu0 0
        %3986 = vmatpush1.bf16.msra.mxu0 0
        %3987 = vmatprep.subr.bf16.mxu0 0
        %3988 = vmatpush1.bf16.msra.mxu0 0
        %3989 = vmatprep.subr.bf16.mxu0 0
        %3990 = vmatpush1.bf16.msra.mxu0 0
        %3991 = vmatprep.subr.bf16.mxu0 0
        %3992 = vmatpush1.bf16.msra.mxu0 0
        %3993 = vmatprep.mubr.bf16.mxu0 0
        %3994 = vmatmul.mubr.bf16.gmra.mrb[0].mxu0 %v2780
        %v3995 = vpop.f32.mrb[0].mxu0
        %v3996 = vadd.f32 0.0, %v3995
        %v3997 = vpop.f32.mrb[0].mxu0
        %v3998 = vpop.f32.mrb[0].mxu0
        %v3999 = vadd.f32 0.0, %v3998
        %v4000 = vpop.f32.mrb[0].mxu0
        %4001 = vmatprep.mubr.bf16.mxu0 0
        %4002 = vmatmul.mubr.bf16.gmra.mrb[0].mxu0 %v2783
        %v4003 = vpop.f32.mrb[0].mxu0
        %v4004 = vadd.f32 0.0, %v4003
        %v4005 = vpop.f32.mrb[0].mxu0
        %v4006 = vpop.f32.mrb[0].mxu0
        %v4007 = vadd.f32 0.0, %v4006
        %v4008 = vpop.f32.mrb[0].mxu0
        %4009 = vmatprep.mubr.bf16.mxu0 0
        %4010 = vmatmul.mubr.bf16.gmra.mrb[0].mxu0 %v2786
        %v4011 = vpop.f32.mrb[0].mxu0
        %v4012 = vadd.f32 0.0, %v4011
        %v4013 = vpop.f32.mrb[0].mxu0
        %v4014 = vpop.f32.mrb[0].mxu0
        %v4015 = vadd.f32 0.0, %v4014
        %v4016 = vpop.f32.mrb[0].mxu0
        %4017 = vmatprep.mubr.bf16.mxu0 0
        %4018 = vmatmul.mubr.bf16.gmra.mrb[0].mxu0 %v2789
        %v4019 = vpop.f32.mrb[0].mxu0
        %v4020 = vadd.f32 0.0, %v4019
        %v4021 = vpop.f32.mrb[0].mxu0
        %v4022 = vpop.f32.mrb[0].mxu0
        %v4023 = vadd.f32 0.0, %v4022
        %v4024 = vpop.f32.mrb[0].mxu0
        %4025 = vmatprep.mubr.bf16.mxu0 0
        %4026 = vmatmul.mubr.bf16.gmra.mrb[0].mxu0 %v2792
        %v4027 = vpop.f32.mrb[0].mxu0
        %v4028 = vadd.f32 0.0, %v4027
        %v4029 = vpop.f32.mrb[0].mxu0
        %v4030 = vpop.f32.mrb[0].mxu0
        %v4031 = vadd.f32 0.0, %v4030
        %v4032 = vpop.f32.mrb[0].mxu0
        %4033 = vmatprep.mubr.bf16.mxu0 0
        %4034 = vmatmul.mubr.bf16.gmra.mrb[0].mxu0 %v2795
        %v4035 = vpop.f32.mrb[0].mxu0
        %v4036 = vadd.f32 0.0, %v4035
        %v4037 = vpop.f32.mrb[0].mxu0
        %v4038 = vpop.f32.mrb[0].mxu0
        %v4039 = vadd.f32 0.0, %v4038
        %v4040 = vpop.f32.mrb[0].mxu0
        %4041 = vmatprep.mubr.bf16.mxu0 0
        %4042 = vmatmul.mubr.bf16.gmra.mrb[0].mxu0 %v2798
        %v4043 = vpop.f32.mrb[0].mxu0
        %v4044 = vadd.f32 0.0, %v4043
        %v4045 = vpop.f32.mrb[0].mxu0
        %v4046 = vpop.f32.mrb[0].mxu0
        %v4047 = vadd.f32 0.0, %v4046
        %v4048 = vpop.f32.mrb[0].mxu0
        %4049 = vmatprep.mubr.bf16.mxu0 0
        %4050 = vmatmul.mubr.bf16.gmra.mrb[0].mxu0 %v2801
        %v4051 = vpop.f32.mrb[0].mxu0
        %v4052 = vadd.f32 0.0, %v4051
        %v4053 = vpop.f32.mrb[0].mxu0
        %v4054 = vpop.f32.mrb[0].mxu0
        %v4055 = vadd.f32 0.0, %v4054
        %v4056 = vpop.f32.mrb[0].mxu0
        %4057 = vmatprep.mubr.bf16.mxu0 0
        %4058 = vmatmul.mubr.bf16.gmra.mrb[0].mxu0 %v2804
        %v4059 = vpop.f32.mrb[0].mxu0
        %v4060 = vadd.f32 0.0, %v4059
        %v4061 = vpop.f32.mrb[0].mxu0
        %v4062 = vpop.f32.mrb[0].mxu0
        %v4063 = vadd.f32 0.0, %v4062
        %v4064 = vpop.f32.mrb[0].mxu0
        %4065 = vmatprep.mubr.bf16.mxu0 0
        %4066 = vmatmul.mubr.bf16.gmra.mrb[0].mxu0 %v2807
        %v4067 = vpop.f32.mrb[0].mxu0
        %v4068 = vadd.f32 0.0, %v4067
        %v4069 = vpop.f32.mrb[0].mxu0
        %v4070 = vpop.f32.mrb[0].mxu0
        %v4071 = vadd.f32 0.0, %v4070
        %v4072 = vpop.f32.mrb[0].mxu0
        %4073 = vmatprep.mubr.bf16.mxu0 0
        %4074 = vmatmul.mubr.bf16.gmra.mrb[0].mxu0 %v3148
        %v4075 = vpop.f32.mrb[0].mxu0
        %v4076 = vadd.f32 0.0, %v4075
        %v4077 = vpop.f32.mrb[0].mxu0
        %v4078 = vpop.f32.mrb[0].mxu0
        %v4079 = vadd.f32 0.0, %v4078
        %v4080 = vpop.f32.mrb[0].mxu0
        %4081 = vmatprep.mubr.bf16.mxu0 0
        %4082 = vmatmul.mubr.bf16.gmra.mrb[0].mxu0 %v3350
        %v4083 = vpop.f32.mrb[0].mxu0
        %v4084 = vadd.f32 0.0, %v4083
        %v4085 = vpop.f32.mrb[0].mxu0
        %v4086 = vpop.f32.mrb[0].mxu0
        %v4087 = vadd.f32 0.0, %v4086
        %v4088 = vpop.f32.mrb[0].mxu0
        %4089 = vmatprep.mubr.bf16.mxu0 0
        %4090 = vmatmul.mubr.bf16.gmra.mrb[0].mxu0 %v3552
        %v4091 = vpop.f32.mrb[0].mxu0
        %v4092 = vadd.f32 0.0, %v4091
        %v4093 = vpop.f32.mrb[0].mxu0
        %v4094 = vpop.f32.mrb[0].mxu0
        %v4095 = vadd.f32 0.0, %v4094
        %v4096 = vpop.f32.mrb[0].mxu0
        %4097 = vmatprep.mubr.bf16.mxu0 0
        %4098 = vmatmul.mubr.bf16.gmra.mrb[0].mxu0 %v3754
        %v4099 = vpop.f32.mrb[0].mxu0
        %v4100 = vadd.f32 0.0, %v4099
        %v4101 = vpop.f32.mrb[0].mxu0
        %v4102 = vpop.f32.mrb[0].mxu0
        %v4103 = vadd.f32 0.0, %v4102
        %v4104 = vpop.f32.mrb[0].mxu0
        %4105 = vmatprep.mubr.bf16.mxu0 0
        %4106 = vmatmul.mubr.bf16.gmra.mrb[0].mxu0 %v3956
        %v4107 = vpop.f32.mrb[0].mxu0
        %v4108 = vadd.f32 0.0, %v4107
        %v4109 = vpop.f32.mrb[0].mxu0
        %v4110 = vpop.f32.mrb[0].mxu0
        %v4111 = vadd.f32 0.0, %v4110
        %v4112 = vpop.f32.mrb[0].mxu0
        %4113 = vdwg.mxu0
        %v4114 = vadd.f32 %v3912, %v3996
        %v4115 = vadd.f32 %v3913, %v3999
        %v4116 = vadd.f32 %v3914, %v4004
        %v4117 = vadd.f32 %v3915, %v4007
        %v4118 = vadd.f32 %v3916, %v4012
        %v4119 = vadd.f32 %v3917, %v4015
        %v4120 = vadd.f32 %v3918, %v4020
        %v4121 = vadd.f32 %v3919, %v4023
        %v4122 = vadd.f32 %v3920, %v4028
        %v4123 = vadd.f32 %v3921, %v4031
        %v4124 = vadd.f32 %v3922, %v4036
        %v4125 = vadd.f32 %v3923, %v4039
        %v4126 = vadd.f32 %v3924, %v4044
        %v4127 = vadd.f32 %v3925, %v4047
        %v4128 = vadd.f32 %v3926, %v4052
        %v4129 = vadd.f32 %v3927, %v4055
        %v4130 = vadd.f32 %v3928, %v4060
        %v4131 = vadd.f32 %v3929, %v4063
        %v4132 = vadd.f32 %v3930, %v4068
        %v4133 = vadd.f32 %v3931, %v4071
        %v4134 = vadd.f32 %v3932, %v4076
        %v4135 = vadd.f32 %v3933, %v4079
        %v4136 = vadd.f32 %v3934, %v4084
        %v4137 = vadd.f32 %v3935, %v4087
        %v4138 = vadd.f32 %v3936, %v4092
        %v4139 = vadd.f32 %v3937, %v4095
        %v4140 = vadd.f32 %v3938, %v4100
        %v4141 = vadd.f32 %v3939, %v4103
        %v4142 = vadd.f32 %v3940, %v4108
        %v4143 = vadd.f32 %v3941, %v4111
        %s4144 = scalar_lea.vmem %s2, 84
        %v4145 = vld [vmem:[%s4144] sm:$0xf]
        %v4146 = vld [vmem:[%s4144 + $0x4] sm:$0xf]
        %v4147 = vld [vmem:[%s4144 + $0x8] sm:$0x3]
        %v4151 = vunpack.c.l.b16 %v4145
        %v4152 = vunpack.c.l.b16 %v4146
        %v4153 = vunpack.c.l.b16 %v4147
        %v4154 = vpack.c.b16 %v4152, %v4151
        %v4155 = vpack.c.b16 %v4153, %v4153
        %v4158 = vsel %vm2763, %v2734, 0
        %v4161 = vsel %vm2809, %v4155, 0
        %4163 = vmatprep.subr.bf16.mxu0 0
        %4164 = vmatpush1.bf16.msra.mxu0 %v4154
        %4165 = vmatprep.subr.bf16.mxu0 0
        %4166 = vmatpush1.bf16.msra.mxu0 %v4161
        %4167 = vmatprep.subr.bf16.mxu0 0
        %4168 = vmatpush1.bf16.msra.mxu0 0
        %4169 = vmatprep.subr.bf16.mxu0 0
        %4170 = vmatpush1.bf16.msra.mxu0 0
        %4171 = vmatprep.subr.bf16.mxu0 0
        %4172 = vmatpush1.bf16.msra.mxu0 0
        %4173 = vmatprep.subr.bf16.mxu0 0
        %4174 = vmatpush1.bf16.msra.mxu0 0
        %4175 = vmatprep.subr.bf16.mxu0 0
        %4176 = vmatpush1.bf16.msra.mxu0 0
        %4177 = vmatprep.subr.bf16.mxu0 0
        %4178 = vmatpush1.bf16.msra.mxu0 0
        %4179 = vmatprep.subr.bf16.mxu0 0
        %4180 = vmatpush1.bf16.msra.mxu0 0
        %4181 = vmatprep.subr.bf16.mxu0 0
        %4182 = vmatpush1.bf16.msra.mxu0 0
        %4183 = vmatprep.subr.bf16.mxu0 0
        %4184 = vmatpush1.bf16.msra.mxu0 0
        %4185 = vmatprep.subr.bf16.mxu0 0
        %4186 = vmatpush1.bf16.msra.mxu0 0
        %4187 = vmatprep.subr.bf16.mxu0 0
        %4188 = vmatpush1.bf16.msra.mxu0 0
        %4189 = vmatprep.subr.bf16.mxu0 0
        %4190 = vmatpush1.bf16.msra.mxu0 0
        %4191 = vmatprep.subr.bf16.mxu0 0
        %4192 = vmatpush1.bf16.msra.mxu0 0
        %4193 = vmatprep.subr.bf16.mxu0 0
        %4194 = vmatpush1.bf16.msra.mxu0 0
        %4195 = vmatprep.mubr.bf16.mxu0 0
        %4196 = vmatmul.mubr.bf16.gmra.mrb[0].mxu0 %v2783
        %v4197 = vpop.f32.mrb[0].mxu0
        %v4198 = vadd.f32 0.0, %v4197
        %v4199 = vpop.f32.mrb[0].mxu0
        %v4200 = vpop.f32.mrb[0].mxu0
        %v4201 = vadd.f32 0.0, %v4200
        %v4202 = vpop.f32.mrb[0].mxu0
        %4203 = vmatprep.mubr.bf16.mxu0 0
        %4204 = vmatmul.mubr.bf16.gmra.mrb[0].mxu0 %v2786
        %v4205 = vpop.f32.mrb[0].mxu0
        %v4206 = vadd.f32 0.0, %v4205
        %v4207 = vpop.f32.mrb[0].mxu0
        %v4208 = vpop.f32.mrb[0].mxu0
        %v4209 = vadd.f32 0.0, %v4208
        %v4210 = vpop.f32.mrb[0].mxu0
        %4211 = vmatprep.mubr.bf16.mxu0 0
        %4212 = vmatmul.mubr.bf16.gmra.mrb[0].mxu0 %v2789
        %v4213 = vpop.f32.mrb[0].mxu0
        %v4214 = vadd.f32 0.0, %v4213
        %v4215 = vpop.f32.mrb[0].mxu0
        %v4216 = vpop.f32.mrb[0].mxu0
        %v4217 = vadd.f32 0.0, %v4216
        %v4218 = vpop.f32.mrb[0].mxu0
        %4219 = vmatprep.mubr.bf16.mxu0 0
        %4220 = vmatmul.mubr.bf16.gmra.mrb[0].mxu0 %v2792
        %v4221 = vpop.f32.mrb[0].mxu0
        %v4222 = vadd.f32 0.0, %v4221
        %v4223 = vpop.f32.mrb[0].mxu0
        %v4224 = vpop.f32.mrb[0].mxu0
        %v4225 = vadd.f32 0.0, %v4224
        %v4226 = vpop.f32.mrb[0].mxu0
        %4227 = vmatprep.mubr.bf16.mxu0 0
        %4228 = vmatmul.mubr.bf16.gmra.mrb[0].mxu0 %v2795
        %v4229 = vpop.f32.mrb[0].mxu0
        %v4230 = vadd.f32 0.0, %v4229
        %v4231 = vpop.f32.mrb[0].mxu0
        %v4232 = vpop.f32.mrb[0].mxu0
        %v4233 = vadd.f32 0.0, %v4232
        %v4234 = vpop.f32.mrb[0].mxu0
        %4235 = vmatprep.mubr.bf16.mxu0 0
        %4236 = vmatmul.mubr.bf16.gmra.mrb[0].mxu0 %v2798
        %v4237 = vpop.f32.mrb[0].mxu0
        %v4238 = vadd.f32 0.0, %v4237
        %v4239 = vpop.f32.mrb[0].mxu0
        %v4240 = vpop.f32.mrb[0].mxu0
        %v4241 = vadd.f32 0.0, %v4240
        %v4242 = vpop.f32.mrb[0].mxu0
        %4243 = vmatprep.mubr.bf16.mxu0 0
        %4244 = vmatmul.mubr.bf16.gmra.mrb[0].mxu0 %v2801
        %v4245 = vpop.f32.mrb[0].mxu0
        %v4246 = vadd.f32 0.0, %v4245
        %v4247 = vpop.f32.mrb[0].mxu0
        %v4248 = vpop.f32.mrb[0].mxu0
        %v4249 = vadd.f32 0.0, %v4248
        %v4250 = vpop.f32.mrb[0].mxu0
        %4251 = vmatprep.mubr.bf16.mxu0 0
        %4252 = vmatmul.mubr.bf16.gmra.mrb[0].mxu0 %v2804
        %v4253 = vpop.f32.mrb[0].mxu0
        %v4254 = vadd.f32 0.0, %v4253
        %v4255 = vpop.f32.mrb[0].mxu0
        %v4256 = vpop.f32.mrb[0].mxu0
        %v4257 = vadd.f32 0.0, %v4256
        %v4258 = vpop.f32.mrb[0].mxu0
        %4259 = vmatprep.mubr.bf16.mxu0 0
        %4260 = vmatmul.mubr.bf16.gmra.mrb[0].mxu0 %v2807
        %v4261 = vpop.f32.mrb[0].mxu0
        %v4262 = vadd.f32 0.0, %v4261
        %v4263 = vpop.f32.mrb[0].mxu0
        %v4264 = vpop.f32.mrb[0].mxu0
        %v4265 = vadd.f32 0.0, %v4264
        %v4266 = vpop.f32.mrb[0].mxu0
        %4267 = vmatprep.mubr.bf16.mxu0 0
        %4268 = vmatmul.mubr.bf16.gmra.mrb[0].mxu0 %v3148
        %v4269 = vpop.f32.mrb[0].mxu0
        %v4270 = vadd.f32 0.0, %v4269
        %v4271 = vpop.f32.mrb[0].mxu0
        %v4272 = vpop.f32.mrb[0].mxu0
        %v4273 = vadd.f32 0.0, %v4272
        %v4274 = vpop.f32.mrb[0].mxu0
        %4275 = vmatprep.mubr.bf16.mxu0 0
        %4276 = vmatmul.mubr.bf16.gmra.mrb[0].mxu0 %v3350
        %v4277 = vpop.f32.mrb[0].mxu0
        %v4278 = vadd.f32 0.0, %v4277
        %v4279 = vpop.f32.mrb[0].mxu0
        %v4280 = vpop.f32.mrb[0].mxu0
        %v4281 = vadd.f32 0.0, %v4280
        %v4282 = vpop.f32.mrb[0].mxu0
        %4283 = vmatprep.mubr.bf16.mxu0 0
        %4284 = vmatmul.mubr.bf16.gmra.mrb[0].mxu0 %v3552
        %v4285 = vpop.f32.mrb[0].mxu0
        %v4286 = vadd.f32 0.0, %v4285
        %v4287 = vpop.f32.mrb[0].mxu0
        %v4288 = vpop.f32.mrb[0].mxu0
        %v4289 = vadd.f32 0.0, %v4288
        %v4290 = vpop.f32.mrb[0].mxu0
        %4291 = vmatprep.mubr.bf16.mxu0 0
        %4292 = vmatmul.mubr.bf16.gmra.mrb[0].mxu0 %v3754
        %v4293 = vpop.f32.mrb[0].mxu0
        %v4294 = vadd.f32 0.0, %v4293
        %v4295 = vpop.f32.mrb[0].mxu0
        %v4296 = vpop.f32.mrb[0].mxu0
        %v4297 = vadd.f32 0.0, %v4296
        %v4298 = vpop.f32.mrb[0].mxu0
        %4299 = vmatprep.mubr.bf16.mxu0 0
        %4300 = vmatmul.mubr.bf16.gmra.mrb[0].mxu0 %v3956
        %v4301 = vpop.f32.mrb[0].mxu0
        %v4302 = vadd.f32 0.0, %v4301
        %v4303 = vpop.f32.mrb[0].mxu0
        %v4304 = vpop.f32.mrb[0].mxu0
        %v4305 = vadd.f32 0.0, %v4304
        %v4306 = vpop.f32.mrb[0].mxu0
        %4307 = vmatprep.mubr.bf16.mxu0 0
        %4308 = vmatmul.mubr.bf16.gmra.mrb[0].mxu0 %v4158
        %v4309 = vpop.f32.mrb[0].mxu0
        %v4310 = vadd.f32 0.0, %v4309
        %v4311 = vpop.f32.mrb[0].mxu0
        %v4312 = vpop.f32.mrb[0].mxu0
        %v4313 = vadd.f32 0.0, %v4312
        %v4314 = vpop.f32.mrb[0].mxu0
        %4315 = vdwg.mxu0
        %v4316 = vadd.f32 %v4114, %v4198
        %v4317 = vadd.f32 %v4115, %v4201
        %v4318 = vadd.f32 %v4116, %v4206
        %v4319 = vadd.f32 %v4117, %v4209
        %v4320 = vadd.f32 %v4118, %v4214
        %v4321 = vadd.f32 %v4119, %v4217
        %v4322 = vadd.f32 %v4120, %v4222
        %v4323 = vadd.f32 %v4121, %v4225
        %v4324 = vadd.f32 %v4122, %v4230
        %v4325 = vadd.f32 %v4123, %v4233
        %v4326 = vadd.f32 %v4124, %v4238
        %v4327 = vadd.f32 %v4125, %v4241
        %v4328 = vadd.f32 %v4126, %v4246
        %v4329 = vadd.f32 %v4127, %v4249
        %v4330 = vadd.f32 %v4128, %v4254
        %v4331 = vadd.f32 %v4129, %v4257
        %v4332 = vadd.f32 %v4130, %v4262
        %v4333 = vadd.f32 %v4131, %v4265
        %v4334 = vadd.f32 %v4132, %v4270
        %v4335 = vadd.f32 %v4133, %v4273
        %v4336 = vadd.f32 %v4134, %v4278
        %v4337 = vadd.f32 %v4135, %v4281
        %v4338 = vadd.f32 %v4136, %v4286
        %v4339 = vadd.f32 %v4137, %v4289
        %v4340 = vadd.f32 %v4138, %v4294
        %v4341 = vadd.f32 %v4139, %v4297
        %v4342 = vadd.f32 %v4140, %v4302
        %v4343 = vadd.f32 %v4141, %v4305
        %v4344 = vadd.f32 %v4142, %v4310
        %v4345 = vadd.f32 %v4143, %v4313
        %s4346 = scalar_lea.vmem %s2, 96
        %v4347 = vld [vmem:[%s4346] sm:$0xf]
        %v4348 = vld [vmem:[%s4346 + $0x4] sm:$0xf]
        %v4349 = vld [vmem:[%s4346 + $0x8] sm:$0x3]
        %v4353 = vunpack.c.l.b16 %v4347
        %v4354 = vunpack.c.l.b16 %v4348
        %v4355 = vunpack.c.l.b16 %v4349
        %v4356 = vpack.c.b16 %v4354, %v4353
        %v4357 = vpack.c.b16 %v4355, %v4355
        %v4360 = vsel %vm2763, %v2735, 0
        %v4363 = vsel %vm2809, %v4357, 0
        %4365 = vmatprep.subr.bf16.mxu0 0
        %4366 = vmatpush1.bf16.msra.mxu0 %v4356
        %4367 = vmatprep.subr.bf16.mxu0 0
        %4368 = vmatpush1.bf16.msra.mxu0 %v4363
        %4369 = vmatprep.subr.bf16.mxu0 0
        %4370 = vmatpush1.bf16.msra.mxu0 0
        %4371 = vmatprep.subr.bf16.mxu0 0
        %4372 = vmatpush1.bf16.msra.mxu0 0
        %4373 = vmatprep.subr.bf16.mxu0 0
        %4374 = vmatpush1.bf16.msra.mxu0 0
        %4375 = vmatprep.subr.bf16.mxu0 0
        %4376 = vmatpush1.bf16.msra.mxu0 0
        %4377 = vmatprep.subr.bf16.mxu0 0
        %4378 = vmatpush1.bf16.msra.mxu0 0
        %4379 = vmatprep.subr.bf16.mxu0 0
        %4380 = vmatpush1.bf16.msra.mxu0 0
        %4381 = vmatprep.subr.bf16.mxu0 0
        %4382 = vmatpush1.bf16.msra.mxu0 0
        %4383 = vmatprep.subr.bf16.mxu0 0
        %4384 = vmatpush1.bf16.msra.mxu0 0
        %4385 = vmatprep.subr.bf16.mxu0 0
        %4386 = vmatpush1.bf16.msra.mxu0 0
        %4387 = vmatprep.subr.bf16.mxu0 0
        %4388 = vmatpush1.bf16.msra.mxu0 0
        %4389 = vmatprep.subr.bf16.mxu0 0
        %4390 = vmatpush1.bf16.msra.mxu0 0
        %4391 = vmatprep.subr.bf16.mxu0 0
        %4392 = vmatpush1.bf16.msra.mxu0 0
        %4393 = vmatprep.subr.bf16.mxu0 0
        %4394 = vmatpush1.bf16.msra.mxu0 0
        %4395 = vmatprep.subr.bf16.mxu0 0
        %4396 = vmatpush1.bf16.msra.mxu0 0
        %4397 = vmatprep.mubr.bf16.mxu0 0
        %4398 = vmatmul.mubr.bf16.gmra.mrb[0].mxu0 %v2786
        %v4399 = vpop.f32.mrb[0].mxu0
        %v4400 = vadd.f32 0.0, %v4399
        %v4401 = vpop.f32.mrb[0].mxu0
        %v4402 = vpop.f32.mrb[0].mxu0
        %v4403 = vadd.f32 0.0, %v4402
        %v4404 = vpop.f32.mrb[0].mxu0
        %4405 = vmatprep.mubr.bf16.mxu0 0
        %4406 = vmatmul.mubr.bf16.gmra.mrb[0].mxu0 %v2789
        %v4407 = vpop.f32.mrb[0].mxu0
        %v4408 = vadd.f32 0.0, %v4407
        %v4409 = vpop.f32.mrb[0].mxu0
        %v4410 = vpop.f32.mrb[0].mxu0
        %v4411 = vadd.f32 0.0, %v4410
        %v4412 = vpop.f32.mrb[0].mxu0
        %4413 = vmatprep.mubr.bf16.mxu0 0
        %4414 = vmatmul.mubr.bf16.gmra.mrb[0].mxu0 %v2792
        %v4415 = vpop.f32.mrb[0].mxu0
        %v4416 = vadd.f32 0.0, %v4415
        %v4417 = vpop.f32.mrb[0].mxu0
        %v4418 = vpop.f32.mrb[0].mxu0
        %v4419 = vadd.f32 0.0, %v4418
        %v4420 = vpop.f32.mrb[0].mxu0
        %4421 = vmatprep.mubr.bf16.mxu0 0
        %4422 = vmatmul.mubr.bf16.gmra.mrb[0].mxu0 %v2795
        %v4423 = vpop.f32.mrb[0].mxu0
        %v4424 = vadd.f32 0.0, %v4423
        %v4425 = vpop.f32.mrb[0].mxu0
        %v4426 = vpop.f32.mrb[0].mxu0
        %v4427 = vadd.f32 0.0, %v4426
        %v4428 = vpop.f32.mrb[0].mxu0
        %4429 = vmatprep.mubr.bf16.mxu0 0
        %4430 = vmatmul.mubr.bf16.gmra.mrb[0].mxu0 %v2798
        %v4431 = vpop.f32.mrb[0].mxu0
        %v4432 = vadd.f32 0.0, %v4431
        %v4433 = vpop.f32.mrb[0].mxu0
        %v4434 = vpop.f32.mrb[0].mxu0
        %v4435 = vadd.f32 0.0, %v4434
        %v4436 = vpop.f32.mrb[0].mxu0
        %4437 = vmatprep.mubr.bf16.mxu0 0
        %4438 = vmatmul.mubr.bf16.gmra.mrb[0].mxu0 %v2801
        %v4439 = vpop.f32.mrb[0].mxu0
        %v4440 = vadd.f32 0.0, %v4439
        %v4441 = vpop.f32.mrb[0].mxu0
        %v4442 = vpop.f32.mrb[0].mxu0
        %v4443 = vadd.f32 0.0, %v4442
        %v4444 = vpop.f32.mrb[0].mxu0
        %4445 = vmatprep.mubr.bf16.mxu0 0
        %4446 = vmatmul.mubr.bf16.gmra.mrb[0].mxu0 %v2804
        %v4447 = vpop.f32.mrb[0].mxu0
        %v4448 = vadd.f32 0.0, %v4447
        %v4449 = vpop.f32.mrb[0].mxu0
        %v4450 = vpop.f32.mrb[0].mxu0
        %v4451 = vadd.f32 0.0, %v4450
        %v4452 = vpop.f32.mrb[0].mxu0
        %4453 = vmatprep.mubr.bf16.mxu0 0
        %4454 = vmatmul.mubr.bf16.gmra.mrb[0].mxu0 %v2807
        %v4455 = vpop.f32.mrb[0].mxu0
        %v4456 = vadd.f32 0.0, %v4455
        %v4457 = vpop.f32.mrb[0].mxu0
        %v4458 = vpop.f32.mrb[0].mxu0
        %v4459 = vadd.f32 0.0, %v4458
        %v4460 = vpop.f32.mrb[0].mxu0
        %4461 = vmatprep.mubr.bf16.mxu0 0
        %4462 = vmatmul.mubr.bf16.gmra.mrb[0].mxu0 %v3148
        %v4463 = vpop.f32.mrb[0].mxu0
        %v4464 = vadd.f32 0.0, %v4463
        %v4465 = vpop.f32.mrb[0].mxu0
        %v4466 = vpop.f32.mrb[0].mxu0
        %v4467 = vadd.f32 0.0, %v4466
        %v4468 = vpop.f32.mrb[0].mxu0
        %4469 = vmatprep.mubr.bf16.mxu0 0
        %4470 = vmatmul.mubr.bf16.gmra.mrb[0].mxu0 %v3350
        %v4471 = vpop.f32.mrb[0].mxu0
        %v4472 = vadd.f32 0.0, %v4471
        %v4473 = vpop.f32.mrb[0].mxu0
        %v4474 = vpop.f32.mrb[0].mxu0
        %v4475 = vadd.f32 0.0, %v4474
        %v4476 = vpop.f32.mrb[0].mxu0
        %4477 = vmatprep.mubr.bf16.mxu0 0
        %4478 = vmatmul.mubr.bf16.gmra.mrb[0].mxu0 %v3552
        %v4479 = vpop.f32.mrb[0].mxu0
        %v4480 = vadd.f32 0.0, %v4479
        %v4481 = vpop.f32.mrb[0].mxu0
        %v4482 = vpop.f32.mrb[0].mxu0
        %v4483 = vadd.f32 0.0, %v4482
        %v4484 = vpop.f32.mrb[0].mxu0
        %4485 = vmatprep.mubr.bf16.mxu0 0
        %4486 = vmatmul.mubr.bf16.gmra.mrb[0].mxu0 %v3754
        %v4487 = vpop.f32.mrb[0].mxu0
        %v4488 = vadd.f32 0.0, %v4487
        %v4489 = vpop.f32.mrb[0].mxu0
        %v4490 = vpop.f32.mrb[0].mxu0
        %v4491 = vadd.f32 0.0, %v4490
        %v4492 = vpop.f32.mrb[0].mxu0
        %4493 = vmatprep.mubr.bf16.mxu0 0
        %4494 = vmatmul.mubr.bf16.gmra.mrb[0].mxu0 %v3956
        %v4495 = vpop.f32.mrb[0].mxu0
        %v4496 = vadd.f32 0.0, %v4495
        %v4497 = vpop.f32.mrb[0].mxu0
        %v4498 = vpop.f32.mrb[0].mxu0
        %v4499 = vadd.f32 0.0, %v4498
        %v4500 = vpop.f32.mrb[0].mxu0
        %4501 = vmatprep.mubr.bf16.mxu0 0
        %4502 = vmatmul.mubr.bf16.gmra.mrb[0].mxu0 %v4158
        %v4503 = vpop.f32.mrb[0].mxu0
        %v4504 = vadd.f32 0.0, %v4503
        %v4505 = vpop.f32.mrb[0].mxu0
        %v4506 = vpop.f32.mrb[0].mxu0
        %v4507 = vadd.f32 0.0, %v4506
        %v4508 = vpop.f32.mrb[0].mxu0
        %4509 = vmatprep.mubr.bf16.mxu0 0
        %4510 = vmatmul.mubr.bf16.gmra.mrb[0].mxu0 %v4360
        %v4511 = vpop.f32.mrb[0].mxu0
        %v4512 = vadd.f32 0.0, %v4511
        %v4513 = vpop.f32.mrb[0].mxu0
        %v4514 = vpop.f32.mrb[0].mxu0
        %v4515 = vadd.f32 0.0, %v4514
        %v4516 = vpop.f32.mrb[0].mxu0
        %4517 = vdwg.mxu0
        %v4518 = vadd.f32 %v4316, %v4400
        %v4519 = vadd.f32 %v4317, %v4403
        %v4520 = vadd.f32 %v4318, %v4408
        %v4521 = vadd.f32 %v4319, %v4411
        %v4522 = vadd.f32 %v4320, %v4416
        %v4523 = vadd.f32 %v4321, %v4419
        %v4524 = vadd.f32 %v4322, %v4424
        %v4525 = vadd.f32 %v4323, %v4427
        %v4526 = vadd.f32 %v4324, %v4432
        %v4527 = vadd.f32 %v4325, %v4435
        %v4528 = vadd.f32 %v4326, %v4440
        %v4529 = vadd.f32 %v4327, %v4443
        %v4530 = vadd.f32 %v4328, %v4448
        %v4531 = vadd.f32 %v4329, %v4451
        %v4532 = vadd.f32 %v4330, %v4456
        %v4533 = vadd.f32 %v4331, %v4459
        %v4534 = vadd.f32 %v4332, %v4464
        %v4535 = vadd.f32 %v4333, %v4467
        %v4536 = vadd.f32 %v4334, %v4472
        %v4537 = vadd.f32 %v4335, %v4475
        %v4538 = vadd.f32 %v4336, %v4480
        %v4539 = vadd.f32 %v4337, %v4483
        %v4540 = vadd.f32 %v4338, %v4488
        %v4541 = vadd.f32 %v4339, %v4491
        %v4542 = vadd.f32 %v4340, %v4496
        %v4543 = vadd.f32 %v4341, %v4499
        %v4544 = vadd.f32 %v4342, %v4504
        %v4545 = vadd.f32 %v4343, %v4507
        %v4546 = vadd.f32 %v4344, %v4512
        %v4547 = vadd.f32 %v4345, %v4515
        %s4548 = scalar_lea.vmem %s2, 108
        %v4549 = vld [vmem:[%s4548] sm:$0xf]
        %v4550 = vld [vmem:[%s4548 + $0x4] sm:$0xf]
        %v4551 = vld [vmem:[%s4548 + $0x8] sm:$0x3]
        %v4555 = vunpack.c.l.b16 %v4549
        %v4556 = vunpack.c.l.b16 %v4550
        %v4557 = vunpack.c.l.b16 %v4551
        %v4558 = vpack.c.b16 %v4556, %v4555
        %v4559 = vpack.c.b16 %v4557, %v4557
        %v4562 = vsel %vm2763, %v2736, 0
        %v4565 = vsel %vm2809, %v4559, 0
        %4567 = vmatprep.subr.bf16.mxu0 0
        %4568 = vmatpush1.bf16.msra.mxu0 %v4558
        %4569 = vmatprep.subr.bf16.mxu0 0
        %4570 = vmatpush1.bf16.msra.mxu0 %v4565
        %4571 = vmatprep.subr.bf16.mxu0 0
        %4572 = vmatpush1.bf16.msra.mxu0 0
        %4573 = vmatprep.subr.bf16.mxu0 0
        %4574 = vmatpush1.bf16.msra.mxu0 0
        %4575 = vmatprep.subr.bf16.mxu0 0
        %4576 = vmatpush1.bf16.msra.mxu0 0
        %4577 = vmatprep.subr.bf16.mxu0 0
        %4578 = vmatpush1.bf16.msra.mxu0 0
        %4579 = vmatprep.subr.bf16.mxu0 0
        %4580 = vmatpush1.bf16.msra.mxu0 0
        %4581 = vmatprep.subr.bf16.mxu0 0
        %4582 = vmatpush1.bf16.msra.mxu0 0
        %4583 = vmatprep.subr.bf16.mxu0 0
        %4584 = vmatpush1.bf16.msra.mxu0 0
        %4585 = vmatprep.subr.bf16.mxu0 0
        %4586 = vmatpush1.bf16.msra.mxu0 0
        %4587 = vmatprep.subr.bf16.mxu0 0
        %4588 = vmatpush1.bf16.msra.mxu0 0
        %4589 = vmatprep.subr.bf16.mxu0 0
        %4590 = vmatpush1.bf16.msra.mxu0 0
        %4591 = vmatprep.subr.bf16.mxu0 0
        %4592 = vmatpush1.bf16.msra.mxu0 0
        %4593 = vmatprep.subr.bf16.mxu0 0
        %4594 = vmatpush1.bf16.msra.mxu0 0
        %4595 = vmatprep.subr.bf16.mxu0 0
        %4596 = vmatpush1.bf16.msra.mxu0 0
        %4597 = vmatprep.subr.bf16.mxu0 0
        %4598 = vmatpush1.bf16.msra.mxu0 0
        %4599 = vmatprep.mubr.bf16.mxu0 0
        %4600 = vmatmul.mubr.bf16.gmra.mrb[0].mxu0 %v2789
        %v4601 = vpop.f32.mrb[0].mxu0
        %v4602 = vadd.f32 0.0, %v4601
        %v4603 = vpop.f32.mrb[0].mxu0
        %v4604 = vpop.f32.mrb[0].mxu0
        %v4605 = vadd.f32 0.0, %v4604
        %v4606 = vpop.f32.mrb[0].mxu0
        %4607 = vmatprep.mubr.bf16.mxu0 0
        %4608 = vmatmul.mubr.bf16.gmra.mrb[0].mxu0 %v2792
        %v4609 = vpop.f32.mrb[0].mxu0
        %v4610 = vadd.f32 0.0, %v4609
        %v4611 = vpop.f32.mrb[0].mxu0
        %v4612 = vpop.f32.mrb[0].mxu0
        %v4613 = vadd.f32 0.0, %v4612
        %v4614 = vpop.f32.mrb[0].mxu0
        %4615 = vmatprep.mubr.bf16.mxu0 0
        %4616 = vmatmul.mubr.bf16.gmra.mrb[0].mxu0 %v2795
        %v4617 = vpop.f32.mrb[0].mxu0
        %v4618 = vadd.f32 0.0, %v4617
        %v4619 = vpop.f32.mrb[0].mxu0
        %v4620 = vpop.f32.mrb[0].mxu0
        %v4621 = vadd.f32 0.0, %v4620
        %v4622 = vpop.f32.mrb[0].mxu0
        %4623 = vmatprep.mubr.bf16.mxu0 0
        %4624 = vmatmul.mubr.bf16.gmra.mrb[0].mxu0 %v2798
        %v4625 = vpop.f32.mrb[0].mxu0
        %v4626 = vadd.f32 0.0, %v4625
        %v4627 = vpop.f32.mrb[0].mxu0
        %v4628 = vpop.f32.mrb[0].mxu0
        %v4629 = vadd.f32 0.0, %v4628
        %v4630 = vpop.f32.mrb[0].mxu0
        %4631 = vmatprep.mubr.bf16.mxu0 0
        %4632 = vmatmul.mubr.bf16.gmra.mrb[0].mxu0 %v2801
        %v4633 = vpop.f32.mrb[0].mxu0
        %v4634 = vadd.f32 0.0, %v4633
        %v4635 = vpop.f32.mrb[0].mxu0
        %v4636 = vpop.f32.mrb[0].mxu0
        %v4637 = vadd.f32 0.0, %v4636
        %v4638 = vpop.f32.mrb[0].mxu0
        %4639 = vmatprep.mubr.bf16.mxu0 0
        %4640 = vmatmul.mubr.bf16.gmra.mrb[0].mxu0 %v2804
        %v4641 = vpop.f32.mrb[0].mxu0
        %v4642 = vadd.f32 0.0, %v4641
        %v4643 = vpop.f32.mrb[0].mxu0
        %v4644 = vpop.f32.mrb[0].mxu0
        %v4645 = vadd.f32 0.0, %v4644
        %v4646 = vpop.f32.mrb[0].mxu0
        %4647 = vmatprep.mubr.bf16.mxu0 0
        %4648 = vmatmul.mubr.bf16.gmra.mrb[0].mxu0 %v2807
        %v4649 = vpop.f32.mrb[0].mxu0
        %v4650 = vadd.f32 0.0, %v4649
        %v4651 = vpop.f32.mrb[0].mxu0
        %v4652 = vpop.f32.mrb[0].mxu0
        %v4653 = vadd.f32 0.0, %v4652
        %v4654 = vpop.f32.mrb[0].mxu0
        %4655 = vmatprep.mubr.bf16.mxu0 0
        %4656 = vmatmul.mubr.bf16.gmra.mrb[0].mxu0 %v3148
        %v4657 = vpop.f32.mrb[0].mxu0
        %v4658 = vadd.f32 0.0, %v4657
        %v4659 = vpop.f32.mrb[0].mxu0
        %v4660 = vpop.f32.mrb[0].mxu0
        %v4661 = vadd.f32 0.0, %v4660
        %v4662 = vpop.f32.mrb[0].mxu0
        %4663 = vmatprep.mubr.bf16.mxu0 0
        %4664 = vmatmul.mubr.bf16.gmra.mrb[0].mxu0 %v3350
        %v4665 = vpop.f32.mrb[0].mxu0
        %v4666 = vadd.f32 0.0, %v4665
        %v4667 = vpop.f32.mrb[0].mxu0
        %v4668 = vpop.f32.mrb[0].mxu0
        %v4669 = vadd.f32 0.0, %v4668
        %v4670 = vpop.f32.mrb[0].mxu0
        %4671 = vmatprep.mubr.bf16.mxu0 0
        %4672 = vmatmul.mubr.bf16.gmra.mrb[0].mxu0 %v3552
        %v4673 = vpop.f32.mrb[0].mxu0
        %v4674 = vadd.f32 0.0, %v4673
        %v4675 = vpop.f32.mrb[0].mxu0
        %v4676 = vpop.f32.mrb[0].mxu0
        %v4677 = vadd.f32 0.0, %v4676
        %v4678 = vpop.f32.mrb[0].mxu0
        %4679 = vmatprep.mubr.bf16.mxu0 0
        %4680 = vmatmul.mubr.bf16.gmra.mrb[0].mxu0 %v3754
        %v4681 = vpop.f32.mrb[0].mxu0
        %v4682 = vadd.f32 0.0, %v4681
        %v4683 = vpop.f32.mrb[0].mxu0
        %v4684 = vpop.f32.mrb[0].mxu0
        %v4685 = vadd.f32 0.0, %v4684
        %v4686 = vpop.f32.mrb[0].mxu0
        %4687 = vmatprep.mubr.bf16.mxu0 0
        %4688 = vmatmul.mubr.bf16.gmra.mrb[0].mxu0 %v3956
        %v4689 = vpop.f32.mrb[0].mxu0
        %v4690 = vadd.f32 0.0, %v4689
        %v4691 = vpop.f32.mrb[0].mxu0
        %v4692 = vpop.f32.mrb[0].mxu0
        %v4693 = vadd.f32 0.0, %v4692
        %v4694 = vpop.f32.mrb[0].mxu0
        %4695 = vmatprep.mubr.bf16.mxu0 0
        %4696 = vmatmul.mubr.bf16.gmra.mrb[0].mxu0 %v4158
        %v4697 = vpop.f32.mrb[0].mxu0
        %v4698 = vadd.f32 0.0, %v4697
        %v4699 = vpop.f32.mrb[0].mxu0
        %v4700 = vpop.f32.mrb[0].mxu0
        %v4701 = vadd.f32 0.0, %v4700
        %v4702 = vpop.f32.mrb[0].mxu0
        %4703 = vmatprep.mubr.bf16.mxu0 0
        %4704 = vmatmul.mubr.bf16.gmra.mrb[0].mxu0 %v4360
        %v4705 = vpop.f32.mrb[0].mxu0
        %v4706 = vadd.f32 0.0, %v4705
        %v4707 = vpop.f32.mrb[0].mxu0
        %v4708 = vpop.f32.mrb[0].mxu0
        %v4709 = vadd.f32 0.0, %v4708
        %v4710 = vpop.f32.mrb[0].mxu0
        %4711 = vmatprep.mubr.bf16.mxu0 0
        %4712 = vmatmul.mubr.bf16.gmra.mrb[0].mxu0 %v4562
        %v4713 = vpop.f32.mrb[0].mxu0
        %v4714 = vadd.f32 0.0, %v4713
        %v4715 = vpop.f32.mrb[0].mxu0
        %v4716 = vpop.f32.mrb[0].mxu0
        %v4717 = vadd.f32 0.0, %v4716
        %v4718 = vpop.f32.mrb[0].mxu0
        %4719 = vdwg.mxu0
        %v4720 = vadd.f32 %v4518, %v4602
        %v4721 = vadd.f32 %v4519, %v4605
        %v4722 = vadd.f32 %v4520, %v4610
        %v4723 = vadd.f32 %v4521, %v4613
        %v4724 = vadd.f32 %v4522, %v4618
        %v4725 = vadd.f32 %v4523, %v4621
        %v4726 = vadd.f32 %v4524, %v4626
        %v4727 = vadd.f32 %v4525, %v4629
        %v4728 = vadd.f32 %v4526, %v4634
        %v4729 = vadd.f32 %v4527, %v4637
        %v4730 = vadd.f32 %v4528, %v4642
        %v4731 = vadd.f32 %v4529, %v4645
        %v4732 = vadd.f32 %v4530, %v4650
        %v4733 = vadd.f32 %v4531, %v4653
        %v4734 = vadd.f32 %v4532, %v4658
        %v4735 = vadd.f32 %v4533, %v4661
        %v4736 = vadd.f32 %v4534, %v4666
        %v4737 = vadd.f32 %v4535, %v4669
        %v4738 = vadd.f32 %v4536, %v4674
        %v4739 = vadd.f32 %v4537, %v4677
        %v4740 = vadd.f32 %v4538, %v4682
        %v4741 = vadd.f32 %v4539, %v4685
        %v4742 = vadd.f32 %v4540, %v4690
        %v4743 = vadd.f32 %v4541, %v4693
        %v4744 = vadd.f32 %v4542, %v4698
        %v4745 = vadd.f32 %v4543, %v4701
        %v4746 = vadd.f32 %v4544, %v4706
        %v4747 = vadd.f32 %v4545, %v4709
        %v4748 = vadd.f32 %v4546, %v4714
        %v4749 = vadd.f32 %v4547, %v4717
        %s4750 = scalar_lea.vmem %s2, 120
        %v4751 = vld [vmem:[%s4750] sm:$0xf]
        %v4752 = vld [vmem:[%s4750 + $0x4] sm:$0xf]
        %v4753 = vld [vmem:[%s4750 + $0x8] sm:$0x3]
        %v4757 = vunpack.c.l.b16 %v4751
        %v4758 = vunpack.c.l.b16 %v4752
        %v4759 = vunpack.c.l.b16 %v4753
        %v4760 = vpack.c.b16 %v4758, %v4757
        %v4761 = vpack.c.b16 %v4759, %v4759
        %v4764 = vsel %vm2763, %v2737, 0
        %v4767 = vsel %vm2809, %v4761, 0
        %4769 = vmatprep.subr.bf16.mxu0 0
        %4770 = vmatpush1.bf16.msra.mxu0 %v4760
        %4771 = vmatprep.subr.bf16.mxu0 0
        %4772 = vmatpush1.bf16.msra.mxu0 %v4767
        %4773 = vmatprep.subr.bf16.mxu0 0
        %4774 = vmatpush1.bf16.msra.mxu0 0
        %4775 = vmatprep.subr.bf16.mxu0 0
        %4776 = vmatpush1.bf16.msra.mxu0 0
        %4777 = vmatprep.subr.bf16.mxu0 0
        %4778 = vmatpush1.bf16.msra.mxu0 0
        %4779 = vmatprep.subr.bf16.mxu0 0
        %4780 = vmatpush1.bf16.msra.mxu0 0
        %4781 = vmatprep.subr.bf16.mxu0 0
        %4782 = vmatpush1.bf16.msra.mxu0 0
        %4783 = vmatprep.subr.bf16.mxu0 0
        %4784 = vmatpush1.bf16.msra.mxu0 0
        %4785 = vmatprep.subr.bf16.mxu0 0
        %4786 = vmatpush1.bf16.msra.mxu0 0
        %4787 = vmatprep.subr.bf16.mxu0 0
        %4788 = vmatpush1.bf16.msra.mxu0 0
        %4789 = vmatprep.subr.bf16.mxu0 0
        %4790 = vmatpush1.bf16.msra.mxu0 0
        %4791 = vmatprep.subr.bf16.mxu0 0
        %4792 = vmatpush1.bf16.msra.mxu0 0
        %4793 = vmatprep.subr.bf16.mxu0 0
        %4794 = vmatpush1.bf16.msra.mxu0 0
        %4795 = vmatprep.subr.bf16.mxu0 0
        %4796 = vmatpush1.bf16.msra.mxu0 0
        %4797 = vmatprep.subr.bf16.mxu0 0
        %4798 = vmatpush1.bf16.msra.mxu0 0
        %4799 = vmatprep.subr.bf16.mxu0 0
        %4800 = vmatpush1.bf16.msra.mxu0 0
        %4801 = vmatprep.mubr.bf16.mxu0 0
        %4802 = vmatmul.mubr.bf16.gmra.mrb[0].mxu0 %v2792
        %v4803 = vpop.f32.mrb[0].mxu0
        %v4804 = vadd.f32 0.0, %v4803
        %v4805 = vpop.f32.mrb[0].mxu0
        %v4806 = vpop.f32.mrb[0].mxu0
        %v4807 = vadd.f32 0.0, %v4806
        %v4808 = vpop.f32.mrb[0].mxu0
        %4809 = vmatprep.mubr.bf16.mxu0 0
        %4810 = vmatmul.mubr.bf16.gmra.mrb[0].mxu0 %v2795
        %v4811 = vpop.f32.mrb[0].mxu0
        %v4812 = vadd.f32 0.0, %v4811
        %v4813 = vpop.f32.mrb[0].mxu0
        %v4814 = vpop.f32.mrb[0].mxu0
        %v4815 = vadd.f32 0.0, %v4814
        %v4816 = vpop.f32.mrb[0].mxu0
        %4817 = vmatprep.mubr.bf16.mxu0 0
        %4818 = vmatmul.mubr.bf16.gmra.mrb[0].mxu0 %v2798
        %v4819 = vpop.f32.mrb[0].mxu0
        %v4820 = vadd.f32 0.0, %v4819
        %v4821 = vpop.f32.mrb[0].mxu0
        %v4822 = vpop.f32.mrb[0].mxu0
        %v4823 = vadd.f32 0.0, %v4822
        %v4824 = vpop.f32.mrb[0].mxu0
        %4825 = vmatprep.mubr.bf16.mxu0 0
        %4826 = vmatmul.mubr.bf16.gmra.mrb[0].mxu0 %v2801
        %v4827 = vpop.f32.mrb[0].mxu0
        %v4828 = vadd.f32 0.0, %v4827
        %v4829 = vpop.f32.mrb[0].mxu0
        %v4830 = vpop.f32.mrb[0].mxu0
        %v4831 = vadd.f32 0.0, %v4830
        %v4832 = vpop.f32.mrb[0].mxu0
        %4833 = vmatprep.mubr.bf16.mxu0 0
        %4834 = vmatmul.mubr.bf16.gmra.mrb[0].mxu0 %v2804
        %v4835 = vpop.f32.mrb[0].mxu0
        %v4836 = vadd.f32 0.0, %v4835
        %v4837 = vpop.f32.mrb[0].mxu0
        %v4838 = vpop.f32.mrb[0].mxu0
        %v4839 = vadd.f32 0.0, %v4838
        %v4840 = vpop.f32.mrb[0].mxu0
        %4841 = vmatprep.mubr.bf16.mxu0 0
        %4842 = vmatmul.mubr.bf16.gmra.mrb[0].mxu0 %v2807
        %v4843 = vpop.f32.mrb[0].mxu0
        %v4844 = vadd.f32 0.0, %v4843
        %v4845 = vpop.f32.mrb[0].mxu0
        %v4846 = vpop.f32.mrb[0].mxu0
        %v4847 = vadd.f32 0.0, %v4846
        %v4848 = vpop.f32.mrb[0].mxu0
        %4849 = vmatprep.mubr.bf16.mxu0 0
        %4850 = vmatmul.mubr.bf16.gmra.mrb[0].mxu0 %v3148
        %v4851 = vpop.f32.mrb[0].mxu0
        %v4852 = vadd.f32 0.0, %v4851
        %v4853 = vpop.f32.mrb[0].mxu0
        %v4854 = vpop.f32.mrb[0].mxu0
        %v4855 = vadd.f32 0.0, %v4854
        %v4856 = vpop.f32.mrb[0].mxu0
        %4857 = vmatprep.mubr.bf16.mxu0 0
        %4858 = vmatmul.mubr.bf16.gmra.mrb[0].mxu0 %v3350
        %v4859 = vpop.f32.mrb[0].mxu0
        %v4860 = vadd.f32 0.0, %v4859
        %v4861 = vpop.f32.mrb[0].mxu0
        %v4862 = vpop.f32.mrb[0].mxu0
        %v4863 = vadd.f32 0.0, %v4862
        %v4864 = vpop.f32.mrb[0].mxu0
        %4865 = vmatprep.mubr.bf16.mxu0 0
        %4866 = vmatmul.mubr.bf16.gmra.mrb[0].mxu0 %v3552
        %v4867 = vpop.f32.mrb[0].mxu0
        %v4868 = vadd.f32 0.0, %v4867
        %v4869 = vpop.f32.mrb[0].mxu0
        %v4870 = vpop.f32.mrb[0].mxu0
        %v4871 = vadd.f32 0.0, %v4870
        %v4872 = vpop.f32.mrb[0].mxu0
        %4873 = vmatprep.mubr.bf16.mxu0 0
        %4874 = vmatmul.mubr.bf16.gmra.mrb[0].mxu0 %v3754
        %v4875 = vpop.f32.mrb[0].mxu0
        %v4876 = vadd.f32 0.0, %v4875
        %v4877 = vpop.f32.mrb[0].mxu0
        %v4878 = vpop.f32.mrb[0].mxu0
        %v4879 = vadd.f32 0.0, %v4878
        %v4880 = vpop.f32.mrb[0].mxu0
        %4881 = vmatprep.mubr.bf16.mxu0 0
        %4882 = vmatmul.mubr.bf16.gmra.mrb[0].mxu0 %v3956
        %v4883 = vpop.f32.mrb[0].mxu0
        %v4884 = vadd.f32 0.0, %v4883
        %v4885 = vpop.f32.mrb[0].mxu0
        %v4886 = vpop.f32.mrb[0].mxu0
        %v4887 = vadd.f32 0.0, %v4886
        %v4888 = vpop.f32.mrb[0].mxu0
        %4889 = vmatprep.mubr.bf16.mxu0 0
        %4890 = vmatmul.mubr.bf16.gmra.mrb[0].mxu0 %v4158
        %v4891 = vpop.f32.mrb[0].mxu0
        %v4892 = vadd.f32 0.0, %v4891
        %v4893 = vpop.f32.mrb[0].mxu0
        %v4894 = vpop.f32.mrb[0].mxu0
        %v4895 = vadd.f32 0.0, %v4894
        %v4896 = vpop.f32.mrb[0].mxu0
        %4897 = vmatprep.mubr.bf16.mxu0 0
        %4898 = vmatmul.mubr.bf16.gmra.mrb[0].mxu0 %v4360
        %v4899 = vpop.f32.mrb[0].mxu0
        %v4900 = vadd.f32 0.0, %v4899
        %v4901 = vpop.f32.mrb[0].mxu0
        %v4902 = vpop.f32.mrb[0].mxu0
        %v4903 = vadd.f32 0.0, %v4902
        %v4904 = vpop.f32.mrb[0].mxu0
        %4905 = vmatprep.mubr.bf16.mxu0 0
        %4906 = vmatmul.mubr.bf16.gmra.mrb[0].mxu0 %v4562
        %v4907 = vpop.f32.mrb[0].mxu0
        %v4908 = vadd.f32 0.0, %v4907
        %v4909 = vpop.f32.mrb[0].mxu0
        %v4910 = vpop.f32.mrb[0].mxu0
        %v4911 = vadd.f32 0.0, %v4910
        %v4912 = vpop.f32.mrb[0].mxu0
        %4913 = vmatprep.mubr.bf16.mxu0 0
        %4914 = vmatmul.mubr.bf16.gmra.mrb[0].mxu0 %v4764
        %v4915 = vpop.f32.mrb[0].mxu0
        %v4916 = vadd.f32 0.0, %v4915
        %v4917 = vpop.f32.mrb[0].mxu0
        %v4918 = vpop.f32.mrb[0].mxu0
        %v4919 = vadd.f32 0.0, %v4918
        %v4920 = vpop.f32.mrb[0].mxu0
        %4921 = vdwg.mxu0
        %v4922 = vadd.f32 %v4720, %v4804
        %v4923 = vadd.f32 %v4721, %v4807
        %v4924 = vadd.f32 %v4722, %v4812
        %v4925 = vadd.f32 %v4723, %v4815
        %v4926 = vadd.f32 %v4724, %v4820
        %v4927 = vadd.f32 %v4725, %v4823
        %v4928 = vadd.f32 %v4726, %v4828
        %v4929 = vadd.f32 %v4727, %v4831
        %v4930 = vadd.f32 %v4728, %v4836
        %v4931 = vadd.f32 %v4729, %v4839
        %v4932 = vadd.f32 %v4730, %v4844
        %v4933 = vadd.f32 %v4731, %v4847
        %v4934 = vadd.f32 %v4732, %v4852
        %v4935 = vadd.f32 %v4733, %v4855
        %v4936 = vadd.f32 %v4734, %v4860
        %v4937 = vadd.f32 %v4735, %v4863
        %v4938 = vadd.f32 %v4736, %v4868
        %v4939 = vadd.f32 %v4737, %v4871
        %v4940 = vadd.f32 %v4738, %v4876
        %v4941 = vadd.f32 %v4739, %v4879
        %v4942 = vadd.f32 %v4740, %v4884
        %v4943 = vadd.f32 %v4741, %v4887
        %v4944 = vadd.f32 %v4742, %v4892
        %v4945 = vadd.f32 %v4743, %v4895
        %v4946 = vadd.f32 %v4744, %v4900
        %v4947 = vadd.f32 %v4745, %v4903
        %v4948 = vadd.f32 %v4746, %v4908
        %v4949 = vadd.f32 %v4747, %v4911
        %v4950 = vadd.f32 %v4748, %v4916
        %v4951 = vadd.f32 %v4749, %v4919
        %s4952 = scalar_lea.vmem %s2, 132
        %v4953 = vld [vmem:[%s4952] sm:$0xf]
        %v4954 = vld [vmem:[%s4952 + $0x4] sm:$0xf]
        %v4955 = vld [vmem:[%s4952 + $0x8] sm:$0x3]
        %v4959 = vunpack.c.l.b16 %v4953
        %v4960 = vunpack.c.l.b16 %v4954
        %v4961 = vunpack.c.l.b16 %v4955
        %v4962 = vpack.c.b16 %v4960, %v4959
        %v4963 = vpack.c.b16 %v4961, %v4961
        %v4966 = vsel %vm2763, %v2738, 0
        %v4969 = vsel %vm2809, %v4963, 0
        %4971 = vmatprep.subr.bf16.mxu0 0
        %4972 = vmatpush1.bf16.msra.mxu0 %v4962
        %4973 = vmatprep.subr.bf16.mxu0 0
        %4974 = vmatpush1.bf16.msra.mxu0 %v4969
        %4975 = vmatprep.subr.bf16.mxu0 0
        %4976 = vmatpush1.bf16.msra.mxu0 0
        %4977 = vmatprep.subr.bf16.mxu0 0
        %4978 = vmatpush1.bf16.msra.mxu0 0
        %4979 = vmatprep.subr.bf16.mxu0 0
        %4980 = vmatpush1.bf16.msra.mxu0 0
        %4981 = vmatprep.subr.bf16.mxu0 0
        %4982 = vmatpush1.bf16.msra.mxu0 0
        %4983 = vmatprep.subr.bf16.mxu0 0
        %4984 = vmatpush1.bf16.msra.mxu0 0
        %4985 = vmatprep.subr.bf16.mxu0 0
        %4986 = vmatpush1.bf16.msra.mxu0 0
        %4987 = vmatprep.subr.bf16.mxu0 0
        %4988 = vmatpush1.bf16.msra.mxu0 0
        %4989 = vmatprep.subr.bf16.mxu0 0
        %4990 = vmatpush1.bf16.msra.mxu0 0
        %4991 = vmatprep.subr.bf16.mxu0 0
        %4992 = vmatpush1.bf16.msra.mxu0 0
        %4993 = vmatprep.subr.bf16.mxu0 0
        %4994 = vmatpush1.bf16.msra.mxu0 0
        %4995 = vmatprep.subr.bf16.mxu0 0
        %4996 = vmatpush1.bf16.msra.mxu0 0
        %4997 = vmatprep.subr.bf16.mxu0 0
        %4998 = vmatpush1.bf16.msra.mxu0 0
        %4999 = vmatprep.subr.bf16.mxu0 0
        %5000 = vmatpush1.bf16.msra.mxu0 0
        %5001 = vmatprep.subr.bf16.mxu0 0
        %5002 = vmatpush1.bf16.msra.mxu0 0
        %5003 = vmatprep.mubr.bf16.mxu0 0
        %5004 = vmatmul.mubr.bf16.gmra.mrb[0].mxu0 %v2795
        %v5005 = vpop.f32.mrb[0].mxu0
        %v5006 = vadd.f32 0.0, %v5005
        %v5007 = vpop.f32.mrb[0].mxu0
        %v5008 = vpop.f32.mrb[0].mxu0
        %v5009 = vadd.f32 0.0, %v5008
        %v5010 = vpop.f32.mrb[0].mxu0
        %5011 = vmatprep.mubr.bf16.mxu0 0
        %5012 = vmatmul.mubr.bf16.gmra.mrb[0].mxu0 %v2798
        %v5013 = vpop.f32.mrb[0].mxu0
        %v5014 = vadd.f32 0.0, %v5013
        %v5015 = vpop.f32.mrb[0].mxu0
        %v5016 = vpop.f32.mrb[0].mxu0
        %v5017 = vadd.f32 0.0, %v5016
        %v5018 = vpop.f32.mrb[0].mxu0
        %5019 = vmatprep.mubr.bf16.mxu0 0
        %5020 = vmatmul.mubr.bf16.gmra.mrb[0].mxu0 %v2801
        %v5021 = vpop.f32.mrb[0].mxu0
        %v5022 = vadd.f32 0.0, %v5021
        %v5023 = vpop.f32.mrb[0].mxu0
        %v5024 = vpop.f32.mrb[0].mxu0
        %v5025 = vadd.f32 0.0, %v5024
        %v5026 = vpop.f32.mrb[0].mxu0
        %5027 = vmatprep.mubr.bf16.mxu0 0
        %5028 = vmatmul.mubr.bf16.gmra.mrb[0].mxu0 %v2804
        %v5029 = vpop.f32.mrb[0].mxu0
        %v5030 = vadd.f32 0.0, %v5029
        %v5031 = vpop.f32.mrb[0].mxu0
        %v5032 = vpop.f32.mrb[0].mxu0
        %v5033 = vadd.f32 0.0, %v5032
        %v5034 = vpop.f32.mrb[0].mxu0
        %5035 = vmatprep.mubr.bf16.mxu0 0
        %5036 = vmatmul.mubr.bf16.gmra.mrb[0].mxu0 %v2807
        %v5037 = vpop.f32.mrb[0].mxu0
        %v5038 = vadd.f32 0.0, %v5037
        %v5039 = vpop.f32.mrb[0].mxu0
        %v5040 = vpop.f32.mrb[0].mxu0
        %v5041 = vadd.f32 0.0, %v5040
        %v5042 = vpop.f32.mrb[0].mxu0
        %5043 = vmatprep.mubr.bf16.mxu0 0
        %5044 = vmatmul.mubr.bf16.gmra.mrb[0].mxu0 %v3148
        %v5045 = vpop.f32.mrb[0].mxu0
        %v5046 = vadd.f32 0.0, %v5045
        %v5047 = vpop.f32.mrb[0].mxu0
        %v5048 = vpop.f32.mrb[0].mxu0
        %v5049 = vadd.f32 0.0, %v5048
        %v5050 = vpop.f32.mrb[0].mxu0
        %5051 = vmatprep.mubr.bf16.mxu0 0
        %5052 = vmatmul.mubr.bf16.gmra.mrb[0].mxu0 %v3350
        %v5053 = vpop.f32.mrb[0].mxu0
        %v5054 = vadd.f32 0.0, %v5053
        %v5055 = vpop.f32.mrb[0].mxu0
        %v5056 = vpop.f32.mrb[0].mxu0
        %v5057 = vadd.f32 0.0, %v5056
        %v5058 = vpop.f32.mrb[0].mxu0
        %5059 = vmatprep.mubr.bf16.mxu0 0
        %5060 = vmatmul.mubr.bf16.gmra.mrb[0].mxu0 %v3552
        %v5061 = vpop.f32.mrb[0].mxu0
        %v5062 = vadd.f32 0.0, %v5061
        %v5063 = vpop.f32.mrb[0].mxu0
        %v5064 = vpop.f32.mrb[0].mxu0
        %v5065 = vadd.f32 0.0, %v5064
        %v5066 = vpop.f32.mrb[0].mxu0
        %5067 = vmatprep.mubr.bf16.mxu0 0
        %5068 = vmatmul.mubr.bf16.gmra.mrb[0].mxu0 %v3754
        %v5069 = vpop.f32.mrb[0].mxu0
        %v5070 = vadd.f32 0.0, %v5069
        %v5071 = vpop.f32.mrb[0].mxu0
        %v5072 = vpop.f32.mrb[0].mxu0
        %v5073 = vadd.f32 0.0, %v5072
        %v5074 = vpop.f32.mrb[0].mxu0
        %5075 = vmatprep.mubr.bf16.mxu0 0
        %5076 = vmatmul.mubr.bf16.gmra.mrb[0].mxu0 %v3956
        %v5077 = vpop.f32.mrb[0].mxu0
        %v5078 = vadd.f32 0.0, %v5077
        %v5079 = vpop.f32.mrb[0].mxu0
        %v5080 = vpop.f32.mrb[0].mxu0
        %v5081 = vadd.f32 0.0, %v5080
        %v5082 = vpop.f32.mrb[0].mxu0
        %5083 = vmatprep.mubr.bf16.mxu0 0
        %5084 = vmatmul.mubr.bf16.gmra.mrb[0].mxu0 %v4158
        %v5085 = vpop.f32.mrb[0].mxu0
        %v5086 = vadd.f32 0.0, %v5085
        %v5087 = vpop.f32.mrb[0].mxu0
        %v5088 = vpop.f32.mrb[0].mxu0
        %v5089 = vadd.f32 0.0, %v5088
        %v5090 = vpop.f32.mrb[0].mxu0
        %5091 = vmatprep.mubr.bf16.mxu0 0
        %5092 = vmatmul.mubr.bf16.gmra.mrb[0].mxu0 %v4360
        %v5093 = vpop.f32.mrb[0].mxu0
        %v5094 = vadd.f32 0.0, %v5093
        %v5095 = vpop.f32.mrb[0].mxu0
        %v5096 = vpop.f32.mrb[0].mxu0
        %v5097 = vadd.f32 0.0, %v5096
        %v5098 = vpop.f32.mrb[0].mxu0
        %5099 = vmatprep.mubr.bf16.mxu0 0
        %5100 = vmatmul.mubr.bf16.gmra.mrb[0].mxu0 %v4562
        %v5101 = vpop.f32.mrb[0].mxu0
        %v5102 = vadd.f32 0.0, %v5101
        %v5103 = vpop.f32.mrb[0].mxu0
        %v5104 = vpop.f32.mrb[0].mxu0
        %v5105 = vadd.f32 0.0, %v5104
        %v5106 = vpop.f32.mrb[0].mxu0
        %5107 = vmatprep.mubr.bf16.mxu0 0
        %5108 = vmatmul.mubr.bf16.gmra.mrb[0].mxu0 %v4764
        %v5109 = vpop.f32.mrb[0].mxu0
        %v5110 = vadd.f32 0.0, %v5109
        %v5111 = vpop.f32.mrb[0].mxu0
        %v5112 = vpop.f32.mrb[0].mxu0
        %v5113 = vadd.f32 0.0, %v5112
        %v5114 = vpop.f32.mrb[0].mxu0
        %5115 = vmatprep.mubr.bf16.mxu0 0
        %5116 = vmatmul.mubr.bf16.gmra.mrb[0].mxu0 %v4966
        %v5117 = vpop.f32.mrb[0].mxu0
        %v5118 = vadd.f32 0.0, %v5117
        %v5119 = vpop.f32.mrb[0].mxu0
        %v5120 = vpop.f32.mrb[0].mxu0
        %v5121 = vadd.f32 0.0, %v5120
        %v5122 = vpop.f32.mrb[0].mxu0
        %5123 = vdwg.mxu0
        %v5124 = vadd.f32 %v4922, %v5006
        %v5125 = vadd.f32 %v4923, %v5009
        %v5126 = vadd.f32 %v4924, %v5014
        %v5127 = vadd.f32 %v4925, %v5017
        %v5128 = vadd.f32 %v4926, %v5022
        %v5129 = vadd.f32 %v4927, %v5025
        %v5130 = vadd.f32 %v4928, %v5030
        %v5131 = vadd.f32 %v4929, %v5033
        %v5132 = vadd.f32 %v4930, %v5038
        %v5133 = vadd.f32 %v4931, %v5041
        %v5134 = vadd.f32 %v4932, %v5046
        %v5135 = vadd.f32 %v4933, %v5049
        %v5136 = vadd.f32 %v4934, %v5054
        %v5137 = vadd.f32 %v4935, %v5057
        %v5138 = vadd.f32 %v4936, %v5062
        %v5139 = vadd.f32 %v4937, %v5065
        %v5140 = vadd.f32 %v4938, %v5070
        %v5141 = vadd.f32 %v4939, %v5073
        %v5142 = vadd.f32 %v4940, %v5078
        %v5143 = vadd.f32 %v4941, %v5081
        %v5144 = vadd.f32 %v4942, %v5086
        %v5145 = vadd.f32 %v4943, %v5089
        %v5146 = vadd.f32 %v4944, %v5094
        %v5147 = vadd.f32 %v4945, %v5097
        %v5148 = vadd.f32 %v4946, %v5102
        %v5149 = vadd.f32 %v4947, %v5105
        %v5150 = vadd.f32 %v4948, %v5110
        %v5151 = vadd.f32 %v4949, %v5113
        %v5152 = vadd.f32 %v4950, %v5118
        %v5153 = vadd.f32 %v4951, %v5121
        %s5154 = scalar_lea.vmem %s2, 144
        %v5155 = vld [vmem:[%s5154] sm:$0xf]
        %v5156 = vld [vmem:[%s5154 + $0x4] sm:$0xf]
        %v5157 = vld [vmem:[%s5154 + $0x8] sm:$0x3]
        %v5161 = vunpack.c.l.b16 %v5155
        %v5162 = vunpack.c.l.b16 %v5156
        %v5163 = vunpack.c.l.b16 %v5157
        %v5164 = vpack.c.b16 %v5162, %v5161
        %v5165 = vpack.c.b16 %v5163, %v5163
        %v5168 = vsel %vm2763, %v2739, 0
        %v5171 = vsel %vm2809, %v5165, 0
        %5173 = vmatprep.subr.bf16.mxu0 0
        %5174 = vmatpush1.bf16.msra.mxu0 %v5164
        %5175 = vmatprep.subr.bf16.mxu0 0
        %5176 = vmatpush1.bf16.msra.mxu0 %v5171
        %5177 = vmatprep.subr.bf16.mxu0 0
        %5178 = vmatpush1.bf16.msra.mxu0 0
        %5179 = vmatprep.subr.bf16.mxu0 0
        %5180 = vmatpush1.bf16.msra.mxu0 0
        %5181 = vmatprep.subr.bf16.mxu0 0
        %5182 = vmatpush1.bf16.msra.mxu0 0
        %5183 = vmatprep.subr.bf16.mxu0 0
        %5184 = vmatpush1.bf16.msra.mxu0 0
        %5185 = vmatprep.subr.bf16.mxu0 0
        %5186 = vmatpush1.bf16.msra.mxu0 0
        %5187 = vmatprep.subr.bf16.mxu0 0
        %5188 = vmatpush1.bf16.msra.mxu0 0
        %5189 = vmatprep.subr.bf16.mxu0 0
        %5190 = vmatpush1.bf16.msra.mxu0 0
        %5191 = vmatprep.subr.bf16.mxu0 0
        %5192 = vmatpush1.bf16.msra.mxu0 0
        %5193 = vmatprep.subr.bf16.mxu0 0
        %5194 = vmatpush1.bf16.msra.mxu0 0
        %5195 = vmatprep.subr.bf16.mxu0 0
        %5196 = vmatpush1.bf16.msra.mxu0 0
        %5197 = vmatprep.subr.bf16.mxu0 0
        %5198 = vmatpush1.bf16.msra.mxu0 0
        %5199 = vmatprep.subr.bf16.mxu0 0
        %5200 = vmatpush1.bf16.msra.mxu0 0
        %5201 = vmatprep.subr.bf16.mxu0 0
        %5202 = vmatpush1.bf16.msra.mxu0 0
        %5203 = vmatprep.subr.bf16.mxu0 0
        %5204 = vmatpush1.bf16.msra.mxu0 0
        %5205 = vmatprep.mubr.bf16.mxu0 0
        %5206 = vmatmul.mubr.bf16.gmra.mrb[0].mxu0 %v2798
        %v5207 = vpop.f32.mrb[0].mxu0
        %v5208 = vadd.f32 0.0, %v5207
        %v5209 = vpop.f32.mrb[0].mxu0
        %v5210 = vpop.f32.mrb[0].mxu0
        %v5211 = vadd.f32 0.0, %v5210
        %v5212 = vpop.f32.mrb[0].mxu0
        %5213 = vmatprep.mubr.bf16.mxu0 0
        %5214 = vmatmul.mubr.bf16.gmra.mrb[0].mxu0 %v2801
        %v5215 = vpop.f32.mrb[0].mxu0
        %v5216 = vadd.f32 0.0, %v5215
        %v5217 = vpop.f32.mrb[0].mxu0
        %v5218 = vpop.f32.mrb[0].mxu0
        %v5219 = vadd.f32 0.0, %v5218
        %v5220 = vpop.f32.mrb[0].mxu0
        %5221 = vmatprep.mubr.bf16.mxu0 0
        %5222 = vmatmul.mubr.bf16.gmra.mrb[0].mxu0 %v2804
        %v5223 = vpop.f32.mrb[0].mxu0
        %v5224 = vadd.f32 0.0, %v5223
        %v5225 = vpop.f32.mrb[0].mxu0
        %v5226 = vpop.f32.mrb[0].mxu0
        %v5227 = vadd.f32 0.0, %v5226
        %v5228 = vpop.f32.mrb[0].mxu0
        %5229 = vmatprep.mubr.bf16.mxu0 0
        %5230 = vmatmul.mubr.bf16.gmra.mrb[0].mxu0 %v2807
        %v5231 = vpop.f32.mrb[0].mxu0
        %v5232 = vadd.f32 0.0, %v5231
        %v5233 = vpop.f32.mrb[0].mxu0
        %v5234 = vpop.f32.mrb[0].mxu0
        %v5235 = vadd.f32 0.0, %v5234
        %v5236 = vpop.f32.mrb[0].mxu0
        %5237 = vmatprep.mubr.bf16.mxu0 0
        %5238 = vmatmul.mubr.bf16.gmra.mrb[0].mxu0 %v3148
        %v5239 = vpop.f32.mrb[0].mxu0
        %v5240 = vadd.f32 0.0, %v5239
        %v5241 = vpop.f32.mrb[0].mxu0
        %v5242 = vpop.f32.mrb[0].mxu0
        %v5243 = vadd.f32 0.0, %v5242
        %v5244 = vpop.f32.mrb[0].mxu0
        %5245 = vmatprep.mubr.bf16.mxu0 0
        %5246 = vmatmul.mubr.bf16.gmra.mrb[0].mxu0 %v3350
        %v5247 = vpop.f32.mrb[0].mxu0
        %v5248 = vadd.f32 0.0, %v5247
        %v5249 = vpop.f32.mrb[0].mxu0
        %v5250 = vpop.f32.mrb[0].mxu0
        %v5251 = vadd.f32 0.0, %v5250
        %v5252 = vpop.f32.mrb[0].mxu0
        %5253 = vmatprep.mubr.bf16.mxu0 0
        %5254 = vmatmul.mubr.bf16.gmra.mrb[0].mxu0 %v3552
        %v5255 = vpop.f32.mrb[0].mxu0
        %v5256 = vadd.f32 0.0, %v5255
        %v5257 = vpop.f32.mrb[0].mxu0
        %v5258 = vpop.f32.mrb[0].mxu0
        %v5259 = vadd.f32 0.0, %v5258
        %v5260 = vpop.f32.mrb[0].mxu0
        %5261 = vmatprep.mubr.bf16.mxu0 0
        %5262 = vmatmul.mubr.bf16.gmra.mrb[0].mxu0 %v3754
        %v5263 = vpop.f32.mrb[0].mxu0
        %v5264 = vadd.f32 0.0, %v5263
        %v5265 = vpop.f32.mrb[0].mxu0
        %v5266 = vpop.f32.mrb[0].mxu0
        %v5267 = vadd.f32 0.0, %v5266
        %v5268 = vpop.f32.mrb[0].mxu0
        %5269 = vmatprep.mubr.bf16.mxu0 0
        %5270 = vmatmul.mubr.bf16.gmra.mrb[0].mxu0 %v3956
        %v5271 = vpop.f32.mrb[0].mxu0
        %v5272 = vadd.f32 0.0, %v5271
        %v5273 = vpop.f32.mrb[0].mxu0
        %v5274 = vpop.f32.mrb[0].mxu0
        %v5275 = vadd.f32 0.0, %v5274
        %v5276 = vpop.f32.mrb[0].mxu0
        %5277 = vmatprep.mubr.bf16.mxu0 0
        %5278 = vmatmul.mubr.bf16.gmra.mrb[0].mxu0 %v4158
        %v5279 = vpop.f32.mrb[0].mxu0
        %v5280 = vadd.f32 0.0, %v5279
        %v5281 = vpop.f32.mrb[0].mxu0
        %v5282 = vpop.f32.mrb[0].mxu0
        %v5283 = vadd.f32 0.0, %v5282
        %v5284 = vpop.f32.mrb[0].mxu0
        %5285 = vmatprep.mubr.bf16.mxu0 0
        %5286 = vmatmul.mubr.bf16.gmra.mrb[0].mxu0 %v4360
        %v5287 = vpop.f32.mrb[0].mxu0
        %v5288 = vadd.f32 0.0, %v5287
        %v5289 = vpop.f32.mrb[0].mxu0
        %v5290 = vpop.f32.mrb[0].mxu0
        %v5291 = vadd.f32 0.0, %v5290
        %v5292 = vpop.f32.mrb[0].mxu0
        %5293 = vmatprep.mubr.bf16.mxu0 0
        %5294 = vmatmul.mubr.bf16.gmra.mrb[0].mxu0 %v4562
        %v5295 = vpop.f32.mrb[0].mxu0
        %v5296 = vadd.f32 0.0, %v5295
        %v5297 = vpop.f32.mrb[0].mxu0
        %v5298 = vpop.f32.mrb[0].mxu0
        %v5299 = vadd.f32 0.0, %v5298
        %v5300 = vpop.f32.mrb[0].mxu0
        %5301 = vmatprep.mubr.bf16.mxu0 0
        %5302 = vmatmul.mubr.bf16.gmra.mrb[0].mxu0 %v4764
        %v5303 = vpop.f32.mrb[0].mxu0
        %v5304 = vadd.f32 0.0, %v5303
        %v5305 = vpop.f32.mrb[0].mxu0
        %v5306 = vpop.f32.mrb[0].mxu0
        %v5307 = vadd.f32 0.0, %v5306
        %v5308 = vpop.f32.mrb[0].mxu0
        %5309 = vmatprep.mubr.bf16.mxu0 0
        %5310 = vmatmul.mubr.bf16.gmra.mrb[0].mxu0 %v4966
        %v5311 = vpop.f32.mrb[0].mxu0
        %v5312 = vadd.f32 0.0, %v5311
        %v5313 = vpop.f32.mrb[0].mxu0
        %v5314 = vpop.f32.mrb[0].mxu0
        %v5315 = vadd.f32 0.0, %v5314
        %v5316 = vpop.f32.mrb[0].mxu0
        %5317 = vmatprep.mubr.bf16.mxu0 0
        %5318 = vmatmul.mubr.bf16.gmra.mrb[0].mxu0 %v5168
        %v5319 = vpop.f32.mrb[0].mxu0
        %v5320 = vadd.f32 0.0, %v5319
        %v5321 = vpop.f32.mrb[0].mxu0
        %v5322 = vpop.f32.mrb[0].mxu0
        %v5323 = vadd.f32 0.0, %v5322
        %v5324 = vpop.f32.mrb[0].mxu0
        %5325 = vdwg.mxu0
        %v5326 = vadd.f32 %v5124, %v5208
        %v5327 = vadd.f32 %v5125, %v5211
        %v5328 = vadd.f32 %v5126, %v5216
        %v5329 = vadd.f32 %v5127, %v5219
        %v5330 = vadd.f32 %v5128, %v5224
        %v5331 = vadd.f32 %v5129, %v5227
        %v5332 = vadd.f32 %v5130, %v5232
        %v5333 = vadd.f32 %v5131, %v5235
        %v5334 = vadd.f32 %v5132, %v5240
        %v5335 = vadd.f32 %v5133, %v5243
        %v5336 = vadd.f32 %v5134, %v5248
        %v5337 = vadd.f32 %v5135, %v5251
        %v5338 = vadd.f32 %v5136, %v5256
        %v5339 = vadd.f32 %v5137, %v5259
        %v5340 = vadd.f32 %v5138, %v5264
        %v5341 = vadd.f32 %v5139, %v5267
        %v5342 = vadd.f32 %v5140, %v5272
        %v5343 = vadd.f32 %v5141, %v5275
        %v5344 = vadd.f32 %v5142, %v5280
        %v5345 = vadd.f32 %v5143, %v5283
        %v5346 = vadd.f32 %v5144, %v5288
        %v5347 = vadd.f32 %v5145, %v5291
        %v5348 = vadd.f32 %v5146, %v5296
        %v5349 = vadd.f32 %v5147, %v5299
        %v5350 = vadd.f32 %v5148, %v5304
        %v5351 = vadd.f32 %v5149, %v5307
        %v5352 = vadd.f32 %v5150, %v5312
        %v5353 = vadd.f32 %v5151, %v5315
        %v5354 = vadd.f32 %v5152, %v5320
        %v5355 = vadd.f32 %v5153, %v5323
        %s5356 = scalar_lea.vmem %s2, 156
        %v5357 = vld [vmem:[%s5356] sm:$0xf]
        %v5358 = vld [vmem:[%s5356 + $0x4] sm:$0xf]
        %v5359 = vld [vmem:[%s5356 + $0x8] sm:$0x3]
        %v5363 = vunpack.c.l.b16 %v5357
        %v5364 = vunpack.c.l.b16 %v5358
        %v5365 = vunpack.c.l.b16 %v5359
        %v5366 = vpack.c.b16 %v5364, %v5363
        %v5367 = vpack.c.b16 %v5365, %v5365
        %v5370 = vsel %vm2763, %v2740, 0
        %v5373 = vsel %vm2809, %v5367, 0
        %5375 = vmatprep.subr.bf16.mxu0 0
        %5376 = vmatpush1.bf16.msra.mxu0 %v5366
        %5377 = vmatprep.subr.bf16.mxu0 0
        %5378 = vmatpush1.bf16.msra.mxu0 %v5373
        %5379 = vmatprep.subr.bf16.mxu0 0
        %5380 = vmatpush1.bf16.msra.mxu0 0
        %5381 = vmatprep.subr.bf16.mxu0 0
        %5382 = vmatpush1.bf16.msra.mxu0 0
        %5383 = vmatprep.subr.bf16.mxu0 0
        %5384 = vmatpush1.bf16.msra.mxu0 0
        %5385 = vmatprep.subr.bf16.mxu0 0
        %5386 = vmatpush1.bf16.msra.mxu0 0
        %5387 = vmatprep.subr.bf16.mxu0 0
        %5388 = vmatpush1.bf16.msra.mxu0 0
        %5389 = vmatprep.subr.bf16.mxu0 0
        %5390 = vmatpush1.bf16.msra.mxu0 0
        %5391 = vmatprep.subr.bf16.mxu0 0
        %5392 = vmatpush1.bf16.msra.mxu0 0
        %5393 = vmatprep.subr.bf16.mxu0 0
        %5394 = vmatpush1.bf16.msra.mxu0 0
        %5395 = vmatprep.subr.bf16.mxu0 0
        %5396 = vmatpush1.bf16.msra.mxu0 0
        %5397 = vmatprep.subr.bf16.mxu0 0
        %5398 = vmatpush1.bf16.msra.mxu0 0
        %5399 = vmatprep.subr.bf16.mxu0 0
        %5400 = vmatpush1.bf16.msra.mxu0 0
        %5401 = vmatprep.subr.bf16.mxu0 0
        %5402 = vmatpush1.bf16.msra.mxu0 0
        %5403 = vmatprep.subr.bf16.mxu0 0
        %5404 = vmatpush1.bf16.msra.mxu0 0
        %5405 = vmatprep.subr.bf16.mxu0 0
        %5406 = vmatpush1.bf16.msra.mxu0 0
        %5407 = vmatprep.mubr.bf16.mxu0 0
        %5408 = vmatmul.mubr.bf16.gmra.mrb[0].mxu0 %v2801
        %v5409 = vpop.f32.mrb[0].mxu0
        %v5410 = vadd.f32 0.0, %v5409
        %v5411 = vpop.f32.mrb[0].mxu0
        %v5412 = vpop.f32.mrb[0].mxu0
        %v5413 = vadd.f32 0.0, %v5412
        %v5414 = vpop.f32.mrb[0].mxu0
        %5415 = vmatprep.mubr.bf16.mxu0 0
        %5416 = vmatmul.mubr.bf16.gmra.mrb[0].mxu0 %v2804
        %v5417 = vpop.f32.mrb[0].mxu0
        %v5418 = vadd.f32 0.0, %v5417
        %v5419 = vpop.f32.mrb[0].mxu0
        %v5420 = vpop.f32.mrb[0].mxu0
        %v5421 = vadd.f32 0.0, %v5420
        %v5422 = vpop.f32.mrb[0].mxu0
        %5423 = vmatprep.mubr.bf16.mxu0 0
        %5424 = vmatmul.mubr.bf16.gmra.mrb[0].mxu0 %v2807
        %v5425 = vpop.f32.mrb[0].mxu0
        %v5426 = vadd.f32 0.0, %v5425
        %v5427 = vpop.f32.mrb[0].mxu0
        %v5428 = vpop.f32.mrb[0].mxu0
        %v5429 = vadd.f32 0.0, %v5428
        %v5430 = vpop.f32.mrb[0].mxu0
        %5431 = vmatprep.mubr.bf16.mxu0 0
        %5432 = vmatmul.mubr.bf16.gmra.mrb[0].mxu0 %v3148
        %v5433 = vpop.f32.mrb[0].mxu0
        %v5434 = vadd.f32 0.0, %v5433
        %v5435 = vpop.f32.mrb[0].mxu0
        %v5436 = vpop.f32.mrb[0].mxu0
        %v5437 = vadd.f32 0.0, %v5436
        %v5438 = vpop.f32.mrb[0].mxu0
        %5439 = vmatprep.mubr.bf16.mxu0 0
        %5440 = vmatmul.mubr.bf16.gmra.mrb[0].mxu0 %v3350
        %v5441 = vpop.f32.mrb[0].mxu0
        %v5442 = vadd.f32 0.0, %v5441
        %v5443 = vpop.f32.mrb[0].mxu0
        %v5444 = vpop.f32.mrb[0].mxu0
        %v5445 = vadd.f32 0.0, %v5444
        %v5446 = vpop.f32.mrb[0].mxu0
        %5447 = vmatprep.mubr.bf16.mxu0 0
        %5448 = vmatmul.mubr.bf16.gmra.mrb[0].mxu0 %v3552
        %v5449 = vpop.f32.mrb[0].mxu0
        %v5450 = vadd.f32 0.0, %v5449
        %v5451 = vpop.f32.mrb[0].mxu0
        %v5452 = vpop.f32.mrb[0].mxu0
        %v5453 = vadd.f32 0.0, %v5452
        %v5454 = vpop.f32.mrb[0].mxu0
        %5455 = vmatprep.mubr.bf16.mxu0 0
        %5456 = vmatmul.mubr.bf16.gmra.mrb[0].mxu0 %v3754
        %v5457 = vpop.f32.mrb[0].mxu0
        %v5458 = vadd.f32 0.0, %v5457
        %v5459 = vpop.f32.mrb[0].mxu0
        %v5460 = vpop.f32.mrb[0].mxu0
        %v5461 = vadd.f32 0.0, %v5460
        %v5462 = vpop.f32.mrb[0].mxu0
        %5463 = vmatprep.mubr.bf16.mxu0 0
        %5464 = vmatmul.mubr.bf16.gmra.mrb[0].mxu0 %v3956
        %v5465 = vpop.f32.mrb[0].mxu0
        %v5466 = vadd.f32 0.0, %v5465
        %v5467 = vpop.f32.mrb[0].mxu0
        %v5468 = vpop.f32.mrb[0].mxu0
        %v5469 = vadd.f32 0.0, %v5468
        %v5470 = vpop.f32.mrb[0].mxu0
        %5471 = vmatprep.mubr.bf16.mxu0 0
        %5472 = vmatmul.mubr.bf16.gmra.mrb[0].mxu0 %v4158
        %v5473 = vpop.f32.mrb[0].mxu0
        %v5474 = vadd.f32 0.0, %v5473
        %v5475 = vpop.f32.mrb[0].mxu0
        %v5476 = vpop.f32.mrb[0].mxu0
        %v5477 = vadd.f32 0.0, %v5476
        %v5478 = vpop.f32.mrb[0].mxu0
        %5479 = vmatprep.mubr.bf16.mxu0 0
        %5480 = vmatmul.mubr.bf16.gmra.mrb[0].mxu0 %v4360
        %v5481 = vpop.f32.mrb[0].mxu0
        %v5482 = vadd.f32 0.0, %v5481
        %v5483 = vpop.f32.mrb[0].mxu0
        %v5484 = vpop.f32.mrb[0].mxu0
        %v5485 = vadd.f32 0.0, %v5484
        %v5486 = vpop.f32.mrb[0].mxu0
        %5487 = vmatprep.mubr.bf16.mxu0 0
        %5488 = vmatmul.mubr.bf16.gmra.mrb[0].mxu0 %v4562
        %v5489 = vpop.f32.mrb[0].mxu0
        %v5490 = vadd.f32 0.0, %v5489
        %v5491 = vpop.f32.mrb[0].mxu0
        %v5492 = vpop.f32.mrb[0].mxu0
        %v5493 = vadd.f32 0.0, %v5492
        %v5494 = vpop.f32.mrb[0].mxu0
        %5495 = vmatprep.mubr.bf16.mxu0 0
        %5496 = vmatmul.mubr.bf16.gmra.mrb[0].mxu0 %v4764
        %v5497 = vpop.f32.mrb[0].mxu0
        %v5498 = vadd.f32 0.0, %v5497
        %v5499 = vpop.f32.mrb[0].mxu0
        %v5500 = vpop.f32.mrb[0].mxu0
        %v5501 = vadd.f32 0.0, %v5500
        %v5502 = vpop.f32.mrb[0].mxu0
        %5503 = vmatprep.mubr.bf16.mxu0 0
        %5504 = vmatmul.mubr.bf16.gmra.mrb[0].mxu0 %v4966
        %v5505 = vpop.f32.mrb[0].mxu0
        %v5506 = vadd.f32 0.0, %v5505
        %v5507 = vpop.f32.mrb[0].mxu0
        %v5508 = vpop.f32.mrb[0].mxu0
        %v5509 = vadd.f32 0.0, %v5508
        %v5510 = vpop.f32.mrb[0].mxu0
        %5511 = vmatprep.mubr.bf16.mxu0 0
        %5512 = vmatmul.mubr.bf16.gmra.mrb[0].mxu0 %v5168
        %v5513 = vpop.f32.mrb[0].mxu0
        %v5514 = vadd.f32 0.0, %v5513
        %v5515 = vpop.f32.mrb[0].mxu0
        %v5516 = vpop.f32.mrb[0].mxu0
        %v5517 = vadd.f32 0.0, %v5516
        %v5518 = vpop.f32.mrb[0].mxu0
        %5519 = vmatprep.mubr.bf16.mxu0 0
        %5520 = vmatmul.mubr.bf16.gmra.mrb[0].mxu0 %v5370
        %v5521 = vpop.f32.mrb[0].mxu0
        %v5522 = vadd.f32 0.0, %v5521
        %v5523 = vpop.f32.mrb[0].mxu0
        %v5524 = vpop.f32.mrb[0].mxu0
        %v5525 = vadd.f32 0.0, %v5524
        %v5526 = vpop.f32.mrb[0].mxu0
        %5527 = vdwg.mxu0
        %v5528 = vadd.f32 %v5326, %v5410
        %v5529 = vadd.f32 %v5327, %v5413
        %v5530 = vadd.f32 %v5328, %v5418
        %v5531 = vadd.f32 %v5329, %v5421
        %v5532 = vadd.f32 %v5330, %v5426
        %v5533 = vadd.f32 %v5331, %v5429
        %v5534 = vadd.f32 %v5332, %v5434
        %v5535 = vadd.f32 %v5333, %v5437
        %v5536 = vadd.f32 %v5334, %v5442
        %v5537 = vadd.f32 %v5335, %v5445
        %v5538 = vadd.f32 %v5336, %v5450
        %v5539 = vadd.f32 %v5337, %v5453
        %v5540 = vadd.f32 %v5338, %v5458
        %v5541 = vadd.f32 %v5339, %v5461
        %v5542 = vadd.f32 %v5340, %v5466
        %v5543 = vadd.f32 %v5341, %v5469
        %v5544 = vadd.f32 %v5342, %v5474
        %v5545 = vadd.f32 %v5343, %v5477
        %v5546 = vadd.f32 %v5344, %v5482
        %v5547 = vadd.f32 %v5345, %v5485
        %v5548 = vadd.f32 %v5346, %v5490
        %v5549 = vadd.f32 %v5347, %v5493
        %v5550 = vadd.f32 %v5348, %v5498
        %v5551 = vadd.f32 %v5349, %v5501
        %v5552 = vadd.f32 %v5350, %v5506
        %v5553 = vadd.f32 %v5351, %v5509
        %v5554 = vadd.f32 %v5352, %v5514
        %v5555 = vadd.f32 %v5353, %v5517
        %v5556 = vadd.f32 %v5354, %v5522
        %v5557 = vadd.f32 %v5355, %v5525
        %s5558 = scalar_lea.vmem %s2, 168
        %v5559 = vld [vmem:[%s5558] sm:$0xf]
        %v5560 = vld [vmem:[%s5558 + $0x4] sm:$0xf]
        %v5561 = vld [vmem:[%s5558 + $0x8] sm:$0x3]
        %v5565 = vunpack.c.l.b16 %v5559
        %v5566 = vunpack.c.l.b16 %v5560
        %v5567 = vunpack.c.l.b16 %v5561
        %v5568 = vpack.c.b16 %v5566, %v5565
        %v5569 = vpack.c.b16 %v5567, %v5567
        %v5572 = vsel %vm2763, %v2741, 0
        %v5575 = vsel %vm2809, %v5569, 0
        %5577 = vmatprep.subr.bf16.mxu0 0
        %5578 = vmatpush1.bf16.msra.mxu0 %v5568
        %5579 = vmatprep.subr.bf16.mxu0 0
        %5580 = vmatpush1.bf16.msra.mxu0 %v5575
        %5581 = vmatprep.subr.bf16.mxu0 0
        %5582 = vmatpush1.bf16.msra.mxu0 0
        %5583 = vmatprep.subr.bf16.mxu0 0
        %5584 = vmatpush1.bf16.msra.mxu0 0
        %5585 = vmatprep.subr.bf16.mxu0 0
        %5586 = vmatpush1.bf16.msra.mxu0 0
        %5587 = vmatprep.subr.bf16.mxu0 0
        %5588 = vmatpush1.bf16.msra.mxu0 0
        %5589 = vmatprep.subr.bf16.mxu0 0
        %5590 = vmatpush1.bf16.msra.mxu0 0
        %5591 = vmatprep.subr.bf16.mxu0 0
        %5592 = vmatpush1.bf16.msra.mxu0 0
        %5593 = vmatprep.subr.bf16.mxu0 0
        %5594 = vmatpush1.bf16.msra.mxu0 0
        %5595 = vmatprep.subr.bf16.mxu0 0
        %5596 = vmatpush1.bf16.msra.mxu0 0
        %5597 = vmatprep.subr.bf16.mxu0 0
        %5598 = vmatpush1.bf16.msra.mxu0 0
        %5599 = vmatprep.subr.bf16.mxu0 0
        %5600 = vmatpush1.bf16.msra.mxu0 0
        %5601 = vmatprep.subr.bf16.mxu0 0
        %5602 = vmatpush1.bf16.msra.mxu0 0
        %5603 = vmatprep.subr.bf16.mxu0 0
        %5604 = vmatpush1.bf16.msra.mxu0 0
        %5605 = vmatprep.subr.bf16.mxu0 0
        %5606 = vmatpush1.bf16.msra.mxu0 0
        %5607 = vmatprep.subr.bf16.mxu0 0
        %5608 = vmatpush1.bf16.msra.mxu0 0
        %5609 = vmatprep.mubr.bf16.mxu0 0
        %5610 = vmatmul.mubr.bf16.gmra.mrb[0].mxu0 %v2804
        %v5611 = vpop.f32.mrb[0].mxu0
        %v5612 = vadd.f32 0.0, %v5611
        %v5613 = vpop.f32.mrb[0].mxu0
        %v5614 = vpop.f32.mrb[0].mxu0
        %v5615 = vadd.f32 0.0, %v5614
        %v5616 = vpop.f32.mrb[0].mxu0
        %5617 = vmatprep.mubr.bf16.mxu0 0
        %5618 = vmatmul.mubr.bf16.gmra.mrb[0].mxu0 %v2807
        %v5619 = vpop.f32.mrb[0].mxu0
        %v5620 = vadd.f32 0.0, %v5619
        %v5621 = vpop.f32.mrb[0].mxu0
        %v5622 = vpop.f32.mrb[0].mxu0
        %v5623 = vadd.f32 0.0, %v5622
        %v5624 = vpop.f32.mrb[0].mxu0
        %5625 = vmatprep.mubr.bf16.mxu0 0
        %5626 = vmatmul.mubr.bf16.gmra.mrb[0].mxu0 %v3148
        %v5627 = vpop.f32.mrb[0].mxu0
        %v5628 = vadd.f32 0.0, %v5627
        %v5629 = vpop.f32.mrb[0].mxu0
        %v5630 = vpop.f32.mrb[0].mxu0
        %v5631 = vadd.f32 0.0, %v5630
        %v5632 = vpop.f32.mrb[0].mxu0
        %5633 = vmatprep.mubr.bf16.mxu0 0
        %5634 = vmatmul.mubr.bf16.gmra.mrb[0].mxu0 %v3350
        %v5635 = vpop.f32.mrb[0].mxu0
        %v5636 = vadd.f32 0.0, %v5635
        %v5637 = vpop.f32.mrb[0].mxu0
        %v5638 = vpop.f32.mrb[0].mxu0
        %v5639 = vadd.f32 0.0, %v5638
        %v5640 = vpop.f32.mrb[0].mxu0
        %5641 = vmatprep.mubr.bf16.mxu0 0
        %5642 = vmatmul.mubr.bf16.gmra.mrb[0].mxu0 %v3552
        %v5643 = vpop.f32.mrb[0].mxu0
        %v5644 = vadd.f32 0.0, %v5643
        %v5645 = vpop.f32.mrb[0].mxu0
        %v5646 = vpop.f32.mrb[0].mxu0
        %v5647 = vadd.f32 0.0, %v5646
        %v5648 = vpop.f32.mrb[0].mxu0
        %5649 = vmatprep.mubr.bf16.mxu0 0
        %5650 = vmatmul.mubr.bf16.gmra.mrb[0].mxu0 %v3754
        %v5651 = vpop.f32.mrb[0].mxu0
        %v5652 = vadd.f32 0.0, %v5651
        %v5653 = vpop.f32.mrb[0].mxu0
        %v5654 = vpop.f32.mrb[0].mxu0
        %v5655 = vadd.f32 0.0, %v5654
        %v5656 = vpop.f32.mrb[0].mxu0
        %5657 = vmatprep.mubr.bf16.mxu0 0
        %5658 = vmatmul.mubr.bf16.gmra.mrb[0].mxu0 %v3956
        %v5659 = vpop.f32.mrb[0].mxu0
        %v5660 = vadd.f32 0.0, %v5659
        %v5661 = vpop.f32.mrb[0].mxu0
        %v5662 = vpop.f32.mrb[0].mxu0
        %v5663 = vadd.f32 0.0, %v5662
        %v5664 = vpop.f32.mrb[0].mxu0
        %5665 = vmatprep.mubr.bf16.mxu0 0
        %5666 = vmatmul.mubr.bf16.gmra.mrb[0].mxu0 %v4158
        %v5667 = vpop.f32.mrb[0].mxu0
        %v5668 = vadd.f32 0.0, %v5667
        %v5669 = vpop.f32.mrb[0].mxu0
        %v5670 = vpop.f32.mrb[0].mxu0
        %v5671 = vadd.f32 0.0, %v5670
        %v5672 = vpop.f32.mrb[0].mxu0
        %5673 = vmatprep.mubr.bf16.mxu0 0
        %5674 = vmatmul.mubr.bf16.gmra.mrb[0].mxu0 %v4360
        %v5675 = vpop.f32.mrb[0].mxu0
        %v5676 = vadd.f32 0.0, %v5675
        %v5677 = vpop.f32.mrb[0].mxu0
        %v5678 = vpop.f32.mrb[0].mxu0
        %v5679 = vadd.f32 0.0, %v5678
        %v5680 = vpop.f32.mrb[0].mxu0
        %5681 = vmatprep.mubr.bf16.mxu0 0
        %5682 = vmatmul.mubr.bf16.gmra.mrb[0].mxu0 %v4562
        %v5683 = vpop.f32.mrb[0].mxu0
        %v5684 = vadd.f32 0.0, %v5683
        %v5685 = vpop.f32.mrb[0].mxu0
        %v5686 = vpop.f32.mrb[0].mxu0
        %v5687 = vadd.f32 0.0, %v5686
        %v5688 = vpop.f32.mrb[0].mxu0
        %5689 = vmatprep.mubr.bf16.mxu0 0
        %5690 = vmatmul.mubr.bf16.gmra.mrb[0].mxu0 %v4764
        %v5691 = vpop.f32.mrb[0].mxu0
        %v5692 = vadd.f32 0.0, %v5691
        %v5693 = vpop.f32.mrb[0].mxu0
        %v5694 = vpop.f32.mrb[0].mxu0
        %v5695 = vadd.f32 0.0, %v5694
        %v5696 = vpop.f32.mrb[0].mxu0
        %5697 = vmatprep.mubr.bf16.mxu0 0
        %5698 = vmatmul.mubr.bf16.gmra.mrb[0].mxu0 %v4966
        %v5699 = vpop.f32.mrb[0].mxu0
        %v5700 = vadd.f32 0.0, %v5699
        %v5701 = vpop.f32.mrb[0].mxu0
        %v5702 = vpop.f32.mrb[0].mxu0
        %v5703 = vadd.f32 0.0, %v5702
        %v5704 = vpop.f32.mrb[0].mxu0
        %5705 = vmatprep.mubr.bf16.mxu0 0
        %5706 = vmatmul.mubr.bf16.gmra.mrb[0].mxu0 %v5168
        %v5707 = vpop.f32.mrb[0].mxu0
        %v5708 = vadd.f32 0.0, %v5707
        %v5709 = vpop.f32.mrb[0].mxu0
        %v5710 = vpop.f32.mrb[0].mxu0
        %v5711 = vadd.f32 0.0, %v5710
        %v5712 = vpop.f32.mrb[0].mxu0
        %5713 = vmatprep.mubr.bf16.mxu0 0
        %5714 = vmatmul.mubr.bf16.gmra.mrb[0].mxu0 %v5370
        %v5715 = vpop.f32.mrb[0].mxu0
        %v5716 = vadd.f32 0.0, %v5715
        %v5717 = vpop.f32.mrb[0].mxu0
        %v5718 = vpop.f32.mrb[0].mxu0
        %v5719 = vadd.f32 0.0, %v5718
        %v5720 = vpop.f32.mrb[0].mxu0
        %5721 = vmatprep.mubr.bf16.mxu0 0
        %5722 = vmatmul.mubr.bf16.gmra.mrb[0].mxu0 %v5572
        %v5723 = vpop.f32.mrb[0].mxu0
        %v5724 = vadd.f32 0.0, %v5723
        %v5725 = vpop.f32.mrb[0].mxu0
        %v5726 = vpop.f32.mrb[0].mxu0
        %v5727 = vadd.f32 0.0, %v5726
        %v5728 = vpop.f32.mrb[0].mxu0
        %5729 = vdwg.mxu0
        %v5730 = vadd.f32 %v5528, %v5612
        %v5731 = vadd.f32 %v5529, %v5615
        %v5732 = vadd.f32 %v5530, %v5620
        %v5733 = vadd.f32 %v5531, %v5623
        %v5734 = vadd.f32 %v5532, %v5628
        %v5735 = vadd.f32 %v5533, %v5631
        %v5736 = vadd.f32 %v5534, %v5636
        %v5737 = vadd.f32 %v5535, %v5639
        %v5738 = vadd.f32 %v5536, %v5644
        %v5739 = vadd.f32 %v5537, %v5647
        %v5740 = vadd.f32 %v5538, %v5652
        %v5741 = vadd.f32 %v5539, %v5655
        %v5742 = vadd.f32 %v5540, %v5660
        %v5743 = vadd.f32 %v5541, %v5663
        %v5744 = vadd.f32 %v5542, %v5668
        %v5745 = vadd.f32 %v5543, %v5671
        %v5746 = vadd.f32 %v5544, %v5676
        %v5747 = vadd.f32 %v5545, %v5679
        %v5748 = vadd.f32 %v5546, %v5684
        %v5749 = vadd.f32 %v5547, %v5687
        %v5750 = vadd.f32 %v5548, %v5692
        %v5751 = vadd.f32 %v5549, %v5695
        %v5752 = vadd.f32 %v5550, %v5700
        %v5753 = vadd.f32 %v5551, %v5703
        %v5754 = vadd.f32 %v5552, %v5708
        %v5755 = vadd.f32 %v5553, %v5711
        %v5756 = vadd.f32 %v5554, %v5716
        %v5757 = vadd.f32 %v5555, %v5719
        %v5758 = vadd.f32 %v5556, %v5724
        %v5759 = vadd.f32 %v5557, %v5727
        %s5760 = scalar_lea.vmem %s2, 180
        %v5761 = vld [vmem:[%s5760] sm:$0xf]
        %v5762 = vld [vmem:[%s5760 + $0x4] sm:$0xf]
        %v5763 = vld [vmem:[%s5760 + $0x8] sm:$0x3]
        %v5767 = vunpack.c.l.b16 %v5761
        %v5768 = vunpack.c.l.b16 %v5762
        %v5769 = vunpack.c.l.b16 %v5763
        %v5770 = vpack.c.b16 %v5768, %v5767
        %v5771 = vpack.c.b16 %v5769, %v5769
        %v5774 = vsel %vm2763, %v2742, 0
        %v5777 = vsel %vm2809, %v5771, 0
        %5779 = vmatprep.subr.bf16.mxu0 0
        %5780 = vmatpush1.bf16.msra.mxu0 %v5770
        %5781 = vmatprep.subr.bf16.mxu0 0
        %5782 = vmatpush1.bf16.msra.mxu0 %v5777
        %5783 = vmatprep.subr.bf16.mxu0 0
        %5784 = vmatpush1.bf16.msra.mxu0 0
        %5785 = vmatprep.subr.bf16.mxu0 0
        %5786 = vmatpush1.bf16.msra.mxu0 0
        %5787 = vmatprep.subr.bf16.mxu0 0
        %5788 = vmatpush1.bf16.msra.mxu0 0
        %5789 = vmatprep.subr.bf16.mxu0 0
        %5790 = vmatpush1.bf16.msra.mxu0 0
        %5791 = vmatprep.subr.bf16.mxu0 0
        %5792 = vmatpush1.bf16.msra.mxu0 0
        %5793 = vmatprep.subr.bf16.mxu0 0
        %5794 = vmatpush1.bf16.msra.mxu0 0
        %5795 = vmatprep.subr.bf16.mxu0 0
        %5796 = vmatpush1.bf16.msra.mxu0 0
        %5797 = vmatprep.subr.bf16.mxu0 0
        %5798 = vmatpush1.bf16.msra.mxu0 0
        %5799 = vmatprep.subr.bf16.mxu0 0
        %5800 = vmatpush1.bf16.msra.mxu0 0
        %5801 = vmatprep.subr.bf16.mxu0 0
        %5802 = vmatpush1.bf16.msra.mxu0 0
        %5803 = vmatprep.subr.bf16.mxu0 0
        %5804 = vmatpush1.bf16.msra.mxu0 0
        %5805 = vmatprep.subr.bf16.mxu0 0
        %5806 = vmatpush1.bf16.msra.mxu0 0
        %5807 = vmatprep.subr.bf16.mxu0 0
        %5808 = vmatpush1.bf16.msra.mxu0 0
        %5809 = vmatprep.subr.bf16.mxu0 0
        %5810 = vmatpush1.bf16.msra.mxu0 0
        %5811 = vmatprep.mubr.bf16.mxu0 0
        %5812 = vmatmul.mubr.bf16.gmra.mrb[0].mxu0 %v2807
        %v5813 = vpop.f32.mrb[0].mxu0
        %v5814 = vadd.f32 0.0, %v5813
        %v5815 = vpop.f32.mrb[0].mxu0
        %v5816 = vpop.f32.mrb[0].mxu0
        %v5817 = vadd.f32 0.0, %v5816
        %v5818 = vpop.f32.mrb[0].mxu0
        %5819 = vmatprep.mubr.bf16.mxu0 0
        %5820 = vmatmul.mubr.bf16.gmra.mrb[0].mxu0 %v3148
        %v5821 = vpop.f32.mrb[0].mxu0
        %v5822 = vadd.f32 0.0, %v5821
        %v5823 = vpop.f32.mrb[0].mxu0
        %v5824 = vpop.f32.mrb[0].mxu0
        %v5825 = vadd.f32 0.0, %v5824
        %v5826 = vpop.f32.mrb[0].mxu0
        %5827 = vmatprep.mubr.bf16.mxu0 0
        %5828 = vmatmul.mubr.bf16.gmra.mrb[0].mxu0 %v3350
        %v5829 = vpop.f32.mrb[0].mxu0
        %v5830 = vadd.f32 0.0, %v5829
        %v5831 = vpop.f32.mrb[0].mxu0
        %v5832 = vpop.f32.mrb[0].mxu0
        %v5833 = vadd.f32 0.0, %v5832
        %v5834 = vpop.f32.mrb[0].mxu0
        %5835 = vmatprep.mubr.bf16.mxu0 0
        %5836 = vmatmul.mubr.bf16.gmra.mrb[0].mxu0 %v3552
        %v5837 = vpop.f32.mrb[0].mxu0
        %v5838 = vadd.f32 0.0, %v5837
        %v5839 = vpop.f32.mrb[0].mxu0
        %v5840 = vpop.f32.mrb[0].mxu0
        %v5841 = vadd.f32 0.0, %v5840
        %v5842 = vpop.f32.mrb[0].mxu0
        %5843 = vmatprep.mubr.bf16.mxu0 0
        %5844 = vmatmul.mubr.bf16.gmra.mrb[0].mxu0 %v3754
        %v5845 = vpop.f32.mrb[0].mxu0
        %v5846 = vadd.f32 0.0, %v5845
        %v5847 = vpop.f32.mrb[0].mxu0
        %v5848 = vpop.f32.mrb[0].mxu0
        %v5849 = vadd.f32 0.0, %v5848
        %v5850 = vpop.f32.mrb[0].mxu0
        %5851 = vmatprep.mubr.bf16.mxu0 0
        %5852 = vmatmul.mubr.bf16.gmra.mrb[0].mxu0 %v3956
        %v5853 = vpop.f32.mrb[0].mxu0
        %v5854 = vadd.f32 0.0, %v5853
        %v5855 = vpop.f32.mrb[0].mxu0
        %v5856 = vpop.f32.mrb[0].mxu0
        %v5857 = vadd.f32 0.0, %v5856
        %v5858 = vpop.f32.mrb[0].mxu0
        %5859 = vmatprep.mubr.bf16.mxu0 0
        %5860 = vmatmul.mubr.bf16.gmra.mrb[0].mxu0 %v4158
        %v5861 = vpop.f32.mrb[0].mxu0
        %v5862 = vadd.f32 0.0, %v5861
        %v5863 = vpop.f32.mrb[0].mxu0
        %v5864 = vpop.f32.mrb[0].mxu0
        %v5865 = vadd.f32 0.0, %v5864
        %v5866 = vpop.f32.mrb[0].mxu0
        %5867 = vmatprep.mubr.bf16.mxu0 0
        %5868 = vmatmul.mubr.bf16.gmra.mrb[0].mxu0 %v4360
        %v5869 = vpop.f32.mrb[0].mxu0
        %v5870 = vadd.f32 0.0, %v5869
        %v5871 = vpop.f32.mrb[0].mxu0
        %v5872 = vpop.f32.mrb[0].mxu0
        %v5873 = vadd.f32 0.0, %v5872
        %v5874 = vpop.f32.mrb[0].mxu0
        %5875 = vmatprep.mubr.bf16.mxu0 0
        %5876 = vmatmul.mubr.bf16.gmra.mrb[0].mxu0 %v4562
        %v5877 = vpop.f32.mrb[0].mxu0
        %v5878 = vadd.f32 0.0, %v5877
        %v5879 = vpop.f32.mrb[0].mxu0
        %v5880 = vpop.f32.mrb[0].mxu0
        %v5881 = vadd.f32 0.0, %v5880
        %v5882 = vpop.f32.mrb[0].mxu0
        %5883 = vmatprep.mubr.bf16.mxu0 0
        %5884 = vmatmul.mubr.bf16.gmra.mrb[0].mxu0 %v4764
        %v5885 = vpop.f32.mrb[0].mxu0
        %v5886 = vadd.f32 0.0, %v5885
        %v5887 = vpop.f32.mrb[0].mxu0
        %v5888 = vpop.f32.mrb[0].mxu0
        %v5889 = vadd.f32 0.0, %v5888
        %v5890 = vpop.f32.mrb[0].mxu0
        %5891 = vmatprep.mubr.bf16.mxu0 0
        %5892 = vmatmul.mubr.bf16.gmra.mrb[0].mxu0 %v4966
        %v5893 = vpop.f32.mrb[0].mxu0
        %v5894 = vadd.f32 0.0, %v5893
        %v5895 = vpop.f32.mrb[0].mxu0
        %v5896 = vpop.f32.mrb[0].mxu0
        %v5897 = vadd.f32 0.0, %v5896
        %v5898 = vpop.f32.mrb[0].mxu0
        %5899 = vmatprep.mubr.bf16.mxu0 0
        %5900 = vmatmul.mubr.bf16.gmra.mrb[0].mxu0 %v5168
        %v5901 = vpop.f32.mrb[0].mxu0
        %v5902 = vadd.f32 0.0, %v5901
        %v5903 = vpop.f32.mrb[0].mxu0
        %v5904 = vpop.f32.mrb[0].mxu0
        %v5905 = vadd.f32 0.0, %v5904
        %v5906 = vpop.f32.mrb[0].mxu0
        %5907 = vmatprep.mubr.bf16.mxu0 0
        %5908 = vmatmul.mubr.bf16.gmra.mrb[0].mxu0 %v5370
        %v5909 = vpop.f32.mrb[0].mxu0
        %v5910 = vadd.f32 0.0, %v5909
        %v5911 = vpop.f32.mrb[0].mxu0
        %v5912 = vpop.f32.mrb[0].mxu0
        %v5913 = vadd.f32 0.0, %v5912
        %v5914 = vpop.f32.mrb[0].mxu0
        %5915 = vmatprep.mubr.bf16.mxu0 0
        %5916 = vmatmul.mubr.bf16.gmra.mrb[0].mxu0 %v5572
        %v5917 = vpop.f32.mrb[0].mxu0
        %v5918 = vadd.f32 0.0, %v5917
        %v5919 = vpop.f32.mrb[0].mxu0
        %v5920 = vpop.f32.mrb[0].mxu0
        %v5921 = vadd.f32 0.0, %v5920
        %v5922 = vpop.f32.mrb[0].mxu0
        %5923 = vmatprep.mubr.bf16.mxu0 0
        %5924 = vmatmul.mubr.bf16.gmra.mrb[0].mxu0 %v5774
        %v5925 = vpop.f32.mrb[0].mxu0
        %v5926 = vadd.f32 0.0, %v5925
        %v5927 = vpop.f32.mrb[0].mxu0
        %v5928 = vpop.f32.mrb[0].mxu0
        %v5929 = vadd.f32 0.0, %v5928
        %v5930 = vpop.f32.mrb[0].mxu0
        %5931 = vdwg.mxu0
        %v5932 = vadd.f32 %v5730, %v5814
        %v5933 = vadd.f32 %v5731, %v5817
        %v5934 = vadd.f32 %v5732, %v5822
        %v5935 = vadd.f32 %v5733, %v5825
        %v5936 = vadd.f32 %v5734, %v5830
        %v5937 = vadd.f32 %v5735, %v5833
        %v5938 = vadd.f32 %v5736, %v5838
        %v5939 = vadd.f32 %v5737, %v5841
        %v5940 = vadd.f32 %v5738, %v5846
        %v5941 = vadd.f32 %v5739, %v5849
        %v5942 = vadd.f32 %v5740, %v5854
        %v5943 = vadd.f32 %v5741, %v5857
        %v5944 = vadd.f32 %v5742, %v5862
        %v5945 = vadd.f32 %v5743, %v5865
        %v5946 = vadd.f32 %v5744, %v5870
        %v5947 = vadd.f32 %v5745, %v5873
        %v5948 = vadd.f32 %v5746, %v5878
        %v5949 = vadd.f32 %v5747, %v5881
        %v5950 = vadd.f32 %v5748, %v5886
        %v5951 = vadd.f32 %v5749, %v5889
        %v5952 = vadd.f32 %v5750, %v5894
        %v5953 = vadd.f32 %v5751, %v5897
        %v5954 = vadd.f32 %v5752, %v5902
        %v5955 = vadd.f32 %v5753, %v5905
        %v5956 = vadd.f32 %v5754, %v5910
        %v5957 = vadd.f32 %v5755, %v5913
        %v5958 = vadd.f32 %v5756, %v5918
        %v5959 = vadd.f32 %v5757, %v5921
        %v5960 = vadd.f32 %v5758, %v5926
        %v5961 = vadd.f32 %v5759, %v5929
        %s5962 = scalar_lea.vmem %s2, 192
        %v5963 = vld [vmem:[%s5962] sm:$0xf]
        %v5964 = vld [vmem:[%s5962 + $0x4] sm:$0xf]
        %v5965 = vld [vmem:[%s5962 + $0x8] sm:$0x3]
        %v5969 = vunpack.c.l.b16 %v5963
        %v5970 = vunpack.c.l.b16 %v5964
        %v5971 = vunpack.c.l.b16 %v5965
        %v5972 = vpack.c.b16 %v5970, %v5969
        %v5973 = vpack.c.b16 %v5971, %v5971
        %v5976 = vsel %vm2763, %v2743, 0
        %v5979 = vsel %vm2809, %v5973, 0
        %5981 = vmatprep.subr.bf16.mxu0 0
        %5982 = vmatpush1.bf16.msra.mxu0 %v5972
        %5983 = vmatprep.subr.bf16.mxu0 0
        %5984 = vmatpush1.bf16.msra.mxu0 %v5979
        %5985 = vmatprep.subr.bf16.mxu0 0
        %5986 = vmatpush1.bf16.msra.mxu0 0
        %5987 = vmatprep.subr.bf16.mxu0 0
        %5988 = vmatpush1.bf16.msra.mxu0 0
        %5989 = vmatprep.subr.bf16.mxu0 0
        %5990 = vmatpush1.bf16.msra.mxu0 0
        %5991 = vmatprep.subr.bf16.mxu0 0
        %5992 = vmatpush1.bf16.msra.mxu0 0
        %5993 = vmatprep.subr.bf16.mxu0 0
        %5994 = vmatpush1.bf16.msra.mxu0 0
        %5995 = vmatprep.subr.bf16.mxu0 0
        %5996 = vmatpush1.bf16.msra.mxu0 0
        %5997 = vmatprep.subr.bf16.mxu0 0
        %5998 = vmatpush1.bf16.msra.mxu0 0
        %5999 = vmatprep.subr.bf16.mxu0 0
        %6000 = vmatpush1.bf16.msra.mxu0 0
        %6001 = vmatprep.subr.bf16.mxu0 0
        %6002 = vmatpush1.bf16.msra.mxu0 0
        %6003 = vmatprep.subr.bf16.mxu0 0
        %6004 = vmatpush1.bf16.msra.mxu0 0
        %6005 = vmatprep.subr.bf16.mxu0 0
        %6006 = vmatpush1.bf16.msra.mxu0 0
        %6007 = vmatprep.subr.bf16.mxu0 0
        %6008 = vmatpush1.bf16.msra.mxu0 0
        %6009 = vmatprep.subr.bf16.mxu0 0
        %6010 = vmatpush1.bf16.msra.mxu0 0
        %6011 = vmatprep.subr.bf16.mxu0 0
        %6012 = vmatpush1.bf16.msra.mxu0 0
        %6013 = vmatprep.mubr.bf16.mxu0 0
        %6014 = vmatmul.mubr.bf16.gmra.mrb[0].mxu0 %v3148
        %v6015 = vpop.f32.mrb[0].mxu0
        %v6016 = vadd.f32 0.0, %v6015
        %v6017 = vpop.f32.mrb[0].mxu0
        %v6018 = vpop.f32.mrb[0].mxu0
        %v6019 = vadd.f32 0.0, %v6018
        %v6020 = vpop.f32.mrb[0].mxu0
        %6021 = vmatprep.mubr.bf16.mxu0 0
        %6022 = vmatmul.mubr.bf16.gmra.mrb[0].mxu0 %v3350
        %v6023 = vpop.f32.mrb[0].mxu0
        %v6024 = vadd.f32 0.0, %v6023
        %v6025 = vpop.f32.mrb[0].mxu0
        %v6026 = vpop.f32.mrb[0].mxu0
        %v6027 = vadd.f32 0.0, %v6026
        %v6028 = vpop.f32.mrb[0].mxu0
        %6029 = vmatprep.mubr.bf16.mxu0 0
        %6030 = vmatmul.mubr.bf16.gmra.mrb[0].mxu0 %v3552
        %v6031 = vpop.f32.mrb[0].mxu0
        %v6032 = vadd.f32 0.0, %v6031
        %v6033 = vpop.f32.mrb[0].mxu0
        %v6034 = vpop.f32.mrb[0].mxu0
        %v6035 = vadd.f32 0.0, %v6034
        %v6036 = vpop.f32.mrb[0].mxu0
        %6037 = vmatprep.mubr.bf16.mxu0 0
        %6038 = vmatmul.mubr.bf16.gmra.mrb[0].mxu0 %v3754
        %v6039 = vpop.f32.mrb[0].mxu0
        %v6040 = vadd.f32 0.0, %v6039
        %v6041 = vpop.f32.mrb[0].mxu0
        %v6042 = vpop.f32.mrb[0].mxu0
        %v6043 = vadd.f32 0.0, %v6042
        %v6044 = vpop.f32.mrb[0].mxu0
        %6045 = vmatprep.mubr.bf16.mxu0 0
        %6046 = vmatmul.mubr.bf16.gmra.mrb[0].mxu0 %v3956
        %v6047 = vpop.f32.mrb[0].mxu0
        %v6048 = vadd.f32 0.0, %v6047
        %v6049 = vpop.f32.mrb[0].mxu0
        %v6050 = vpop.f32.mrb[0].mxu0
        %v6051 = vadd.f32 0.0, %v6050
        %v6052 = vpop.f32.mrb[0].mxu0
        %6053 = vmatprep.mubr.bf16.mxu0 0
        %6054 = vmatmul.mubr.bf16.gmra.mrb[0].mxu0 %v4158
        %v6055 = vpop.f32.mrb[0].mxu0
        %v6056 = vadd.f32 0.0, %v6055
        %v6057 = vpop.f32.mrb[0].mxu0
        %v6058 = vpop.f32.mrb[0].mxu0
        %v6059 = vadd.f32 0.0, %v6058
        %v6060 = vpop.f32.mrb[0].mxu0
        %6061 = vmatprep.mubr.bf16.mxu0 0
        %6062 = vmatmul.mubr.bf16.gmra.mrb[0].mxu0 %v4360
        %v6063 = vpop.f32.mrb[0].mxu0
        %v6064 = vadd.f32 0.0, %v6063
        %v6065 = vpop.f32.mrb[0].mxu0
        %v6066 = vpop.f32.mrb[0].mxu0
        %v6067 = vadd.f32 0.0, %v6066
        %v6068 = vpop.f32.mrb[0].mxu0
        %6069 = vmatprep.mubr.bf16.mxu0 0
        %6070 = vmatmul.mubr.bf16.gmra.mrb[0].mxu0 %v4562
        %v6071 = vpop.f32.mrb[0].mxu0
        %v6072 = vadd.f32 0.0, %v6071
        %v6073 = vpop.f32.mrb[0].mxu0
        %v6074 = vpop.f32.mrb[0].mxu0
        %v6075 = vadd.f32 0.0, %v6074
        %v6076 = vpop.f32.mrb[0].mxu0
        %6077 = vmatprep.mubr.bf16.mxu0 0
        %6078 = vmatmul.mubr.bf16.gmra.mrb[0].mxu0 %v4764
        %v6079 = vpop.f32.mrb[0].mxu0
        %v6080 = vadd.f32 0.0, %v6079
        %v6081 = vpop.f32.mrb[0].mxu0
        %v6082 = vpop.f32.mrb[0].mxu0
        %v6083 = vadd.f32 0.0, %v6082
        %v6084 = vpop.f32.mrb[0].mxu0
        %6085 = vmatprep.mubr.bf16.mxu0 0
        %6086 = vmatmul.mubr.bf16.gmra.mrb[0].mxu0 %v4966
        %v6087 = vpop.f32.mrb[0].mxu0
        %v6088 = vadd.f32 0.0, %v6087
        %v6089 = vpop.f32.mrb[0].mxu0
        %v6090 = vpop.f32.mrb[0].mxu0
        %v6091 = vadd.f32 0.0, %v6090
        %v6092 = vpop.f32.mrb[0].mxu0
        %6093 = vmatprep.mubr.bf16.mxu0 0
        %6094 = vmatmul.mubr.bf16.gmra.mrb[0].mxu0 %v5168
        %v6095 = vpop.f32.mrb[0].mxu0
        %v6096 = vadd.f32 0.0, %v6095
        %v6097 = vpop.f32.mrb[0].mxu0
        %v6098 = vpop.f32.mrb[0].mxu0
        %v6099 = vadd.f32 0.0, %v6098
        %v6100 = vpop.f32.mrb[0].mxu0
        %6101 = vmatprep.mubr.bf16.mxu0 0
        %6102 = vmatmul.mubr.bf16.gmra.mrb[0].mxu0 %v5370
        %v6103 = vpop.f32.mrb[0].mxu0
        %v6104 = vadd.f32 0.0, %v6103
        %v6105 = vpop.f32.mrb[0].mxu0
        %v6106 = vpop.f32.mrb[0].mxu0
        %v6107 = vadd.f32 0.0, %v6106
        %v6108 = vpop.f32.mrb[0].mxu0
        %6109 = vmatprep.mubr.bf16.mxu0 0
        %6110 = vmatmul.mubr.bf16.gmra.mrb[0].mxu0 %v5572
        %v6111 = vpop.f32.mrb[0].mxu0
        %v6112 = vadd.f32 0.0, %v6111
        %v6113 = vpop.f32.mrb[0].mxu0
        %v6114 = vpop.f32.mrb[0].mxu0
        %v6115 = vadd.f32 0.0, %v6114
        %v6116 = vpop.f32.mrb[0].mxu0
        %6117 = vmatprep.mubr.bf16.mxu0 0
        %6118 = vmatmul.mubr.bf16.gmra.mrb[0].mxu0 %v5774
        %v6119 = vpop.f32.mrb[0].mxu0
        %v6120 = vadd.f32 0.0, %v6119
        %v6121 = vpop.f32.mrb[0].mxu0
        %v6122 = vpop.f32.mrb[0].mxu0
        %v6123 = vadd.f32 0.0, %v6122
        %v6124 = vpop.f32.mrb[0].mxu0
        %6125 = vmatprep.mubr.bf16.mxu0 0
        %6126 = vmatmul.mubr.bf16.gmra.mrb[0].mxu0 %v5976
        %v6127 = vpop.f32.mrb[0].mxu0
        %v6128 = vadd.f32 0.0, %v6127
        %v6129 = vpop.f32.mrb[0].mxu0
        %v6130 = vpop.f32.mrb[0].mxu0
        %v6131 = vadd.f32 0.0, %v6130
        %v6132 = vpop.f32.mrb[0].mxu0
        %6133 = vdwg.mxu0
        %v6134 = vadd.f32 %v5932, %v6016
        %v6135 = vadd.f32 %v5933, %v6019
        %v6136 = vadd.f32 %v5934, %v6024
        %v6137 = vadd.f32 %v5935, %v6027
        %v6138 = vadd.f32 %v5936, %v6032
        %v6139 = vadd.f32 %v5937, %v6035
        %v6140 = vadd.f32 %v5938, %v6040
        %v6141 = vadd.f32 %v5939, %v6043
        %v6142 = vadd.f32 %v5940, %v6048
        %v6143 = vadd.f32 %v5941, %v6051
        %v6144 = vadd.f32 %v5942, %v6056
        %v6145 = vadd.f32 %v5943, %v6059
        %v6146 = vadd.f32 %v5944, %v6064
        %v6147 = vadd.f32 %v5945, %v6067
        %v6148 = vadd.f32 %v5946, %v6072
        %v6149 = vadd.f32 %v5947, %v6075
        %v6150 = vadd.f32 %v5948, %v6080
        %v6151 = vadd.f32 %v5949, %v6083
        %v6152 = vadd.f32 %v5950, %v6088
        %v6153 = vadd.f32 %v5951, %v6091
        %v6154 = vadd.f32 %v5952, %v6096
        %v6155 = vadd.f32 %v5953, %v6099
        %v6156 = vadd.f32 %v5954, %v6104
        %v6157 = vadd.f32 %v5955, %v6107
        %v6158 = vadd.f32 %v5956, %v6112
        %v6159 = vadd.f32 %v5957, %v6115
        %v6160 = vadd.f32 %v5958, %v6120
        %v6161 = vadd.f32 %v5959, %v6123
        %v6162 = vadd.f32 %v5960, %v6128
        %v6163 = vadd.f32 %v5961, %v6131
        %s6164 = scalar_lea.vmem %s2, 204
        %v6165 = vld [vmem:[%s6164] sm:$0xf]
        %v6166 = vld [vmem:[%s6164 + $0x4] sm:$0xf]
        %v6167 = vld [vmem:[%s6164 + $0x8] sm:$0x3]
        %v6171 = vunpack.c.l.b16 %v6165
        %v6172 = vunpack.c.l.b16 %v6166
        %v6173 = vunpack.c.l.b16 %v6167
        %v6174 = vpack.c.b16 %v6172, %v6171
        %v6175 = vpack.c.b16 %v6173, %v6173
        %v6178 = vsel %vm2763, %v2744, 0
        %v6181 = vsel %vm2809, %v6175, 0
        %6183 = vmatprep.subr.bf16.mxu0 0
        %6184 = vmatpush1.bf16.msra.mxu0 %v6174
        %6185 = vmatprep.subr.bf16.mxu0 0
        %6186 = vmatpush1.bf16.msra.mxu0 %v6181
        %6187 = vmatprep.subr.bf16.mxu0 0
        %6188 = vmatpush1.bf16.msra.mxu0 0
        %6189 = vmatprep.subr.bf16.mxu0 0
        %6190 = vmatpush1.bf16.msra.mxu0 0
        %6191 = vmatprep.subr.bf16.mxu0 0
        %6192 = vmatpush1.bf16.msra.mxu0 0
        %6193 = vmatprep.subr.bf16.mxu0 0
        %6194 = vmatpush1.bf16.msra.mxu0 0
        %6195 = vmatprep.subr.bf16.mxu0 0
        %6196 = vmatpush1.bf16.msra.mxu0 0
        %6197 = vmatprep.subr.bf16.mxu0 0
        %6198 = vmatpush1.bf16.msra.mxu0 0
        %6199 = vmatprep.subr.bf16.mxu0 0
        %6200 = vmatpush1.bf16.msra.mxu0 0
        %6201 = vmatprep.subr.bf16.mxu0 0
        %6202 = vmatpush1.bf16.msra.mxu0 0
        %6203 = vmatprep.subr.bf16.mxu0 0
        %6204 = vmatpush1.bf16.msra.mxu0 0
        %6205 = vmatprep.subr.bf16.mxu0 0
        %6206 = vmatpush1.bf16.msra.mxu0 0
        %6207 = vmatprep.subr.bf16.mxu0 0
        %6208 = vmatpush1.bf16.msra.mxu0 0
        %6209 = vmatprep.subr.bf16.mxu0 0
        %6210 = vmatpush1.bf16.msra.mxu0 0
        %6211 = vmatprep.subr.bf16.mxu0 0
        %6212 = vmatpush1.bf16.msra.mxu0 0
        %6213 = vmatprep.subr.bf16.mxu0 0
        %6214 = vmatpush1.bf16.msra.mxu0 0
        %6215 = vmatprep.mubr.bf16.mxu0 0
        %6216 = vmatmul.mubr.bf16.gmra.mrb[0].mxu0 %v3350
        %v6217 = vpop.f32.mrb[0].mxu0
        %v6218 = vadd.f32 0.0, %v6217
        %v6219 = vpop.f32.mrb[0].mxu0
        %v6220 = vpop.f32.mrb[0].mxu0
        %v6221 = vadd.f32 0.0, %v6220
        %v6222 = vpop.f32.mrb[0].mxu0
        %6223 = vmatprep.mubr.bf16.mxu0 0
        %6224 = vmatmul.mubr.bf16.gmra.mrb[0].mxu0 %v3552
        %v6225 = vpop.f32.mrb[0].mxu0
        %v6226 = vadd.f32 0.0, %v6225
        %v6227 = vpop.f32.mrb[0].mxu0
        %v6228 = vpop.f32.mrb[0].mxu0
        %v6229 = vadd.f32 0.0, %v6228
        %v6230 = vpop.f32.mrb[0].mxu0
        %6231 = vmatprep.mubr.bf16.mxu0 0
        %6232 = vmatmul.mubr.bf16.gmra.mrb[0].mxu0 %v3754
        %v6233 = vpop.f32.mrb[0].mxu0
        %v6234 = vadd.f32 0.0, %v6233
        %v6235 = vpop.f32.mrb[0].mxu0
        %v6236 = vpop.f32.mrb[0].mxu0
        %v6237 = vadd.f32 0.0, %v6236
        %v6238 = vpop.f32.mrb[0].mxu0
        %6239 = vmatprep.mubr.bf16.mxu0 0
        %6240 = vmatmul.mubr.bf16.gmra.mrb[0].mxu0 %v3956
        %v6241 = vpop.f32.mrb[0].mxu0
        %v6242 = vadd.f32 0.0, %v6241
        %v6243 = vpop.f32.mrb[0].mxu0
        %v6244 = vpop.f32.mrb[0].mxu0
        %v6245 = vadd.f32 0.0, %v6244
        %v6246 = vpop.f32.mrb[0].mxu0
        %6247 = vmatprep.mubr.bf16.mxu0 0
        %6248 = vmatmul.mubr.bf16.gmra.mrb[0].mxu0 %v4158
        %v6249 = vpop.f32.mrb[0].mxu0
        %v6250 = vadd.f32 0.0, %v6249
        %v6251 = vpop.f32.mrb[0].mxu0
        %v6252 = vpop.f32.mrb[0].mxu0
        %v6253 = vadd.f32 0.0, %v6252
        %v6254 = vpop.f32.mrb[0].mxu0
        %6255 = vmatprep.mubr.bf16.mxu0 0
        %6256 = vmatmul.mubr.bf16.gmra.mrb[0].mxu0 %v4360
        %v6257 = vpop.f32.mrb[0].mxu0
        %v6258 = vadd.f32 0.0, %v6257
        %v6259 = vpop.f32.mrb[0].mxu0
        %v6260 = vpop.f32.mrb[0].mxu0
        %v6261 = vadd.f32 0.0, %v6260
        %v6262 = vpop.f32.mrb[0].mxu0
        %6263 = vmatprep.mubr.bf16.mxu0 0
        %6264 = vmatmul.mubr.bf16.gmra.mrb[0].mxu0 %v4562
        %v6265 = vpop.f32.mrb[0].mxu0
        %v6266 = vadd.f32 0.0, %v6265
        %v6267 = vpop.f32.mrb[0].mxu0
        %v6268 = vpop.f32.mrb[0].mxu0
        %v6269 = vadd.f32 0.0, %v6268
        %v6270 = vpop.f32.mrb[0].mxu0
        %6271 = vmatprep.mubr.bf16.mxu0 0
        %6272 = vmatmul.mubr.bf16.gmra.mrb[0].mxu0 %v4764
        %v6273 = vpop.f32.mrb[0].mxu0
        %v6274 = vadd.f32 0.0, %v6273
        %v6275 = vpop.f32.mrb[0].mxu0
        %v6276 = vpop.f32.mrb[0].mxu0
        %v6277 = vadd.f32 0.0, %v6276
        %v6278 = vpop.f32.mrb[0].mxu0
        %6279 = vmatprep.mubr.bf16.mxu0 0
        %6280 = vmatmul.mubr.bf16.gmra.mrb[0].mxu0 %v4966
        %v6281 = vpop.f32.mrb[0].mxu0
        %v6282 = vadd.f32 0.0, %v6281
        %v6283 = vpop.f32.mrb[0].mxu0
        %v6284 = vpop.f32.mrb[0].mxu0
        %v6285 = vadd.f32 0.0, %v6284
        %v6286 = vpop.f32.mrb[0].mxu0
        %6287 = vmatprep.mubr.bf16.mxu0 0
        %6288 = vmatmul.mubr.bf16.gmra.mrb[0].mxu0 %v5168
        %v6289 = vpop.f32.mrb[0].mxu0
        %v6290 = vadd.f32 0.0, %v6289
        %v6291 = vpop.f32.mrb[0].mxu0
        %v6292 = vpop.f32.mrb[0].mxu0
        %v6293 = vadd.f32 0.0, %v6292
        %v6294 = vpop.f32.mrb[0].mxu0
        %6295 = vmatprep.mubr.bf16.mxu0 0
        %6296 = vmatmul.mubr.bf16.gmra.mrb[0].mxu0 %v5370
        %v6297 = vpop.f32.mrb[0].mxu0
        %v6298 = vadd.f32 0.0, %v6297
        %v6299 = vpop.f32.mrb[0].mxu0
        %v6300 = vpop.f32.mrb[0].mxu0
        %v6301 = vadd.f32 0.0, %v6300
        %v6302 = vpop.f32.mrb[0].mxu0
        %6303 = vmatprep.mubr.bf16.mxu0 0
        %6304 = vmatmul.mubr.bf16.gmra.mrb[0].mxu0 %v5572
        %v6305 = vpop.f32.mrb[0].mxu0
        %v6306 = vadd.f32 0.0, %v6305
        %v6307 = vpop.f32.mrb[0].mxu0
        %v6308 = vpop.f32.mrb[0].mxu0
        %v6309 = vadd.f32 0.0, %v6308
        %v6310 = vpop.f32.mrb[0].mxu0
        %6311 = vmatprep.mubr.bf16.mxu0 0
        %6312 = vmatmul.mubr.bf16.gmra.mrb[0].mxu0 %v5774
        %v6313 = vpop.f32.mrb[0].mxu0
        %v6314 = vadd.f32 0.0, %v6313
        %v6315 = vpop.f32.mrb[0].mxu0
        %v6316 = vpop.f32.mrb[0].mxu0
        %v6317 = vadd.f32 0.0, %v6316
        %v6318 = vpop.f32.mrb[0].mxu0
        %6319 = vmatprep.mubr.bf16.mxu0 0
        %6320 = vmatmul.mubr.bf16.gmra.mrb[0].mxu0 %v5976
        %v6321 = vpop.f32.mrb[0].mxu0
        %v6322 = vadd.f32 0.0, %v6321
        %v6323 = vpop.f32.mrb[0].mxu0
        %v6324 = vpop.f32.mrb[0].mxu0
        %v6325 = vadd.f32 0.0, %v6324
        %v6326 = vpop.f32.mrb[0].mxu0
        %6327 = vmatprep.mubr.bf16.mxu0 0
        %6328 = vmatmul.mubr.bf16.gmra.mrb[0].mxu0 %v6178
        %v6329 = vpop.f32.mrb[0].mxu0
        %v6330 = vadd.f32 0.0, %v6329
        %v6331 = vpop.f32.mrb[0].mxu0
        %v6332 = vpop.f32.mrb[0].mxu0
        %v6333 = vadd.f32 0.0, %v6332
        %v6334 = vpop.f32.mrb[0].mxu0
        %6335 = vdwg.mxu0
        %v6336 = vadd.f32 %v6134, %v6218
        %v6337 = vadd.f32 %v6135, %v6221
        %v6338 = vadd.f32 %v6136, %v6226
        %v6339 = vadd.f32 %v6137, %v6229
        %v6340 = vadd.f32 %v6138, %v6234
        %v6341 = vadd.f32 %v6139, %v6237
        %v6342 = vadd.f32 %v6140, %v6242
        %v6343 = vadd.f32 %v6141, %v6245
        %v6344 = vadd.f32 %v6142, %v6250
        %v6345 = vadd.f32 %v6143, %v6253
        %v6346 = vadd.f32 %v6144, %v6258
        %v6347 = vadd.f32 %v6145, %v6261
        %v6348 = vadd.f32 %v6146, %v6266
        %v6349 = vadd.f32 %v6147, %v6269
        %v6350 = vadd.f32 %v6148, %v6274
        %v6351 = vadd.f32 %v6149, %v6277
        %v6352 = vadd.f32 %v6150, %v6282
        %v6353 = vadd.f32 %v6151, %v6285
        %v6354 = vadd.f32 %v6152, %v6290
        %v6355 = vadd.f32 %v6153, %v6293
        %v6356 = vadd.f32 %v6154, %v6298
        %v6357 = vadd.f32 %v6155, %v6301
        %v6358 = vadd.f32 %v6156, %v6306
        %v6359 = vadd.f32 %v6157, %v6309
        %v6360 = vadd.f32 %v6158, %v6314
        %v6361 = vadd.f32 %v6159, %v6317
        %v6362 = vadd.f32 %v6160, %v6322
        %v6363 = vadd.f32 %v6161, %v6325
        %v6364 = vadd.f32 %v6162, %v6330
        %v6365 = vadd.f32 %v6163, %v6333
        %s6366 = scalar_lea.vmem %s2, 216
        %v6367 = vld [vmem:[%s6366] sm:$0xf]
        %v6368 = vld [vmem:[%s6366 + $0x4] sm:$0xf]
        %v6369 = vld [vmem:[%s6366 + $0x8] sm:$0x3]
        %v6373 = vunpack.c.l.b16 %v6367
        %v6374 = vunpack.c.l.b16 %v6368
        %v6375 = vunpack.c.l.b16 %v6369
        %v6376 = vpack.c.b16 %v6374, %v6373
        %v6377 = vpack.c.b16 %v6375, %v6375
        %v6380 = vsel %vm2763, %v2745, 0
        %v6383 = vsel %vm2809, %v6377, 0
        %6385 = vmatprep.subr.bf16.mxu0 0
        %6386 = vmatpush1.bf16.msra.mxu0 %v6376
        %6387 = vmatprep.subr.bf16.mxu0 0
        %6388 = vmatpush1.bf16.msra.mxu0 %v6383
        %6389 = vmatprep.subr.bf16.mxu0 0
        %6390 = vmatpush1.bf16.msra.mxu0 0
        %6391 = vmatprep.subr.bf16.mxu0 0
        %6392 = vmatpush1.bf16.msra.mxu0 0
        %6393 = vmatprep.subr.bf16.mxu0 0
        %6394 = vmatpush1.bf16.msra.mxu0 0
        %6395 = vmatprep.subr.bf16.mxu0 0
        %6396 = vmatpush1.bf16.msra.mxu0 0
        %6397 = vmatprep.subr.bf16.mxu0 0
        %6398 = vmatpush1.bf16.msra.mxu0 0
        %6399 = vmatprep.subr.bf16.mxu0 0
        %6400 = vmatpush1.bf16.msra.mxu0 0
        %6401 = vmatprep.subr.bf16.mxu0 0
        %6402 = vmatpush1.bf16.msra.mxu0 0
        %6403 = vmatprep.subr.bf16.mxu0 0
        %6404 = vmatpush1.bf16.msra.mxu0 0
        %6405 = vmatprep.subr.bf16.mxu0 0
        %6406 = vmatpush1.bf16.msra.mxu0 0
        %6407 = vmatprep.subr.bf16.mxu0 0
        %6408 = vmatpush1.bf16.msra.mxu0 0
        %6409 = vmatprep.subr.bf16.mxu0 0
        %6410 = vmatpush1.bf16.msra.mxu0 0
        %6411 = vmatprep.subr.bf16.mxu0 0
        %6412 = vmatpush1.bf16.msra.mxu0 0
        %6413 = vmatprep.subr.bf16.mxu0 0
        %6414 = vmatpush1.bf16.msra.mxu0 0
        %6415 = vmatprep.subr.bf16.mxu0 0
        %6416 = vmatpush1.bf16.msra.mxu0 0
        %6417 = vmatprep.mubr.bf16.mxu0 0
        %6418 = vmatmul.mubr.bf16.gmra.mrb[0].mxu0 %v3552
        %v6419 = vpop.f32.mrb[0].mxu0
        %v6420 = vadd.f32 0.0, %v6419
        %v6421 = vpop.f32.mrb[0].mxu0
        %v6422 = vpop.f32.mrb[0].mxu0
        %v6423 = vadd.f32 0.0, %v6422
        %v6424 = vpop.f32.mrb[0].mxu0
        %6425 = vmatprep.mubr.bf16.mxu0 0
        %6426 = vmatmul.mubr.bf16.gmra.mrb[0].mxu0 %v3754
        %v6427 = vpop.f32.mrb[0].mxu0
        %v6428 = vadd.f32 0.0, %v6427
        %v6429 = vpop.f32.mrb[0].mxu0
        %v6430 = vpop.f32.mrb[0].mxu0
        %v6431 = vadd.f32 0.0, %v6430
        %v6432 = vpop.f32.mrb[0].mxu0
        %6433 = vmatprep.mubr.bf16.mxu0 0
        %6434 = vmatmul.mubr.bf16.gmra.mrb[0].mxu0 %v3956
        %v6435 = vpop.f32.mrb[0].mxu0
        %v6436 = vadd.f32 0.0, %v6435
        %v6437 = vpop.f32.mrb[0].mxu0
        %v6438 = vpop.f32.mrb[0].mxu0
        %v6439 = vadd.f32 0.0, %v6438
        %v6440 = vpop.f32.mrb[0].mxu0
        %6441 = vmatprep.mubr.bf16.mxu0 0
        %6442 = vmatmul.mubr.bf16.gmra.mrb[0].mxu0 %v4158
        %v6443 = vpop.f32.mrb[0].mxu0
        %v6444 = vadd.f32 0.0, %v6443
        %v6445 = vpop.f32.mrb[0].mxu0
        %v6446 = vpop.f32.mrb[0].mxu0
        %v6447 = vadd.f32 0.0, %v6446
        %v6448 = vpop.f32.mrb[0].mxu0
        %6449 = vmatprep.mubr.bf16.mxu0 0
        %6450 = vmatmul.mubr.bf16.gmra.mrb[0].mxu0 %v4360
        %v6451 = vpop.f32.mrb[0].mxu0
        %v6452 = vadd.f32 0.0, %v6451
        %v6453 = vpop.f32.mrb[0].mxu0
        %v6454 = vpop.f32.mrb[0].mxu0
        %v6455 = vadd.f32 0.0, %v6454
        %v6456 = vpop.f32.mrb[0].mxu0
        %6457 = vmatprep.mubr.bf16.mxu0 0
        %6458 = vmatmul.mubr.bf16.gmra.mrb[0].mxu0 %v4562
        %v6459 = vpop.f32.mrb[0].mxu0
        %v6460 = vadd.f32 0.0, %v6459
        %v6461 = vpop.f32.mrb[0].mxu0
        %v6462 = vpop.f32.mrb[0].mxu0
        %v6463 = vadd.f32 0.0, %v6462
        %v6464 = vpop.f32.mrb[0].mxu0
        %6465 = vmatprep.mubr.bf16.mxu0 0
        %6466 = vmatmul.mubr.bf16.gmra.mrb[0].mxu0 %v4764
        %v6467 = vpop.f32.mrb[0].mxu0
        %v6468 = vadd.f32 0.0, %v6467
        %v6469 = vpop.f32.mrb[0].mxu0
        %v6470 = vpop.f32.mrb[0].mxu0
        %v6471 = vadd.f32 0.0, %v6470
        %v6472 = vpop.f32.mrb[0].mxu0
        %6473 = vmatprep.mubr.bf16.mxu0 0
        %6474 = vmatmul.mubr.bf16.gmra.mrb[0].mxu0 %v4966
        %v6475 = vpop.f32.mrb[0].mxu0
        %v6476 = vadd.f32 0.0, %v6475
        %v6477 = vpop.f32.mrb[0].mxu0
        %v6478 = vpop.f32.mrb[0].mxu0
        %v6479 = vadd.f32 0.0, %v6478
        %v6480 = vpop.f32.mrb[0].mxu0
        %6481 = vmatprep.mubr.bf16.mxu0 0
        %6482 = vmatmul.mubr.bf16.gmra.mrb[0].mxu0 %v5168
        %v6483 = vpop.f32.mrb[0].mxu0
        %v6484 = vadd.f32 0.0, %v6483
        %v6485 = vpop.f32.mrb[0].mxu0
        %v6486 = vpop.f32.mrb[0].mxu0
        %v6487 = vadd.f32 0.0, %v6486
        %v6488 = vpop.f32.mrb[0].mxu0
        %6489 = vmatprep.mubr.bf16.mxu0 0
        %6490 = vmatmul.mubr.bf16.gmra.mrb[0].mxu0 %v5370
        %v6491 = vpop.f32.mrb[0].mxu0
        %v6492 = vadd.f32 0.0, %v6491
        %v6493 = vpop.f32.mrb[0].mxu0
        %v6494 = vpop.f32.mrb[0].mxu0
        %v6495 = vadd.f32 0.0, %v6494
        %v6496 = vpop.f32.mrb[0].mxu0
        %6497 = vmatprep.mubr.bf16.mxu0 0
        %6498 = vmatmul.mubr.bf16.gmra.mrb[0].mxu0 %v5572
        %v6499 = vpop.f32.mrb[0].mxu0
        %v6500 = vadd.f32 0.0, %v6499
        %v6501 = vpop.f32.mrb[0].mxu0
        %v6502 = vpop.f32.mrb[0].mxu0
        %v6503 = vadd.f32 0.0, %v6502
        %v6504 = vpop.f32.mrb[0].mxu0
        %6505 = vmatprep.mubr.bf16.mxu0 0
        %6506 = vmatmul.mubr.bf16.gmra.mrb[0].mxu0 %v5774
        %v6507 = vpop.f32.mrb[0].mxu0
        %v6508 = vadd.f32 0.0, %v6507
        %v6509 = vpop.f32.mrb[0].mxu0
        %v6510 = vpop.f32.mrb[0].mxu0
        %v6511 = vadd.f32 0.0, %v6510
        %v6512 = vpop.f32.mrb[0].mxu0
        %6513 = vmatprep.mubr.bf16.mxu0 0
        %6514 = vmatmul.mubr.bf16.gmra.mrb[0].mxu0 %v5976
        %v6515 = vpop.f32.mrb[0].mxu0
        %v6516 = vadd.f32 0.0, %v6515
        %v6517 = vpop.f32.mrb[0].mxu0
        %v6518 = vpop.f32.mrb[0].mxu0
        %v6519 = vadd.f32 0.0, %v6518
        %v6520 = vpop.f32.mrb[0].mxu0
        %6521 = vmatprep.mubr.bf16.mxu0 0
        %6522 = vmatmul.mubr.bf16.gmra.mrb[0].mxu0 %v6178
        %v6523 = vpop.f32.mrb[0].mxu0
        %v6524 = vadd.f32 0.0, %v6523
        %v6525 = vpop.f32.mrb[0].mxu0
        %v6526 = vpop.f32.mrb[0].mxu0
        %v6527 = vadd.f32 0.0, %v6526
        %v6528 = vpop.f32.mrb[0].mxu0
        %6529 = vmatprep.mubr.bf16.mxu0 0
        %6530 = vmatmul.mubr.bf16.gmra.mrb[0].mxu0 %v6380
        %v6531 = vpop.f32.mrb[0].mxu0
        %v6532 = vadd.f32 0.0, %v6531
        %v6533 = vpop.f32.mrb[0].mxu0
        %v6534 = vpop.f32.mrb[0].mxu0
        %v6535 = vadd.f32 0.0, %v6534
        %v6536 = vpop.f32.mrb[0].mxu0
        %6537 = vdwg.mxu0
        %v6538 = vadd.f32 %v6336, %v6420
        %v6539 = vadd.f32 %v6337, %v6423
        %v6540 = vadd.f32 %v6338, %v6428
        %v6541 = vadd.f32 %v6339, %v6431
        %v6542 = vadd.f32 %v6340, %v6436
        %v6543 = vadd.f32 %v6341, %v6439
        %v6544 = vadd.f32 %v6342, %v6444
        %v6545 = vadd.f32 %v6343, %v6447
        %v6546 = vadd.f32 %v6344, %v6452
        %v6547 = vadd.f32 %v6345, %v6455
        %v6548 = vadd.f32 %v6346, %v6460
        %v6549 = vadd.f32 %v6347, %v6463
        %v6550 = vadd.f32 %v6348, %v6468
        %v6551 = vadd.f32 %v6349, %v6471
        %v6552 = vadd.f32 %v6350, %v6476
        %v6553 = vadd.f32 %v6351, %v6479
        %v6554 = vadd.f32 %v6352, %v6484
        %v6555 = vadd.f32 %v6353, %v6487
        %v6556 = vadd.f32 %v6354, %v6492
        %v6557 = vadd.f32 %v6355, %v6495
        %v6558 = vadd.f32 %v6356, %v6500
        %v6559 = vadd.f32 %v6357, %v6503
        %v6560 = vadd.f32 %v6358, %v6508
        %v6561 = vadd.f32 %v6359, %v6511
        %v6562 = vadd.f32 %v6360, %v6516
        %v6563 = vadd.f32 %v6361, %v6519
        %v6564 = vadd.f32 %v6362, %v6524
        %v6565 = vadd.f32 %v6363, %v6527
        %v6566 = vadd.f32 %v6364, %v6532
        %v6567 = vadd.f32 %v6365, %v6535
        %s6568 = scalar_lea.vmem %s2, 228
        %v6569 = vld [vmem:[%s6568] sm:$0xf]
        %v6570 = vld [vmem:[%s6568 + $0x4] sm:$0xf]
        %v6571 = vld [vmem:[%s6568 + $0x8] sm:$0x3]
        %v6575 = vunpack.c.l.b16 %v6569
        %v6576 = vunpack.c.l.b16 %v6570
        %v6577 = vunpack.c.l.b16 %v6571
        %v6578 = vpack.c.b16 %v6576, %v6575
        %v6579 = vpack.c.b16 %v6577, %v6577
        %v6582 = vsel %vm2763, %v2746, 0
        %v6585 = vsel %vm2809, %v6579, 0
        %6587 = vmatprep.subr.bf16.mxu0 0
        %6588 = vmatpush1.bf16.msra.mxu0 %v6578
        %6589 = vmatprep.subr.bf16.mxu0 0
        %6590 = vmatpush1.bf16.msra.mxu0 %v6585
        %6591 = vmatprep.subr.bf16.mxu0 0
        %6592 = vmatpush1.bf16.msra.mxu0 0
        %6593 = vmatprep.subr.bf16.mxu0 0
        %6594 = vmatpush1.bf16.msra.mxu0 0
        %6595 = vmatprep.subr.bf16.mxu0 0
        %6596 = vmatpush1.bf16.msra.mxu0 0
        %6597 = vmatprep.subr.bf16.mxu0 0
        %6598 = vmatpush1.bf16.msra.mxu0 0
        %6599 = vmatprep.subr.bf16.mxu0 0
        %6600 = vmatpush1.bf16.msra.mxu0 0
        %6601 = vmatprep.subr.bf16.mxu0 0
        %6602 = vmatpush1.bf16.msra.mxu0 0
        %6603 = vmatprep.subr.bf16.mxu0 0
        %6604 = vmatpush1.bf16.msra.mxu0 0
        %6605 = vmatprep.subr.bf16.mxu0 0
        %6606 = vmatpush1.bf16.msra.mxu0 0
        %6607 = vmatprep.subr.bf16.mxu0 0
        %6608 = vmatpush1.bf16.msra.mxu0 0
        %6609 = vmatprep.subr.bf16.mxu0 0
        %6610 = vmatpush1.bf16.msra.mxu0 0
        %6611 = vmatprep.subr.bf16.mxu0 0
        %6612 = vmatpush1.bf16.msra.mxu0 0
        %6613 = vmatprep.subr.bf16.mxu0 0
        %6614 = vmatpush1.bf16.msra.mxu0 0
        %6615 = vmatprep.subr.bf16.mxu0 0
        %6616 = vmatpush1.bf16.msra.mxu0 0
        %6617 = vmatprep.subr.bf16.mxu0 0
        %6618 = vmatpush1.bf16.msra.mxu0 0
        %6619 = vmatprep.mubr.bf16.mxu0 0
        %6620 = vmatmul.mubr.bf16.gmra.mrb[0].mxu0 %v3754
        %v6621 = vpop.f32.mrb[0].mxu0
        %v6622 = vadd.f32 0.0, %v6621
        %v6623 = vpop.f32.mrb[0].mxu0
        %v6624 = vpop.f32.mrb[0].mxu0
        %v6625 = vadd.f32 0.0, %v6624
        %v6626 = vpop.f32.mrb[0].mxu0
        %6627 = vmatprep.mubr.bf16.mxu0 0
        %6628 = vmatmul.mubr.bf16.gmra.mrb[0].mxu0 %v3956
        %v6629 = vpop.f32.mrb[0].mxu0
        %v6630 = vadd.f32 0.0, %v6629
        %v6631 = vpop.f32.mrb[0].mxu0
        %v6632 = vpop.f32.mrb[0].mxu0
        %v6633 = vadd.f32 0.0, %v6632
        %v6634 = vpop.f32.mrb[0].mxu0
        %6635 = vmatprep.mubr.bf16.mxu0 0
        %6636 = vmatmul.mubr.bf16.gmra.mrb[0].mxu0 %v4158
        %v6637 = vpop.f32.mrb[0].mxu0
        %v6638 = vadd.f32 0.0, %v6637
        %v6639 = vpop.f32.mrb[0].mxu0
        %v6640 = vpop.f32.mrb[0].mxu0
        %v6641 = vadd.f32 0.0, %v6640
        %v6642 = vpop.f32.mrb[0].mxu0
        %6643 = vmatprep.mubr.bf16.mxu0 0
        %6644 = vmatmul.mubr.bf16.gmra.mrb[0].mxu0 %v4360
        %v6645 = vpop.f32.mrb[0].mxu0
        %v6646 = vadd.f32 0.0, %v6645
        %v6647 = vpop.f32.mrb[0].mxu0
        %v6648 = vpop.f32.mrb[0].mxu0
        %v6649 = vadd.f32 0.0, %v6648
        %v6650 = vpop.f32.mrb[0].mxu0
        %6651 = vmatprep.mubr.bf16.mxu0 0
        %6652 = vmatmul.mubr.bf16.gmra.mrb[0].mxu0 %v4562
        %v6653 = vpop.f32.mrb[0].mxu0
        %v6654 = vadd.f32 0.0, %v6653
        %v6655 = vpop.f32.mrb[0].mxu0
        %v6656 = vpop.f32.mrb[0].mxu0
        %v6657 = vadd.f32 0.0, %v6656
        %v6658 = vpop.f32.mrb[0].mxu0
        %6659 = vmatprep.mubr.bf16.mxu0 0
        %6660 = vmatmul.mubr.bf16.gmra.mrb[0].mxu0 %v4764
        %v6661 = vpop.f32.mrb[0].mxu0
        %v6662 = vadd.f32 0.0, %v6661
        %v6663 = vpop.f32.mrb[0].mxu0
        %v6664 = vpop.f32.mrb[0].mxu0
        %v6665 = vadd.f32 0.0, %v6664
        %v6666 = vpop.f32.mrb[0].mxu0
        %6667 = vmatprep.mubr.bf16.mxu0 0
        %6668 = vmatmul.mubr.bf16.gmra.mrb[0].mxu0 %v4966
        %v6669 = vpop.f32.mrb[0].mxu0
        %v6670 = vadd.f32 0.0, %v6669
        %v6671 = vpop.f32.mrb[0].mxu0
        %v6672 = vpop.f32.mrb[0].mxu0
        %v6673 = vadd.f32 0.0, %v6672
        %v6674 = vpop.f32.mrb[0].mxu0
        %6675 = vmatprep.mubr.bf16.mxu0 0
        %6676 = vmatmul.mubr.bf16.gmra.mrb[0].mxu0 %v5168
        %v6677 = vpop.f32.mrb[0].mxu0
        %v6678 = vadd.f32 0.0, %v6677
        %v6679 = vpop.f32.mrb[0].mxu0
        %v6680 = vpop.f32.mrb[0].mxu0
        %v6681 = vadd.f32 0.0, %v6680
        %v6682 = vpop.f32.mrb[0].mxu0
        %6683 = vmatprep.mubr.bf16.mxu0 0
        %6684 = vmatmul.mubr.bf16.gmra.mrb[0].mxu0 %v5370
        %v6685 = vpop.f32.mrb[0].mxu0
        %v6686 = vadd.f32 0.0, %v6685
        %v6687 = vpop.f32.mrb[0].mxu0
        %v6688 = vpop.f32.mrb[0].mxu0
        %v6689 = vadd.f32 0.0, %v6688
        %v6690 = vpop.f32.mrb[0].mxu0
        %6691 = vmatprep.mubr.bf16.mxu0 0
        %6692 = vmatmul.mubr.bf16.gmra.mrb[0].mxu0 %v5572
        %v6693 = vpop.f32.mrb[0].mxu0
        %v6694 = vadd.f32 0.0, %v6693
        %v6695 = vpop.f32.mrb[0].mxu0
        %v6696 = vpop.f32.mrb[0].mxu0
        %v6697 = vadd.f32 0.0, %v6696
        %v6698 = vpop.f32.mrb[0].mxu0
        %6699 = vmatprep.mubr.bf16.mxu0 0
        %6700 = vmatmul.mubr.bf16.gmra.mrb[0].mxu0 %v5774
        %v6701 = vpop.f32.mrb[0].mxu0
        %v6702 = vadd.f32 0.0, %v6701
        %v6703 = vpop.f32.mrb[0].mxu0
        %v6704 = vpop.f32.mrb[0].mxu0
        %v6705 = vadd.f32 0.0, %v6704
        %v6706 = vpop.f32.mrb[0].mxu0
        %6707 = vmatprep.mubr.bf16.mxu0 0
        %6708 = vmatmul.mubr.bf16.gmra.mrb[0].mxu0 %v5976
        %v6709 = vpop.f32.mrb[0].mxu0
        %v6710 = vadd.f32 0.0, %v6709
        %v6711 = vpop.f32.mrb[0].mxu0
        %v6712 = vpop.f32.mrb[0].mxu0
        %v6713 = vadd.f32 0.0, %v6712
        %v6714 = vpop.f32.mrb[0].mxu0
        %6715 = vmatprep.mubr.bf16.mxu0 0
        %6716 = vmatmul.mubr.bf16.gmra.mrb[0].mxu0 %v6178
        %v6717 = vpop.f32.mrb[0].mxu0
        %v6718 = vadd.f32 0.0, %v6717
        %v6719 = vpop.f32.mrb[0].mxu0
        %v6720 = vpop.f32.mrb[0].mxu0
        %v6721 = vadd.f32 0.0, %v6720
        %v6722 = vpop.f32.mrb[0].mxu0
        %6723 = vmatprep.mubr.bf16.mxu0 0
        %6724 = vmatmul.mubr.bf16.gmra.mrb[0].mxu0 %v6380
        %v6725 = vpop.f32.mrb[0].mxu0
        %v6726 = vadd.f32 0.0, %v6725
        %v6727 = vpop.f32.mrb[0].mxu0
        %v6728 = vpop.f32.mrb[0].mxu0
        %v6729 = vadd.f32 0.0, %v6728
        %v6730 = vpop.f32.mrb[0].mxu0
        %6731 = vmatprep.mubr.bf16.mxu0 0
        %6732 = vmatmul.mubr.bf16.gmra.mrb[0].mxu0 %v6582
        %v6733 = vpop.f32.mrb[0].mxu0
        %v6734 = vadd.f32 0.0, %v6733
        %v6735 = vpop.f32.mrb[0].mxu0
        %v6736 = vpop.f32.mrb[0].mxu0
        %v6737 = vadd.f32 0.0, %v6736
        %v6738 = vpop.f32.mrb[0].mxu0
        %6739 = vdwg.mxu0
        %v6740 = vadd.f32 %v6538, %v6622
        %v6741 = vadd.f32 %v6539, %v6625
        %v6742 = vadd.f32 %v6540, %v6630
        %v6743 = vadd.f32 %v6541, %v6633
        %v6744 = vadd.f32 %v6542, %v6638
        %v6745 = vadd.f32 %v6543, %v6641
        %v6746 = vadd.f32 %v6544, %v6646
        %v6747 = vadd.f32 %v6545, %v6649
        %v6748 = vadd.f32 %v6546, %v6654
        %v6749 = vadd.f32 %v6547, %v6657
        %v6750 = vadd.f32 %v6548, %v6662
        %v6751 = vadd.f32 %v6549, %v6665
        %v6752 = vadd.f32 %v6550, %v6670
        %v6753 = vadd.f32 %v6551, %v6673
        %v6754 = vadd.f32 %v6552, %v6678
        %v6755 = vadd.f32 %v6553, %v6681
        %v6756 = vadd.f32 %v6554, %v6686
        %v6757 = vadd.f32 %v6555, %v6689
        %v6758 = vadd.f32 %v6556, %v6694
        %v6759 = vadd.f32 %v6557, %v6697
        %v6760 = vadd.f32 %v6558, %v6702
        %v6761 = vadd.f32 %v6559, %v6705
        %v6762 = vadd.f32 %v6560, %v6710
        %v6763 = vadd.f32 %v6561, %v6713
        %v6764 = vadd.f32 %v6562, %v6718
        %v6765 = vadd.f32 %v6563, %v6721
        %v6766 = vadd.f32 %v6564, %v6726
        %v6767 = vadd.f32 %v6565, %v6729
        %v6768 = vadd.f32 %v6566, %v6734
        %v6769 = vadd.f32 %v6567, %v6737
        %v6770 = vld [vmem:[%s5] sm:$0x1]
        %v6771 = vmax.f32 %v6740, %v6742
        %v6772 = vmax.f32 %v6741, %v6743
        %v6773 = vmax.f32 %v6746, %v6748
        %v6774 = vmax.f32 %v6747, %v6749
        %v6775 = vmax.f32 %v6752, %v6754
        %v6776 = vmax.f32 %v6753, %v6755
        %v6777 = vmax.f32 %v6758, %v6760
        %v6778 = vmax.f32 %v6759, %v6761
        %v6779 = vmax.f32 %v6764, %v6766
        %v6780 = vmax.f32 %v6765, %v6767
        %v6781 = vmax.f32 %v6771, %v6744
        %v6782 = vmax.f32 %v6772, %v6745
        %v6783 = vmax.f32 %v6773, %v6750
        %v6784 = vmax.f32 %v6774, %v6751
        %v6785 = vmax.f32 %v6775, %v6756
        %v6786 = vmax.f32 %v6776, %v6757
        %v6787 = vmax.f32 %v6777, %v6762
        %v6788 = vmax.f32 %v6778, %v6763
        %v6789 = vmax.f32 %v6779, %v6768
        %v6790 = vmax.f32 %v6780, %v6769
        %v6792 = vlaneseq
        %v6793 = vshrl.u32 %v6792, 7
        %v6794 = vsub.s32 0, %v6793
        %v6795 = vrot.slane %v6770, %v6794
        %v6797 = vadd.f32 %v6781, %v6795
        %v6798 = vadd.f32 %v6782, %v6795
        %v6799 = vadd.f32 %v6783, %v6795
        %v6800 = vadd.f32 %v6784, %v6795
        %v6801 = vadd.f32 %v6785, %v6795
        %v6802 = vadd.f32 %v6786, %v6795
        %v6803 = vadd.f32 %v6787, %v6795
        %v6804 = vadd.f32 %v6788, %v6795
        %v6805 = vadd.f32 %v6789, %v6795
        %v6806 = vadd.f32 %v6790, %v6795
        %vm6807 = vcmp.gt.f32.partialorder %v6797, 0.0
        %vm6808 = vcmp.gt.f32.partialorder %v6798, 0.0
        %vm6809 = vcmp.gt.f32.partialorder %v6799, 0.0
        %vm6810 = vcmp.gt.f32.partialorder %v6800, 0.0
        %vm6811 = vcmp.gt.f32.partialorder %v6801, 0.0
        %vm6812 = vcmp.gt.f32.partialorder %v6802, 0.0
        %vm6813 = vcmp.gt.f32.partialorder %v6803, 0.0
        %vm6814 = vcmp.gt.f32.partialorder %v6804, 0.0
        %vm6815 = vcmp.gt.f32.partialorder %v6805, 0.0
        %vm6816 = vcmp.gt.f32.partialorder %v6806, 0.0
        %v6817 = vmul.f32 %v6797, 1.442695
        %v6818 = vpow.pop %v6817
        %v6819 = vmul.f32 %v6798, 1.442695
        %v6820 = vpow.pop %v6819
        %v6821 = vmul.f32 %v6799, 1.442695
        %v6822 = vpow.pop %v6821
        %v6823 = vmul.f32 %v6800, 1.442695
        %v6824 = vpow.pop %v6823
        %v6825 = vmul.f32 %v6801, 1.442695
        %v6826 = vpow.pop %v6825
        %v6827 = vmul.f32 %v6802, 1.442695
        %v6828 = vpow.pop %v6827
        %v6829 = vmul.f32 %v6803, 1.442695
        %v6830 = vpow.pop %v6829
        %v6831 = vmul.f32 %v6804, 1.442695
        %v6832 = vpow.pop %v6831
        %v6833 = vmul.f32 %v6805, 1.442695
        %v6834 = vpow.pop %v6833
        %v6835 = vmul.f32 %v6806, 1.442695
        %v6836 = vpow.pop %v6835
        %v6837 = vsub.f32 %v6818, 1.0
        %v6838 = vsub.f32 %v6820, 1.0
        %v6839 = vsub.f32 %v6822, 1.0
        %v6840 = vsub.f32 %v6824, 1.0
        %v6841 = vsub.f32 %v6826, 1.0
        %v6842 = vsub.f32 %v6828, 1.0
        %v6843 = vsub.f32 %v6830, 1.0
        %v6844 = vsub.f32 %v6832, 1.0
        %v6845 = vsub.f32 %v6834, 1.0
        %v6846 = vsub.f32 %v6836, 1.0
        %v6847 = vsel %vm6807, %v6797, %v6837
        %v6848 = vsel %vm6808, %v6798, %v6838
        %v6849 = vsel %vm6809, %v6799, %v6839
        %v6850 = vsel %vm6810, %v6800, %v6840
        %v6851 = vsel %vm6811, %v6801, %v6841
        %v6852 = vsel %vm6812, %v6802, %v6842
        %v6853 = vsel %vm6813, %v6803, %v6843
        %v6854 = vsel %vm6814, %v6804, %v6844
        %v6855 = vsel %vm6815, %v6805, %v6845
        %v6856 = vsel %vm6816, %v6806, %v6846
        %6857 = vst.msk [vmem:[#allocation2] sm:$0xff] %vm2763, 0.0
        %6858 = vst.msk [vmem:[#allocation2 + $0x8] sm:$0xff] %vm2763, 0.0
        %vm6859 = vcmask 156672
        %6860 = vst.msk [vmem:[#allocation2 + $0x10] sm:$0x3] %vm6859, 0.0
        %6861 = vst.msk [vmem:[#allocation2 + $0x18] sm:$0xff] %vm2763, 0.0
        %6862 = vst.msk [vmem:[#allocation2 + $0x20] sm:$0xff] %vm2763, 0.0
        %6863 = vst.msk [vmem:[#allocation2 + $0x28] sm:$0x3] %vm6859, 0.0
        %6864 = vst.msk [vmem:[#allocation2 + $0x30] sm:$0xff] %vm2763, 0.0
        %6865 = vst.msk [vmem:[#allocation2 + $0x38] sm:$0xff] %vm2763, 0.0
        %6866 = vst.msk [vmem:[#allocation2 + $0x40] sm:$0x3] %vm6859, 0.0
        %6867 = vst.msk [vmem:[#allocation2 + $0x48] sm:$0xff] %vm2763, 0.0
        %6868 = vst.msk [vmem:[#allocation2 + $0x50] sm:$0xff] %vm2763, 0.0
        %6869 = vst.msk [vmem:[#allocation2 + $0x58] sm:$0x3] %vm6859, 0.0
        %6870 = vst.msk [vmem:[#allocation2 + $0x60] sm:$0xff] %vm2763, 0.0
        %6871 = vst.msk [vmem:[#allocation2 + $0x68] sm:$0xff] %vm2763, 0.0
        %6872 = vst.msk [vmem:[#allocation2 + $0x70] sm:$0x3] %vm6859, 0.0
        %6873 = vst.msk [vmem:[#allocation2 + $0x1] sm:$0xff] %vm2763, %v6847
        %6874 = vst.msk [vmem:[#allocation2 + $0x9] sm:$0xff] %vm2763, %v6848
        %6875 = vst.msk [vmem:[#allocation2 + $0x19] sm:$0xff] %vm2763, %v6849
        %6876 = vst.msk [vmem:[#allocation2 + $0x21] sm:$0xff] %vm2763, %v6850
        %6877 = vst.msk [vmem:[#allocation2 + $0x31] sm:$0xff] %vm2763, %v6851
        %6878 = vst.msk [vmem:[#allocation2 + $0x39] sm:$0xff] %vm2763, %v6852
        %6879 = vst.msk [vmem:[#allocation2 + $0x49] sm:$0xff] %vm2763, %v6853
        %6880 = vst.msk [vmem:[#allocation2 + $0x51] sm:$0xff] %vm2763, %v6854
        %6881 = vst.msk [vmem:[#allocation2 + $0x61] sm:$0xff] %vm2763, %v6855
        %6882 = vst.msk [vmem:[#allocation2 + $0x69] sm:$0xff] %vm2763, %v6856
        %v6883 = vld [vmem:[#allocation2] sm:$0xff]
        %v6884 = vld [vmem:[#allocation2 + $0x8] sm:$0xff]
        %v6885 = vld [vmem:[#allocation2 + $0x18] sm:$0xff]
        %v6886 = vld [vmem:[#allocation2 + $0x20] sm:$0xff]
        %v6887 = vld [vmem:[#allocation2 + $0x30] sm:$0xff]
        %v6888 = vld [vmem:[#allocation2 + $0x38] sm:$0xff]
        %v6889 = vpack.c.bf16 %v6884, %v6883
        %v6890 = vpack.c.bf16 %v6886, %v6885
        %v6891 = vpack.c.bf16 %v6888, %v6887
        %v6892 = vld [vmem:[%s3] sm:$0xf]
        %v6893 = vld [vmem:[%s3 + $0x4] sm:$0xf]
        %v6894 = vld [vmem:[%s3 + $0x8] sm:$0x3]
        %v6895 = vld [vmem:[#allocation2 + $0x1] sm:$0xff]
        %v6896 = vld [vmem:[#allocation2 + $0x9] sm:$0xff]
        %v6897 = vld [vmem:[#allocation2 + $0x19] sm:$0xff]
        %v6898 = vld [vmem:[#allocation2 + $0x21] sm:$0xff]
        %v6899 = vld [vmem:[#allocation2 + $0x31] sm:$0xff]
        %v6900 = vld [vmem:[#allocation2 + $0x39] sm:$0xff]
        %v6901 = vpack.c.bf16 %v6896, %v6895
        %v6902 = vpack.c.bf16 %v6898, %v6897
        %v6903 = vpack.c.bf16 %v6900, %v6899
        %s6904 = scalar_lea.vmem %s3, 12
        %v6905 = vld [vmem:[%s6904] sm:$0xf]
        %v6906 = vld [vmem:[%s6904 + $0x4] sm:$0xf]
        %v6907 = vld [vmem:[%s6904 + $0x8] sm:$0x3]
        %v6911 = vunpack.c.l.b16 %v6905
        %v6912 = vunpack.c.l.b16 %v6906
        %v6913 = vunpack.c.l.b16 %v6907
        %v6914 = vpack.c.b16 %v6912, %v6911
        %v6915 = vpack.c.b16 %v6913, %v6913
        %v6918 = vsel %vm2763, %v6901, 0
        %v6921 = vsel %vm2763, %v6902, 0
        %v6924 = vsel %vm2763, %v6903, 0
        %v6927 = vsel %vm2809, %v6915, 0
        %6929 = vmatprep.subr.bf16.mxu0 0
        %6930 = vmatpush1.bf16.msra.mxu0 %v6914
        %6931 = vmatprep.subr.bf16.mxu0 0
        %6932 = vmatpush1.bf16.msra.mxu0 %v6927
        %6933 = vmatprep.subr.bf16.mxu0 0
        %6934 = vmatpush1.bf16.msra.mxu0 0
        %6935 = vmatprep.subr.bf16.mxu0 0
        %6936 = vmatpush1.bf16.msra.mxu0 0
        %6937 = vmatprep.subr.bf16.mxu0 0
        %6938 = vmatpush1.bf16.msra.mxu0 0
        %6939 = vmatprep.subr.bf16.mxu0 0
        %6940 = vmatpush1.bf16.msra.mxu0 0
        %6941 = vmatprep.subr.bf16.mxu0 0
        %6942 = vmatpush1.bf16.msra.mxu0 0
        %6943 = vmatprep.subr.bf16.mxu0 0
        %6944 = vmatpush1.bf16.msra.mxu0 0
        %6945 = vmatprep.subr.bf16.mxu0 0
        %6946 = vmatpush1.bf16.msra.mxu0 0
        %6947 = vmatprep.subr.bf16.mxu0 0
        %6948 = vmatpush1.bf16.msra.mxu0 0
        %6949 = vmatprep.subr.bf16.mxu0 0
        %6950 = vmatpush1.bf16.msra.mxu0 0
        %6951 = vmatprep.subr.bf16.mxu0 0
        %6952 = vmatpush1.bf16.msra.mxu0 0
        %6953 = vmatprep.subr.bf16.mxu0 0
        %6954 = vmatpush1.bf16.msra.mxu0 0
        %6955 = vmatprep.subr.bf16.mxu0 0
        %6956 = vmatpush1.bf16.msra.mxu0 0
        %6957 = vmatprep.subr.bf16.mxu0 0
        %6958 = vmatpush1.bf16.msra.mxu0 0
        %6959 = vmatprep.subr.bf16.mxu0 0
        %6960 = vmatpush1.bf16.msra.mxu0 0
        %6961 = vmatprep.mubr.bf16.mxu0 0
        %6962 = vmatmul.mubr.bf16.gmra.mrb[0].mxu0 %v6918
        %v6963 = vpop.f32.mrb[0].mxu0
        %v6964 = vadd.f32 0.0, %v6963
        %v6965 = vpop.f32.mrb[0].mxu0
        %v6966 = vpop.f32.mrb[0].mxu0
        %v6967 = vadd.f32 0.0, %v6966
        %v6968 = vpop.f32.mrb[0].mxu0
        %6969 = vmatprep.mubr.bf16.mxu0 0
        %6970 = vmatmul.mubr.bf16.gmra.mrb[0].mxu0 %v6921
        %v6971 = vpop.f32.mrb[0].mxu0
        %v6972 = vadd.f32 0.0, %v6971
        %v6973 = vpop.f32.mrb[0].mxu0
        %v6974 = vpop.f32.mrb[0].mxu0
        %v6975 = vadd.f32 0.0, %v6974
        %v6976 = vpop.f32.mrb[0].mxu0
        %6977 = vmatprep.mubr.bf16.mxu0 0
        %6978 = vmatmul.mubr.bf16.gmra.mrb[0].mxu0 %v6924
        %v6979 = vpop.f32.mrb[0].mxu0
        %v6980 = vadd.f32 0.0, %v6979
        %v6981 = vpop.f32.mrb[0].mxu0
        %v6982 = vpop.f32.mrb[0].mxu0
        %v6983 = vadd.f32 0.0, %v6982
        %v6984 = vpop.f32.mrb[0].mxu0
        %6985 = vdwg.mxu0
        %v6989 = vunpack.c.l.b16 %v6892
        %v6990 = vunpack.c.l.b16 %v6893
        %v6991 = vunpack.c.l.b16 %v6894
        %v6992 = vpack.c.b16 %v6990, %v6989
        %v6993 = vpack.c.b16 %v6991, %v6991
        %v6996 = vsel %vm2763, %v6889, 0
        %v6999 = vsel %vm2763, %v6890, 0
        %v7002 = vsel %vm2763, %v6891, 0
        %v7005 = vsel %vm2809, %v6993, 0
        %7007 = vmatprep.subr.bf16.mxu0 0
        %7008 = vmatpush1.bf16.msra.mxu0 %v6992
        %7009 = vmatprep.subr.bf16.mxu0 0
        %7010 = vmatpush1.bf16.msra.mxu0 %v7005
        %7011 = vmatprep.subr.bf16.mxu0 0
        %7012 = vmatpush1.bf16.msra.mxu0 0
        %7013 = vmatprep.subr.bf16.mxu0 0
        %7014 = vmatpush1.bf16.msra.mxu0 0
        %7015 = vmatprep.subr.bf16.mxu0 0
        %7016 = vmatpush1.bf16.msra.mxu0 0
        %7017 = vmatprep.subr.bf16.mxu0 0
        %7018 = vmatpush1.bf16.msra.mxu0 0
        %7019 = vmatprep.subr.bf16.mxu0 0
        %7020 = vmatpush1.bf16.msra.mxu0 0
        %7021 = vmatprep.subr.bf16.mxu0 0
        %7022 = vmatpush1.bf16.msra.mxu0 0
        %7023 = vmatprep.subr.bf16.mxu0 0
        %7024 = vmatpush1.bf16.msra.mxu0 0
        %7025 = vmatprep.subr.bf16.mxu0 0
        %7026 = vmatpush1.bf16.msra.mxu0 0
        %7027 = vmatprep.subr.bf16.mxu0 0
        %7028 = vmatpush1.bf16.msra.mxu0 0
        %7029 = vmatprep.subr.bf16.mxu0 0
        %7030 = vmatpush1.bf16.msra.mxu0 0
        %7031 = vmatprep.subr.bf16.mxu0 0
        %7032 = vmatpush1.bf16.msra.mxu0 0
        %7033 = vmatprep.subr.bf16.mxu0 0
        %7034 = vmatpush1.bf16.msra.mxu0 0
        %7035 = vmatprep.subr.bf16.mxu0 0
        %7036 = vmatpush1.bf16.msra.mxu0 0
        %7037 = vmatprep.subr.bf16.mxu0 0
        %7038 = vmatpush1.bf16.msra.mxu0 0
        %7039 = vmatprep.mubr.bf16.mxu0 0
        %7040 = vmatmul.mubr.bf16.gmra.mrb[0].mxu0 %v6996
        %v7041 = vpop.f32.mrb[0].mxu0
        %v7042 = vadd.f32 %v6964, %v7041
        %v7043 = vpop.f32.mrb[0].mxu0
        %v7044 = vpop.f32.mrb[0].mxu0
        %v7045 = vadd.f32 %v6967, %v7044
        %v7046 = vpop.f32.mrb[0].mxu0
        %7047 = vmatprep.mubr.bf16.mxu0 0
        %7048 = vmatmul.mubr.bf16.gmra.mrb[0].mxu0 %v6999
        %v7049 = vpop.f32.mrb[0].mxu0
        %v7050 = vadd.f32 %v6972, %v7049
        %v7051 = vpop.f32.mrb[0].mxu0
        %v7052 = vpop.f32.mrb[0].mxu0
        %v7053 = vadd.f32 %v6975, %v7052
        %v7054 = vpop.f32.mrb[0].mxu0
        %7055 = vmatprep.mubr.bf16.mxu0 0
        %7056 = vmatmul.mubr.bf16.gmra.mrb[0].mxu0 %v7002
        %v7057 = vpop.f32.mrb[0].mxu0
        %v7058 = vadd.f32 %v6980, %v7057
        %v7059 = vpop.f32.mrb[0].mxu0
        %v7060 = vpop.f32.mrb[0].mxu0
        %v7061 = vadd.f32 %v6983, %v7060
        %v7062 = vpop.f32.mrb[0].mxu0
        %7063 = vdwg.mxu0
        %v7064 = vld [vmem:[#allocation2 + $0x2] sm:$0xff]
        %v7065 = vld [vmem:[#allocation2 + $0xa] sm:$0xff]
        %v7066 = vld [vmem:[#allocation2 + $0x1a] sm:$0xff]
        %v7067 = vld [vmem:[#allocation2 + $0x22] sm:$0xff]
        %v7068 = vld [vmem:[#allocation2 + $0x32] sm:$0xff]
        %v7069 = vld [vmem:[#allocation2 + $0x3a] sm:$0xff]
        %v7070 = vpack.c.bf16 %v7065, %v7064
        %v7071 = vpack.c.bf16 %v7067, %v7066
        %v7072 = vpack.c.bf16 %v7069, %v7068
        %s7073 = scalar_lea.vmem %s3, 24
        %v7074 = vld [vmem:[%s7073] sm:$0xf]
        %v7075 = vld [vmem:[%s7073 + $0x4] sm:$0xf]
        %v7076 = vld [vmem:[%s7073 + $0x8] sm:$0x3]
        %v7080 = vunpack.c.l.b16 %v7074
        %v7081 = vunpack.c.l.b16 %v7075
        %v7082 = vunpack.c.l.b16 %v7076
        %v7083 = vpack.c.b16 %v7081, %v7080
        %v7084 = vpack.c.b16 %v7082, %v7082
        %v7087 = vsel %vm2763, %v7070, 0
        %v7090 = vsel %vm2763, %v7071, 0
        %v7093 = vsel %vm2763, %v7072, 0
        %v7096 = vsel %vm2809, %v7084, 0
        %7098 = vmatprep.subr.bf16.mxu0 0
        %7099 = vmatpush1.bf16.msra.mxu0 %v7083
        %7100 = vmatprep.subr.bf16.mxu0 0
        %7101 = vmatpush1.bf16.msra.mxu0 %v7096
        %7102 = vmatprep.subr.bf16.mxu0 0
        %7103 = vmatpush1.bf16.msra.mxu0 0
        %7104 = vmatprep.subr.bf16.mxu0 0
        %7105 = vmatpush1.bf16.msra.mxu0 0
        %7106 = vmatprep.subr.bf16.mxu0 0
        %7107 = vmatpush1.bf16.msra.mxu0 0
        %7108 = vmatprep.subr.bf16.mxu0 0
        %7109 = vmatpush1.bf16.msra.mxu0 0
        %7110 = vmatprep.subr.bf16.mxu0 0
        %7111 = vmatpush1.bf16.msra.mxu0 0
        %7112 = vmatprep.subr.bf16.mxu0 0
        %7113 = vmatpush1.bf16.msra.mxu0 0
        %7114 = vmatprep.subr.bf16.mxu0 0
        %7115 = vmatpush1.bf16.msra.mxu0 0
        %7116 = vmatprep.subr.bf16.mxu0 0
        %7117 = vmatpush1.bf16.msra.mxu0 0
        %7118 = vmatprep.subr.bf16.mxu0 0
        %7119 = vmatpush1.bf16.msra.mxu0 0
        %7120 = vmatprep.subr.bf16.mxu0 0
        %7121 = vmatpush1.bf16.msra.mxu0 0
        %7122 = vmatprep.subr.bf16.mxu0 0
        %7123 = vmatpush1.bf16.msra.mxu0 0
        %7124 = vmatprep.subr.bf16.mxu0 0
        %7125 = vmatpush1.bf16.msra.mxu0 0
        %7126 = vmatprep.subr.bf16.mxu0 0
        %7127 = vmatpush1.bf16.msra.mxu0 0
        %7128 = vmatprep.subr.bf16.mxu0 0
        %7129 = vmatpush1.bf16.msra.mxu0 0
        %7130 = vmatprep.mubr.bf16.mxu0 0
        %7131 = vmatmul.mubr.bf16.gmra.mrb[0].mxu0 %v7087
        %v7132 = vpop.f32.mrb[0].mxu0
        %v7133 = vadd.f32 0.0, %v7132
        %v7134 = vpop.f32.mrb[0].mxu0
        %v7135 = vpop.f32.mrb[0].mxu0
        %v7136 = vadd.f32 0.0, %v7135
        %v7137 = vpop.f32.mrb[0].mxu0
        %7138 = vmatprep.mubr.bf16.mxu0 0
        %7139 = vmatmul.mubr.bf16.gmra.mrb[0].mxu0 %v7090
        %v7140 = vpop.f32.mrb[0].mxu0
        %v7141 = vadd.f32 0.0, %v7140
        %v7142 = vpop.f32.mrb[0].mxu0
        %v7143 = vpop.f32.mrb[0].mxu0
        %v7144 = vadd.f32 0.0, %v7143
        %v7145 = vpop.f32.mrb[0].mxu0
        %7146 = vmatprep.mubr.bf16.mxu0 0
        %7147 = vmatmul.mubr.bf16.gmra.mrb[0].mxu0 %v7093
        %v7148 = vpop.f32.mrb[0].mxu0
        %v7149 = vadd.f32 0.0, %v7148
        %v7150 = vpop.f32.mrb[0].mxu0
        %v7151 = vpop.f32.mrb[0].mxu0
        %v7152 = vadd.f32 0.0, %v7151
        %v7153 = vpop.f32.mrb[0].mxu0
        %7154 = vdwg.mxu0
        %v7155 = vadd.f32 %v7042, %v7133
        %v7156 = vadd.f32 %v7045, %v7136
        %v7157 = vadd.f32 %v7050, %v7141
        %v7158 = vadd.f32 %v7053, %v7144
        %v7159 = vadd.f32 %v7058, %v7149
        %v7160 = vadd.f32 %v7061, %v7152
        %s7161 = scalar_lea.vmem [#allocation2], 24
        %v7162 = vld [vmem:[%s7161] sm:$0xff]
        %v7163 = vld [vmem:[%s7161 + $0x8] sm:$0xff]
        %v7164 = vld [vmem:[%s7161 + $0x18] sm:$0xff]
        %v7165 = vld [vmem:[%s7161 + $0x20] sm:$0xff]
        %v7166 = vld [vmem:[%s7161 + $0x30] sm:$0xff]
        %v7167 = vld [vmem:[%s7161 + $0x38] sm:$0xff]
        %v7168 = vpack.c.bf16 %v7163, %v7162
        %v7169 = vpack.c.bf16 %v7165, %v7164
        %v7170 = vpack.c.bf16 %v7167, %v7166
        %s7171 = scalar_lea.vmem %s3, 36
        %v7172 = vld [vmem:[%s7171] sm:$0xf]
        %v7173 = vld [vmem:[%s7171 + $0x4] sm:$0xf]
        %v7174 = vld [vmem:[%s7171 + $0x8] sm:$0x3]
        %v7178 = vunpack.c.l.b16 %v7172
        %v7179 = vunpack.c.l.b16 %v7173
        %v7180 = vunpack.c.l.b16 %v7174
        %v7181 = vpack.c.b16 %v7179, %v7178
        %v7182 = vpack.c.b16 %v7180, %v7180
        %v7185 = vsel %vm2763, %v7168, 0
        %v7188 = vsel %vm2763, %v7169, 0
        %v7191 = vsel %vm2763, %v7170, 0
        %v7194 = vsel %vm2809, %v7182, 0
        %7196 = vmatprep.subr.bf16.mxu0 0
        %7197 = vmatpush1.bf16.msra.mxu0 %v7181
        %7198 = vmatprep.subr.bf16.mxu0 0
        %7199 = vmatpush1.bf16.msra.mxu0 %v7194
        %7200 = vmatprep.subr.bf16.mxu0 0
        %7201 = vmatpush1.bf16.msra.mxu0 0
        %7202 = vmatprep.subr.bf16.mxu0 0
        %7203 = vmatpush1.bf16.msra.mxu0 0
        %7204 = vmatprep.subr.bf16.mxu0 0
        %7205 = vmatpush1.bf16.msra.mxu0 0
        %7206 = vmatprep.subr.bf16.mxu0 0
        %7207 = vmatpush1.bf16.msra.mxu0 0
        %7208 = vmatprep.subr.bf16.mxu0 0
        %7209 = vmatpush1.bf16.msra.mxu0 0
        %7210 = vmatprep.subr.bf16.mxu0 0
        %7211 = vmatpush1.bf16.msra.mxu0 0
        %7212 = vmatprep.subr.bf16.mxu0 0
        %7213 = vmatpush1.bf16.msra.mxu0 0
        %7214 = vmatprep.subr.bf16.mxu0 0
        %7215 = vmatpush1.bf16.msra.mxu0 0
        %7216 = vmatprep.subr.bf16.mxu0 0
        %7217 = vmatpush1.bf16.msra.mxu0 0
        %7218 = vmatprep.subr.bf16.mxu0 0
        %7219 = vmatpush1.bf16.msra.mxu0 0
        %7220 = vmatprep.subr.bf16.mxu0 0
        %7221 = vmatpush1.bf16.msra.mxu0 0
        %7222 = vmatprep.subr.bf16.mxu0 0
        %7223 = vmatpush1.bf16.msra.mxu0 0
        %7224 = vmatprep.subr.bf16.mxu0 0
        %7225 = vmatpush1.bf16.msra.mxu0 0
        %7226 = vmatprep.subr.bf16.mxu0 0
        %7227 = vmatpush1.bf16.msra.mxu0 0
        %7228 = vmatprep.mubr.bf16.mxu0 0
        %7229 = vmatmul.mubr.bf16.gmra.mrb[0].mxu0 %v7185
        %v7230 = vpop.f32.mrb[0].mxu0
        %v7231 = vadd.f32 0.0, %v7230
        %v7232 = vpop.f32.mrb[0].mxu0
        %v7233 = vpop.f32.mrb[0].mxu0
        %v7234 = vadd.f32 0.0, %v7233
        %v7235 = vpop.f32.mrb[0].mxu0
        %7236 = vmatprep.mubr.bf16.mxu0 0
        %7237 = vmatmul.mubr.bf16.gmra.mrb[0].mxu0 %v7188
        %v7238 = vpop.f32.mrb[0].mxu0
        %v7239 = vadd.f32 0.0, %v7238
        %v7240 = vpop.f32.mrb[0].mxu0
        %v7241 = vpop.f32.mrb[0].mxu0
        %v7242 = vadd.f32 0.0, %v7241
        %v7243 = vpop.f32.mrb[0].mxu0
        %7244 = vmatprep.mubr.bf16.mxu0 0
        %7245 = vmatmul.mubr.bf16.gmra.mrb[0].mxu0 %v7191
        %v7246 = vpop.f32.mrb[0].mxu0
        %v7247 = vadd.f32 0.0, %v7246
        %v7248 = vpop.f32.mrb[0].mxu0
        %v7249 = vpop.f32.mrb[0].mxu0
        %v7250 = vadd.f32 0.0, %v7249
        %v7251 = vpop.f32.mrb[0].mxu0
        %7252 = vdwg.mxu0
        %v7253 = vadd.f32 %v7155, %v7231
        %v7254 = vadd.f32 %v7156, %v7234
        %v7255 = vadd.f32 %v7157, %v7239
        %v7256 = vadd.f32 %v7158, %v7242
        %v7257 = vadd.f32 %v7159, %v7247
        %v7258 = vadd.f32 %v7160, %v7250
        %v7259 = vld [vmem:[%s7161 + $0x1] sm:$0xff]
        %v7260 = vld [vmem:[%s7161 + $0x9] sm:$0xff]
        %v7261 = vld [vmem:[%s7161 + $0x19] sm:$0xff]
        %v7262 = vld [vmem:[%s7161 + $0x21] sm:$0xff]
        %v7263 = vld [vmem:[%s7161 + $0x31] sm:$0xff]
        %v7264 = vld [vmem:[%s7161 + $0x39] sm:$0xff]
        %v7265 = vpack.c.bf16 %v7260, %v7259
        %v7266 = vpack.c.bf16 %v7262, %v7261
        %v7267 = vpack.c.bf16 %v7264, %v7263
        %s7268 = scalar_lea.vmem %s3, 48
        %v7269 = vld [vmem:[%s7268] sm:$0xf]
        %v7270 = vld [vmem:[%s7268 + $0x4] sm:$0xf]
        %v7271 = vld [vmem:[%s7268 + $0x8] sm:$0x3]
        %v7275 = vunpack.c.l.b16 %v7269
        %v7276 = vunpack.c.l.b16 %v7270
        %v7277 = vunpack.c.l.b16 %v7271
        %v7278 = vpack.c.b16 %v7276, %v7275
        %v7279 = vpack.c.b16 %v7277, %v7277
        %v7282 = vsel %vm2763, %v7265, 0
        %v7285 = vsel %vm2763, %v7266, 0
        %v7288 = vsel %vm2763, %v7267, 0
        %v7291 = vsel %vm2809, %v7279, 0
        %7293 = vmatprep.subr.bf16.mxu0 0
        %7294 = vmatpush1.bf16.msra.mxu0 %v7278
        %7295 = vmatprep.subr.bf16.mxu0 0
        %7296 = vmatpush1.bf16.msra.mxu0 %v7291
        %7297 = vmatprep.subr.bf16.mxu0 0
        %7298 = vmatpush1.bf16.msra.mxu0 0
        %7299 = vmatprep.subr.bf16.mxu0 0
        %7300 = vmatpush1.bf16.msra.mxu0 0
        %7301 = vmatprep.subr.bf16.mxu0 0
        %7302 = vmatpush1.bf16.msra.mxu0 0
        %7303 = vmatprep.subr.bf16.mxu0 0
        %7304 = vmatpush1.bf16.msra.mxu0 0
        %7305 = vmatprep.subr.bf16.mxu0 0
        %7306 = vmatpush1.bf16.msra.mxu0 0
        %7307 = vmatprep.subr.bf16.mxu0 0
        %7308 = vmatpush1.bf16.msra.mxu0 0
        %7309 = vmatprep.subr.bf16.mxu0 0
        %7310 = vmatpush1.bf16.msra.mxu0 0
        %7311 = vmatprep.subr.bf16.mxu0 0
        %7312 = vmatpush1.bf16.msra.mxu0 0
        %7313 = vmatprep.subr.bf16.mxu0 0
        %7314 = vmatpush1.bf16.msra.mxu0 0
        %7315 = vmatprep.subr.bf16.mxu0 0
        %7316 = vmatpush1.bf16.msra.mxu0 0
        %7317 = vmatprep.subr.bf16.mxu0 0
        %7318 = vmatpush1.bf16.msra.mxu0 0
        %7319 = vmatprep.subr.bf16.mxu0 0
        %7320 = vmatpush1.bf16.msra.mxu0 0
        %7321 = vmatprep.subr.bf16.mxu0 0
        %7322 = vmatpush1.bf16.msra.mxu0 0
        %7323 = vmatprep.subr.bf16.mxu0 0
        %7324 = vmatpush1.bf16.msra.mxu0 0
        %7325 = vmatprep.mubr.bf16.mxu0 0
        %7326 = vmatmul.mubr.bf16.gmra.mrb[0].mxu0 %v7282
        %v7327 = vpop.f32.mrb[0].mxu0
        %v7328 = vadd.f32 0.0, %v7327
        %v7329 = vpop.f32.mrb[0].mxu0
        %v7330 = vpop.f32.mrb[0].mxu0
        %v7331 = vadd.f32 0.0, %v7330
        %v7332 = vpop.f32.mrb[0].mxu0
        %7333 = vmatprep.mubr.bf16.mxu0 0
        %7334 = vmatmul.mubr.bf16.gmra.mrb[0].mxu0 %v7285
        %v7335 = vpop.f32.mrb[0].mxu0
        %v7336 = vadd.f32 0.0, %v7335
        %v7337 = vpop.f32.mrb[0].mxu0
        %v7338 = vpop.f32.mrb[0].mxu0
        %v7339 = vadd.f32 0.0, %v7338
        %v7340 = vpop.f32.mrb[0].mxu0
        %7341 = vmatprep.mubr.bf16.mxu0 0
        %7342 = vmatmul.mubr.bf16.gmra.mrb[0].mxu0 %v7288
        %v7343 = vpop.f32.mrb[0].mxu0
        %v7344 = vadd.f32 0.0, %v7343
        %v7345 = vpop.f32.mrb[0].mxu0
        %v7346 = vpop.f32.mrb[0].mxu0
        %v7347 = vadd.f32 0.0, %v7346
        %v7348 = vpop.f32.mrb[0].mxu0
        %7349 = vdwg.mxu0
        %v7350 = vadd.f32 %v7253, %v7328
        %v7351 = vadd.f32 %v7254, %v7331
        %v7352 = vadd.f32 %v7255, %v7336
        %v7353 = vadd.f32 %v7256, %v7339
        %v7354 = vadd.f32 %v7257, %v7344
        %v7355 = vadd.f32 %v7258, %v7347
        %v7356 = vld [vmem:[%s7161 + $0x2] sm:$0xff]
        %v7357 = vld [vmem:[%s7161 + $0xa] sm:$0xff]
        %v7358 = vld [vmem:[%s7161 + $0x1a] sm:$0xff]
        %v7359 = vld [vmem:[%s7161 + $0x22] sm:$0xff]
        %v7360 = vld [vmem:[%s7161 + $0x32] sm:$0xff]
        %v7361 = vld [vmem:[%s7161 + $0x3a] sm:$0xff]
        %v7362 = vpack.c.bf16 %v7357, %v7356
        %v7363 = vpack.c.bf16 %v7359, %v7358
        %v7364 = vpack.c.bf16 %v7361, %v7360
        %s7365 = scalar_lea.vmem %s3, 60
        %v7366 = vld [vmem:[%s7365] sm:$0xf]
        %v7367 = vld [vmem:[%s7365 + $0x4] sm:$0xf]
        %v7368 = vld [vmem:[%s7365 + $0x8] sm:$0x3]
        %v7372 = vunpack.c.l.b16 %v7366
        %v7373 = vunpack.c.l.b16 %v7367
        %v7374 = vunpack.c.l.b16 %v7368
        %v7375 = vpack.c.b16 %v7373, %v7372
        %v7376 = vpack.c.b16 %v7374, %v7374
        %v7379 = vsel %vm2763, %v7362, 0
        %v7382 = vsel %vm2763, %v7363, 0
        %v7385 = vsel %vm2763, %v7364, 0
        %v7388 = vsel %vm2809, %v7376, 0
        %7390 = vmatprep.subr.bf16.mxu0 0
        %7391 = vmatpush1.bf16.msra.mxu0 %v7375
        %7392 = vmatprep.subr.bf16.mxu0 0
        %7393 = vmatpush1.bf16.msra.mxu0 %v7388
        %7394 = vmatprep.subr.bf16.mxu0 0
        %7395 = vmatpush1.bf16.msra.mxu0 0
        %7396 = vmatprep.subr.bf16.mxu0 0
        %7397 = vmatpush1.bf16.msra.mxu0 0
        %7398 = vmatprep.subr.bf16.mxu0 0
        %7399 = vmatpush1.bf16.msra.mxu0 0
        %7400 = vmatprep.subr.bf16.mxu0 0
        %7401 = vmatpush1.bf16.msra.mxu0 0
        %7402 = vmatprep.subr.bf16.mxu0 0
        %7403 = vmatpush1.bf16.msra.mxu0 0
        %7404 = vmatprep.subr.bf16.mxu0 0
        %7405 = vmatpush1.bf16.msra.mxu0 0
        %7406 = vmatprep.subr.bf16.mxu0 0
        %7407 = vmatpush1.bf16.msra.mxu0 0
        %7408 = vmatprep.subr.bf16.mxu0 0
        %7409 = vmatpush1.bf16.msra.mxu0 0
        %7410 = vmatprep.subr.bf16.mxu0 0
        %7411 = vmatpush1.bf16.msra.mxu0 0
        %7412 = vmatprep.subr.bf16.mxu0 0
        %7413 = vmatpush1.bf16.msra.mxu0 0
        %7414 = vmatprep.subr.bf16.mxu0 0
        %7415 = vmatpush1.bf16.msra.mxu0 0
        %7416 = vmatprep.subr.bf16.mxu0 0
        %7417 = vmatpush1.bf16.msra.mxu0 0
        %7418 = vmatprep.subr.bf16.mxu0 0
        %7419 = vmatpush1.bf16.msra.mxu0 0
        %7420 = vmatprep.subr.bf16.mxu0 0
        %7421 = vmatpush1.bf16.msra.mxu0 0
        %7422 = vmatprep.mubr.bf16.mxu0 0
        %7423 = vmatmul.mubr.bf16.gmra.mrb[0].mxu0 %v7379
        %v7424 = vpop.f32.mrb[0].mxu0
        %v7425 = vadd.f32 0.0, %v7424
        %v7426 = vpop.f32.mrb[0].mxu0
        %v7427 = vpop.f32.mrb[0].mxu0
        %v7428 = vadd.f32 0.0, %v7427
        %v7429 = vpop.f32.mrb[0].mxu0
        %7430 = vmatprep.mubr.bf16.mxu0 0
        %7431 = vmatmul.mubr.bf16.gmra.mrb[0].mxu0 %v7382
        %v7432 = vpop.f32.mrb[0].mxu0
        %v7433 = vadd.f32 0.0, %v7432
        %v7434 = vpop.f32.mrb[0].mxu0
        %v7435 = vpop.f32.mrb[0].mxu0
        %v7436 = vadd.f32 0.0, %v7435
        %v7437 = vpop.f32.mrb[0].mxu0
        %7438 = vmatprep.mubr.bf16.mxu0 0
        %7439 = vmatmul.mubr.bf16.gmra.mrb[0].mxu0 %v7385
        %v7440 = vpop.f32.mrb[0].mxu0
        %v7441 = vadd.f32 0.0, %v7440
        %v7442 = vpop.f32.mrb[0].mxu0
        %v7443 = vpop.f32.mrb[0].mxu0
        %v7444 = vadd.f32 0.0, %v7443
        %v7445 = vpop.f32.mrb[0].mxu0
        %7446 = vdwg.mxu0
        %v7447 = vadd.f32 %v7350, %v7425
        %v7448 = vadd.f32 %v7351, %v7428
        %v7449 = vadd.f32 %v7352, %v7433
        %v7450 = vadd.f32 %v7353, %v7436
        %v7451 = vadd.f32 %v7354, %v7441
        %v7452 = vadd.f32 %v7355, %v7444
        %s7453 = scalar_lea.vmem [#allocation2], 48
        %v7454 = vld [vmem:[%s7453] sm:$0xff]
        %v7455 = vld [vmem:[%s7453 + $0x8] sm:$0xff]
        %v7456 = vld [vmem:[%s7453 + $0x18] sm:$0xff]
        %v7457 = vld [vmem:[%s7453 + $0x20] sm:$0xff]
        %v7458 = vld [vmem:[%s7453 + $0x30] sm:$0xff]
        %v7459 = vld [vmem:[%s7453 + $0x38] sm:$0xff]
        %v7460 = vpack.c.bf16 %v7455, %v7454
        %v7461 = vpack.c.bf16 %v7457, %v7456
        %v7462 = vpack.c.bf16 %v7459, %v7458
        %s7463 = scalar_lea.vmem %s3, 72
        %v7464 = vld [vmem:[%s7463] sm:$0xf]
        %v7465 = vld [vmem:[%s7463 + $0x4] sm:$0xf]
        %v7466 = vld [vmem:[%s7463 + $0x8] sm:$0x3]
        %v7470 = vunpack.c.l.b16 %v7464
        %v7471 = vunpack.c.l.b16 %v7465
        %v7472 = vunpack.c.l.b16 %v7466
        %v7473 = vpack.c.b16 %v7471, %v7470
        %v7474 = vpack.c.b16 %v7472, %v7472
        %v7477 = vsel %vm2763, %v7460, 0
        %v7480 = vsel %vm2763, %v7461, 0
        %v7483 = vsel %vm2763, %v7462, 0
        %v7486 = vsel %vm2809, %v7474, 0
        %7488 = vmatprep.subr.bf16.mxu0 0
        %7489 = vmatpush1.bf16.msra.mxu0 %v7473
        %7490 = vmatprep.subr.bf16.mxu0 0
        %7491 = vmatpush1.bf16.msra.mxu0 %v7486
        %7492 = vmatprep.subr.bf16.mxu0 0
        %7493 = vmatpush1.bf16.msra.mxu0 0
        %7494 = vmatprep.subr.bf16.mxu0 0
        %7495 = vmatpush1.bf16.msra.mxu0 0
        %7496 = vmatprep.subr.bf16.mxu0 0
        %7497 = vmatpush1.bf16.msra.mxu0 0
        %7498 = vmatprep.subr.bf16.mxu0 0
        %7499 = vmatpush1.bf16.msra.mxu0 0
        %7500 = vmatprep.subr.bf16.mxu0 0
        %7501 = vmatpush1.bf16.msra.mxu0 0
        %7502 = vmatprep.subr.bf16.mxu0 0
        %7503 = vmatpush1.bf16.msra.mxu0 0
        %7504 = vmatprep.subr.bf16.mxu0 0
        %7505 = vmatpush1.bf16.msra.mxu0 0
        %7506 = vmatprep.subr.bf16.mxu0 0
        %7507 = vmatpush1.bf16.msra.mxu0 0
        %7508 = vmatprep.subr.bf16.mxu0 0
        %7509 = vmatpush1.bf16.msra.mxu0 0
        %7510 = vmatprep.subr.bf16.mxu0 0
        %7511 = vmatpush1.bf16.msra.mxu0 0
        %7512 = vmatprep.subr.bf16.mxu0 0
        %7513 = vmatpush1.bf16.msra.mxu0 0
        %7514 = vmatprep.subr.bf16.mxu0 0
        %7515 = vmatpush1.bf16.msra.mxu0 0
        %7516 = vmatprep.subr.bf16.mxu0 0
        %7517 = vmatpush1.bf16.msra.mxu0 0
        %7518 = vmatprep.subr.bf16.mxu0 0
        %7519 = vmatpush1.bf16.msra.mxu0 0
        %7520 = vmatprep.mubr.bf16.mxu0 0
        %7521 = vmatmul.mubr.bf16.gmra.mrb[0].mxu0 %v7477
        %v7522 = vpop.f32.mrb[0].mxu0
        %v7523 = vadd.f32 0.0, %v7522
        %v7524 = vpop.f32.mrb[0].mxu0
        %v7525 = vpop.f32.mrb[0].mxu0
        %v7526 = vadd.f32 0.0, %v7525
        %v7527 = vpop.f32.mrb[0].mxu0
        %7528 = vmatprep.mubr.bf16.mxu0 0
        %7529 = vmatmul.mubr.bf16.gmra.mrb[0].mxu0 %v7480
        %v7530 = vpop.f32.mrb[0].mxu0
        %v7531 = vadd.f32 0.0, %v7530
        %v7532 = vpop.f32.mrb[0].mxu0
        %v7533 = vpop.f32.mrb[0].mxu0
        %v7534 = vadd.f32 0.0, %v7533
        %v7535 = vpop.f32.mrb[0].mxu0
        %7536 = vmatprep.mubr.bf16.mxu0 0
        %7537 = vmatmul.mubr.bf16.gmra.mrb[0].mxu0 %v7483
        %v7538 = vpop.f32.mrb[0].mxu0
        %v7539 = vadd.f32 0.0, %v7538
        %v7540 = vpop.f32.mrb[0].mxu0
        %v7541 = vpop.f32.mrb[0].mxu0
        %v7542 = vadd.f32 0.0, %v7541
        %v7543 = vpop.f32.mrb[0].mxu0
        %7544 = vdwg.mxu0
        %v7545 = vadd.f32 %v7447, %v7523
        %v7546 = vadd.f32 %v7448, %v7526
        %v7547 = vadd.f32 %v7449, %v7531
        %v7548 = vadd.f32 %v7450, %v7534
        %v7549 = vadd.f32 %v7451, %v7539
        %v7550 = vadd.f32 %v7452, %v7542
        %v7551 = vld [vmem:[%s7453 + $0x1] sm:$0xff]
        %v7552 = vld [vmem:[%s7453 + $0x9] sm:$0xff]
        %v7553 = vld [vmem:[%s7453 + $0x19] sm:$0xff]
        %v7554 = vld [vmem:[%s7453 + $0x21] sm:$0xff]
        %v7555 = vld [vmem:[%s7453 + $0x31] sm:$0xff]
        %v7556 = vld [vmem:[%s7453 + $0x39] sm:$0xff]
        %v7557 = vpack.c.bf16 %v7552, %v7551
        %v7558 = vpack.c.bf16 %v7554, %v7553
        %v7559 = vpack.c.bf16 %v7556, %v7555
        %s7560 = scalar_lea.vmem %s3, 84
        %v7561 = vld [vmem:[%s7560] sm:$0xf]
        %v7562 = vld [vmem:[%s7560 + $0x4] sm:$0xf]
        %v7563 = vld [vmem:[%s7560 + $0x8] sm:$0x3]
        %v7567 = vunpack.c.l.b16 %v7561
        %v7568 = vunpack.c.l.b16 %v7562
        %v7569 = vunpack.c.l.b16 %v7563
        %v7570 = vpack.c.b16 %v7568, %v7567
        %v7571 = vpack.c.b16 %v7569, %v7569
        %v7574 = vsel %vm2763, %v7557, 0
        %v7577 = vsel %vm2763, %v7558, 0
        %v7580 = vsel %vm2763, %v7559, 0
        %v7583 = vsel %vm2809, %v7571, 0
        %7585 = vmatprep.subr.bf16.mxu0 0
        %7586 = vmatpush1.bf16.msra.mxu0 %v7570
        %7587 = vmatprep.subr.bf16.mxu0 0
        %7588 = vmatpush1.bf16.msra.mxu0 %v7583
        %7589 = vmatprep.subr.bf16.mxu0 0
        %7590 = vmatpush1.bf16.msra.mxu0 0
        %7591 = vmatprep.subr.bf16.mxu0 0
        %7592 = vmatpush1.bf16.msra.mxu0 0
        %7593 = vmatprep.subr.bf16.mxu0 0
        %7594 = vmatpush1.bf16.msra.mxu0 0
        %7595 = vmatprep.subr.bf16.mxu0 0
        %7596 = vmatpush1.bf16.msra.mxu0 0
        %7597 = vmatprep.subr.bf16.mxu0 0
        %7598 = vmatpush1.bf16.msra.mxu0 0
        %7599 = vmatprep.subr.bf16.mxu0 0
        %7600 = vmatpush1.bf16.msra.mxu0 0
        %7601 = vmatprep.subr.bf16.mxu0 0
        %7602 = vmatpush1.bf16.msra.mxu0 0
        %7603 = vmatprep.subr.bf16.mxu0 0
        %7604 = vmatpush1.bf16.msra.mxu0 0
        %7605 = vmatprep.subr.bf16.mxu0 0
        %7606 = vmatpush1.bf16.msra.mxu0 0
        %7607 = vmatprep.subr.bf16.mxu0 0
        %7608 = vmatpush1.bf16.msra.mxu0 0
        %7609 = vmatprep.subr.bf16.mxu0 0
        %7610 = vmatpush1.bf16.msra.mxu0 0
        %7611 = vmatprep.subr.bf16.mxu0 0
        %7612 = vmatpush1.bf16.msra.mxu0 0
        %7613 = vmatprep.subr.bf16.mxu0 0
        %7614 = vmatpush1.bf16.msra.mxu0 0
        %7615 = vmatprep.subr.bf16.mxu0 0
        %7616 = vmatpush1.bf16.msra.mxu0 0
        %7617 = vmatprep.mubr.bf16.mxu0 0
        %7618 = vmatmul.mubr.bf16.gmra.mrb[0].mxu0 %v7574
        %v7619 = vpop.f32.mrb[0].mxu0
        %v7620 = vadd.f32 0.0, %v7619
        %v7621 = vpop.f32.mrb[0].mxu0
        %v7622 = vpop.f32.mrb[0].mxu0
        %v7623 = vadd.f32 0.0, %v7622
        %v7624 = vpop.f32.mrb[0].mxu0
        %7625 = vmatprep.mubr.bf16.mxu0 0
        %7626 = vmatmul.mubr.bf16.gmra.mrb[0].mxu0 %v7577
        %v7627 = vpop.f32.mrb[0].mxu0
        %v7628 = vadd.f32 0.0, %v7627
        %v7629 = vpop.f32.mrb[0].mxu0
        %v7630 = vpop.f32.mrb[0].mxu0
        %v7631 = vadd.f32 0.0, %v7630
        %v7632 = vpop.f32.mrb[0].mxu0
        %7633 = vmatprep.mubr.bf16.mxu0 0
        %7634 = vmatmul.mubr.bf16.gmra.mrb[0].mxu0 %v7580
        %v7635 = vpop.f32.mrb[0].mxu0
        %v7636 = vadd.f32 0.0, %v7635
        %v7637 = vpop.f32.mrb[0].mxu0
        %v7638 = vpop.f32.mrb[0].mxu0
        %v7639 = vadd.f32 0.0, %v7638
        %v7640 = vpop.f32.mrb[0].mxu0
        %7641 = vdwg.mxu0
        %v7642 = vadd.f32 %v7545, %v7620
        %v7643 = vadd.f32 %v7546, %v7623
        %v7644 = vadd.f32 %v7547, %v7628
        %v7645 = vadd.f32 %v7548, %v7631
        %v7646 = vadd.f32 %v7549, %v7636
        %v7647 = vadd.f32 %v7550, %v7639
        %v7648 = vld [vmem:[%s7453 + $0x2] sm:$0xff]
        %v7649 = vld [vmem:[%s7453 + $0xa] sm:$0xff]
        %v7650 = vld [vmem:[%s7453 + $0x1a] sm:$0xff]
        %v7651 = vld [vmem:[%s7453 + $0x22] sm:$0xff]
        %v7652 = vld [vmem:[%s7453 + $0x32] sm:$0xff]
        %v7653 = vld [vmem:[%s7453 + $0x3a] sm:$0xff]
        %v7654 = vpack.c.bf16 %v7649, %v7648
        %v7655 = vpack.c.bf16 %v7651, %v7650
        %v7656 = vpack.c.bf16 %v7653, %v7652
        %s7657 = scalar_lea.vmem %s3, 96
        %v7658 = vld [vmem:[%s7657] sm:$0xf]
        %v7659 = vld [vmem:[%s7657 + $0x4] sm:$0xf]
        %v7660 = vld [vmem:[%s7657 + $0x8] sm:$0x3]
        %v7664 = vunpack.c.l.b16 %v7658
        %v7665 = vunpack.c.l.b16 %v7659
        %v7666 = vunpack.c.l.b16 %v7660
        %v7667 = vpack.c.b16 %v7665, %v7664
        %v7668 = vpack.c.b16 %v7666, %v7666
        %v7671 = vsel %vm2763, %v7654, 0
        %v7674 = vsel %vm2763, %v7655, 0
        %v7677 = vsel %vm2763, %v7656, 0
        %v7680 = vsel %vm2809, %v7668, 0
        %7682 = vmatprep.subr.bf16.mxu0 0
        %7683 = vmatpush1.bf16.msra.mxu0 %v7667
        %7684 = vmatprep.subr.bf16.mxu0 0
        %7685 = vmatpush1.bf16.msra.mxu0 %v7680
        %7686 = vmatprep.subr.bf16.mxu0 0
        %7687 = vmatpush1.bf16.msra.mxu0 0
        %7688 = vmatprep.subr.bf16.mxu0 0
        %7689 = vmatpush1.bf16.msra.mxu0 0
        %7690 = vmatprep.subr.bf16.mxu0 0
        %7691 = vmatpush1.bf16.msra.mxu0 0
        %7692 = vmatprep.subr.bf16.mxu0 0
        %7693 = vmatpush1.bf16.msra.mxu0 0
        %7694 = vmatprep.subr.bf16.mxu0 0
        %7695 = vmatpush1.bf16.msra.mxu0 0
        %7696 = vmatprep.subr.bf16.mxu0 0
        %7697 = vmatpush1.bf16.msra.mxu0 0
        %7698 = vmatprep.subr.bf16.mxu0 0
        %7699 = vmatpush1.bf16.msra.mxu0 0
        %7700 = vmatprep.subr.bf16.mxu0 0
        %7701 = vmatpush1.bf16.msra.mxu0 0
        %7702 = vmatprep.subr.bf16.mxu0 0
        %7703 = vmatpush1.bf16.msra.mxu0 0
        %7704 = vmatprep.subr.bf16.mxu0 0
        %7705 = vmatpush1.bf16.msra.mxu0 0
        %7706 = vmatprep.subr.bf16.mxu0 0
        %7707 = vmatpush1.bf16.msra.mxu0 0
        %7708 = vmatprep.subr.bf16.mxu0 0
        %7709 = vmatpush1.bf16.msra.mxu0 0
        %7710 = vmatprep.subr.bf16.mxu0 0
        %7711 = vmatpush1.bf16.msra.mxu0 0
        %7712 = vmatprep.subr.bf16.mxu0 0
        %7713 = vmatpush1.bf16.msra.mxu0 0
        %7714 = vmatprep.mubr.bf16.mxu0 0
        %7715 = vmatmul.mubr.bf16.gmra.mrb[0].mxu0 %v7671
        %v7716 = vpop.f32.mrb[0].mxu0
        %v7717 = vadd.f32 0.0, %v7716
        %v7718 = vpop.f32.mrb[0].mxu0
        %v7719 = vpop.f32.mrb[0].mxu0
        %v7720 = vadd.f32 0.0, %v7719
        %v7721 = vpop.f32.mrb[0].mxu0
        %7722 = vmatprep.mubr.bf16.mxu0 0
        %7723 = vmatmul.mubr.bf16.gmra.mrb[0].mxu0 %v7674
        %v7724 = vpop.f32.mrb[0].mxu0
        %v7725 = vadd.f32 0.0, %v7724
        %v7726 = vpop.f32.mrb[0].mxu0
        %v7727 = vpop.f32.mrb[0].mxu0
        %v7728 = vadd.f32 0.0, %v7727
        %v7729 = vpop.f32.mrb[0].mxu0
        %7730 = vmatprep.mubr.bf16.mxu0 0
        %7731 = vmatmul.mubr.bf16.gmra.mrb[0].mxu0 %v7677
        %v7732 = vpop.f32.mrb[0].mxu0
        %v7733 = vadd.f32 0.0, %v7732
        %v7734 = vpop.f32.mrb[0].mxu0
        %v7735 = vpop.f32.mrb[0].mxu0
        %v7736 = vadd.f32 0.0, %v7735
        %v7737 = vpop.f32.mrb[0].mxu0
        %7738 = vdwg.mxu0
        %v7739 = vadd.f32 %v7642, %v7717
        %v7740 = vadd.f32 %v7643, %v7720
        %v7741 = vadd.f32 %v7644, %v7725
        %v7742 = vadd.f32 %v7645, %v7728
        %v7743 = vadd.f32 %v7646, %v7733
        %v7744 = vadd.f32 %v7647, %v7736
        %v7745 = vld [vmem:[%s6] sm:$0x1]
        %v7746 = vmax.f32 %v7739, %v7741
        %v7747 = vmax.f32 %v7740, %v7742
        %v7748 = vmax.f32 %v7746, %v7743
        %v7749 = vmax.f32 %v7747, %v7744
        %v7751 = vlaneseq
        %v7752 = vshrl.u32 %v7751, 7
        %v7753 = vsub.s32 0, %v7752
        %v7754 = vrot.slane %v7745, %v7753
        %v7756 = vadd.f32 %v7748, %v7754
        %v7757 = vadd.f32 %v7749, %v7754
        %vm7758 = vcmp.gt.f32.partialorder %v7756, 0.0
        %vm7759 = vcmp.gt.f32.partialorder %v7757, 0.0
        %v7760 = vmul.f32 %v7756, 1.442695
        %v7761 = vpow.pop %v7760
        %v7762 = vmul.f32 %v7757, 1.442695
        %v7763 = vpow.pop %v7762
        %v7764 = vsub.f32 %v7761, 1.0
        %v7765 = vsub.f32 %v7763, 1.0
        %v7766 = vsel %vm7758, %v7756, %v7764
        %v7767 = vsel %vm7759, %v7757, %v7765
        %7768 = vst.msk [vmem:[%s271] sm:$0xff] %vm2763, %v7766
        %7769 = vst.msk [vmem:[%s271 + $0x8] sm:$0xff] %vm2763, %v7767
        %s7770 = sand.u32 %s181, 1
        %s7771 = scalar_lea.sflag [#allocation4], %s7770
        %s7772 = sand.u32 %s181, 1
        %s7773 = smul.addr %s7772, 16
        %s7774 = scalar_lea.vmem [#allocation3], %s7773
        // Predicated region
        $region49: #{conv_frontend.1} parent=47 // pred_check
          %p7775 = pneg %p191
        $region50: #{conv_frontend.1} parent=47 // pred_check_branch
          %7777 = sbr.rel (%p7775) target = $region52
        $region51: #{conv_frontend.1} parent=47 // pred_region
          %s7779 = ssub.s32 256, 256
          %7780 = vsyncadd %s7771, %s7779
          %s7781 = smul.addr %s21, 2
          %s7782 = smul.addr %s7781, 128
          %s7783 = scalar_lea.hbm %s7, %s7782
          %s7784 = sshll.u32 %s7774, 4
          %s7785 = int_to_ptr.vmem [resolvable:$true] %s7784
          %7790 = dma.vmem_to_hbm [thread:$0]  %s7785, 256, %s7783, %s7771, 128, 128, 8
        $region52: #{conv_frontend.1} parent=47 // pred_fallthru
          _
      $region48: #{conv_frontend.1} parent=5 // pred_fallthru
        _
      %p7791 = scmp.le.s32.totalorder 2, %s16
      // Predicated region
      $region53: #{conv_frontend.1} parent=5 // pred_check
        %p7792 = pneg %p7791
      $region54: #{conv_frontend.1} parent=5 // pred_check_branch
        %7794 = sbr.rel (%p7792) target = $region56
      $region55: #{conv_frontend.1} parent=5 // pred_region
        %s7795 = ssub.s32 %s16, 2
        // Predicated region
        $region57: #{conv_frontend.1} parent=55 // pred_check
          %p7796 = pneg %p197
        $region58: #{conv_frontend.1} parent=55 // pred_check_branch
          %7798 = sbr.rel (%p7796) target = $region60
        $region59: #{conv_frontend.1} parent=55 // pred_region
          %s7799 = sand.u32 %s182, 1
          %s7800 = scalar_lea.sflag [#allocation4], %s7799
          %s7801 = sand.u32 %s182, 1
          %s7802 = smul.addr %s7801, 16
          %s7803 = scalar_lea.vmem [#allocation3], %s7802
          %7804 = dma.done %s7800, 256
        $region60: #{conv_frontend.1} parent=55 // pred_fallthru
          _
      $region56: #{conv_frontend.1} parent=5 // pred_fallthru
        _
    $region6: #{conv_frontend.1} parent=1 // loop_footer
      %s20 = sadd.s32 1, %s16
    $region7: #{conv_frontend.1} parent=1 // loop_footer_branch
      %15 = sbr.rel target = $region3
    $region8: #{conv_frontend.1} parent=1 // loop_exit
      _
    %7805 = vsyncpa [#allocation4], 1
    %s7806 = scalar_lea.sflag [#allocation4], 1
    %7807 = vsyncpa %s7806, 1

</llo_original>
